<compile_context>
chip_gen: v5e
topology: v5e:2x2
jax: 0.10.0
libtpu: 0.0.40
codegen_flags: <defaults>
</compile_context>

<pallas_src>
import jax
import jax.numpy as jnp
from jax.experimental import pallas as pl
from jax.experimental.pallas import tpu as pltpu


# ----------------------------- kernel helpers -------------------------------


def _affine_relu(acc, sb_ref):
    """acc: (M, C) f32 accumulator; sb_ref: (2, C) -> row0 scale, row1 bias."""
    return jnp.maximum(acc * sb_ref[0:1, :] + sb_ref[1:2, :], 0.0)


def _decimate2(v, i, j, oh, ow):
    """Return v[i:i+2*oh:2, j:j+2*ow:2, :] using only contiguous slices and
    reshapes (no strided ref gathers, which neither interpret nor lower)."""
    h, w, c = v.shape
    r = v[i:i + 2 * oh]                      # (2*oh, W, C) contiguous rows
    r = r.reshape(oh, 2, w, c)[:, 0]         # even rows of the window
    s = r[:, j:j + 2 * ow]                   # (oh, 2*ow, C)
    s = s.reshape(oh, ow, 2, c)[:, :, 0]     # even cols of the window
    return s


# ------------------------------ fused kernel --------------------------------


def _reduction_block_a_kernel(x_ref, wb3_ref, sbb3_ref, w1_ref, sb1_ref,
                              w2_ref, sb2_ref, w3_ref, sb3_ref,
                              o_ref, y1p_ref):
    """One batch item of ReductionBlock_A, all branches fused.

    x_ref  : (1, H, W, Cin)
    w*_ref : im2col-flattened conv weights (kh*kw*cin, cout)
    sb*_ref: (2, cout) folded BN (scale, bias)
    o_ref  : (1, Ho, Wo, Cpad)  lane-dense output slab, channel order
             [branch_pool | branch_3x3 | branch_3x3db | zero pad]
    y1p_ref: VMEM scratch (H+2, W+2, F1) for the zero-padded 'same' conv input
    """
    _, hgt, wid, cin = x_ref.shape
    _, ho, wo, cpad = o_ref.shape
    f1 = w1_ref.shape[1]
    f2 = w2_ref.shape[1]
    f0 = wb3_ref.shape[1]
    f3 = w3_ref.shape[1]
    ctot = cin + f0 + f3
    cdt = x_ref.dtype                         # native MXU operand dtype

    xv = x_ref[0]                             # (H, W, Cin)

    # ---- stride-2 3x3 windows of x: shared by max-pool and branch_3x3 ------
    taps = [_decimate2(xv, i, j, ho, wo) for i in range(3) for j in range(3)]

    # branch_pool : 3x3 / stride-2 max pool (valid)
    bp = taps[0]
    for t in taps[1:]:
        bp = jnp.maximum(bp, t)               # (Ho, Wo, Cin)

    # branch_3x3 : 3x3 / stride-2 conv (valid) as a single im2col matmul
    p = jnp.concatenate(taps, axis=-1).reshape(ho * wo, 9 * cin)
    b3 = _affine_relu(
        jnp.dot(p.astype(cdt), wb3_ref[...], preferred_element_type=jnp.float32),
        sbb3_ref)                             # (Ho*Wo, F0) f32

    # branch_3x3db, stage 1 : 1x1 conv == matmul over flattened spatial
    xf = xv.reshape(hgt * wid, cin)
    y1 = _affine_relu(
        jnp.dot(xf.astype(cdt), w1_ref[...], preferred_element_type=jnp.float32),
        sb1_ref)                              # (H*W, F1) f32

    # stage 2 : 3x3 'same' conv — padded activation stays in VMEM scratch
    y1p_ref[...] = jnp.zeros_like(y1p_ref)
    y1p_ref[pl.ds(1, hgt), pl.ds(1, wid), :] = (
        y1.reshape(hgt, wid, f1).astype(y1p_ref.dtype))
    cols = [y1p_ref[pl.ds(i, hgt), pl.ds(j, wid), :]
            for i in range(3) for j in range(3)]
    p2 = jnp.concatenate(cols, axis=-1).reshape(hgt * wid, 9 * f1)
    y2 = _affine_relu(
        jnp.dot(p2.astype(cdt), w2_ref[...], preferred_element_type=jnp.float32),
        sb2_ref).astype(cdt).reshape(hgt, wid, f2)        # (H, W, F2)

    # stage 3 : 3x3 / stride-2 conv (valid)
    taps3 = [_decimate2(y2, i, j, ho, wo) for i in range(3) for j in range(3)]
    p3 = jnp.concatenate(taps3, axis=-1).reshape(ho * wo, 9 * f2)
    db = _affine_relu(
        jnp.dot(p3, w3_ref[...], preferred_element_type=jnp.float32),
        sb3_ref)                              # (Ho*Wo, F3) f32

    # ---- channel concat, written once as a lane-dense slab -----------------
    parts = [bp.reshape(ho * wo, cin).astype(jnp.float32), b3, db]
    if cpad > ctot:
        parts.append(jnp.zeros((ho * wo, cpad - ctot), jnp.float32))
    out = jnp.concatenate(parts, axis=-1)     # (Ho*Wo, Cpad)
    o_ref[0] = out.reshape(ho, wo, cpad).astype(o_ref.dtype)


# --------------------------------- wrapper -----------------------------------


def reduction_block_a(x_nchw, params):
    """Matches ReductionBlock_A.forward; input/output are NCHW like PyTorch."""
    n, cin, h, w = x_nchw.shape
    assert h % 2 == 0 and w % 2 == 0, "even spatial dims expected"
    x = jnp.transpose(x_nchw, (0, 2, 3, 1))   # NCHW -> NHWC
    dtype = x.dtype

    wb3, sbb3 = params["b3"]
    w1, sb1 = params["db1"]
    w2, sb2 = params["db2"]
    w3, sb3 = params["db3"]
    # Feed the MXU operands in the activation dtype (no forced f32 upcast).
    wb3, w1, w2, w3 = (a.astype(dtype) for a in (wb3, w1, w2, w3))

    f0, f1, f3 = wb3.shape[1], w1.shape[1], w3.shape[1]
    ho = (h - 3) // 2 + 1
    wo = (w - 3) // 2 + 1
    ctot = cin + f0 + f3
    cpad = ((ctot + 127) // 128) * 128        # lane-dense output slab

    def full(a):
        return pl.BlockSpec(a.shape, lambda b: (0,) * a.ndim)

    # TODO(synk): for production-scale inputs, add an Ho (and Cout) grid axis
    # with halo handling so the pipeline has >2 steps and VMEM stays within
    # v7x's 64 MiB budget; at this toy size one batch item per core is enough.
    out_padded = pl.pallas_call(
        _reduction_block_a_kernel,
        out_shape=jax.ShapeDtypeStruct((n, ho, wo, cpad), dtype),
        grid=(n,),
        in_specs=[
            pl.BlockSpec((1, h, w, cin), lambda b: (b, 0, 0, 0)),
            full(wb3), full(sbb3), full(w1), full(sb1),
            full(w2), full(sb2), full(w3), full(sb3),
        ],
        out_specs=pl.BlockSpec((1, ho, wo, cpad), lambda b: (b, 0, 0, 0)),
        scratch_shapes=[pltpu.VMEM((h + 2, w + 2, f1), dtype)],
        compiler_params=pltpu.CompilerParams(dimension_semantics=("parallel",)),
    )(x, wb3, sbb3, w1, sb1, w2, sb2, w3, sb3)

    out = out_padded[..., :ctot]              # drop lane padding
    return jnp.transpose(out, (0, 3, 1, 2))   # NHWC -> NCHW


# ----------------------------- parameter creation ----------------------------


def init_conv_bn(key, cin, cout, kh, kw):
    """Deterministic conv+BN params with BN folded into (scale, bias).

    Returns (w_im2col, sb):
      w_im2col : (kh*kw*cin, cout), rows ordered (kh, kw, cin) to match the
                 kernel's im2col tap order.
      sb       : (2, cout) -> row 0 scale, row 1 bias.
    """
    k1, k2, k3, k4, k5, k6 = jax.random.split(key, 6)
    fan_in = cin * kh * kw
    bound = 1.0 / jnp.sqrt(jnp.float32(fan_in))
    w = jax.random.uniform(k1, (kh, kw, cin, cout), jnp.float32, -bound, bound)
    b = jax.random.uniform(k2, (cout,), jnp.float32, -bound, bound)
    gamma = 1.0 + 0.1 * jax.random.normal(k3, (cout,), jnp.float32)
    beta = 0.1 * jax.random.normal(k4, (cout,), jnp.float32)
    mean = 0.1 * jax.random.normal(k5, (cout,), jnp.float32)
    var = jnp.abs(jax.random.normal(k6, (cout,), jnp.float32)) + 0.5
    eps = 1e-5
    scale = gamma / jnp.sqrt(var + eps)
    bias = (b - mean) * scale + beta
    return w.reshape(kh * kw * cin, cout), jnp.stack([scale, bias])


def make_reduction_block_a_params(key, inchannels, num_filters):
    keys = jax.random.split(key, 4)
    return {
        "b3": init_conv_bn(keys[0], inchannels, num_filters[0], 3, 3),
        "db1": init_conv_bn(keys[1], inchannels, num_filters[1], 1, 1),
        "db2": init_conv_bn(keys[2], num_filters[1], num_filters[2], 3, 3),
        "db3": init_conv_bn(keys[3], num_filters[2], num_filters[3], 3, 3),
    }


# ------------------------------------ main -----------------------------------


if __name__ == "__main__":
    key = jax.random.PRNGKey(0)
    k_x, k_p = jax.random.split(key)

    N, C, H, W = 2, 4, 16, 16
    num_filters = [8, 8, 8, 8]

    x = jax.random.normal(k_x, (N, C, H, W), jnp.float32)
    params = make_reduction_block_a_params(k_p, C, num_filters)

    out = jax.jit(reduction_block_a)(x, params)
    out = jax.block_until_ready(out)

    expected = (N, C + num_filters[0] + num_filters[3],
                (H - 3) // 2 + 1, (W - 3) // 2 + 1)
    assert out.shape == expected, (out.shape, expected)
    assert bool(jnp.all(jnp.isfinite(out)))
    print("KERNEL_OK")
</pallas_src>

<mosaic_0001>
module attributes {stable_mosaic.version = 11 : i64} {
  func.func @_reduction_block_a_kernel(%arg0: i32, %arg1: memref<1x16x16x4xf32, #tpu.memory_space<vmem>>, %arg2: memref<36x8xf32, #tpu.memory_space<vmem>>, %arg3: memref<2x8xf32, #tpu.memory_space<vmem>>, %arg4: memref<4x8xf32, #tpu.memory_space<vmem>>, %arg5: memref<2x8xf32, #tpu.memory_space<vmem>>, %arg6: memref<72x8xf32, #tpu.memory_space<vmem>>, %arg7: memref<2x8xf32, #tpu.memory_space<vmem>>, %arg8: memref<72x8xf32, #tpu.memory_space<vmem>>, %arg9: memref<2x8xf32, #tpu.memory_space<vmem>>, %arg10: memref<1x7x7x128xf32, #tpu.memory_space<vmem>>, %arg11: memref<18x18x8xf32, #tpu.memory_space<vmem>>) attributes {dimension_semantics = [#tpu.dimension_semantics<parallel>], iteration_bounds = array<i64: 2>, scalar_prefetch = 0 : i64, scratch_operands = 1 : i64, tpu.core_type = #tpu.core_type<tc>, window_params = [{transform_indices = @transform_0, window_bounds = array<i64: 1, 16, 16, 4>}, {pipeline_mode = #tpu.pipeline_mode<synchronous>, transform_indices = @transform_1, window_bounds = array<i64: 36, 8>}, {pipeline_mode = #tpu.pipeline_mode<synchronous>, transform_indices = @transform_2, window_bounds = array<i64: 2, 8>}, {pipeline_mode = #tpu.pipeline_mode<synchronous>, transform_indices = @transform_3, window_bounds = array<i64: 4, 8>}, {pipeline_mode = #tpu.pipeline_mode<synchronous>, transform_indices = @transform_4, window_bounds = array<i64: 2, 8>}, {pipeline_mode = #tpu.pipeline_mode<synchronous>, transform_indices = @transform_5, window_bounds = array<i64: 72, 8>}, {pipeline_mode = #tpu.pipeline_mode<synchronous>, transform_indices = @transform_6, window_bounds = array<i64: 2, 8>}, {pipeline_mode = #tpu.pipeline_mode<synchronous>, transform_indices = @transform_7, window_bounds = array<i64: 72, 8>}, {pipeline_mode = #tpu.pipeline_mode<synchronous>, transform_indices = @transform_8, window_bounds = array<i64: 2, 8>}, {transform_indices = @transform_9, window_bounds = array<i64: 1, 7, 7, 128>}]} {
    %c0 = arith.constant 0 : index
    %c0_0 = arith.constant 0 : index
    %c0_1 = arith.constant 0 : index
    %c0_2 = arith.constant 0 : index
    %0 = vector.load %arg1[%c0, %c0_0, %c0_1, %c0_2] : memref<1x16x16x4xf32, #tpu.memory_space<vmem>>, vector<1x16x16x4xf32>
    %1 = vector.shape_cast %0 : vector<1x16x16x4xf32> to vector<16x16x4xf32>
    %2 = vector.extract_strided_slice %1 {offsets = [0, 0, 0], sizes = [14, 16, 4], strides = [1, 1, 1]} : vector<16x16x4xf32> to vector<14x16x4xf32>
    %3 = vector.shape_cast %2 : vector<14x16x4xf32> to vector<7x2x16x4xf32>
    %4 = vector.extract_strided_slice %3 {offsets = [0, 0, 0, 0], sizes = [7, 1, 16, 4], strides = [1, 1, 1, 1]} : vector<7x2x16x4xf32> to vector<7x1x16x4xf32>
    %5 = vector.shape_cast %4 : vector<7x1x16x4xf32> to vector<7x16x4xf32>
    %6 = vector.extract_strided_slice %5 {offsets = [0, 0, 0], sizes = [7, 14, 4], strides = [1, 1, 1]} : vector<7x16x4xf32> to vector<7x14x4xf32>
    %7 = vector.shape_cast %6 : vector<7x14x4xf32> to vector<7x7x2x4xf32>
    %8 = vector.extract_strided_slice %7 {offsets = [0, 0, 0, 0], sizes = [7, 7, 1, 4], strides = [1, 1, 1, 1]} : vector<7x7x2x4xf32> to vector<7x7x1x4xf32>
    %9 = vector.shape_cast %8 : vector<7x7x1x4xf32> to vector<7x7x4xf32>
    %10 = vector.extract_strided_slice %1 {offsets = [0, 0, 0], sizes = [14, 16, 4], strides = [1, 1, 1]} : vector<16x16x4xf32> to vector<14x16x4xf32>
    %11 = vector.shape_cast %10 : vector<14x16x4xf32> to vector<7x2x16x4xf32>
    %12 = vector.extract_strided_slice %11 {offsets = [0, 0, 0, 0], sizes = [7, 1, 16, 4], strides = [1, 1, 1, 1]} : vector<7x2x16x4xf32> to vector<7x1x16x4xf32>
    %13 = vector.shape_cast %12 : vector<7x1x16x4xf32> to vector<7x16x4xf32>
    %14 = vector.extract_strided_slice %13 {offsets = [0, 1, 0], sizes = [7, 14, 4], strides = [1, 1, 1]} : vector<7x16x4xf32> to vector<7x14x4xf32>
    %15 = vector.shape_cast %14 : vector<7x14x4xf32> to vector<7x7x2x4xf32>
    %16 = vector.extract_strided_slice %15 {offsets = [0, 0, 0, 0], sizes = [7, 7, 1, 4], strides = [1, 1, 1, 1]} : vector<7x7x2x4xf32> to vector<7x7x1x4xf32>
    %17 = vector.shape_cast %16 : vector<7x7x1x4xf32> to vector<7x7x4xf32>
    %18 = vector.extract_strided_slice %1 {offsets = [0, 0, 0], sizes = [14, 16, 4], strides = [1, 1, 1]} : vector<16x16x4xf32> to vector<14x16x4xf32>
    %19 = vector.shape_cast %18 : vector<14x16x4xf32> to vector<7x2x16x4xf32>
    %20 = vector.extract_strided_slice %19 {offsets = [0, 0, 0, 0], sizes = [7, 1, 16, 4], strides = [1, 1, 1, 1]} : vector<7x2x16x4xf32> to vector<7x1x16x4xf32>
    %21 = vector.shape_cast %20 : vector<7x1x16x4xf32> to vector<7x16x4xf32>
    %22 = vector.extract_strided_slice %21 {offsets = [0, 2, 0], sizes = [7, 14, 4], strides = [1, 1, 1]} : vector<7x16x4xf32> to vector<7x14x4xf32>
    %23 = vector.shape_cast %22 : vector<7x14x4xf32> to vector<7x7x2x4xf32>
    %24 = vector.extract_strided_slice %23 {offsets = [0, 0, 0, 0], sizes = [7, 7, 1, 4], strides = [1, 1, 1, 1]} : vector<7x7x2x4xf32> to vector<7x7x1x4xf32>
    %25 = vector.shape_cast %24 : vector<7x7x1x4xf32> to vector<7x7x4xf32>
    %26 = vector.extract_strided_slice %1 {offsets = [1, 0, 0], sizes = [14, 16, 4], strides = [1, 1, 1]} : vector<16x16x4xf32> to vector<14x16x4xf32>
    %27 = vector.shape_cast %26 : vector<14x16x4xf32> to vector<7x2x16x4xf32>
    %28 = vector.extract_strided_slice %27 {offsets = [0, 0, 0, 0], sizes = [7, 1, 16, 4], strides = [1, 1, 1, 1]} : vector<7x2x16x4xf32> to vector<7x1x16x4xf32>
    %29 = vector.shape_cast %28 : vector<7x1x16x4xf32> to vector<7x16x4xf32>
    %30 = vector.extract_strided_slice %29 {offsets = [0, 0, 0], sizes = [7, 14, 4], strides = [1, 1, 1]} : vector<7x16x4xf32> to vector<7x14x4xf32>
    %31 = vector.shape_cast %30 : vector<7x14x4xf32> to vector<7x7x2x4xf32>
    %32 = vector.extract_strided_slice %31 {offsets = [0, 0, 0, 0], sizes = [7, 7, 1, 4], strides = [1, 1, 1, 1]} : vector<7x7x2x4xf32> to vector<7x7x1x4xf32>
    %33 = vector.shape_cast %32 : vector<7x7x1x4xf32> to vector<7x7x4xf32>
    %34 = vector.extract_strided_slice %1 {offsets = [1, 0, 0], sizes = [14, 16, 4], strides = [1, 1, 1]} : vector<16x16x4xf32> to vector<14x16x4xf32>
    %35 = vector.shape_cast %34 : vector<14x16x4xf32> to vector<7x2x16x4xf32>
    %36 = vector.extract_strided_slice %35 {offsets = [0, 0, 0, 0], sizes = [7, 1, 16, 4], strides = [1, 1, 1, 1]} : vector<7x2x16x4xf32> to vector<7x1x16x4xf32>
    %37 = vector.shape_cast %36 : vector<7x1x16x4xf32> to vector<7x16x4xf32>
    %38 = vector.extract_strided_slice %37 {offsets = [0, 1, 0], sizes = [7, 14, 4], strides = [1, 1, 1]} : vector<7x16x4xf32> to vector<7x14x4xf32>
    %39 = vector.shape_cast %38 : vector<7x14x4xf32> to vector<7x7x2x4xf32>
    %40 = vector.extract_strided_slice %39 {offsets = [0, 0, 0, 0], sizes = [7, 7, 1, 4], strides = [1, 1, 1, 1]} : vector<7x7x2x4xf32> to vector<7x7x1x4xf32>
    %41 = vector.shape_cast %40 : vector<7x7x1x4xf32> to vector<7x7x4xf32>
    %42 = vector.extract_strided_slice %1 {offsets = [1, 0, 0], sizes = [14, 16, 4], strides = [1, 1, 1]} : vector<16x16x4xf32> to vector<14x16x4xf32>
    %43 = vector.shape_cast %42 : vector<14x16x4xf32> to vector<7x2x16x4xf32>
    %44 = vector.extract_strided_slice %43 {offsets = [0, 0, 0, 0], sizes = [7, 1, 16, 4], strides = [1, 1, 1, 1]} : vector<7x2x16x4xf32> to vector<7x1x16x4xf32>
    %45 = vector.shape_cast %44 : vector<7x1x16x4xf32> to vector<7x16x4xf32>
    %46 = vector.extract_strided_slice %45 {offsets = [0, 2, 0], sizes = [7, 14, 4], strides = [1, 1, 1]} : vector<7x16x4xf32> to vector<7x14x4xf32>
    %47 = vector.shape_cast %46 : vector<7x14x4xf32> to vector<7x7x2x4xf32>
    %48 = vector.extract_strided_slice %47 {offsets = [0, 0, 0, 0], sizes = [7, 7, 1, 4], strides = [1, 1, 1, 1]} : vector<7x7x2x4xf32> to vector<7x7x1x4xf32>
    %49 = vector.shape_cast %48 : vector<7x7x1x4xf32> to vector<7x7x4xf32>
    %50 = vector.extract_strided_slice %1 {offsets = [2, 0, 0], sizes = [14, 16, 4], strides = [1, 1, 1]} : vector<16x16x4xf32> to vector<14x16x4xf32>
    %51 = vector.shape_cast %50 : vector<14x16x4xf32> to vector<7x2x16x4xf32>
    %52 = vector.extract_strided_slice %51 {offsets = [0, 0, 0, 0], sizes = [7, 1, 16, 4], strides = [1, 1, 1, 1]} : vector<7x2x16x4xf32> to vector<7x1x16x4xf32>
    %53 = vector.shape_cast %52 : vector<7x1x16x4xf32> to vector<7x16x4xf32>
    %54 = vector.extract_strided_slice %53 {offsets = [0, 0, 0], sizes = [7, 14, 4], strides = [1, 1, 1]} : vector<7x16x4xf32> to vector<7x14x4xf32>
    %55 = vector.shape_cast %54 : vector<7x14x4xf32> to vector<7x7x2x4xf32>
    %56 = vector.extract_strided_slice %55 {offsets = [0, 0, 0, 0], sizes = [7, 7, 1, 4], strides = [1, 1, 1, 1]} : vector<7x7x2x4xf32> to vector<7x7x1x4xf32>
    %57 = vector.shape_cast %56 : vector<7x7x1x4xf32> to vector<7x7x4xf32>
    %58 = vector.extract_strided_slice %1 {offsets = [2, 0, 0], sizes = [14, 16, 4], strides = [1, 1, 1]} : vector<16x16x4xf32> to vector<14x16x4xf32>
    %59 = vector.shape_cast %58 : vector<14x16x4xf32> to vector<7x2x16x4xf32>
    %60 = vector.extract_strided_slice %59 {offsets = [0, 0, 0, 0], sizes = [7, 1, 16, 4], strides = [1, 1, 1, 1]} : vector<7x2x16x4xf32> to vector<7x1x16x4xf32>
    %61 = vector.shape_cast %60 : vector<7x1x16x4xf32> to vector<7x16x4xf32>
    %62 = vector.extract_strided_slice %61 {offsets = [0, 1, 0], sizes = [7, 14, 4], strides = [1, 1, 1]} : vector<7x16x4xf32> to vector<7x14x4xf32>
    %63 = vector.shape_cast %62 : vector<7x14x4xf32> to vector<7x7x2x4xf32>
    %64 = vector.extract_strided_slice %63 {offsets = [0, 0, 0, 0], sizes = [7, 7, 1, 4], strides = [1, 1, 1, 1]} : vector<7x7x2x4xf32> to vector<7x7x1x4xf32>
    %65 = vector.shape_cast %64 : vector<7x7x1x4xf32> to vector<7x7x4xf32>
    %66 = vector.extract_strided_slice %1 {offsets = [2, 0, 0], sizes = [14, 16, 4], strides = [1, 1, 1]} : vector<16x16x4xf32> to vector<14x16x4xf32>
    %67 = vector.shape_cast %66 : vector<14x16x4xf32> to vector<7x2x16x4xf32>
    %68 = vector.extract_strided_slice %67 {offsets = [0, 0, 0, 0], sizes = [7, 1, 16, 4], strides = [1, 1, 1, 1]} : vector<7x2x16x4xf32> to vector<7x1x16x4xf32>
    %69 = vector.shape_cast %68 : vector<7x1x16x4xf32> to vector<7x16x4xf32>
    %70 = vector.extract_strided_slice %69 {offsets = [0, 2, 0], sizes = [7, 14, 4], strides = [1, 1, 1]} : vector<7x16x4xf32> to vector<7x14x4xf32>
    %71 = vector.shape_cast %70 : vector<7x14x4xf32> to vector<7x7x2x4xf32>
    %72 = vector.extract_strided_slice %71 {offsets = [0, 0, 0, 0], sizes = [7, 7, 1, 4], strides = [1, 1, 1, 1]} : vector<7x7x2x4xf32> to vector<7x7x1x4xf32>
    %73 = vector.shape_cast %72 : vector<7x7x1x4xf32> to vector<7x7x4xf32>
    %74 = arith.maximumf %9, %17 : vector<7x7x4xf32>
    %75 = arith.maximumf %74, %25 : vector<7x7x4xf32>
    %76 = arith.maximumf %75, %33 : vector<7x7x4xf32>
    %77 = arith.maximumf %76, %41 : vector<7x7x4xf32>
    %78 = arith.maximumf %77, %49 : vector<7x7x4xf32>
    %79 = arith.maximumf %78, %57 : vector<7x7x4xf32>
    %80 = arith.maximumf %79, %65 : vector<7x7x4xf32>
    %81 = arith.maximumf %80, %73 : vector<7x7x4xf32>
    %82 = tpu.concatenate %9, %17, %25, %33, %41, %49, %57, %65, %73 in 2 : vector<7x7x4xf32>, vector<7x7x4xf32>, vector<7x7x4xf32>, vector<7x7x4xf32>, vector<7x7x4xf32>, vector<7x7x4xf32>, vector<7x7x4xf32>, vector<7x7x4xf32>, vector<7x7x4xf32> -> vector<7x7x36xf32>
    %83 = vector.shape_cast %82 : vector<7x7x36xf32> to vector<49x36xf32>
    %c0_3 = arith.constant 0 : index
    %c0_4 = arith.constant 0 : index
    %84 = vector.load %arg2[%c0_3, %c0_4] : memref<36x8xf32, #tpu.memory_space<vmem>>, vector<36x8xf32>
    %cst = arith.constant dense<0.000000e+00> : vector<49x8xf32>
    %85 = tpu.matmul %83, %84, %cst {dimension_numbers = #tpu.dot_dimension_numbers<[1], [0], [0], [1], [0, 0, 1, 1], [], []>} : vector<49x36xf32>, vector<36x8xf32>, vector<49x8xf32> -> vector<49x8xf32>
    %c0_5 = arith.constant 0 : index
    %c0_6 = arith.constant 0 : index
    %86 = vector.load %arg3[%c0_5, %c0_6] : memref<2x8xf32, #tpu.memory_space<vmem>>, vector<1x8xf32>
    %87 = vector.broadcast %86 : vector<1x8xf32> to vector<49x8xf32>
    %88 = arith.mulf %85, %87 : vector<49x8xf32>
    %c1 = arith.constant 1 : index
    %c0_7 = arith.constant 0 : index
    %89 = vector.load %arg3[%c1, %c0_7] : memref<2x8xf32, #tpu.memory_space<vmem>>, vector<1x8xf32>
    %90 = vector.broadcast %89 : vector<1x8xf32> to vector<49x8xf32>
    %91 = arith.addf %88, %90 : vector<49x8xf32>
    %cst_8 = arith.constant 0.000000e+00 : f32
    %92 = vector.broadcast %cst_8 : f32 to vector<49x8xf32>
    %93 = arith.maximumf %91, %92 : vector<49x8xf32>
    %94 = vector.shape_cast %1 : vector<16x16x4xf32> to vector<256x4xf32>
    %c0_9 = arith.constant 0 : index
    %c0_10 = arith.constant 0 : index
    %95 = vector.load %arg4[%c0_9, %c0_10] : memref<4x8xf32, #tpu.memory_space<vmem>>, vector<4x8xf32>
    %cst_11 = arith.constant dense<0.000000e+00> : vector<256x8xf32>
    %96 = tpu.matmul %94, %95, %cst_11 {dimension_numbers = #tpu.dot_dimension_numbers<[1], [0], [0], [1], [0, 0, 1, 1], [], []>} : vector<256x4xf32>, vector<4x8xf32>, vector<256x8xf32> -> vector<256x8xf32>
    %c0_12 = arith.constant 0 : index
    %c0_13 = arith.constant 0 : index
    %97 = vector.load %arg5[%c0_12, %c0_13] : memref<2x8xf32, #tpu.memory_space<vmem>>, vector<1x8xf32>
    %98 = vector.broadcast %97 : vector<1x8xf32> to vector<256x8xf32>
    %99 = arith.mulf %96, %98 : vector<256x8xf32>
    %c1_14 = arith.constant 1 : index
    %c0_15 = arith.constant 0 : index
    %100 = vector.load %arg5[%c1_14, %c0_15] : memref<2x8xf32, #tpu.memory_space<vmem>>, vector<1x8xf32>
    %101 = vector.broadcast %100 : vector<1x8xf32> to vector<256x8xf32>
    %102 = arith.addf %99, %101 : vector<256x8xf32>
    %cst_16 = arith.constant 0.000000e+00 : f32
    %103 = vector.broadcast %cst_16 : f32 to vector<256x8xf32>
    %104 = arith.maximumf %102, %103 : vector<256x8xf32>
    %cst_17 = arith.constant 0.000000e+00 : f32
    %105 = vector.broadcast %cst_17 : f32 to vector<18x18x8xf32>
    %c0_18 = arith.constant 0 : index
    %c0_19 = arith.constant 0 : index
    %c0_20 = arith.constant 0 : index
    %106 = vector.load %arg11[%c0_18, %c0_19, %c0_20] : memref<18x18x8xf32, #tpu.memory_space<vmem>>, vector<18x18x8xf32>
    tpu.vector_store %arg11[%c0_18, %c0_19, %c0_20], %105 {strides = array<i32>} : memref<18x18x8xf32, #tpu.memory_space<vmem>>, vector<18x18x8xf32>,
    %107 = vector.shape_cast %104 : vector<256x8xf32> to vector<16x16x8xf32>
    %c1_21 = arith.constant 1 : index
    %c1_22 = arith.constant 1 : index
    %c0_23 = arith.constant 0 : index
    %108 = vector.load %arg11[%c1_21, %c1_22, %c0_23] : memref<18x18x8xf32, #tpu.memory_space<vmem>>, vector<16x16x8xf32>
    tpu.vector_store %arg11[%c1_21, %c1_22, %c0_23], %107 {strides = array<i32>} : memref<18x18x8xf32, #tpu.memory_space<vmem>>, vector<16x16x8xf32>,
    %c0_24 = arith.constant 0 : index
    %c0_25 = arith.constant 0 : index
    %c0_26 = arith.constant 0 : index
    %109 = vector.load %arg11[%c0_24, %c0_25, %c0_26] : memref<18x18x8xf32, #tpu.memory_space<vmem>>, vector<16x16x8xf32>
    %c0_27 = arith.constant 0 : index
    %c1_28 = arith.constant 1 : index
    %c0_29 = arith.constant 0 : index
    %110 = vector.load %arg11[%c0_27, %c1_28, %c0_29] : memref<18x18x8xf32, #tpu.memory_space<vmem>>, vector<16x16x8xf32>
    %c0_30 = arith.constant 0 : index
    %c2 = arith.constant 2 : index
    %c0_31 = arith.constant 0 : index
    %111 = vector.load %arg11[%c0_30, %c2, %c0_31] : memref<18x18x8xf32, #tpu.memory_space<vmem>>, vector<16x16x8xf32>
    %c1_32 = arith.constant 1 : index
    %c0_33 = arith.constant 0 : index
    %c0_34 = arith.constant 0 : index
    %112 = vector.load %arg11[%c1_32, %c0_33, %c0_34] : memref<18x18x8xf32, #tpu.memory_space<vmem>>, vector<16x16x8xf32>
    %c1_35 = arith.constant 1 : index
    %c1_36 = arith.constant 1 : index
    %c0_37 = arith.constant 0 : index
    %113 = vector.load %arg11[%c1_35, %c1_36, %c0_37] : memref<18x18x8xf32, #tpu.memory_space<vmem>>, vector<16x16x8xf32>
    %c1_38 = arith.constant 1 : index
    %c2_39 = arith.constant 2 : index
    %c0_40 = arith.constant 0 : index
    %114 = vector.load %arg11[%c1_38, %c2_39, %c0_40] : memref<18x18x8xf32, #tpu.memory_space<vmem>>, vector<16x16x8xf32>
    %c2_41 = arith.constant 2 : index
    %c0_42 = arith.constant 0 : index
    %c0_43 = arith.constant 0 : index
    %115 = vector.load %arg11[%c2_41, %c0_42, %c0_43] : memref<18x18x8xf32, #tpu.memory_space<vmem>>, vector<16x16x8xf32>
    %c2_44 = arith.constant 2 : index
    %c1_45 = arith.constant 1 : index
    %c0_46 = arith.constant 0 : index
    %116 = vector.load %arg11[%c2_44, %c1_45, %c0_46] : memref<18x18x8xf32, #tpu.memory_space<vmem>>, vector<16x16x8xf32>
    %c2_47 = arith.constant 2 : index
    %c2_48 = arith.constant 2 : index
    %c0_49 = arith.constant 0 : index
    %117 = vector.load %arg11[%c2_47, %c2_48, %c0_49] : memref<18x18x8xf32, #tpu.memory_space<vmem>>, vector<16x16x8xf32>
    %118 = tpu.concatenate %109, %110, %111, %112, %113, %114, %115, %116, %117 in 2 : vector<16x16x8xf32>, vector<16x16x8xf32>, vector<16x16x8xf32>, vector<16x16x8xf32>, vector<16x16x8xf32>, vector<16x16x8xf32>, vector<16x16x8xf32>, vector<16x16x8xf32>, vector<16x16x8xf32> -> vector<16x16x72xf32>
    %119 = vector.shape_cast %118 : vector<16x16x72xf32> to vector<256x72xf32>
    %c0_50 = arith.constant 0 : index
    %c0_51 = arith.constant 0 : index
    %120 = vector.load %arg6[%c0_50, %c0_51] : memref<72x8xf32, #tpu.memory_space<vmem>>, vector<72x8xf32>
    %cst_52 = arith.constant dense<0.000000e+00> : vector<256x8xf32>
    %121 = tpu.matmul %119, %120, %cst_52 {dimension_numbers = #tpu.dot_dimension_numbers<[1], [0], [0], [1], [0, 0, 1, 1], [], []>} : vector<256x72xf32>, vector<72x8xf32>, vector<256x8xf32> -> vector<256x8xf32>
    %c0_53 = arith.constant 0 : index
    %c0_54 = arith.constant 0 : index
    %122 = vector.load %arg7[%c0_53, %c0_54] : memref<2x8xf32, #tpu.memory_space<vmem>>, vector<1x8xf32>
    %123 = vector.broadcast %122 : vector<1x8xf32> to vector<256x8xf32>
    %124 = arith.mulf %121, %123 : vector<256x8xf32>
    %c1_55 = arith.constant 1 : index
    %c0_56 = arith.constant 0 : index
    %125 = vector.load %arg7[%c1_55, %c0_56] : memref<2x8xf32, #tpu.memory_space<vmem>>, vector<1x8xf32>
    %126 = vector.broadcast %125 : vector<1x8xf32> to vector<256x8xf32>
    %127 = arith.addf %124, %126 : vector<256x8xf32>
    %cst_57 = arith.constant 0.000000e+00 : f32
    %128 = vector.broadcast %cst_57 : f32 to vector<256x8xf32>
    %129 = arith.maximumf %127, %128 : vector<256x8xf32>
    %130 = vector.shape_cast %129 : vector<256x8xf32> to vector<16x16x8xf32>
    %131 = vector.extract_strided_slice %130 {offsets = [0, 0, 0], sizes = [14, 16, 8], strides = [1, 1, 1]} : vector<16x16x8xf32> to vector<14x16x8xf32>
    %132 = vector.shape_cast %131 : vector<14x16x8xf32> to vector<7x2x16x8xf32>
    %133 = vector.extract_strided_slice %132 {offsets = [0, 0, 0, 0], sizes = [7, 1, 16, 8], strides = [1, 1, 1, 1]} : vector<7x2x16x8xf32> to vector<7x1x16x8xf32>
    %134 = vector.shape_cast %133 : vector<7x1x16x8xf32> to vector<7x16x8xf32>
    %135 = vector.extract_strided_slice %134 {offsets = [0, 0, 0], sizes = [7, 14, 8], strides = [1, 1, 1]} : vector<7x16x8xf32> to vector<7x14x8xf32>
    %136 = vector.shape_cast %135 : vector<7x14x8xf32> to vector<7x7x2x8xf32>
    %137 = vector.extract_strided_slice %136 {offsets = [0, 0, 0, 0], sizes = [7, 7, 1, 8], strides = [1, 1, 1, 1]} : vector<7x7x2x8xf32> to vector<7x7x1x8xf32>
    %138 = vector.shape_cast %137 : vector<7x7x1x8xf32> to vector<7x7x8xf32>
    %139 = vector.extract_strided_slice %130 {offsets = [0, 0, 0], sizes = [14, 16, 8], strides = [1, 1, 1]} : vector<16x16x8xf32> to vector<14x16x8xf32>
    %140 = vector.shape_cast %139 : vector<14x16x8xf32> to vector<7x2x16x8xf32>
    %141 = vector.extract_strided_slice %140 {offsets = [0, 0, 0, 0], sizes = [7, 1, 16, 8], strides = [1, 1, 1, 1]} : vector<7x2x16x8xf32> to vector<7x1x16x8xf32>
    %142 = vector.shape_cast %141 : vector<7x1x16x8xf32> to vector<7x16x8xf32>
    %143 = vector.extract_strided_slice %142 {offsets = [0, 1, 0], sizes = [7, 14, 8], strides = [1, 1, 1]} : vector<7x16x8xf32> to vector<7x14x8xf32>
    %144 = vector.shape_cast %143 : vector<7x14x8xf32> to vector<7x7x2x8xf32>
    %145 = vector.extract_strided_slice %144 {offsets = [0, 0, 0, 0], sizes = [7, 7, 1, 8], strides = [1, 1, 1, 1]} : vector<7x7x2x8xf32> to vector<7x7x1x8xf32>
    %146 = vector.shape_cast %145 : vector<7x7x1x8xf32> to vector<7x7x8xf32>
    %147 = vector.extract_strided_slice %130 {offsets = [0, 0, 0], sizes = [14, 16, 8], strides = [1, 1, 1]} : vector<16x16x8xf32> to vector<14x16x8xf32>
    %148 = vector.shape_cast %147 : vector<14x16x8xf32> to vector<7x2x16x8xf32>
    %149 = vector.extract_strided_slice %148 {offsets = [0, 0, 0, 0], sizes = [7, 1, 16, 8], strides = [1, 1, 1, 1]} : vector<7x2x16x8xf32> to vector<7x1x16x8xf32>
    %150 = vector.shape_cast %149 : vector<7x1x16x8xf32> to vector<7x16x8xf32>
    %151 = vector.extract_strided_slice %150 {offsets = [0, 2, 0], sizes = [7, 14, 8], strides = [1, 1, 1]} : vector<7x16x8xf32> to vector<7x14x8xf32>
    %152 = vector.shape_cast %151 : vector<7x14x8xf32> to vector<7x7x2x8xf32>
    %153 = vector.extract_strided_slice %152 {offsets = [0, 0, 0, 0], sizes = [7, 7, 1, 8], strides = [1, 1, 1, 1]} : vector<7x7x2x8xf32> to vector<7x7x1x8xf32>
    %154 = vector.shape_cast %153 : vector<7x7x1x8xf32> to vector<7x7x8xf32>
    %155 = vector.extract_strided_slice %130 {offsets = [1, 0, 0], sizes = [14, 16, 8], strides = [1, 1, 1]} : vector<16x16x8xf32> to vector<14x16x8xf32>
    %156 = vector.shape_cast %155 : vector<14x16x8xf32> to vector<7x2x16x8xf32>
    %157 = vector.extract_strided_slice %156 {offsets = [0, 0, 0, 0], sizes = [7, 1, 16, 8], strides = [1, 1, 1, 1]} : vector<7x2x16x8xf32> to vector<7x1x16x8xf32>
    %158 = vector.shape_cast %157 : vector<7x1x16x8xf32> to vector<7x16x8xf32>
    %159 = vector.extract_strided_slice %158 {offsets = [0, 0, 0], sizes = [7, 14, 8], strides = [1, 1, 1]} : vector<7x16x8xf32> to vector<7x14x8xf32>
    %160 = vector.shape_cast %159 : vector<7x14x8xf32> to vector<7x7x2x8xf32>
    %161 = vector.extract_strided_slice %160 {offsets = [0, 0, 0, 0], sizes = [7, 7, 1, 8], strides = [1, 1, 1, 1]} : vector<7x7x2x8xf32> to vector<7x7x1x8xf32>
    %162 = vector.shape_cast %161 : vector<7x7x1x8xf32> to vector<7x7x8xf32>
    %163 = vector.extract_strided_slice %130 {offsets = [1, 0, 0], sizes = [14, 16, 8], strides = [1, 1, 1]} : vector<16x16x8xf32> to vector<14x16x8xf32>
    %164 = vector.shape_cast %163 : vector<14x16x8xf32> to vector<7x2x16x8xf32>
    %165 = vector.extract_strided_slice %164 {offsets = [0, 0, 0, 0], sizes = [7, 1, 16, 8], strides = [1, 1, 1, 1]} : vector<7x2x16x8xf32> to vector<7x1x16x8xf32>
    %166 = vector.shape_cast %165 : vector<7x1x16x8xf32> to vector<7x16x8xf32>
    %167 = vector.extract_strided_slice %166 {offsets = [0, 1, 0], sizes = [7, 14, 8], strides = [1, 1, 1]} : vector<7x16x8xf32> to vector<7x14x8xf32>
    %168 = vector.shape_cast %167 : vector<7x14x8xf32> to vector<7x7x2x8xf32>
    %169 = vector.extract_strided_slice %168 {offsets = [0, 0, 0, 0], sizes = [7, 7, 1, 8], strides = [1, 1, 1, 1]} : vector<7x7x2x8xf32> to vector<7x7x1x8xf32>
    %170 = vector.shape_cast %169 : vector<7x7x1x8xf32> to vector<7x7x8xf32>
    %171 = vector.extract_strided_slice %130 {offsets = [1, 0, 0], sizes = [14, 16, 8], strides = [1, 1, 1]} : vector<16x16x8xf32> to vector<14x16x8xf32>
    %172 = vector.shape_cast %171 : vector<14x16x8xf32> to vector<7x2x16x8xf32>
    %173 = vector.extract_strided_slice %172 {offsets = [0, 0, 0, 0], sizes = [7, 1, 16, 8], strides = [1, 1, 1, 1]} : vector<7x2x16x8xf32> to vector<7x1x16x8xf32>
    %174 = vector.shape_cast %173 : vector<7x1x16x8xf32> to vector<7x16x8xf32>
    %175 = vector.extract_strided_slice %174 {offsets = [0, 2, 0], sizes = [7, 14, 8], strides = [1, 1, 1]} : vector<7x16x8xf32> to vector<7x14x8xf32>
    %176 = vector.shape_cast %175 : vector<7x14x8xf32> to vector<7x7x2x8xf32>
    %177 = vector.extract_strided_slice %176 {offsets = [0, 0, 0, 0], sizes = [7, 7, 1, 8], strides = [1, 1, 1, 1]} : vector<7x7x2x8xf32> to vector<7x7x1x8xf32>
    %178 = vector.shape_cast %177 : vector<7x7x1x8xf32> to vector<7x7x8xf32>
    %179 = vector.extract_strided_slice %130 {offsets = [2, 0, 0], sizes = [14, 16, 8], strides = [1, 1, 1]} : vector<16x16x8xf32> to vector<14x16x8xf32>
    %180 = vector.shape_cast %179 : vector<14x16x8xf32> to vector<7x2x16x8xf32>
    %181 = vector.extract_strided_slice %180 {offsets = [0, 0, 0, 0], sizes = [7, 1, 16, 8], strides = [1, 1, 1, 1]} : vector<7x2x16x8xf32> to vector<7x1x16x8xf32>
    %182 = vector.shape_cast %181 : vector<7x1x16x8xf32> to vector<7x16x8xf32>
    %183 = vector.extract_strided_slice %182 {offsets = [0, 0, 0], sizes = [7, 14, 8], strides = [1, 1, 1]} : vector<7x16x8xf32> to vector<7x14x8xf32>
    %184 = vector.shape_cast %183 : vector<7x14x8xf32> to vector<7x7x2x8xf32>
    %185 = vector.extract_strided_slice %184 {offsets = [0, 0, 0, 0], sizes = [7, 7, 1, 8], strides = [1, 1, 1, 1]} : vector<7x7x2x8xf32> to vector<7x7x1x8xf32>
    %186 = vector.shape_cast %185 : vector<7x7x1x8xf32> to vector<7x7x8xf32>
    %187 = vector.extract_strided_slice %130 {offsets = [2, 0, 0], sizes = [14, 16, 8], strides = [1, 1, 1]} : vector<16x16x8xf32> to vector<14x16x8xf32>
    %188 = vector.shape_cast %187 : vector<14x16x8xf32> to vector<7x2x16x8xf32>
    %189 = vector.extract_strided_slice %188 {offsets = [0, 0, 0, 0], sizes = [7, 1, 16, 8], strides = [1, 1, 1, 1]} : vector<7x2x16x8xf32> to vector<7x1x16x8xf32>
    %190 = vector.shape_cast %189 : vector<7x1x16x8xf32> to vector<7x16x8xf32>
    %191 = vector.extract_strided_slice %190 {offsets = [0, 1, 0], sizes = [7, 14, 8], strides = [1, 1, 1]} : vector<7x16x8xf32> to vector<7x14x8xf32>
    %192 = vector.shape_cast %191 : vector<7x14x8xf32> to vector<7x7x2x8xf32>
    %193 = vector.extract_strided_slice %192 {offsets = [0, 0, 0, 0], sizes = [7, 7, 1, 8], strides = [1, 1, 1, 1]} : vector<7x7x2x8xf32> to vector<7x7x1x8xf32>
    %194 = vector.shape_cast %193 : vector<7x7x1x8xf32> to vector<7x7x8xf32>
    %195 = vector.extract_strided_slice %130 {offsets = [2, 0, 0], sizes = [14, 16, 8], strides = [1, 1, 1]} : vector<16x16x8xf32> to vector<14x16x8xf32>
    %196 = vector.shape_cast %195 : vector<14x16x8xf32> to vector<7x2x16x8xf32>
    %197 = vector.extract_strided_slice %196 {offsets = [0, 0, 0, 0], sizes = [7, 1, 16, 8], strides = [1, 1, 1, 1]} : vector<7x2x16x8xf32> to vector<7x1x16x8xf32>
    %198 = vector.shape_cast %197 : vector<7x1x16x8xf32> to vector<7x16x8xf32>
    %199 = vector.extract_strided_slice %198 {offsets = [0, 2, 0], sizes = [7, 14, 8], strides = [1, 1, 1]} : vector<7x16x8xf32> to vector<7x14x8xf32>
    %200 = vector.shape_cast %199 : vector<7x14x8xf32> to vector<7x7x2x8xf32>
    %201 = vector.extract_strided_slice %200 {offsets = [0, 0, 0, 0], sizes = [7, 7, 1, 8], strides = [1, 1, 1, 1]} : vector<7x7x2x8xf32> to vector<7x7x1x8xf32>
    %202 = vector.shape_cast %201 : vector<7x7x1x8xf32> to vector<7x7x8xf32>
    %203 = tpu.concatenate %138, %146, %154, %162, %170, %178, %186, %194, %202 in 2 : vector<7x7x8xf32>, vector<7x7x8xf32>, vector<7x7x8xf32>, vector<7x7x8xf32>, vector<7x7x8xf32>, vector<7x7x8xf32>, vector<7x7x8xf32>, vector<7x7x8xf32>, vector<7x7x8xf32> -> vector<7x7x72xf32>
    %204 = vector.shape_cast %203 : vector<7x7x72xf32> to vector<49x72xf32>
    %c0_58 = arith.constant 0 : index
    %c0_59 = arith.constant 0 : index
    %205 = vector.load %arg8[%c0_58, %c0_59] : memref<72x8xf32, #tpu.memory_space<vmem>>, vector<72x8xf32>
    %cst_60 = arith.constant dense<0.000000e+00> : vector<49x8xf32>
    %206 = tpu.matmul %204, %205, %cst_60 {dimension_numbers = #tpu.dot_dimension_numbers<[1], [0], [0], [1], [0, 0, 1, 1], [], []>} : vector<49x72xf32>, vector<72x8xf32>, vector<49x8xf32> -> vector<49x8xf32>
    %c0_61 = arith.constant 0 : index
    %c0_62 = arith.constant 0 : index
    %207 = vector.load %arg9[%c0_61, %c0_62] : memref<2x8xf32, #tpu.memory_space<vmem>>, vector<1x8xf32>
    %208 = vector.broadcast %207 : vector<1x8xf32> to vector<49x8xf32>
    %209 = arith.mulf %206, %208 : vector<49x8xf32>
    %c1_63 = arith.constant 1 : index
    %c0_64 = arith.constant 0 : index
    %210 = vector.load %arg9[%c1_63, %c0_64] : memref<2x8xf32, #tpu.memory_space<vmem>>, vector<1x8xf32>
    %211 = vector.broadcast %210 : vector<1x8xf32> to vector<49x8xf32>
    %212 = arith.addf %209, %211 : vector<49x8xf32>
    %cst_65 = arith.constant 0.000000e+00 : f32
    %213 = vector.broadcast %cst_65 : f32 to vector<49x8xf32>
    %214 = arith.maximumf %212, %213 : vector<49x8xf32>
    %215 = vector.shape_cast %81 : vector<7x7x4xf32> to vector<49x4xf32>
    %cst_66 = arith.constant 0.000000e+00 : f32
    %216 = vector.broadcast %cst_66 : f32 to vector<49x108xf32>
    %217 = tpu.concatenate %215, %93, %214, %216 in 1 : vector<49x4xf32>, vector<49x8xf32>, vector<49x8xf32>, vector<49x108xf32> -> vector<49x128xf32>
    %218 = vector.shape_cast %217 : vector<49x128xf32> to vector<7x7x128xf32>
    %c0_67 = arith.constant 0 : index
    %c0_68 = arith.constant 0 : index
    %c0_69 = arith.constant 0 : index
    %c0_70 = arith.constant 0 : index
    %219 = vector.load %arg10[%c0_67, %c0_68, %c0_69, %c0_70] : memref<1x7x7x128xf32, #tpu.memory_space<vmem>>, vector<1x7x7x128xf32>
    %220 = vector.shape_cast %219 : vector<1x7x7x128xf32> to vector<7x7x128xf32>
    %221 = vector.shape_cast %218 : vector<7x7x128xf32> to vector<1x7x7x128xf32>
    tpu.vector_store %arg10[%c0_67, %c0_68, %c0_69, %c0_70], %221 {strides = array<i32>} : memref<1x7x7x128xf32, #tpu.memory_space<vmem>>, vector<1x7x7x128xf32>,
    return
  }
  func.func @transform_0(%arg0: i32) -> (i32, i32, i32, i32) {
    %c0_i32 = arith.constant 0 : i32
    %c0_i32_0 = arith.constant 0 : i32
    %c0_i32_1 = arith.constant 0 : i32
    %c0_i32_2 = arith.constant 0 : i32
    return %arg0, %c0_i32, %c0_i32_0, %c0_i32_1 : i32, i32, i32, i32
  }
  func.func @transform_1(%arg0: i32) -> (i32, i32) {
    %c0_i32 = arith.constant 0 : i32
    %c0_i32_0 = arith.constant 0 : i32
    %c0_i32_1 = arith.constant 0 : i32
    return %c0_i32, %c0_i32_0 : i32, i32
  }
  func.func @transform_2(%arg0: i32) -> (i32, i32) {
    %c0_i32 = arith.constant 0 : i32
    %c0_i32_0 = arith.constant 0 : i32
    %c0_i32_1 = arith.constant 0 : i32
    return %c0_i32, %c0_i32_0 : i32, i32
  }
  func.func @transform_3(%arg0: i32) -> (i32, i32) {
    %c0_i32 = arith.constant 0 : i32
    %c0_i32_0 = arith.constant 0 : i32
    %c0_i32_1 = arith.constant 0 : i32
    return %c0_i32, %c0_i32_0 : i32, i32
  }
  func.func @transform_4(%arg0: i32) -> (i32, i32) {
    %c0_i32 = arith.constant 0 : i32
    %c0_i32_0 = arith.constant 0 : i32
    %c0_i32_1 = arith.constant 0 : i32
    return %c0_i32, %c0_i32_0 : i32, i32
  }
  func.func @transform_5(%arg0: i32) -> (i32, i32) {
    %c0_i32 = arith.constant 0 : i32
    %c0_i32_0 = arith.constant 0 : i32
    %c0_i32_1 = arith.constant 0 : i32
    return %c0_i32, %c0_i32_0 : i32, i32
  }
  func.func @transform_6(%arg0: i32) -> (i32, i32) {
    %c0_i32 = arith.constant 0 : i32
    %c0_i32_0 = arith.constant 0 : i32
    %c0_i32_1 = arith.constant 0 : i32
    return %c0_i32, %c0_i32_0 : i32, i32
  }
  func.func @transform_7(%arg0: i32) -> (i32, i32) {
    %c0_i32 = arith.constant 0 : i32
    %c0_i32_0 = arith.constant 0 : i32
    %c0_i32_1 = arith.constant 0 : i32
    return %c0_i32, %c0_i32_0 : i32, i32
  }
  func.func @transform_8(%arg0: i32) -> (i32, i32) {
    %c0_i32 = arith.constant 0 : i32
    %c0_i32_0 = arith.constant 0 : i32
    %c0_i32_1 = arith.constant 0 : i32
    return %c0_i32, %c0_i32_0 : i32, i32
  }
  func.func @transform_9(%arg0: i32) -> (i32, i32, i32, i32) {
    %c0_i32 = arith.constant 0 : i32
    %c0_i32_0 = arith.constant 0 : i32
    %c0_i32_1 = arith.constant 0 : i32
    %c0_i32_2 = arith.constant 0 : i32
    return %arg0, %c0_i32, %c0_i32_0, %c0_i32_1 : i32, i32, i32, i32
  }
}

</mosaic_0001>

<llo_original>
// kernel: reduction_block_a.1
$region0: #{reduction_block_a.1}
  #allocation0 [shape = 'u32[]', space=smem, size = 0x4, offset = 0x4, fixed_abs, tag = 'smem constant byte address 0x4 - core index']
  #allocation1 [shape = 'u32[72,128]{1,0:T(1,128)}', space=vmem, size = 0x9000, scoped, tag = 'internal scratch']
  #allocation2 [shape = 'f32[18,18,8]{2,1,0:T(8,128)}', space=vmem, size = 0x36000, scoped, tag = 'scratch operand']
  %s0 = inlined_call_operand.vmem [shape: f32[2,16,16,4], index: 0, kind: input, shape index: {}]
  %s1 = inlined_call_operand.vmem [shape: f32[36,8], index: 1, kind: input, shape index: {}]
  %s2 = inlined_call_operand.vmem [shape: f32[2,8], index: 2, kind: input, shape index: {}]
  %s3 = inlined_call_operand.vmem [shape: f32[4,8], index: 3, kind: input, shape index: {}]
  %s4 = inlined_call_operand.vmem [shape: f32[2,8], index: 4, kind: input, shape index: {}]
  %s5 = inlined_call_operand.vmem [shape: f32[72,8], index: 5, kind: input, shape index: {}]
  %s6 = inlined_call_operand.vmem [shape: f32[2,8], index: 6, kind: input, shape index: {}]
  %s7 = inlined_call_operand.vmem [shape: f32[72,8], index: 7, kind: input, shape index: {}]
  %s8 = inlined_call_operand.vmem [shape: f32[2,8], index: 8, kind: input, shape index: {}]
  %s9 = inlined_call_operand.vmem [shape: f32[2,7,7,128], index: 9, kind: output, shape index: {}]
  %s10 = sld [smem:[#allocation0]]
  $region69: #{reduction_block_a.1} parent=0
    _
  %s12 = ssub.s32 1, %s10
  %s13 = scalar_select 0, %s12, %s10
  loop: start=0, step=1, limit=4
  $region2: #{reduction_block_a.1} parent=0 // loop_pre_header
    _
  $region3: #{reduction_block_a.1} parent=0 // loop_header
    %s15 = sphi 0, %s19
    %p16 = scmp.ge.s32.totalorder %s15, 4
    %s25 = sphi 0, %s27
    %s28 = sphi 0, %s25
    %s29 = sphi 0, %s28
    %s45 = sphi 0, %s29
    %s49 = sphi 0, %s49
    %s51 = sphi 0, %s49
    %s52 = sphi 0, %s51
    %s66 = sphi 0, %s52
    %s70 = sphi 0, %s70
    %s72 = sphi 0, %s70
    %s73 = sphi 0, %s72
    %s87 = sphi 0, %s73
    %s91 = sphi 0, %s91
    %s93 = sphi 0, %s91
    %s94 = sphi 0, %s93
    %s108 = sphi 0, %s94
    %s112 = sphi 0, %s112
    %s114 = sphi 0, %s112
    %s115 = sphi 0, %s114
    %s129 = sphi 0, %s115
    %s133 = sphi 0, %s133
    %s135 = sphi 0, %s133
    %s136 = sphi 0, %s135
    %s150 = sphi 0, %s136
    %s154 = sphi 0, %s154
    %s156 = sphi 0, %s154
    %s157 = sphi 0, %s156
    %s171 = sphi 0, %s157
    %s175 = sphi 0, %s175
    %s177 = sphi 0, %s175
    %s178 = sphi 0, %s177
    %s192 = sphi 0, %s178
    %s196 = sphi 0, %s196
    %s198 = sphi 0, %s196
    %s199 = sphi 0, %s198
    %s213 = sphi 0, %s199
    %s219 = sphi 0, %s221
    %s222 = sphi 0, %s219
    %s223 = sphi 0, %s222
    %s239 = sphi 0, %s223
  $region4: #{reduction_block_a.1} parent=0 // loop_header_branch
    %18 = sbr.rel (%p16) target = $region8
  $region5: #{reduction_block_a.1} parent=0 // loop_body
    %s20 = ssub.s32 %s15, 1
    %s21 = ssub.s32 %s15, 2
    %s22 = sadd.s32 %s15, 1
    %s23 = ssub.s32 %s15, %s22
    %p24 = scmp.eq.s32.totalorder %s23, 0
    %s26 = sadd.s32 %s25, 1
    %s27 = scalar_select %p24, %s25, %s26
    %p30 = pneg %p24
    %p31 = scmp.eq.s32.totalorder %s15, 1
    %p32 = por %p30, %p31
    %p33 = scmp.ne.s32.totalorder %s25, %s28
    %p34 = scmp.eq.s32.totalorder %s15, 0
    %p35 = por %p33, %p34
    %p36 = scmp.ne.s32.totalorder %s25, %s28
    %p37 = scmp.eq.s32.totalorder %s20, 1
    %p38 = por %p36, %p37
    %p39 = scmp.ne.s32.totalorder %s28, %s29
    %p40 = scmp.eq.s32.totalorder %s20, 0
    %p41 = por %p39, %p40
    %p42 = scmp.ne.s32.totalorder %s28, %s29
    %p43 = scmp.eq.s32.totalorder %s21, 1
    %p44 = por %p42, %p43
    %p46 = scmp.ne.s32.totalorder %s29, %s45
    %p47 = scmp.eq.s32.totalorder %s21, 0
    %p48 = por %p46, %p47
    %s50 = sadd.s32 %s49, 1
    %p53 = scmp.eq.s32.totalorder %s15, 1
    %p54 = scmp.ne.s32.totalorder %s49, %s51
    %p55 = scmp.eq.s32.totalorder %s15, 0
    %p56 = por %p54, %p55
    %p57 = scmp.ne.s32.totalorder %s49, %s51
    %p58 = scmp.eq.s32.totalorder %s20, 1
    %p59 = por %p57, %p58
    %p60 = scmp.ne.s32.totalorder %s51, %s52
    %p61 = scmp.eq.s32.totalorder %s20, 0
    %p62 = por %p60, %p61
    %p63 = scmp.ne.s32.totalorder %s51, %s52
    %p64 = scmp.eq.s32.totalorder %s21, 1
    %p65 = por %p63, %p64
    %p67 = scmp.ne.s32.totalorder %s52, %s66
    %p68 = scmp.eq.s32.totalorder %s21, 0
    %p69 = por %p67, %p68
    %s71 = sadd.s32 %s70, 1
    %p74 = scmp.eq.s32.totalorder %s15, 1
    %p75 = scmp.ne.s32.totalorder %s70, %s72
    %p76 = scmp.eq.s32.totalorder %s15, 0
    %p77 = por %p75, %p76
    %p78 = scmp.ne.s32.totalorder %s70, %s72
    %p79 = scmp.eq.s32.totalorder %s20, 1
    %p80 = por %p78, %p79
    %p81 = scmp.ne.s32.totalorder %s72, %s73
    %p82 = scmp.eq.s32.totalorder %s20, 0
    %p83 = por %p81, %p82
    %p84 = scmp.ne.s32.totalorder %s72, %s73
    %p85 = scmp.eq.s32.totalorder %s21, 1
    %p86 = por %p84, %p85
    %p88 = scmp.ne.s32.totalorder %s73, %s87
    %p89 = scmp.eq.s32.totalorder %s21, 0
    %p90 = por %p88, %p89
    %s92 = sadd.s32 %s91, 1
    %p95 = scmp.eq.s32.totalorder %s15, 1
    %p96 = scmp.ne.s32.totalorder %s91, %s93
    %p97 = scmp.eq.s32.totalorder %s15, 0
    %p98 = por %p96, %p97
    %p99 = scmp.ne.s32.totalorder %s91, %s93
    %p100 = scmp.eq.s32.totalorder %s20, 1
    %p101 = por %p99, %p100
    %p102 = scmp.ne.s32.totalorder %s93, %s94
    %p103 = scmp.eq.s32.totalorder %s20, 0
    %p104 = por %p102, %p103
    %p105 = scmp.ne.s32.totalorder %s93, %s94
    %p106 = scmp.eq.s32.totalorder %s21, 1
    %p107 = por %p105, %p106
    %p109 = scmp.ne.s32.totalorder %s94, %s108
    %p110 = scmp.eq.s32.totalorder %s21, 0
    %p111 = por %p109, %p110
    %s113 = sadd.s32 %s112, 1
    %p116 = scmp.eq.s32.totalorder %s15, 1
    %p117 = scmp.ne.s32.totalorder %s112, %s114
    %p118 = scmp.eq.s32.totalorder %s15, 0
    %p119 = por %p117, %p118
    %p120 = scmp.ne.s32.totalorder %s112, %s114
    %p121 = scmp.eq.s32.totalorder %s20, 1
    %p122 = por %p120, %p121
    %p123 = scmp.ne.s32.totalorder %s114, %s115
    %p124 = scmp.eq.s32.totalorder %s20, 0
    %p125 = por %p123, %p124
    %p126 = scmp.ne.s32.totalorder %s114, %s115
    %p127 = scmp.eq.s32.totalorder %s21, 1
    %p128 = por %p126, %p127
    %p130 = scmp.ne.s32.totalorder %s115, %s129
    %p131 = scmp.eq.s32.totalorder %s21, 0
    %p132 = por %p130, %p131
    %s134 = sadd.s32 %s133, 1
    %p137 = scmp.eq.s32.totalorder %s15, 1
    %p138 = scmp.ne.s32.totalorder %s133, %s135
    %p139 = scmp.eq.s32.totalorder %s15, 0
    %p140 = por %p138, %p139
    %p141 = scmp.ne.s32.totalorder %s133, %s135
    %p142 = scmp.eq.s32.totalorder %s20, 1
    %p143 = por %p141, %p142
    %p144 = scmp.ne.s32.totalorder %s135, %s136
    %p145 = scmp.eq.s32.totalorder %s20, 0
    %p146 = por %p144, %p145
    %p147 = scmp.ne.s32.totalorder %s135, %s136
    %p148 = scmp.eq.s32.totalorder %s21, 1
    %p149 = por %p147, %p148
    %p151 = scmp.ne.s32.totalorder %s136, %s150
    %p152 = scmp.eq.s32.totalorder %s21, 0
    %p153 = por %p151, %p152
    %s155 = sadd.s32 %s154, 1
    %p158 = scmp.eq.s32.totalorder %s15, 1
    %p159 = scmp.ne.s32.totalorder %s154, %s156
    %p160 = scmp.eq.s32.totalorder %s15, 0
    %p161 = por %p159, %p160
    %p162 = scmp.ne.s32.totalorder %s154, %s156
    %p163 = scmp.eq.s32.totalorder %s20, 1
    %p164 = por %p162, %p163
    %p165 = scmp.ne.s32.totalorder %s156, %s157
    %p166 = scmp.eq.s32.totalorder %s20, 0
    %p167 = por %p165, %p166
    %p168 = scmp.ne.s32.totalorder %s156, %s157
    %p169 = scmp.eq.s32.totalorder %s21, 1
    %p170 = por %p168, %p169
    %p172 = scmp.ne.s32.totalorder %s157, %s171
    %p173 = scmp.eq.s32.totalorder %s21, 0
    %p174 = por %p172, %p173
    %s176 = sadd.s32 %s175, 1
    %p179 = scmp.eq.s32.totalorder %s15, 1
    %p180 = scmp.ne.s32.totalorder %s175, %s177
    %p181 = scmp.eq.s32.totalorder %s15, 0
    %p182 = por %p180, %p181
    %p183 = scmp.ne.s32.totalorder %s175, %s177
    %p184 = scmp.eq.s32.totalorder %s20, 1
    %p185 = por %p183, %p184
    %p186 = scmp.ne.s32.totalorder %s177, %s178
    %p187 = scmp.eq.s32.totalorder %s20, 0
    %p188 = por %p186, %p187
    %p189 = scmp.ne.s32.totalorder %s177, %s178
    %p190 = scmp.eq.s32.totalorder %s21, 1
    %p191 = por %p189, %p190
    %p193 = scmp.ne.s32.totalorder %s178, %s192
    %p194 = scmp.eq.s32.totalorder %s21, 0
    %p195 = por %p193, %p194
    %s197 = sadd.s32 %s196, 1
    %p200 = scmp.eq.s32.totalorder %s15, 1
    %p201 = scmp.ne.s32.totalorder %s196, %s198
    %p202 = scmp.eq.s32.totalorder %s15, 0
    %p203 = por %p201, %p202
    %p204 = scmp.ne.s32.totalorder %s196, %s198
    %p205 = scmp.eq.s32.totalorder %s20, 1
    %p206 = por %p204, %p205
    %p207 = scmp.ne.s32.totalorder %s198, %s199
    %p208 = scmp.eq.s32.totalorder %s20, 0
    %p209 = por %p207, %p208
    %p210 = scmp.ne.s32.totalorder %s198, %s199
    %p211 = scmp.eq.s32.totalorder %s21, 1
    %p212 = por %p210, %p211
    %p214 = scmp.ne.s32.totalorder %s199, %s213
    %p215 = scmp.eq.s32.totalorder %s21, 0
    %p216 = por %p214, %p215
    %s217 = ssub.s32 %s15, %s22
    %p218 = scmp.eq.s32.totalorder %s217, 0
    %s220 = sadd.s32 %s219, 1
    %s221 = scalar_select %p218, %s219, %s220
    %p224 = pneg %p218
    %p225 = scmp.eq.s32.totalorder %s15, 1
    %p226 = por %p224, %p225
    %p227 = scmp.ne.s32.totalorder %s219, %s222
    %p228 = scmp.eq.s32.totalorder %s15, 0
    %p229 = por %p227, %p228
    %p230 = scmp.ne.s32.totalorder %s219, %s222
    %p231 = scmp.eq.s32.totalorder %s20, 1
    %p232 = por %p230, %p231
    %p233 = scmp.ne.s32.totalorder %s222, %s223
    %p234 = scmp.eq.s32.totalorder %s20, 0
    %p235 = por %p233, %p234
    %p236 = scmp.ne.s32.totalorder %s222, %s223
    %p237 = scmp.eq.s32.totalorder %s21, 1
    %p238 = por %p236, %p237
    %p240 = scmp.ne.s32.totalorder %s223, %s239
    %p241 = scmp.eq.s32.totalorder %s21, 0
    %p242 = por %p240, %p241
    %p243 = scmp.le.s32.totalorder 1, %s15
    %p244 = scmp.lt.s32.totalorder %s15, 3
    %p245 = pnand %p243, %p244
    %p246 = pneg %p245
    // Predicated region
    $region9: #{reduction_block_a.1} parent=5 // pred_check
      _
    $region10: #{reduction_block_a.1} parent=5 // pred_check_branch
      %248 = sbr.rel (%p245) target = $region12
    $region11: #{reduction_block_a.1} parent=5 // pred_region
      %s249 = ssub.s32 %s15, 1
      // Predicated region
      $region13: #{reduction_block_a.1} parent=11 // pred_check
        %p250 = pneg %p62
      $region14: #{reduction_block_a.1} parent=11 // pred_check_branch
        %252 = sbr.rel (%p250) target = $region16
      $region15: #{reduction_block_a.1} parent=11 // pred_region
        _
      $region16: #{reduction_block_a.1} parent=11 // pred_fallthru
        _
      // Predicated region
      $region17: #{reduction_block_a.1} parent=11 // pred_check
        %p253 = pneg %p83
      $region18: #{reduction_block_a.1} parent=11 // pred_check_branch
        %255 = sbr.rel (%p253) target = $region20
      $region19: #{reduction_block_a.1} parent=11 // pred_region
        _
      $region20: #{reduction_block_a.1} parent=11 // pred_fallthru
        _
      // Predicated region
      $region21: #{reduction_block_a.1} parent=11 // pred_check
        %p256 = pneg %p104
      $region22: #{reduction_block_a.1} parent=11 // pred_check_branch
        %258 = sbr.rel (%p256) target = $region24
      $region23: #{reduction_block_a.1} parent=11 // pred_region
        _
      $region24: #{reduction_block_a.1} parent=11 // pred_fallthru
        _
      // Predicated region
      $region25: #{reduction_block_a.1} parent=11 // pred_check
        %p259 = pneg %p125
      $region26: #{reduction_block_a.1} parent=11 // pred_check_branch
        %261 = sbr.rel (%p259) target = $region28
      $region27: #{reduction_block_a.1} parent=11 // pred_region
        _
      $region28: #{reduction_block_a.1} parent=11 // pred_fallthru
        _
      // Predicated region
      $region29: #{reduction_block_a.1} parent=11 // pred_check
        %p262 = pneg %p146
      $region30: #{reduction_block_a.1} parent=11 // pred_check_branch
        %264 = sbr.rel (%p262) target = $region32
      $region31: #{reduction_block_a.1} parent=11 // pred_region
        _
      $region32: #{reduction_block_a.1} parent=11 // pred_fallthru
        _
      // Predicated region
      $region33: #{reduction_block_a.1} parent=11 // pred_check
        %p265 = pneg %p167
      $region34: #{reduction_block_a.1} parent=11 // pred_check_branch
        %267 = sbr.rel (%p265) target = $region36
      $region35: #{reduction_block_a.1} parent=11 // pred_region
        _
      $region36: #{reduction_block_a.1} parent=11 // pred_fallthru
        _
      // Predicated region
      $region37: #{reduction_block_a.1} parent=11 // pred_check
        %p268 = pneg %p188
      $region38: #{reduction_block_a.1} parent=11 // pred_check_branch
        %270 = sbr.rel (%p268) target = $region40
      $region39: #{reduction_block_a.1} parent=11 // pred_region
        _
      $region40: #{reduction_block_a.1} parent=11 // pred_fallthru
        _
      // Predicated region
      $region41: #{reduction_block_a.1} parent=11 // pred_check
        %p271 = pneg %p209
      $region42: #{reduction_block_a.1} parent=11 // pred_check_branch
        %273 = sbr.rel (%p271) target = $region44
      $region43: #{reduction_block_a.1} parent=11 // pred_region
        _
      $region44: #{reduction_block_a.1} parent=11 // pred_fallthru
        _
    $region12: #{reduction_block_a.1} parent=5 // pred_fallthru
      _
    %p274 = scmp.lt.s32.totalorder %s15, 2
    // Predicated region
    $region45: #{reduction_block_a.1} parent=5 // pred_check
      %p275 = pneg %p274
    $region46: #{reduction_block_a.1} parent=5 // pred_check_branch
      %277 = sbr.rel (%p275) target = $region48
    $region47: #{reduction_block_a.1} parent=5 // pred_region
      // Predicated region
      $region49: #{reduction_block_a.1} parent=47 // pred_check
        %p278 = pneg %p35
      $region50: #{reduction_block_a.1} parent=47 // pred_check_branch
        %280 = sbr.rel (%p278) target = $region52
      $region51: #{reduction_block_a.1} parent=47 // pred_region
        %p281 = scmp.lt.s32.totalorder %s15, 1
        %s282 = scalar_select %p281, %s15, 1
        %s283 = smul.addr %s282, 32
        %s284 = smul.addr %s283, 8
        %s285 = scalar_lea.vmem %s0, %s284
      $region52: #{reduction_block_a.1} parent=47 // pred_fallthru
        _
    $region48: #{reduction_block_a.1} parent=5 // pred_fallthru
      _
    %p286 = scmp.le.s32.totalorder 1, %s15
    %p287 = scmp.lt.s32.totalorder %s15, 3
    %p288 = pnand %p286, %p287
    %p289 = pneg %p288
    // Predicated region
    $region53: #{reduction_block_a.1} parent=5 // pred_check
      _
    $region54: #{reduction_block_a.1} parent=5 // pred_check_branch
      %291 = sbr.rel (%p288) target = $region56
    $region55: #{reduction_block_a.1} parent=5 // pred_region
      %s292 = ssub.s32 %s15, 1
      %p293 = scmp.lt.s32.totalorder %s20, 1
      %s294 = scalar_select %p293, %s20, 1
      %s295 = smul.addr %s294, 32
      %s296 = smul.addr %s295, 8
      %s297 = scalar_lea.vmem %s0, %s296
      %p298 = pneg %p41
      %p299 = pneg %p38
      %p300 = pneg %p62
      %p301 = pneg %p59
      %p302 = pneg %p83
      %p303 = pneg %p80
      %p304 = pneg %p104
      %p305 = pneg %p101
      %p306 = pneg %p125
      %p307 = pneg %p122
      %p308 = pneg %p146
      %p309 = pneg %p143
      %p310 = pneg %p167
      %p311 = pneg %p164
      %p312 = pneg %p188
      %p313 = pneg %p185
      %p314 = pneg %p209
      %p315 = pneg %p206
      %p316 = pneg %p235
      %p317 = pneg %p232
      %p318 = scmp.lt.s32.totalorder %s20, 1
      %s319 = scalar_select %p318, %s20, 1
      %s320 = smul.addr %s319, 7
      %s321 = smul.addr %s320, 8
      %s322 = scalar_lea.vmem %s9, %s321
      %p323 = scmp.lt.s32.totalorder %s20, 1
      %s324 = scalar_select %p323, %s20, 1
      %s325 = smul.addr %s324, 32
      %s326 = smul.addr %s325, 8
      %s327 = scalar_lea.vmem %s0, %s326
      %p328 = scmp.lt.s32.totalorder %s20, 1
      %s329 = scalar_select %p328, %s20, 1
      %s330 = smul.addr %s329, 7
      %s331 = smul.addr %s330, 8
      %s332 = scalar_lea.vmem %s9, %s331
      %v333 = vld [vmem:[%s327] sm:$0xff]
      %v334 = vld [vmem:[%s327 + $0x8] sm:$0xff]
      %v335 = vld [vmem:[%s327 + $0x10] sm:$0xff]
      %v336 = vld [vmem:[%s327 + $0x18] sm:$0xff]
      %v337 = vld [vmem:[%s327 + $0x20] sm:$0xff]
      %v338 = vld [vmem:[%s327 + $0x28] sm:$0xff]
      %v339 = vld [vmem:[%s327 + $0x30] sm:$0xff]
      %v340 = vld [vmem:[%s327 + $0x38] sm:$0xff]
      %v341 = vld [vmem:[%s327 + $0x40] sm:$0xff]
      %v342 = vld [vmem:[%s327 + $0x48] sm:$0xff]
      %v343 = vld [vmem:[%s327 + $0x50] sm:$0xff]
      %v344 = vld [vmem:[%s327 + $0x58] sm:$0xff]
      %v345 = vld [vmem:[%s327 + $0x60] sm:$0xff]
      %v346 = vld [vmem:[%s327 + $0x68] sm:$0xff]
      %v347 = vld [vmem:[%s327 + $0x70] sm:$0xff]
      %v348 = vld [vmem:[%s327 + $0x78] sm:$0xff]
      %v349 = vld [vmem:[%s327 + $0x80] sm:$0xff]
      %v350 = vld [vmem:[%s327 + $0x88] sm:$0xff]
      %v351 = vld [vmem:[%s327 + $0x90] sm:$0xff]
      %v352 = vld [vmem:[%s327 + $0x98] sm:$0xff]
      %v353 = vld [vmem:[%s327 + $0xa0] sm:$0xff]
      %v354 = vld [vmem:[%s327 + $0xa8] sm:$0xff]
      %v355 = vld [vmem:[%s327 + $0xb0] sm:$0xff]
      %v356 = vld [vmem:[%s327 + $0xb8] sm:$0xff]
      %v357 = vld [vmem:[%s327 + $0xc0] sm:$0xff]
      %v358 = vld [vmem:[%s327 + $0xc8] sm:$0xff]
      %v359 = vld [vmem:[%s327 + $0xd0] sm:$0xff]
      %v360 = vld [vmem:[%s327 + $0xd8] sm:$0xff]
      %v361 = vld [vmem:[%s327 + $0xe0] sm:$0xff]
      %v362 = vld [vmem:[%s327 + $0xe8] sm:$0xff]
      %v363 = vld [vmem:[%s327 + $0xf0] sm:$0xff]
      %v364 = vld [vmem:[%s327 + $0xf8] sm:$0xff]
      %v379 = vrot.slane %v333, 2
      %v380 = vrot.slane %v333, 4
      %v381 = vrot.slane %v333, 6
      %v382 = vrot.slane %v334, 2
      %v383 = vrot.slane %v334, 4
      %v384 = vrot.slane %v337, 2
      %v385 = vrot.slane %v337, 4
      %v386 = vrot.slane %v337, 6
      %v387 = vrot.slane %v338, 2
      %v388 = vrot.slane %v338, 4
      %v389 = vrot.slane %v341, 2
      %v390 = vrot.slane %v341, 4
      %v391 = vrot.slane %v341, 6
      %v392 = vrot.slane %v342, 2
      %v393 = vrot.slane %v342, 4
      %v394 = vrot.slane %v345, 2
      %v395 = vrot.slane %v345, 4
      %v396 = vrot.slane %v345, 6
      %v397 = vrot.slane %v346, 2
      %v398 = vrot.slane %v346, 4
      %v399 = vrot.slane %v349, 2
      %v400 = vrot.slane %v349, 4
      %v401 = vrot.slane %v349, 6
      %v402 = vrot.slane %v350, 2
      %v403 = vrot.slane %v350, 4
      %v404 = vrot.slane %v353, 2
      %v405 = vrot.slane %v353, 4
      %v406 = vrot.slane %v353, 6
      %v407 = vrot.slane %v354, 2
      %v408 = vrot.slane %v354, 4
      %v409 = vrot.slane %v357, 2
      %v410 = vrot.slane %v357, 4
      %v411 = vrot.slane %v357, 6
      %v412 = vrot.slane %v358, 2
      %v413 = vrot.slane %v358, 4
      %v449 = vrot.slane %v334, 6
      %v450 = vrot.slane %v338, 6
      %v451 = vrot.slane %v342, 6
      %v452 = vrot.slane %v346, 6
      %v453 = vrot.slane %v350, 6
      %v454 = vrot.slane %v354, 6
      %v455 = vrot.slane %v358, 6
      %vm456 = vcmask 1040384
      %vm457 = vcmask 1042434
      %vm458 = vmor %vm456, %vm457
      %vm459 = vcmask 1044484
      %vm460 = vmor %vm458, %vm459
      %vm461 = vcmask 1046534
      %vm462 = vmor %vm460, %vm461
      %v463 = vrot.slane %v333, 7
      %v464 = vrot.slane %v463, 2
      %v465 = vrot.slane %v379, 7
      %v466 = vsel %vm462, %v464, %v465
      %v467 = vrot.slane %v465, 2
      %v468 = vrot.slane %v380, 7
      %v469 = vsel %vm462, %v467, %v468
      %v470 = vrot.slane %v468, 2
      %v471 = vrot.slane %v381, 7
      %v472 = vsel %vm462, %v470, %v471
      %v473 = vrot.slane %v471, 2
      %v474 = vrot.slane %v334, 7
      %v475 = vsel %vm462, %v473, %v474
      %v476 = vrot.slane %v474, 2
      %v477 = vrot.slane %v382, 7
      %v478 = vsel %vm462, %v476, %v477
      %v479 = vrot.slane %v477, 2
      %v480 = vrot.slane %v383, 7
      %v481 = vsel %vm462, %v479, %v480
      %v482 = vrot.slane %v480, 2
      %v483 = vrot.slane %v449, 7
      %v484 = vsel %vm462, %v482, %v483
      %v485 = vrot.slane %v337, 7
      %v486 = vrot.slane %v485, 2
      %v487 = vrot.slane %v384, 7
      %v488 = vsel %vm462, %v486, %v487
      %v489 = vrot.slane %v487, 2
      %v490 = vrot.slane %v385, 7
      %v491 = vsel %vm462, %v489, %v490
      %v492 = vrot.slane %v490, 2
      %v493 = vrot.slane %v386, 7
      %v494 = vsel %vm462, %v492, %v493
      %v495 = vrot.slane %v493, 2
      %v496 = vrot.slane %v338, 7
      %v497 = vsel %vm462, %v495, %v496
      %v498 = vrot.slane %v496, 2
      %v499 = vrot.slane %v387, 7
      %v500 = vsel %vm462, %v498, %v499
      %v501 = vrot.slane %v499, 2
      %v502 = vrot.slane %v388, 7
      %v503 = vsel %vm462, %v501, %v502
      %v504 = vrot.slane %v502, 2
      %v505 = vrot.slane %v450, 7
      %v506 = vsel %vm462, %v504, %v505
      %v507 = vrot.slane %v341, 7
      %v508 = vrot.slane %v507, 2
      %v509 = vrot.slane %v389, 7
      %v510 = vsel %vm462, %v508, %v509
      %v511 = vrot.slane %v509, 2
      %v512 = vrot.slane %v390, 7
      %v513 = vsel %vm462, %v511, %v512
      %v514 = vrot.slane %v512, 2
      %v515 = vrot.slane %v391, 7
      %v516 = vsel %vm462, %v514, %v515
      %v517 = vrot.slane %v515, 2
      %v518 = vrot.slane %v342, 7
      %v519 = vsel %vm462, %v517, %v518
      %v520 = vrot.slane %v518, 2
      %v521 = vrot.slane %v392, 7
      %v522 = vsel %vm462, %v520, %v521
      %v523 = vrot.slane %v521, 2
      %v524 = vrot.slane %v393, 7
      %v525 = vsel %vm462, %v523, %v524
      %v526 = vrot.slane %v524, 2
      %v527 = vrot.slane %v451, 7
      %v528 = vsel %vm462, %v526, %v527
      %v529 = vrot.slane %v345, 7
      %v530 = vrot.slane %v529, 2
      %v531 = vrot.slane %v394, 7
      %v532 = vsel %vm462, %v530, %v531
      %v533 = vrot.slane %v531, 2
      %v534 = vrot.slane %v395, 7
      %v535 = vsel %vm462, %v533, %v534
      %v536 = vrot.slane %v534, 2
      %v537 = vrot.slane %v396, 7
      %v538 = vsel %vm462, %v536, %v537
      %v539 = vrot.slane %v537, 2
      %v540 = vrot.slane %v346, 7
      %v541 = vsel %vm462, %v539, %v540
      %v542 = vrot.slane %v540, 2
      %v543 = vrot.slane %v397, 7
      %v544 = vsel %vm462, %v542, %v543
      %v545 = vrot.slane %v543, 2
      %v546 = vrot.slane %v398, 7
      %v547 = vsel %vm462, %v545, %v546
      %v548 = vrot.slane %v546, 2
      %v549 = vrot.slane %v452, 7
      %v550 = vsel %vm462, %v548, %v549
      %v551 = vrot.slane %v349, 7
      %v552 = vrot.slane %v551, 2
      %v553 = vrot.slane %v399, 7
      %v554 = vsel %vm462, %v552, %v553
      %v555 = vrot.slane %v553, 2
      %v556 = vrot.slane %v400, 7
      %v557 = vsel %vm462, %v555, %v556
      %v558 = vrot.slane %v556, 2
      %v559 = vrot.slane %v401, 7
      %v560 = vsel %vm462, %v558, %v559
      %v561 = vrot.slane %v559, 2
      %v562 = vrot.slane %v350, 7
      %v563 = vsel %vm462, %v561, %v562
      %v564 = vrot.slane %v562, 2
      %v565 = vrot.slane %v402, 7
      %v566 = vsel %vm462, %v564, %v565
      %v567 = vrot.slane %v565, 2
      %v568 = vrot.slane %v403, 7
      %v569 = vsel %vm462, %v567, %v568
      %v570 = vrot.slane %v568, 2
      %v571 = vrot.slane %v453, 7
      %v572 = vsel %vm462, %v570, %v571
      %v573 = vrot.slane %v353, 7
      %v574 = vrot.slane %v573, 2
      %v575 = vrot.slane %v404, 7
      %v576 = vsel %vm462, %v574, %v575
      %v577 = vrot.slane %v575, 2
      %v578 = vrot.slane %v405, 7
      %v579 = vsel %vm462, %v577, %v578
      %v580 = vrot.slane %v578, 2
      %v581 = vrot.slane %v406, 7
      %v582 = vsel %vm462, %v580, %v581
      %v583 = vrot.slane %v581, 2
      %v584 = vrot.slane %v354, 7
      %v585 = vsel %vm462, %v583, %v584
      %v586 = vrot.slane %v584, 2
      %v587 = vrot.slane %v407, 7
      %v588 = vsel %vm462, %v586, %v587
      %v589 = vrot.slane %v587, 2
      %v590 = vrot.slane %v408, 7
      %v591 = vsel %vm462, %v589, %v590
      %v592 = vrot.slane %v590, 2
      %v593 = vrot.slane %v454, 7
      %v594 = vsel %vm462, %v592, %v593
      %v595 = vrot.slane %v357, 7
      %v596 = vrot.slane %v595, 2
      %v597 = vrot.slane %v409, 7
      %v598 = vsel %vm462, %v596, %v597
      %v599 = vrot.slane %v597, 2
      %v600 = vrot.slane %v410, 7
      %v601 = vsel %vm462, %v599, %v600
      %v602 = vrot.slane %v600, 2
      %v603 = vrot.slane %v411, 7
      %v604 = vsel %vm462, %v602, %v603
      %v605 = vrot.slane %v603, 2
      %v606 = vrot.slane %v358, 7
      %v607 = vsel %vm462, %v605, %v606
      %v608 = vrot.slane %v606, 2
      %v609 = vrot.slane %v412, 7
      %v610 = vsel %vm462, %v608, %v609
      %v611 = vrot.slane %v609, 2
      %v612 = vrot.slane %v413, 7
      %v613 = vsel %vm462, %v611, %v612
      %v614 = vrot.slane %v612, 2
      %v615 = vrot.slane %v455, 7
      %v616 = vsel %vm462, %v614, %v615
      %666 = vst.sshfl [vmem:[#allocation1] sm:$0xff pattern:$0x73625140] %v333
      %667 = vst.sshfl [vmem:[#allocation1 + $0x20] sm:$0xff pattern:$0x73625140] %v334
      %s668 = scalar_lea.vmem [#allocation1], 1
      %v669 = vld [vmem:[%s668] ss:$4 sm:$0xff]
      %s670 = scalar_lea.vmem [#allocation1], 2
      %v671 = vld [vmem:[%s670] ss:$4 sm:$0xff]
      %s672 = scalar_lea.vmem [#allocation1], 3
      %v673 = vld [vmem:[%s672] ss:$4 sm:$0xff]
      %s674 = scalar_lea.vmem [#allocation1], 32
      %v675 = vld [vmem:[%s674] ss:$4 sm:$0xff]
      %s676 = scalar_lea.vmem [#allocation1], 33
      %v677 = vld [vmem:[%s676] ss:$4 sm:$0xff]
      %s678 = scalar_lea.vmem [#allocation1], 34
      %v679 = vld [vmem:[%s678] ss:$4 sm:$0xff]
      %s680 = scalar_lea.vmem [#allocation1], 35
      %v681 = vld [vmem:[%s680] ss:$4 sm:$0xff]
      %682 = vst.sshfl [vmem:[#allocation1] sm:$0xff pattern:$0x73625140] %v337
      %683 = vst.sshfl [vmem:[#allocation1 + $0x20] sm:$0xff pattern:$0x73625140] %v338
      %v684 = vld [vmem:[%s668] ss:$4 sm:$0xff]
      %v685 = vld [vmem:[%s670] ss:$4 sm:$0xff]
      %v686 = vld [vmem:[%s672] ss:$4 sm:$0xff]
      %v687 = vld [vmem:[%s674] ss:$4 sm:$0xff]
      %v688 = vld [vmem:[%s676] ss:$4 sm:$0xff]
      %v689 = vld [vmem:[%s678] ss:$4 sm:$0xff]
      %v690 = vld [vmem:[%s680] ss:$4 sm:$0xff]
      %691 = vst.sshfl [vmem:[#allocation1] sm:$0xff pattern:$0x73625140] %v341
      %692 = vst.sshfl [vmem:[#allocation1 + $0x20] sm:$0xff pattern:$0x73625140] %v342
      %v693 = vld [vmem:[%s668] ss:$4 sm:$0xff]
      %v694 = vld [vmem:[%s670] ss:$4 sm:$0xff]
      %v695 = vld [vmem:[%s672] ss:$4 sm:$0xff]
      %v696 = vld [vmem:[%s674] ss:$4 sm:$0xff]
      %v697 = vld [vmem:[%s676] ss:$4 sm:$0xff]
      %v698 = vld [vmem:[%s678] ss:$4 sm:$0xff]
      %v699 = vld [vmem:[%s680] ss:$4 sm:$0xff]
      %700 = vst.sshfl [vmem:[#allocation1] sm:$0xff pattern:$0x73625140] %v345
      %701 = vst.sshfl [vmem:[#allocation1 + $0x20] sm:$0xff pattern:$0x73625140] %v346
      %v702 = vld [vmem:[%s668] ss:$4 sm:$0xff]
      %v703 = vld [vmem:[%s670] ss:$4 sm:$0xff]
      %v704 = vld [vmem:[%s672] ss:$4 sm:$0xff]
      %v705 = vld [vmem:[%s674] ss:$4 sm:$0xff]
      %v706 = vld [vmem:[%s676] ss:$4 sm:$0xff]
      %v707 = vld [vmem:[%s678] ss:$4 sm:$0xff]
      %v708 = vld [vmem:[%s680] ss:$4 sm:$0xff]
      %709 = vst.sshfl [vmem:[#allocation1] sm:$0xff pattern:$0x73625140] %v349
      %710 = vst.sshfl [vmem:[#allocation1 + $0x20] sm:$0xff pattern:$0x73625140] %v350
      %v711 = vld [vmem:[%s668] ss:$4 sm:$0xff]
      %v712 = vld [vmem:[%s670] ss:$4 sm:$0xff]
      %v713 = vld [vmem:[%s672] ss:$4 sm:$0xff]
      %v714 = vld [vmem:[%s674] ss:$4 sm:$0xff]
      %v715 = vld [vmem:[%s676] ss:$4 sm:$0xff]
      %v716 = vld [vmem:[%s678] ss:$4 sm:$0xff]
      %v717 = vld [vmem:[%s680] ss:$4 sm:$0xff]
      %718 = vst.sshfl [vmem:[#allocation1] sm:$0xff pattern:$0x73625140] %v353
      %719 = vst.sshfl [vmem:[#allocation1 + $0x20] sm:$0xff pattern:$0x73625140] %v354
      %v720 = vld [vmem:[%s668] ss:$4 sm:$0xff]
      %v721 = vld [vmem:[%s670] ss:$4 sm:$0xff]
      %v722 = vld [vmem:[%s672] ss:$4 sm:$0xff]
      %v723 = vld [vmem:[%s674] ss:$4 sm:$0xff]
      %v724 = vld [vmem:[%s676] ss:$4 sm:$0xff]
      %v725 = vld [vmem:[%s678] ss:$4 sm:$0xff]
      %v726 = vld [vmem:[%s680] ss:$4 sm:$0xff]
      %727 = vst.sshfl [vmem:[#allocation1] sm:$0xff pattern:$0x73625140] %v357
      %728 = vst.sshfl [vmem:[#allocation1 + $0x20] sm:$0xff pattern:$0x73625140] %v358
      %v729 = vld [vmem:[%s668] ss:$4 sm:$0xff]
      %v730 = vld [vmem:[%s670] ss:$4 sm:$0xff]
      %v731 = vld [vmem:[%s672] ss:$4 sm:$0xff]
      %v732 = vld [vmem:[%s674] ss:$4 sm:$0xff]
      %v733 = vld [vmem:[%s676] ss:$4 sm:$0xff]
      %v734 = vld [vmem:[%s678] ss:$4 sm:$0xff]
      %v735 = vld [vmem:[%s680] ss:$4 sm:$0xff]
      %v799 = vrot.slane %v335, 2
      %v800 = vrot.slane %v335, 4
      %v801 = vrot.slane %v335, 6
      %v802 = vrot.slane %v336, 2
      %v803 = vrot.slane %v336, 4
      %v804 = vrot.slane %v339, 2
      %v805 = vrot.slane %v339, 4
      %v806 = vrot.slane %v339, 6
      %v807 = vrot.slane %v340, 2
      %v808 = vrot.slane %v340, 4
      %v809 = vrot.slane %v343, 2
      %v810 = vrot.slane %v343, 4
      %v811 = vrot.slane %v343, 6
      %v812 = vrot.slane %v344, 2
      %v813 = vrot.slane %v344, 4
      %v814 = vrot.slane %v347, 2
      %v815 = vrot.slane %v347, 4
      %v816 = vrot.slane %v347, 6
      %v817 = vrot.slane %v348, 2
      %v818 = vrot.slane %v348, 4
      %v819 = vrot.slane %v351, 2
      %v820 = vrot.slane %v351, 4
      %v821 = vrot.slane %v351, 6
      %v822 = vrot.slane %v352, 2
      %v823 = vrot.slane %v352, 4
      %v824 = vrot.slane %v355, 2
      %v825 = vrot.slane %v355, 4
      %v826 = vrot.slane %v355, 6
      %v827 = vrot.slane %v356, 2
      %v828 = vrot.slane %v356, 4
      %v829 = vrot.slane %v359, 2
      %v830 = vrot.slane %v359, 4
      %v831 = vrot.slane %v359, 6
      %v832 = vrot.slane %v360, 2
      %v833 = vrot.slane %v360, 4
      %v869 = vrot.slane %v336, 6
      %v870 = vrot.slane %v340, 6
      %v871 = vrot.slane %v344, 6
      %v872 = vrot.slane %v348, 6
      %v873 = vrot.slane %v352, 6
      %v874 = vrot.slane %v356, 6
      %v875 = vrot.slane %v360, 6
      %v876 = vrot.slane %v335, 7
      %v877 = vrot.slane %v876, 2
      %v878 = vrot.slane %v799, 7
      %v879 = vsel %vm462, %v877, %v878
      %v880 = vrot.slane %v878, 2
      %v881 = vrot.slane %v800, 7
      %v882 = vsel %vm462, %v880, %v881
      %v883 = vrot.slane %v881, 2
      %v884 = vrot.slane %v801, 7
      %v885 = vsel %vm462, %v883, %v884
      %v886 = vrot.slane %v884, 2
      %v887 = vrot.slane %v336, 7
      %v888 = vsel %vm462, %v886, %v887
      %v889 = vrot.slane %v887, 2
      %v890 = vrot.slane %v802, 7
      %v891 = vsel %vm462, %v889, %v890
      %v892 = vrot.slane %v890, 2
      %v893 = vrot.slane %v803, 7
      %v894 = vsel %vm462, %v892, %v893
      %v895 = vrot.slane %v893, 2
      %v896 = vrot.slane %v869, 7
      %v897 = vsel %vm462, %v895, %v896
      %v898 = vrot.slane %v339, 7
      %v899 = vrot.slane %v898, 2
      %v900 = vrot.slane %v804, 7
      %v901 = vsel %vm462, %v899, %v900
      %v902 = vrot.slane %v900, 2
      %v903 = vrot.slane %v805, 7
      %v904 = vsel %vm462, %v902, %v903
      %v905 = vrot.slane %v903, 2
      %v906 = vrot.slane %v806, 7
      %v907 = vsel %vm462, %v905, %v906
      %v908 = vrot.slane %v906, 2
      %v909 = vrot.slane %v340, 7
      %v910 = vsel %vm462, %v908, %v909
      %v911 = vrot.slane %v909, 2
      %v912 = vrot.slane %v807, 7
      %v913 = vsel %vm462, %v911, %v912
      %v914 = vrot.slane %v912, 2
      %v915 = vrot.slane %v808, 7
      %v916 = vsel %vm462, %v914, %v915
      %v917 = vrot.slane %v915, 2
      %v918 = vrot.slane %v870, 7
      %v919 = vsel %vm462, %v917, %v918
      %v920 = vrot.slane %v343, 7
      %v921 = vrot.slane %v920, 2
      %v922 = vrot.slane %v809, 7
      %v923 = vsel %vm462, %v921, %v922
      %v924 = vrot.slane %v922, 2
      %v925 = vrot.slane %v810, 7
      %v926 = vsel %vm462, %v924, %v925
      %v927 = vrot.slane %v925, 2
      %v928 = vrot.slane %v811, 7
      %v929 = vsel %vm462, %v927, %v928
      %v930 = vrot.slane %v928, 2
      %v931 = vrot.slane %v344, 7
      %v932 = vsel %vm462, %v930, %v931
      %v933 = vrot.slane %v931, 2
      %v934 = vrot.slane %v812, 7
      %v935 = vsel %vm462, %v933, %v934
      %v936 = vrot.slane %v934, 2
      %v937 = vrot.slane %v813, 7
      %v938 = vsel %vm462, %v936, %v937
      %v939 = vrot.slane %v937, 2
      %v940 = vrot.slane %v871, 7
      %v941 = vsel %vm462, %v939, %v940
      %v942 = vrot.slane %v347, 7
      %v943 = vrot.slane %v942, 2
      %v944 = vrot.slane %v814, 7
      %v945 = vsel %vm462, %v943, %v944
      %v946 = vrot.slane %v944, 2
      %v947 = vrot.slane %v815, 7
      %v948 = vsel %vm462, %v946, %v947
      %v949 = vrot.slane %v947, 2
      %v950 = vrot.slane %v816, 7
      %v951 = vsel %vm462, %v949, %v950
      %v952 = vrot.slane %v950, 2
      %v953 = vrot.slane %v348, 7
      %v954 = vsel %vm462, %v952, %v953
      %v955 = vrot.slane %v953, 2
      %v956 = vrot.slane %v817, 7
      %v957 = vsel %vm462, %v955, %v956
      %v958 = vrot.slane %v956, 2
      %v959 = vrot.slane %v818, 7
      %v960 = vsel %vm462, %v958, %v959
      %v961 = vrot.slane %v959, 2
      %v962 = vrot.slane %v872, 7
      %v963 = vsel %vm462, %v961, %v962
      %v964 = vrot.slane %v351, 7
      %v965 = vrot.slane %v964, 2
      %v966 = vrot.slane %v819, 7
      %v967 = vsel %vm462, %v965, %v966
      %v968 = vrot.slane %v966, 2
      %v969 = vrot.slane %v820, 7
      %v970 = vsel %vm462, %v968, %v969
      %v971 = vrot.slane %v969, 2
      %v972 = vrot.slane %v821, 7
      %v973 = vsel %vm462, %v971, %v972
      %v974 = vrot.slane %v972, 2
      %v975 = vrot.slane %v352, 7
      %v976 = vsel %vm462, %v974, %v975
      %v977 = vrot.slane %v975, 2
      %v978 = vrot.slane %v822, 7
      %v979 = vsel %vm462, %v977, %v978
      %v980 = vrot.slane %v978, 2
      %v981 = vrot.slane %v823, 7
      %v982 = vsel %vm462, %v980, %v981
      %v983 = vrot.slane %v981, 2
      %v984 = vrot.slane %v873, 7
      %v985 = vsel %vm462, %v983, %v984
      %v986 = vrot.slane %v355, 7
      %v987 = vrot.slane %v986, 2
      %v988 = vrot.slane %v824, 7
      %v989 = vsel %vm462, %v987, %v988
      %v990 = vrot.slane %v988, 2
      %v991 = vrot.slane %v825, 7
      %v992 = vsel %vm462, %v990, %v991
      %v993 = vrot.slane %v991, 2
      %v994 = vrot.slane %v826, 7
      %v995 = vsel %vm462, %v993, %v994
      %v996 = vrot.slane %v994, 2
      %v997 = vrot.slane %v356, 7
      %v998 = vsel %vm462, %v996, %v997
      %v999 = vrot.slane %v997, 2
      %v1000 = vrot.slane %v827, 7
      %v1001 = vsel %vm462, %v999, %v1000
      %v1002 = vrot.slane %v1000, 2
      %v1003 = vrot.slane %v828, 7
      %v1004 = vsel %vm462, %v1002, %v1003
      %v1005 = vrot.slane %v1003, 2
      %v1006 = vrot.slane %v874, 7
      %v1007 = vsel %vm462, %v1005, %v1006
      %v1008 = vrot.slane %v359, 7
      %v1009 = vrot.slane %v1008, 2
      %v1010 = vrot.slane %v829, 7
      %v1011 = vsel %vm462, %v1009, %v1010
      %v1012 = vrot.slane %v1010, 2
      %v1013 = vrot.slane %v830, 7
      %v1014 = vsel %vm462, %v1012, %v1013
      %v1015 = vrot.slane %v1013, 2
      %v1016 = vrot.slane %v831, 7
      %v1017 = vsel %vm462, %v1015, %v1016
      %v1018 = vrot.slane %v1016, 2
      %v1019 = vrot.slane %v360, 7
      %v1020 = vsel %vm462, %v1018, %v1019
      %v1021 = vrot.slane %v1019, 2
      %v1022 = vrot.slane %v832, 7
      %v1023 = vsel %vm462, %v1021, %v1022
      %v1024 = vrot.slane %v1022, 2
      %v1025 = vrot.slane %v833, 7
      %v1026 = vsel %vm462, %v1024, %v1025
      %v1027 = vrot.slane %v1025, 2
      %v1028 = vrot.slane %v875, 7
      %v1029 = vsel %vm462, %v1027, %v1028
      %1079 = vst.sshfl [vmem:[#allocation1] sm:$0xff pattern:$0x73625140] %v335
      %1080 = vst.sshfl [vmem:[#allocation1 + $0x20] sm:$0xff pattern:$0x73625140] %v336
      %s1081 = scalar_lea.vmem [#allocation1], 1
      %v1082 = vld [vmem:[%s1081] ss:$4 sm:$0xff]
      %s1083 = scalar_lea.vmem [#allocation1], 2
      %v1084 = vld [vmem:[%s1083] ss:$4 sm:$0xff]
      %s1085 = scalar_lea.vmem [#allocation1], 3
      %v1086 = vld [vmem:[%s1085] ss:$4 sm:$0xff]
      %s1087 = scalar_lea.vmem [#allocation1], 32
      %v1088 = vld [vmem:[%s1087] ss:$4 sm:$0xff]
      %s1089 = scalar_lea.vmem [#allocation1], 33
      %v1090 = vld [vmem:[%s1089] ss:$4 sm:$0xff]
      %s1091 = scalar_lea.vmem [#allocation1], 34
      %v1092 = vld [vmem:[%s1091] ss:$4 sm:$0xff]
      %s1093 = scalar_lea.vmem [#allocation1], 35
      %v1094 = vld [vmem:[%s1093] ss:$4 sm:$0xff]
      %1095 = vst.sshfl [vmem:[#allocation1] sm:$0xff pattern:$0x73625140] %v339
      %1096 = vst.sshfl [vmem:[#allocation1 + $0x20] sm:$0xff pattern:$0x73625140] %v340
      %v1097 = vld [vmem:[%s1081] ss:$4 sm:$0xff]
      %v1098 = vld [vmem:[%s1083] ss:$4 sm:$0xff]
      %v1099 = vld [vmem:[%s1085] ss:$4 sm:$0xff]
      %v1100 = vld [vmem:[%s1087] ss:$4 sm:$0xff]
      %v1101 = vld [vmem:[%s1089] ss:$4 sm:$0xff]
      %v1102 = vld [vmem:[%s1091] ss:$4 sm:$0xff]
      %v1103 = vld [vmem:[%s1093] ss:$4 sm:$0xff]
      %1104 = vst.sshfl [vmem:[#allocation1] sm:$0xff pattern:$0x73625140] %v343
      %1105 = vst.sshfl [vmem:[#allocation1 + $0x20] sm:$0xff pattern:$0x73625140] %v344
      %v1106 = vld [vmem:[%s1081] ss:$4 sm:$0xff]
      %v1107 = vld [vmem:[%s1083] ss:$4 sm:$0xff]
      %v1108 = vld [vmem:[%s1085] ss:$4 sm:$0xff]
      %v1109 = vld [vmem:[%s1087] ss:$4 sm:$0xff]
      %v1110 = vld [vmem:[%s1089] ss:$4 sm:$0xff]
      %v1111 = vld [vmem:[%s1091] ss:$4 sm:$0xff]
      %v1112 = vld [vmem:[%s1093] ss:$4 sm:$0xff]
      %1113 = vst.sshfl [vmem:[#allocation1] sm:$0xff pattern:$0x73625140] %v347
      %1114 = vst.sshfl [vmem:[#allocation1 + $0x20] sm:$0xff pattern:$0x73625140] %v348
      %v1115 = vld [vmem:[%s1081] ss:$4 sm:$0xff]
      %v1116 = vld [vmem:[%s1083] ss:$4 sm:$0xff]
      %v1117 = vld [vmem:[%s1085] ss:$4 sm:$0xff]
      %v1118 = vld [vmem:[%s1087] ss:$4 sm:$0xff]
      %v1119 = vld [vmem:[%s1089] ss:$4 sm:$0xff]
      %v1120 = vld [vmem:[%s1091] ss:$4 sm:$0xff]
      %v1121 = vld [vmem:[%s1093] ss:$4 sm:$0xff]
      %1122 = vst.sshfl [vmem:[#allocation1] sm:$0xff pattern:$0x73625140] %v351
      %1123 = vst.sshfl [vmem:[#allocation1 + $0x20] sm:$0xff pattern:$0x73625140] %v352
      %v1124 = vld [vmem:[%s1081] ss:$4 sm:$0xff]
      %v1125 = vld [vmem:[%s1083] ss:$4 sm:$0xff]
      %v1126 = vld [vmem:[%s1085] ss:$4 sm:$0xff]
      %v1127 = vld [vmem:[%s1087] ss:$4 sm:$0xff]
      %v1128 = vld [vmem:[%s1089] ss:$4 sm:$0xff]
      %v1129 = vld [vmem:[%s1091] ss:$4 sm:$0xff]
      %v1130 = vld [vmem:[%s1093] ss:$4 sm:$0xff]
      %1131 = vst.sshfl [vmem:[#allocation1] sm:$0xff pattern:$0x73625140] %v355
      %1132 = vst.sshfl [vmem:[#allocation1 + $0x20] sm:$0xff pattern:$0x73625140] %v356
      %v1133 = vld [vmem:[%s1081] ss:$4 sm:$0xff]
      %v1134 = vld [vmem:[%s1083] ss:$4 sm:$0xff]
      %v1135 = vld [vmem:[%s1085] ss:$4 sm:$0xff]
      %v1136 = vld [vmem:[%s1087] ss:$4 sm:$0xff]
      %v1137 = vld [vmem:[%s1089] ss:$4 sm:$0xff]
      %v1138 = vld [vmem:[%s1091] ss:$4 sm:$0xff]
      %v1139 = vld [vmem:[%s1093] ss:$4 sm:$0xff]
      %1140 = vst.sshfl [vmem:[#allocation1] sm:$0xff pattern:$0x73625140] %v359
      %1141 = vst.sshfl [vmem:[#allocation1 + $0x20] sm:$0xff pattern:$0x73625140] %v360
      %v1142 = vld [vmem:[%s1081] ss:$4 sm:$0xff]
      %v1143 = vld [vmem:[%s1083] ss:$4 sm:$0xff]
      %v1144 = vld [vmem:[%s1085] ss:$4 sm:$0xff]
      %v1145 = vld [vmem:[%s1087] ss:$4 sm:$0xff]
      %v1146 = vld [vmem:[%s1089] ss:$4 sm:$0xff]
      %v1147 = vld [vmem:[%s1091] ss:$4 sm:$0xff]
      %v1148 = vld [vmem:[%s1093] ss:$4 sm:$0xff]
      %v1200 = vrot.slane %v361, 2
      %v1201 = vrot.slane %v361, 4
      %v1202 = vrot.slane %v361, 6
      %v1203 = vrot.slane %v362, 2
      %v1204 = vrot.slane %v362, 4
      %v1210 = vrot.slane %v362, 6
      %v1211 = vrot.slane %v361, 7
      %v1212 = vrot.slane %v1211, 2
      %v1213 = vrot.slane %v1200, 7
      %v1214 = vsel %vm462, %v1212, %v1213
      %v1215 = vrot.slane %v1213, 2
      %v1216 = vrot.slane %v1201, 7
      %v1217 = vsel %vm462, %v1215, %v1216
      %v1218 = vrot.slane %v1216, 2
      %v1219 = vrot.slane %v1202, 7
      %v1220 = vsel %vm462, %v1218, %v1219
      %v1221 = vrot.slane %v1219, 2
      %v1222 = vrot.slane %v362, 7
      %v1223 = vsel %vm462, %v1221, %v1222
      %v1224 = vrot.slane %v1222, 2
      %v1225 = vrot.slane %v1203, 7
      %v1226 = vsel %vm462, %v1224, %v1225
      %v1227 = vrot.slane %v1225, 2
      %v1228 = vrot.slane %v1204, 7
      %v1229 = vsel %vm462, %v1227, %v1228
      %v1230 = vrot.slane %v1228, 2
      %v1231 = vrot.slane %v1210, 7
      %v1232 = vsel %vm462, %v1230, %v1231
      %1240 = vst.sshfl [vmem:[#allocation1] sm:$0xff pattern:$0x73625140] %v337
      %1241 = vst.sshfl [vmem:[#allocation1 + $0x20] sm:$0xff pattern:$0x73625140] %v338
      %s1242 = scalar_lea.vmem [#allocation1], 1
      %v1243 = vld [vmem:[%s1242] ss:$4 sm:$0xff]
      %s1244 = scalar_lea.vmem [#allocation1], 2
      %v1245 = vld [vmem:[%s1244] ss:$4 sm:$0xff]
      %s1246 = scalar_lea.vmem [#allocation1], 3
      %v1247 = vld [vmem:[%s1246] ss:$4 sm:$0xff]
      %s1248 = scalar_lea.vmem [#allocation1], 32
      %v1249 = vld [vmem:[%s1248] ss:$4 sm:$0xff]
      %s1250 = scalar_lea.vmem [#allocation1], 33
      %v1251 = vld [vmem:[%s1250] ss:$4 sm:$0xff]
      %s1252 = scalar_lea.vmem [#allocation1], 34
      %v1253 = vld [vmem:[%s1252] ss:$4 sm:$0xff]
      %s1254 = scalar_lea.vmem [#allocation1], 35
      %v1255 = vld [vmem:[%s1254] ss:$4 sm:$0xff]
      %1256 = vst.sshfl [vmem:[#allocation1] sm:$0xff pattern:$0x73625140] %v341
      %1257 = vst.sshfl [vmem:[#allocation1 + $0x20] sm:$0xff pattern:$0x73625140] %v342
      %v1258 = vld [vmem:[%s1242] ss:$4 sm:$0xff]
      %v1259 = vld [vmem:[%s1244] ss:$4 sm:$0xff]
      %v1260 = vld [vmem:[%s1246] ss:$4 sm:$0xff]
      %v1261 = vld [vmem:[%s1248] ss:$4 sm:$0xff]
      %v1262 = vld [vmem:[%s1250] ss:$4 sm:$0xff]
      %v1263 = vld [vmem:[%s1252] ss:$4 sm:$0xff]
      %v1264 = vld [vmem:[%s1254] ss:$4 sm:$0xff]
      %1265 = vst.sshfl [vmem:[#allocation1] sm:$0xff pattern:$0x73625140] %v345
      %1266 = vst.sshfl [vmem:[#allocation1 + $0x20] sm:$0xff pattern:$0x73625140] %v346
      %v1267 = vld [vmem:[%s1242] ss:$4 sm:$0xff]
      %v1268 = vld [vmem:[%s1244] ss:$4 sm:$0xff]
      %v1269 = vld [vmem:[%s1246] ss:$4 sm:$0xff]
      %v1270 = vld [vmem:[%s1248] ss:$4 sm:$0xff]
      %v1271 = vld [vmem:[%s1250] ss:$4 sm:$0xff]
      %v1272 = vld [vmem:[%s1252] ss:$4 sm:$0xff]
      %v1273 = vld [vmem:[%s1254] ss:$4 sm:$0xff]
      %1274 = vst.sshfl [vmem:[#allocation1] sm:$0xff pattern:$0x73625140] %v349
      %1275 = vst.sshfl [vmem:[#allocation1 + $0x20] sm:$0xff pattern:$0x73625140] %v350
      %v1276 = vld [vmem:[%s1242] ss:$4 sm:$0xff]
      %v1277 = vld [vmem:[%s1244] ss:$4 sm:$0xff]
      %v1278 = vld [vmem:[%s1246] ss:$4 sm:$0xff]
      %v1279 = vld [vmem:[%s1248] ss:$4 sm:$0xff]
      %v1280 = vld [vmem:[%s1250] ss:$4 sm:$0xff]
      %v1281 = vld [vmem:[%s1252] ss:$4 sm:$0xff]
      %v1282 = vld [vmem:[%s1254] ss:$4 sm:$0xff]
      %1283 = vst.sshfl [vmem:[#allocation1] sm:$0xff pattern:$0x73625140] %v353
      %1284 = vst.sshfl [vmem:[#allocation1 + $0x20] sm:$0xff pattern:$0x73625140] %v354
      %v1285 = vld [vmem:[%s1242] ss:$4 sm:$0xff]
      %v1286 = vld [vmem:[%s1244] ss:$4 sm:$0xff]
      %v1287 = vld [vmem:[%s1246] ss:$4 sm:$0xff]
      %v1288 = vld [vmem:[%s1248] ss:$4 sm:$0xff]
      %v1289 = vld [vmem:[%s1250] ss:$4 sm:$0xff]
      %v1290 = vld [vmem:[%s1252] ss:$4 sm:$0xff]
      %v1291 = vld [vmem:[%s1254] ss:$4 sm:$0xff]
      %1292 = vst.sshfl [vmem:[#allocation1] sm:$0xff pattern:$0x73625140] %v357
      %1293 = vst.sshfl [vmem:[#allocation1 + $0x20] sm:$0xff pattern:$0x73625140] %v358
      %v1294 = vld [vmem:[%s1242] ss:$4 sm:$0xff]
      %v1295 = vld [vmem:[%s1244] ss:$4 sm:$0xff]
      %v1296 = vld [vmem:[%s1246] ss:$4 sm:$0xff]
      %v1297 = vld [vmem:[%s1248] ss:$4 sm:$0xff]
      %v1298 = vld [vmem:[%s1250] ss:$4 sm:$0xff]
      %v1299 = vld [vmem:[%s1252] ss:$4 sm:$0xff]
      %v1300 = vld [vmem:[%s1254] ss:$4 sm:$0xff]
      %1301 = vst.sshfl [vmem:[#allocation1] sm:$0xff pattern:$0x73625140] %v361
      %1302 = vst.sshfl [vmem:[#allocation1 + $0x20] sm:$0xff pattern:$0x73625140] %v362
      %v1303 = vld [vmem:[%s1242] ss:$4 sm:$0xff]
      %v1304 = vld [vmem:[%s1244] ss:$4 sm:$0xff]
      %v1305 = vld [vmem:[%s1246] ss:$4 sm:$0xff]
      %v1306 = vld [vmem:[%s1248] ss:$4 sm:$0xff]
      %v1307 = vld [vmem:[%s1250] ss:$4 sm:$0xff]
      %v1308 = vld [vmem:[%s1252] ss:$4 sm:$0xff]
      %v1309 = vld [vmem:[%s1254] ss:$4 sm:$0xff]
      %v1359 = vmax.f32 %v333, %v466
      %v1360 = vmax.f32 %v379, %v469
      %v1361 = vmax.f32 %v380, %v472
      %v1362 = vmax.f32 %v381, %v475
      %v1363 = vmax.f32 %v334, %v478
      %v1364 = vmax.f32 %v382, %v481
      %v1365 = vmax.f32 %v383, %v484
      %v1366 = vmax.f32 %v337, %v488
      %v1367 = vmax.f32 %v384, %v491
      %v1368 = vmax.f32 %v385, %v494
      %v1369 = vmax.f32 %v386, %v497
      %v1370 = vmax.f32 %v338, %v500
      %v1371 = vmax.f32 %v387, %v503
      %v1372 = vmax.f32 %v388, %v506
      %v1373 = vmax.f32 %v341, %v510
      %v1374 = vmax.f32 %v389, %v513
      %v1375 = vmax.f32 %v390, %v516
      %v1376 = vmax.f32 %v391, %v519
      %v1377 = vmax.f32 %v342, %v522
      %v1378 = vmax.f32 %v392, %v525
      %v1379 = vmax.f32 %v393, %v528
      %v1380 = vmax.f32 %v345, %v532
      %v1381 = vmax.f32 %v394, %v535
      %v1382 = vmax.f32 %v395, %v538
      %v1383 = vmax.f32 %v396, %v541
      %v1384 = vmax.f32 %v346, %v544
      %v1385 = vmax.f32 %v397, %v547
      %v1386 = vmax.f32 %v398, %v550
      %v1387 = vmax.f32 %v349, %v554
      %v1388 = vmax.f32 %v399, %v557
      %v1389 = vmax.f32 %v400, %v560
      %v1390 = vmax.f32 %v401, %v563
      %v1391 = vmax.f32 %v350, %v566
      %v1392 = vmax.f32 %v402, %v569
      %v1393 = vmax.f32 %v403, %v572
      %v1394 = vmax.f32 %v353, %v576
      %v1395 = vmax.f32 %v404, %v579
      %v1396 = vmax.f32 %v405, %v582
      %v1397 = vmax.f32 %v406, %v585
      %v1398 = vmax.f32 %v354, %v588
      %v1399 = vmax.f32 %v407, %v591
      %v1400 = vmax.f32 %v408, %v594
      %v1401 = vmax.f32 %v357, %v598
      %v1402 = vmax.f32 %v409, %v601
      %v1403 = vmax.f32 %v410, %v604
      %v1404 = vmax.f32 %v411, %v607
      %v1405 = vmax.f32 %v358, %v610
      %v1406 = vmax.f32 %v412, %v613
      %v1407 = vmax.f32 %v413, %v616
      %v1408 = vmax.f32 %v1359, %v669
      %v1409 = vmax.f32 %v1360, %v671
      %v1410 = vmax.f32 %v1361, %v673
      %v1411 = vmax.f32 %v1362, %v675
      %v1412 = vmax.f32 %v1363, %v677
      %v1413 = vmax.f32 %v1364, %v679
      %v1414 = vmax.f32 %v1365, %v681
      %v1415 = vmax.f32 %v1366, %v684
      %v1416 = vmax.f32 %v1367, %v685
      %v1417 = vmax.f32 %v1368, %v686
      %v1418 = vmax.f32 %v1369, %v687
      %v1419 = vmax.f32 %v1370, %v688
      %v1420 = vmax.f32 %v1371, %v689
      %v1421 = vmax.f32 %v1372, %v690
      %v1422 = vmax.f32 %v1373, %v693
      %v1423 = vmax.f32 %v1374, %v694
      %v1424 = vmax.f32 %v1375, %v695
      %v1425 = vmax.f32 %v1376, %v696
      %v1426 = vmax.f32 %v1377, %v697
      %v1427 = vmax.f32 %v1378, %v698
      %v1428 = vmax.f32 %v1379, %v699
      %v1429 = vmax.f32 %v1380, %v702
      %v1430 = vmax.f32 %v1381, %v703
      %v1431 = vmax.f32 %v1382, %v704
      %v1432 = vmax.f32 %v1383, %v705
      %v1433 = vmax.f32 %v1384, %v706
      %v1434 = vmax.f32 %v1385, %v707
      %v1435 = vmax.f32 %v1386, %v708
      %v1436 = vmax.f32 %v1387, %v711
      %v1437 = vmax.f32 %v1388, %v712
      %v1438 = vmax.f32 %v1389, %v713
      %v1439 = vmax.f32 %v1390, %v714
      %v1440 = vmax.f32 %v1391, %v715
      %v1441 = vmax.f32 %v1392, %v716
      %v1442 = vmax.f32 %v1393, %v717
      %v1443 = vmax.f32 %v1394, %v720
      %v1444 = vmax.f32 %v1395, %v721
      %v1445 = vmax.f32 %v1396, %v722
      %v1446 = vmax.f32 %v1397, %v723
      %v1447 = vmax.f32 %v1398, %v724
      %v1448 = vmax.f32 %v1399, %v725
      %v1449 = vmax.f32 %v1400, %v726
      %v1450 = vmax.f32 %v1401, %v729
      %v1451 = vmax.f32 %v1402, %v730
      %v1452 = vmax.f32 %v1403, %v731
      %v1453 = vmax.f32 %v1404, %v732
      %v1454 = vmax.f32 %v1405, %v733
      %v1455 = vmax.f32 %v1406, %v734
      %v1456 = vmax.f32 %v1407, %v735
      %v1457 = vmax.f32 %v1408, %v335
      %v1458 = vmax.f32 %v1409, %v799
      %v1459 = vmax.f32 %v1410, %v800
      %v1460 = vmax.f32 %v1411, %v801
      %v1461 = vmax.f32 %v1412, %v336
      %v1462 = vmax.f32 %v1413, %v802
      %v1463 = vmax.f32 %v1414, %v803
      %v1464 = vmax.f32 %v1415, %v339
      %v1465 = vmax.f32 %v1416, %v804
      %v1466 = vmax.f32 %v1417, %v805
      %v1467 = vmax.f32 %v1418, %v806
      %v1468 = vmax.f32 %v1419, %v340
      %v1469 = vmax.f32 %v1420, %v807
      %v1470 = vmax.f32 %v1421, %v808
      %v1471 = vmax.f32 %v1422, %v343
      %v1472 = vmax.f32 %v1423, %v809
      %v1473 = vmax.f32 %v1424, %v810
      %v1474 = vmax.f32 %v1425, %v811
      %v1475 = vmax.f32 %v1426, %v344
      %v1476 = vmax.f32 %v1427, %v812
      %v1477 = vmax.f32 %v1428, %v813
      %v1478 = vmax.f32 %v1429, %v347
      %v1479 = vmax.f32 %v1430, %v814
      %v1480 = vmax.f32 %v1431, %v815
      %v1481 = vmax.f32 %v1432, %v816
      %v1482 = vmax.f32 %v1433, %v348
      %v1483 = vmax.f32 %v1434, %v817
      %v1484 = vmax.f32 %v1435, %v818
      %v1485 = vmax.f32 %v1436, %v351
      %v1486 = vmax.f32 %v1437, %v819
      %v1487 = vmax.f32 %v1438, %v820
      %v1488 = vmax.f32 %v1439, %v821
      %v1489 = vmax.f32 %v1440, %v352
      %v1490 = vmax.f32 %v1441, %v822
      %v1491 = vmax.f32 %v1442, %v823
      %v1492 = vmax.f32 %v1443, %v355
      %v1493 = vmax.f32 %v1444, %v824
      %v1494 = vmax.f32 %v1445, %v825
      %v1495 = vmax.f32 %v1446, %v826
      %v1496 = vmax.f32 %v1447, %v356
      %v1497 = vmax.f32 %v1448, %v827
      %v1498 = vmax.f32 %v1449, %v828
      %v1499 = vmax.f32 %v1450, %v359
      %v1500 = vmax.f32 %v1451, %v829
      %v1501 = vmax.f32 %v1452, %v830
      %v1502 = vmax.f32 %v1453, %v831
      %v1503 = vmax.f32 %v1454, %v360
      %v1504 = vmax.f32 %v1455, %v832
      %v1505 = vmax.f32 %v1456, %v833
      %v1506 = vmax.f32 %v1457, %v879
      %v1507 = vmax.f32 %v1458, %v882
      %v1508 = vmax.f32 %v1459, %v885
      %v1509 = vmax.f32 %v1460, %v888
      %v1510 = vmax.f32 %v1461, %v891
      %v1511 = vmax.f32 %v1462, %v894
      %v1512 = vmax.f32 %v1463, %v897
      %v1513 = vmax.f32 %v1464, %v901
      %v1514 = vmax.f32 %v1465, %v904
      %v1515 = vmax.f32 %v1466, %v907
      %v1516 = vmax.f32 %v1467, %v910
      %v1517 = vmax.f32 %v1468, %v913
      %v1518 = vmax.f32 %v1469, %v916
      %v1519 = vmax.f32 %v1470, %v919
      %v1520 = vmax.f32 %v1471, %v923
      %v1521 = vmax.f32 %v1472, %v926
      %v1522 = vmax.f32 %v1473, %v929
      %v1523 = vmax.f32 %v1474, %v932
      %v1524 = vmax.f32 %v1475, %v935
      %v1525 = vmax.f32 %v1476, %v938
      %v1526 = vmax.f32 %v1477, %v941
      %v1527 = vmax.f32 %v1478, %v945
      %v1528 = vmax.f32 %v1479, %v948
      %v1529 = vmax.f32 %v1480, %v951
      %v1530 = vmax.f32 %v1481, %v954
      %v1531 = vmax.f32 %v1482, %v957
      %v1532 = vmax.f32 %v1483, %v960
      %v1533 = vmax.f32 %v1484, %v963
      %v1534 = vmax.f32 %v1485, %v967
      %v1535 = vmax.f32 %v1486, %v970
      %v1536 = vmax.f32 %v1487, %v973
      %v1537 = vmax.f32 %v1488, %v976
      %v1538 = vmax.f32 %v1489, %v979
      %v1539 = vmax.f32 %v1490, %v982
      %v1540 = vmax.f32 %v1491, %v985
      %v1541 = vmax.f32 %v1492, %v989
      %v1542 = vmax.f32 %v1493, %v992
      %v1543 = vmax.f32 %v1494, %v995
      %v1544 = vmax.f32 %v1495, %v998
      %v1545 = vmax.f32 %v1496, %v1001
      %v1546 = vmax.f32 %v1497, %v1004
      %v1547 = vmax.f32 %v1498, %v1007
      %v1548 = vmax.f32 %v1499, %v1011
      %v1549 = vmax.f32 %v1500, %v1014
      %v1550 = vmax.f32 %v1501, %v1017
      %v1551 = vmax.f32 %v1502, %v1020
      %v1552 = vmax.f32 %v1503, %v1023
      %v1553 = vmax.f32 %v1504, %v1026
      %v1554 = vmax.f32 %v1505, %v1029
      %v1555 = vmax.f32 %v1506, %v1082
      %v1556 = vmax.f32 %v1507, %v1084
      %v1557 = vmax.f32 %v1508, %v1086
      %v1558 = vmax.f32 %v1509, %v1088
      %v1559 = vmax.f32 %v1510, %v1090
      %v1560 = vmax.f32 %v1511, %v1092
      %v1561 = vmax.f32 %v1512, %v1094
      %v1562 = vmax.f32 %v1513, %v1097
      %v1563 = vmax.f32 %v1514, %v1098
      %v1564 = vmax.f32 %v1515, %v1099
      %v1565 = vmax.f32 %v1516, %v1100
      %v1566 = vmax.f32 %v1517, %v1101
      %v1567 = vmax.f32 %v1518, %v1102
      %v1568 = vmax.f32 %v1519, %v1103
      %v1569 = vmax.f32 %v1520, %v1106
      %v1570 = vmax.f32 %v1521, %v1107
      %v1571 = vmax.f32 %v1522, %v1108
      %v1572 = vmax.f32 %v1523, %v1109
      %v1573 = vmax.f32 %v1524, %v1110
      %v1574 = vmax.f32 %v1525, %v1111
      %v1575 = vmax.f32 %v1526, %v1112
      %v1576 = vmax.f32 %v1527, %v1115
      %v1577 = vmax.f32 %v1528, %v1116
      %v1578 = vmax.f32 %v1529, %v1117
      %v1579 = vmax.f32 %v1530, %v1118
      %v1580 = vmax.f32 %v1531, %v1119
      %v1581 = vmax.f32 %v1532, %v1120
      %v1582 = vmax.f32 %v1533, %v1121
      %v1583 = vmax.f32 %v1534, %v1124
      %v1584 = vmax.f32 %v1535, %v1125
      %v1585 = vmax.f32 %v1536, %v1126
      %v1586 = vmax.f32 %v1537, %v1127
      %v1587 = vmax.f32 %v1538, %v1128
      %v1588 = vmax.f32 %v1539, %v1129
      %v1589 = vmax.f32 %v1540, %v1130
      %v1590 = vmax.f32 %v1541, %v1133
      %v1591 = vmax.f32 %v1542, %v1134
      %v1592 = vmax.f32 %v1543, %v1135
      %v1593 = vmax.f32 %v1544, %v1136
      %v1594 = vmax.f32 %v1545, %v1137
      %v1595 = vmax.f32 %v1546, %v1138
      %v1596 = vmax.f32 %v1547, %v1139
      %v1597 = vmax.f32 %v1548, %v1142
      %v1598 = vmax.f32 %v1549, %v1143
      %v1599 = vmax.f32 %v1550, %v1144
      %v1600 = vmax.f32 %v1551, %v1145
      %v1601 = vmax.f32 %v1552, %v1146
      %v1602 = vmax.f32 %v1553, %v1147
      %v1603 = vmax.f32 %v1554, %v1148
      %v1604 = vmax.f32 %v1555, %v337
      %v1605 = vmax.f32 %v1556, %v384
      %v1606 = vmax.f32 %v1557, %v385
      %v1607 = vmax.f32 %v1558, %v386
      %v1608 = vmax.f32 %v1559, %v338
      %v1609 = vmax.f32 %v1560, %v387
      %v1610 = vmax.f32 %v1561, %v388
      %v1611 = vmax.f32 %v1562, %v341
      %v1612 = vmax.f32 %v1563, %v389
      %v1613 = vmax.f32 %v1564, %v390
      %v1614 = vmax.f32 %v1565, %v391
      %v1615 = vmax.f32 %v1566, %v342
      %v1616 = vmax.f32 %v1567, %v392
      %v1617 = vmax.f32 %v1568, %v393
      %v1618 = vmax.f32 %v1569, %v345
      %v1619 = vmax.f32 %v1570, %v394
      %v1620 = vmax.f32 %v1571, %v395
      %v1621 = vmax.f32 %v1572, %v396
      %v1622 = vmax.f32 %v1573, %v346
      %v1623 = vmax.f32 %v1574, %v397
      %v1624 = vmax.f32 %v1575, %v398
      %v1625 = vmax.f32 %v1576, %v349
      %v1626 = vmax.f32 %v1577, %v399
      %v1627 = vmax.f32 %v1578, %v400
      %v1628 = vmax.f32 %v1579, %v401
      %v1629 = vmax.f32 %v1580, %v350
      %v1630 = vmax.f32 %v1581, %v402
      %v1631 = vmax.f32 %v1582, %v403
      %v1632 = vmax.f32 %v1583, %v353
      %v1633 = vmax.f32 %v1584, %v404
      %v1634 = vmax.f32 %v1585, %v405
      %v1635 = vmax.f32 %v1586, %v406
      %v1636 = vmax.f32 %v1587, %v354
      %v1637 = vmax.f32 %v1588, %v407
      %v1638 = vmax.f32 %v1589, %v408
      %v1639 = vmax.f32 %v1590, %v357
      %v1640 = vmax.f32 %v1591, %v409
      %v1641 = vmax.f32 %v1592, %v410
      %v1642 = vmax.f32 %v1593, %v411
      %v1643 = vmax.f32 %v1594, %v358
      %v1644 = vmax.f32 %v1595, %v412
      %v1645 = vmax.f32 %v1596, %v413
      %v1646 = vmax.f32 %v1597, %v361
      %v1647 = vmax.f32 %v1598, %v1200
      %v1648 = vmax.f32 %v1599, %v1201
      %v1649 = vmax.f32 %v1600, %v1202
      %v1650 = vmax.f32 %v1601, %v362
      %v1651 = vmax.f32 %v1602, %v1203
      %v1652 = vmax.f32 %v1603, %v1204
      %v1653 = vmax.f32 %v1604, %v488
      %v1654 = vmax.f32 %v1605, %v491
      %v1655 = vmax.f32 %v1606, %v494
      %v1656 = vmax.f32 %v1607, %v497
      %v1657 = vmax.f32 %v1608, %v500
      %v1658 = vmax.f32 %v1609, %v503
      %v1659 = vmax.f32 %v1610, %v506
      %v1660 = vmax.f32 %v1611, %v510
      %v1661 = vmax.f32 %v1612, %v513
      %v1662 = vmax.f32 %v1613, %v516
      %v1663 = vmax.f32 %v1614, %v519
      %v1664 = vmax.f32 %v1615, %v522
      %v1665 = vmax.f32 %v1616, %v525
      %v1666 = vmax.f32 %v1617, %v528
      %v1667 = vmax.f32 %v1618, %v532
      %v1668 = vmax.f32 %v1619, %v535
      %v1669 = vmax.f32 %v1620, %v538
      %v1670 = vmax.f32 %v1621, %v541
      %v1671 = vmax.f32 %v1622, %v544
      %v1672 = vmax.f32 %v1623, %v547
      %v1673 = vmax.f32 %v1624, %v550
      %v1674 = vmax.f32 %v1625, %v554
      %v1675 = vmax.f32 %v1626, %v557
      %v1676 = vmax.f32 %v1627, %v560
      %v1677 = vmax.f32 %v1628, %v563
      %v1678 = vmax.f32 %v1629, %v566
      %v1679 = vmax.f32 %v1630, %v569
      %v1680 = vmax.f32 %v1631, %v572
      %v1681 = vmax.f32 %v1632, %v576
      %v1682 = vmax.f32 %v1633, %v579
      %v1683 = vmax.f32 %v1634, %v582
      %v1684 = vmax.f32 %v1635, %v585
      %v1685 = vmax.f32 %v1636, %v588
      %v1686 = vmax.f32 %v1637, %v591
      %v1687 = vmax.f32 %v1638, %v594
      %v1688 = vmax.f32 %v1639, %v598
      %v1689 = vmax.f32 %v1640, %v601
      %v1690 = vmax.f32 %v1641, %v604
      %v1691 = vmax.f32 %v1642, %v607
      %v1692 = vmax.f32 %v1643, %v610
      %v1693 = vmax.f32 %v1644, %v613
      %v1694 = vmax.f32 %v1645, %v616
      %v1695 = vmax.f32 %v1646, %v1214
      %v1696 = vmax.f32 %v1647, %v1217
      %v1697 = vmax.f32 %v1648, %v1220
      %v1698 = vmax.f32 %v1649, %v1223
      %v1699 = vmax.f32 %v1650, %v1226
      %v1700 = vmax.f32 %v1651, %v1229
      %v1701 = vmax.f32 %v1652, %v1232
      %v1702 = vmax.f32 %v1653, %v1243
      %v1703 = vmax.f32 %v1654, %v1245
      %v1704 = vmax.f32 %v1655, %v1247
      %v1705 = vmax.f32 %v1656, %v1249
      %v1706 = vmax.f32 %v1657, %v1251
      %v1707 = vmax.f32 %v1658, %v1253
      %v1708 = vmax.f32 %v1659, %v1255
      %v1709 = vmax.f32 %v1660, %v1258
      %v1710 = vmax.f32 %v1661, %v1259
      %v1711 = vmax.f32 %v1662, %v1260
      %v1712 = vmax.f32 %v1663, %v1261
      %v1713 = vmax.f32 %v1664, %v1262
      %v1714 = vmax.f32 %v1665, %v1263
      %v1715 = vmax.f32 %v1666, %v1264
      %v1716 = vmax.f32 %v1667, %v1267
      %v1717 = vmax.f32 %v1668, %v1268
      %v1718 = vmax.f32 %v1669, %v1269
      %v1719 = vmax.f32 %v1670, %v1270
      %v1720 = vmax.f32 %v1671, %v1271
      %v1721 = vmax.f32 %v1672, %v1272
      %v1722 = vmax.f32 %v1673, %v1273
      %v1723 = vmax.f32 %v1674, %v1276
      %v1724 = vmax.f32 %v1675, %v1277
      %v1725 = vmax.f32 %v1676, %v1278
      %v1726 = vmax.f32 %v1677, %v1279
      %v1727 = vmax.f32 %v1678, %v1280
      %v1728 = vmax.f32 %v1679, %v1281
      %v1729 = vmax.f32 %v1680, %v1282
      %v1730 = vmax.f32 %v1681, %v1285
      %v1731 = vmax.f32 %v1682, %v1286
      %v1732 = vmax.f32 %v1683, %v1287
      %v1733 = vmax.f32 %v1684, %v1288
      %v1734 = vmax.f32 %v1685, %v1289
      %v1735 = vmax.f32 %v1686, %v1290
      %v1736 = vmax.f32 %v1687, %v1291
      %v1737 = vmax.f32 %v1688, %v1294
      %v1738 = vmax.f32 %v1689, %v1295
      %v1739 = vmax.f32 %v1690, %v1296
      %v1740 = vmax.f32 %v1691, %v1297
      %v1741 = vmax.f32 %v1692, %v1298
      %v1742 = vmax.f32 %v1693, %v1299
      %v1743 = vmax.f32 %v1694, %v1300
      %v1744 = vmax.f32 %v1695, %v1303
      %v1745 = vmax.f32 %v1696, %v1304
      %v1746 = vmax.f32 %v1697, %v1305
      %v1747 = vmax.f32 %v1698, %v1306
      %v1748 = vmax.f32 %v1699, %v1307
      %v1749 = vmax.f32 %v1700, %v1308
      %v1750 = vmax.f32 %v1701, %v1309
      %v1751 = vperm.slane %v333, 0
      %v1752 = vperm.slane %v379, 0
      %v1753 = vperm.slane %v380, 0
      %v1754 = vperm.slane %v381, 0
      %v1755 = vperm.slane %v334, 0
      %v1756 = vperm.slane %v382, 0
      %v1757 = vperm.slane %v383, 0
      %v1758 = vperm.slane %v337, 0
      %v1759 = vperm.slane %v384, 0
      %v1760 = vperm.slane %v385, 0
      %v1761 = vperm.slane %v386, 0
      %v1762 = vperm.slane %v338, 0
      %v1763 = vperm.slane %v387, 0
      %v1764 = vperm.slane %v388, 0
      %v1765 = vperm.slane %v341, 0
      %v1766 = vperm.slane %v389, 0
      %v1767 = vperm.slane %v390, 0
      %v1768 = vperm.slane %v391, 0
      %v1769 = vperm.slane %v342, 0
      %v1770 = vperm.slane %v392, 0
      %v1771 = vperm.slane %v393, 0
      %v1772 = vperm.slane %v345, 0
      %v1773 = vperm.slane %v394, 0
      %v1774 = vperm.slane %v395, 0
      %v1775 = vperm.slane %v396, 0
      %v1776 = vperm.slane %v346, 0
      %v1777 = vperm.slane %v397, 0
      %v1778 = vperm.slane %v398, 0
      %v1779 = vperm.slane %v349, 0
      %v1780 = vperm.slane %v399, 0
      %v1781 = vperm.slane %v400, 0
      %v1782 = vperm.slane %v401, 0
      %v1783 = vperm.slane %v350, 0
      %v1784 = vperm.slane %v402, 0
      %v1785 = vperm.slane %v403, 0
      %v1786 = vperm.slane %v353, 0
      %v1787 = vperm.slane %v404, 0
      %v1788 = vperm.slane %v405, 0
      %v1789 = vperm.slane %v406, 0
      %v1790 = vperm.slane %v354, 0
      %v1791 = vperm.slane %v407, 0
      %v1792 = vperm.slane %v408, 0
      %v1793 = vperm.slane %v357, 0
      %v1794 = vperm.slane %v409, 0
      %v1795 = vperm.slane %v410, 0
      %v1796 = vperm.slane %v411, 0
      %v1797 = vperm.slane %v358, 0
      %v1798 = vperm.slane %v412, 0
      %v1799 = vperm.slane %v413, 0
      %vm1800 = vcmask 1041409
      %v1801 = vsel %vm1800, %v1752, %v1751
      %v1802 = vsel %vm457, %v1753, %v1801
      %vm1803 = vcmask 1043459
      %v1804 = vsel %vm1803, %v1754, %v1802
      %v1805 = vsel %vm459, %v1755, %v1804
      %vm1806 = vcmask 1045509
      %v1807 = vsel %vm1806, %v1756, %v1805
      %v1808 = vsel %vm461, %v1757, %v1807
      %v1809 = vsel %vm1800, %v1759, %v1758
      %v1810 = vsel %vm457, %v1760, %v1809
      %v1811 = vsel %vm1803, %v1761, %v1810
      %v1812 = vsel %vm459, %v1762, %v1811
      %v1813 = vsel %vm1806, %v1763, %v1812
      %v1814 = vsel %vm461, %v1764, %v1813
      %v1815 = vsel %vm1800, %v1766, %v1765
      %v1816 = vsel %vm457, %v1767, %v1815
      %v1817 = vsel %vm1803, %v1768, %v1816
      %v1818 = vsel %vm459, %v1769, %v1817
      %v1819 = vsel %vm1806, %v1770, %v1818
      %v1820 = vsel %vm461, %v1771, %v1819
      %v1821 = vsel %vm1800, %v1773, %v1772
      %v1822 = vsel %vm457, %v1774, %v1821
      %v1823 = vsel %vm1803, %v1775, %v1822
      %v1824 = vsel %vm459, %v1776, %v1823
      %v1825 = vsel %vm1806, %v1777, %v1824
      %v1826 = vsel %vm461, %v1778, %v1825
      %v1827 = vsel %vm1800, %v1780, %v1779
      %v1828 = vsel %vm457, %v1781, %v1827
      %v1829 = vsel %vm1803, %v1782, %v1828
      %v1830 = vsel %vm459, %v1783, %v1829
      %v1831 = vsel %vm1806, %v1784, %v1830
      %v1832 = vsel %vm461, %v1785, %v1831
      %v1833 = vsel %vm1800, %v1787, %v1786
      %v1834 = vsel %vm457, %v1788, %v1833
      %v1835 = vsel %vm1803, %v1789, %v1834
      %v1836 = vsel %vm459, %v1790, %v1835
      %v1837 = vsel %vm1806, %v1791, %v1836
      %v1838 = vsel %vm461, %v1792, %v1837
      %v1839 = vsel %vm1800, %v1794, %v1793
      %v1840 = vsel %vm457, %v1795, %v1839
      %v1841 = vsel %vm1803, %v1796, %v1840
      %v1842 = vsel %vm459, %v1797, %v1841
      %v1843 = vsel %vm1806, %v1798, %v1842
      %v1844 = vsel %vm461, %v1799, %v1843
      %v1852 = vperm.slane %v466, 0
      %v1853 = vperm.slane %v469, 0
      %v1854 = vperm.slane %v472, 0
      %v1855 = vperm.slane %v475, 0
      %v1856 = vperm.slane %v478, 0
      %v1857 = vperm.slane %v481, 0
      %v1858 = vperm.slane %v484, 0
      %v1859 = vperm.slane %v488, 0
      %v1860 = vperm.slane %v491, 0
      %v1861 = vperm.slane %v494, 0
      %v1862 = vperm.slane %v497, 0
      %v1863 = vperm.slane %v500, 0
      %v1864 = vperm.slane %v503, 0
      %v1865 = vperm.slane %v506, 0
      %v1866 = vperm.slane %v510, 0
      %v1867 = vperm.slane %v513, 0
      %v1868 = vperm.slane %v516, 0
      %v1869 = vperm.slane %v519, 0
      %v1870 = vperm.slane %v522, 0
      %v1871 = vperm.slane %v525, 0
      %v1872 = vperm.slane %v528, 0
      %v1873 = vperm.slane %v532, 0
      %v1874 = vperm.slane %v535, 0
      %v1875 = vperm.slane %v538, 0
      %v1876 = vperm.slane %v541, 0
      %v1877 = vperm.slane %v544, 0
      %v1878 = vperm.slane %v547, 0
      %v1879 = vperm.slane %v550, 0
      %v1880 = vperm.slane %v554, 0
      %v1881 = vperm.slane %v557, 0
      %v1882 = vperm.slane %v560, 0
      %v1883 = vperm.slane %v563, 0
      %v1884 = vperm.slane %v566, 0
      %v1885 = vperm.slane %v569, 0
      %v1886 = vperm.slane %v572, 0
      %v1887 = vperm.slane %v576, 0
      %v1888 = vperm.slane %v579, 0
      %v1889 = vperm.slane %v582, 0
      %v1890 = vperm.slane %v585, 0
      %v1891 = vperm.slane %v588, 0
      %v1892 = vperm.slane %v591, 0
      %v1893 = vperm.slane %v594, 0
      %v1894 = vperm.slane %v598, 0
      %v1895 = vperm.slane %v601, 0
      %v1896 = vperm.slane %v604, 0
      %v1897 = vperm.slane %v607, 0
      %v1898 = vperm.slane %v610, 0
      %v1899 = vperm.slane %v613, 0
      %v1900 = vperm.slane %v616, 0
      %v1901 = vsel %vm1800, %v1853, %v1852
      %v1902 = vsel %vm457, %v1854, %v1901
      %v1903 = vsel %vm1803, %v1855, %v1902
      %v1904 = vsel %vm459, %v1856, %v1903
      %v1905 = vsel %vm1806, %v1857, %v1904
      %v1906 = vsel %vm461, %v1858, %v1905
      %v1907 = vsel %vm1800, %v1860, %v1859
      %v1908 = vsel %vm457, %v1861, %v1907
      %v1909 = vsel %vm1803, %v1862, %v1908
      %v1910 = vsel %vm459, %v1863, %v1909
      %v1911 = vsel %vm1806, %v1864, %v1910
      %v1912 = vsel %vm461, %v1865, %v1911
      %v1913 = vsel %vm1800, %v1867, %v1866
      %v1914 = vsel %vm457, %v1868, %v1913
      %v1915 = vsel %vm1803, %v1869, %v1914
      %v1916 = vsel %vm459, %v1870, %v1915
      %v1917 = vsel %vm1806, %v1871, %v1916
      %v1918 = vsel %vm461, %v1872, %v1917
      %v1919 = vsel %vm1800, %v1874, %v1873
      %v1920 = vsel %vm457, %v1875, %v1919
      %v1921 = vsel %vm1803, %v1876, %v1920
      %v1922 = vsel %vm459, %v1877, %v1921
      %v1923 = vsel %vm1806, %v1878, %v1922
      %v1924 = vsel %vm461, %v1879, %v1923
      %v1925 = vsel %vm1800, %v1881, %v1880
      %v1926 = vsel %vm457, %v1882, %v1925
      %v1927 = vsel %vm1803, %v1883, %v1926
      %v1928 = vsel %vm459, %v1884, %v1927
      %v1929 = vsel %vm1806, %v1885, %v1928
      %v1930 = vsel %vm461, %v1886, %v1929
      %v1931 = vsel %vm1800, %v1888, %v1887
      %v1932 = vsel %vm457, %v1889, %v1931
      %v1933 = vsel %vm1803, %v1890, %v1932
      %v1934 = vsel %vm459, %v1891, %v1933
      %v1935 = vsel %vm1806, %v1892, %v1934
      %v1936 = vsel %vm461, %v1893, %v1935
      %v1937 = vsel %vm1800, %v1895, %v1894
      %v1938 = vsel %vm457, %v1896, %v1937
      %v1939 = vsel %vm1803, %v1897, %v1938
      %v1940 = vsel %vm459, %v1898, %v1939
      %v1941 = vsel %vm1806, %v1899, %v1940
      %v1942 = vsel %vm461, %v1900, %v1941
      %1943 = vrot.lane.b32.xlu0 %v1906, 4
      %v1944 = vpop.permute.xlu0 %1943
      %1945 = vrot.lane.b32.xlu0 %v1912, 4
      %v1946 = vpop.permute.xlu0 %1945
      %1947 = vrot.lane.b32.xlu0 %v1918, 4
      %v1948 = vpop.permute.xlu0 %1947
      %1949 = vrot.lane.b32.xlu0 %v1924, 4
      %v1950 = vpop.permute.xlu0 %1949
      %1951 = vrot.lane.b32.xlu0 %v1930, 4
      %v1952 = vpop.permute.xlu0 %1951
      %1953 = vrot.lane.b32.xlu0 %v1936, 4
      %v1954 = vpop.permute.xlu0 %1953
      %1955 = vrot.lane.b32.xlu0 %v1942, 4
      %v1956 = vpop.permute.xlu0 %1955
      %v1964 = vperm.slane %v669, 0
      %v1965 = vperm.slane %v671, 0
      %v1966 = vperm.slane %v673, 0
      %v1967 = vperm.slane %v675, 0
      %v1968 = vperm.slane %v677, 0
      %v1969 = vperm.slane %v679, 0
      %v1970 = vperm.slane %v681, 0
      %v1971 = vperm.slane %v684, 0
      %v1972 = vperm.slane %v685, 0
      %v1973 = vperm.slane %v686, 0
      %v1974 = vperm.slane %v687, 0
      %v1975 = vperm.slane %v688, 0
      %v1976 = vperm.slane %v689, 0
      %v1977 = vperm.slane %v690, 0
      %v1978 = vperm.slane %v693, 0
      %v1979 = vperm.slane %v694, 0
      %v1980 = vperm.slane %v695, 0
      %v1981 = vperm.slane %v696, 0
      %v1982 = vperm.slane %v697, 0
      %v1983 = vperm.slane %v698, 0
      %v1984 = vperm.slane %v699, 0
      %v1985 = vperm.slane %v702, 0
      %v1986 = vperm.slane %v703, 0
      %v1987 = vperm.slane %v704, 0
      %v1988 = vperm.slane %v705, 0
      %v1989 = vperm.slane %v706, 0
      %v1990 = vperm.slane %v707, 0
      %v1991 = vperm.slane %v708, 0
      %v1992 = vperm.slane %v711, 0
      %v1993 = vperm.slane %v712, 0
      %v1994 = vperm.slane %v713, 0
      %v1995 = vperm.slane %v714, 0
      %v1996 = vperm.slane %v715, 0
      %v1997 = vperm.slane %v716, 0
      %v1998 = vperm.slane %v717, 0
      %v1999 = vperm.slane %v720, 0
      %v2000 = vperm.slane %v721, 0
      %v2001 = vperm.slane %v722, 0
      %v2002 = vperm.slane %v723, 0
      %v2003 = vperm.slane %v724, 0
      %v2004 = vperm.slane %v725, 0
      %v2005 = vperm.slane %v726, 0
      %v2006 = vperm.slane %v729, 0
      %v2007 = vperm.slane %v730, 0
      %v2008 = vperm.slane %v731, 0
      %v2009 = vperm.slane %v732, 0
      %v2010 = vperm.slane %v733, 0
      %v2011 = vperm.slane %v734, 0
      %v2012 = vperm.slane %v735, 0
      %v2013 = vsel %vm1800, %v1965, %v1964
      %v2014 = vsel %vm457, %v1966, %v2013
      %v2015 = vsel %vm1803, %v1967, %v2014
      %v2016 = vsel %vm459, %v1968, %v2015
      %v2017 = vsel %vm1806, %v1969, %v2016
      %v2018 = vsel %vm461, %v1970, %v2017
      %v2019 = vsel %vm1800, %v1972, %v1971
      %v2020 = vsel %vm457, %v1973, %v2019
      %v2021 = vsel %vm1803, %v1974, %v2020
      %v2022 = vsel %vm459, %v1975, %v2021
      %v2023 = vsel %vm1806, %v1976, %v2022
      %v2024 = vsel %vm461, %v1977, %v2023
      %v2025 = vsel %vm1800, %v1979, %v1978
      %v2026 = vsel %vm457, %v1980, %v2025
      %v2027 = vsel %vm1803, %v1981, %v2026
      %v2028 = vsel %vm459, %v1982, %v2027
      %v2029 = vsel %vm1806, %v1983, %v2028
      %v2030 = vsel %vm461, %v1984, %v2029
      %v2031 = vsel %vm1800, %v1986, %v1985
      %v2032 = vsel %vm457, %v1987, %v2031
      %v2033 = vsel %vm1803, %v1988, %v2032
      %v2034 = vsel %vm459, %v1989, %v2033
      %v2035 = vsel %vm1806, %v1990, %v2034
      %v2036 = vsel %vm461, %v1991, %v2035
      %v2037 = vsel %vm1800, %v1993, %v1992
      %v2038 = vsel %vm457, %v1994, %v2037
      %v2039 = vsel %vm1803, %v1995, %v2038
      %v2040 = vsel %vm459, %v1996, %v2039
      %v2041 = vsel %vm1806, %v1997, %v2040
      %v2042 = vsel %vm461, %v1998, %v2041
      %v2043 = vsel %vm1800, %v2000, %v1999
      %v2044 = vsel %vm457, %v2001, %v2043
      %v2045 = vsel %vm1803, %v2002, %v2044
      %v2046 = vsel %vm459, %v2003, %v2045
      %v2047 = vsel %vm1806, %v2004, %v2046
      %v2048 = vsel %vm461, %v2005, %v2047
      %v2049 = vsel %vm1800, %v2007, %v2006
      %v2050 = vsel %vm457, %v2008, %v2049
      %v2051 = vsel %vm1803, %v2009, %v2050
      %v2052 = vsel %vm459, %v2010, %v2051
      %v2053 = vsel %vm1806, %v2011, %v2052
      %v2054 = vsel %vm461, %v2012, %v2053
      %2055 = vrot.lane.b32.xlu0 %v2018, 8
      %v2056 = vpop.permute.xlu0 %2055
      %2057 = vrot.lane.b32.xlu0 %v2024, 8
      %v2058 = vpop.permute.xlu0 %2057
      %2059 = vrot.lane.b32.xlu0 %v2030, 8
      %v2060 = vpop.permute.xlu0 %2059
      %2061 = vrot.lane.b32.xlu0 %v2036, 8
      %v2062 = vpop.permute.xlu0 %2061
      %2063 = vrot.lane.b32.xlu0 %v2042, 8
      %v2064 = vpop.permute.xlu0 %2063
      %2065 = vrot.lane.b32.xlu0 %v2048, 8
      %v2066 = vpop.permute.xlu0 %2065
      %2067 = vrot.lane.b32.xlu0 %v2054, 8
      %v2068 = vpop.permute.xlu0 %2067
      %v2076 = vperm.slane %v335, 0
      %v2077 = vperm.slane %v799, 0
      %v2078 = vperm.slane %v800, 0
      %v2079 = vperm.slane %v801, 0
      %v2080 = vperm.slane %v336, 0
      %v2081 = vperm.slane %v802, 0
      %v2082 = vperm.slane %v803, 0
      %v2083 = vperm.slane %v339, 0
      %v2084 = vperm.slane %v804, 0
      %v2085 = vperm.slane %v805, 0
      %v2086 = vperm.slane %v806, 0
      %v2087 = vperm.slane %v340, 0
      %v2088 = vperm.slane %v807, 0
      %v2089 = vperm.slane %v808, 0
      %v2090 = vperm.slane %v343, 0
      %v2091 = vperm.slane %v809, 0
      %v2092 = vperm.slane %v810, 0
      %v2093 = vperm.slane %v811, 0
      %v2094 = vperm.slane %v344, 0
      %v2095 = vperm.slane %v812, 0
      %v2096 = vperm.slane %v813, 0
      %v2097 = vperm.slane %v347, 0
      %v2098 = vperm.slane %v814, 0
      %v2099 = vperm.slane %v815, 0
      %v2100 = vperm.slane %v816, 0
      %v2101 = vperm.slane %v348, 0
      %v2102 = vperm.slane %v817, 0
      %v2103 = vperm.slane %v818, 0
      %v2104 = vperm.slane %v351, 0
      %v2105 = vperm.slane %v819, 0
      %v2106 = vperm.slane %v820, 0
      %v2107 = vperm.slane %v821, 0
      %v2108 = vperm.slane %v352, 0
      %v2109 = vperm.slane %v822, 0
      %v2110 = vperm.slane %v823, 0
      %v2111 = vperm.slane %v355, 0
      %v2112 = vperm.slane %v824, 0
      %v2113 = vperm.slane %v825, 0
      %v2114 = vperm.slane %v826, 0
      %v2115 = vperm.slane %v356, 0
      %v2116 = vperm.slane %v827, 0
      %v2117 = vperm.slane %v828, 0
      %v2118 = vperm.slane %v359, 0
      %v2119 = vperm.slane %v829, 0
      %v2120 = vperm.slane %v830, 0
      %v2121 = vperm.slane %v831, 0
      %v2122 = vperm.slane %v360, 0
      %v2123 = vperm.slane %v832, 0
      %v2124 = vperm.slane %v833, 0
      %v2125 = vsel %vm1800, %v2077, %v2076
      %v2126 = vsel %vm457, %v2078, %v2125
      %v2127 = vsel %vm1803, %v2079, %v2126
      %v2128 = vsel %vm459, %v2080, %v2127
      %v2129 = vsel %vm1806, %v2081, %v2128
      %v2130 = vsel %vm461, %v2082, %v2129
      %v2131 = vsel %vm1800, %v2084, %v2083
      %v2132 = vsel %vm457, %v2085, %v2131
      %v2133 = vsel %vm1803, %v2086, %v2132
      %v2134 = vsel %vm459, %v2087, %v2133
      %v2135 = vsel %vm1806, %v2088, %v2134
      %v2136 = vsel %vm461, %v2089, %v2135
      %v2137 = vsel %vm1800, %v2091, %v2090
      %v2138 = vsel %vm457, %v2092, %v2137
      %v2139 = vsel %vm1803, %v2093, %v2138
      %v2140 = vsel %vm459, %v2094, %v2139
      %v2141 = vsel %vm1806, %v2095, %v2140
      %v2142 = vsel %vm461, %v2096, %v2141
      %v2143 = vsel %vm1800, %v2098, %v2097
      %v2144 = vsel %vm457, %v2099, %v2143
      %v2145 = vsel %vm1803, %v2100, %v2144
      %v2146 = vsel %vm459, %v2101, %v2145
      %v2147 = vsel %vm1806, %v2102, %v2146
      %v2148 = vsel %vm461, %v2103, %v2147
      %v2149 = vsel %vm1800, %v2105, %v2104
      %v2150 = vsel %vm457, %v2106, %v2149
      %v2151 = vsel %vm1803, %v2107, %v2150
      %v2152 = vsel %vm459, %v2108, %v2151
      %v2153 = vsel %vm1806, %v2109, %v2152
      %v2154 = vsel %vm461, %v2110, %v2153
      %v2155 = vsel %vm1800, %v2112, %v2111
      %v2156 = vsel %vm457, %v2113, %v2155
      %v2157 = vsel %vm1803, %v2114, %v2156
      %v2158 = vsel %vm459, %v2115, %v2157
      %v2159 = vsel %vm1806, %v2116, %v2158
      %v2160 = vsel %vm461, %v2117, %v2159
      %v2161 = vsel %vm1800, %v2119, %v2118
      %v2162 = vsel %vm457, %v2120, %v2161
      %v2163 = vsel %vm1803, %v2121, %v2162
      %v2164 = vsel %vm459, %v2122, %v2163
      %v2165 = vsel %vm1806, %v2123, %v2164
      %v2166 = vsel %vm461, %v2124, %v2165
      %2167 = vrot.lane.b32.xlu0 %v2130, 12
      %v2168 = vpop.permute.xlu0 %2167
      %2169 = vrot.lane.b32.xlu0 %v2136, 12
      %v2170 = vpop.permute.xlu0 %2169
      %2171 = vrot.lane.b32.xlu0 %v2142, 12
      %v2172 = vpop.permute.xlu0 %2171
      %2173 = vrot.lane.b32.xlu0 %v2148, 12
      %v2174 = vpop.permute.xlu0 %2173
      %2175 = vrot.lane.b32.xlu0 %v2154, 12
      %v2176 = vpop.permute.xlu0 %2175
      %2177 = vrot.lane.b32.xlu0 %v2160, 12
      %v2178 = vpop.permute.xlu0 %2177
      %2179 = vrot.lane.b32.xlu0 %v2166, 12
      %v2180 = vpop.permute.xlu0 %2179
      %v2188 = vperm.slane %v879, 0
      %v2189 = vperm.slane %v882, 0
      %v2190 = vperm.slane %v885, 0
      %v2191 = vperm.slane %v888, 0
      %v2192 = vperm.slane %v891, 0
      %v2193 = vperm.slane %v894, 0
      %v2194 = vperm.slane %v897, 0
      %v2195 = vperm.slane %v901, 0
      %v2196 = vperm.slane %v904, 0
      %v2197 = vperm.slane %v907, 0
      %v2198 = vperm.slane %v910, 0
      %v2199 = vperm.slane %v913, 0
      %v2200 = vperm.slane %v916, 0
      %v2201 = vperm.slane %v919, 0
      %v2202 = vperm.slane %v923, 0
      %v2203 = vperm.slane %v926, 0
      %v2204 = vperm.slane %v929, 0
      %v2205 = vperm.slane %v932, 0
      %v2206 = vperm.slane %v935, 0
      %v2207 = vperm.slane %v938, 0
      %v2208 = vperm.slane %v941, 0
      %v2209 = vperm.slane %v945, 0
      %v2210 = vperm.slane %v948, 0
      %v2211 = vperm.slane %v951, 0
      %v2212 = vperm.slane %v954, 0
      %v2213 = vperm.slane %v957, 0
      %v2214 = vperm.slane %v960, 0
      %v2215 = vperm.slane %v963, 0
      %v2216 = vperm.slane %v967, 0
      %v2217 = vperm.slane %v970, 0
      %v2218 = vperm.slane %v973, 0
      %v2219 = vperm.slane %v976, 0
      %v2220 = vperm.slane %v979, 0
      %v2221 = vperm.slane %v982, 0
      %v2222 = vperm.slane %v985, 0
      %v2223 = vperm.slane %v989, 0
      %v2224 = vperm.slane %v992, 0
      %v2225 = vperm.slane %v995, 0
      %v2226 = vperm.slane %v998, 0
      %v2227 = vperm.slane %v1001, 0
      %v2228 = vperm.slane %v1004, 0
      %v2229 = vperm.slane %v1007, 0
      %v2230 = vperm.slane %v1011, 0
      %v2231 = vperm.slane %v1014, 0
      %v2232 = vperm.slane %v1017, 0
      %v2233 = vperm.slane %v1020, 0
      %v2234 = vperm.slane %v1023, 0
      %v2235 = vperm.slane %v1026, 0
      %v2236 = vperm.slane %v1029, 0
      %v2237 = vsel %vm1800, %v2189, %v2188
      %v2238 = vsel %vm457, %v2190, %v2237
      %v2239 = vsel %vm1803, %v2191, %v2238
      %v2240 = vsel %vm459, %v2192, %v2239
      %v2241 = vsel %vm1806, %v2193, %v2240
      %v2242 = vsel %vm461, %v2194, %v2241
      %v2243 = vsel %vm1800, %v2196, %v2195
      %v2244 = vsel %vm457, %v2197, %v2243
      %v2245 = vsel %vm1803, %v2198, %v2244
      %v2246 = vsel %vm459, %v2199, %v2245
      %v2247 = vsel %vm1806, %v2200, %v2246
      %v2248 = vsel %vm461, %v2201, %v2247
      %v2249 = vsel %vm1800, %v2203, %v2202
      %v2250 = vsel %vm457, %v2204, %v2249
      %v2251 = vsel %vm1803, %v2205, %v2250
      %v2252 = vsel %vm459, %v2206, %v2251
      %v2253 = vsel %vm1806, %v2207, %v2252
      %v2254 = vsel %vm461, %v2208, %v2253
      %v2255 = vsel %vm1800, %v2210, %v2209
      %v2256 = vsel %vm457, %v2211, %v2255
      %v2257 = vsel %vm1803, %v2212, %v2256
      %v2258 = vsel %vm459, %v2213, %v2257
      %v2259 = vsel %vm1806, %v2214, %v2258
      %v2260 = vsel %vm461, %v2215, %v2259
      %v2261 = vsel %vm1800, %v2217, %v2216
      %v2262 = vsel %vm457, %v2218, %v2261
      %v2263 = vsel %vm1803, %v2219, %v2262
      %v2264 = vsel %vm459, %v2220, %v2263
      %v2265 = vsel %vm1806, %v2221, %v2264
      %v2266 = vsel %vm461, %v2222, %v2265
      %v2267 = vsel %vm1800, %v2224, %v2223
      %v2268 = vsel %vm457, %v2225, %v2267
      %v2269 = vsel %vm1803, %v2226, %v2268
      %v2270 = vsel %vm459, %v2227, %v2269
      %v2271 = vsel %vm1806, %v2228, %v2270
      %v2272 = vsel %vm461, %v2229, %v2271
      %v2273 = vsel %vm1800, %v2231, %v2230
      %v2274 = vsel %vm457, %v2232, %v2273
      %v2275 = vsel %vm1803, %v2233, %v2274
      %v2276 = vsel %vm459, %v2234, %v2275
      %v2277 = vsel %vm1806, %v2235, %v2276
      %v2278 = vsel %vm461, %v2236, %v2277
      %2279 = vrot.lane.b32.xlu0 %v2242, 16
      %v2280 = vpop.permute.xlu0 %2279
      %2281 = vrot.lane.b32.xlu0 %v2248, 16
      %v2282 = vpop.permute.xlu0 %2281
      %2283 = vrot.lane.b32.xlu0 %v2254, 16
      %v2284 = vpop.permute.xlu0 %2283
      %2285 = vrot.lane.b32.xlu0 %v2260, 16
      %v2286 = vpop.permute.xlu0 %2285
      %2287 = vrot.lane.b32.xlu0 %v2266, 16
      %v2288 = vpop.permute.xlu0 %2287
      %2289 = vrot.lane.b32.xlu0 %v2272, 16
      %v2290 = vpop.permute.xlu0 %2289
      %2291 = vrot.lane.b32.xlu0 %v2278, 16
      %v2292 = vpop.permute.xlu0 %2291
      %v2300 = vperm.slane %v1082, 0
      %v2301 = vperm.slane %v1084, 0
      %v2302 = vperm.slane %v1086, 0
      %v2303 = vperm.slane %v1088, 0
      %v2304 = vperm.slane %v1090, 0
      %v2305 = vperm.slane %v1092, 0
      %v2306 = vperm.slane %v1094, 0
      %v2307 = vperm.slane %v1097, 0
      %v2308 = vperm.slane %v1098, 0
      %v2309 = vperm.slane %v1099, 0
      %v2310 = vperm.slane %v1100, 0
      %v2311 = vperm.slane %v1101, 0
      %v2312 = vperm.slane %v1102, 0
      %v2313 = vperm.slane %v1103, 0
      %v2314 = vperm.slane %v1106, 0
      %v2315 = vperm.slane %v1107, 0
      %v2316 = vperm.slane %v1108, 0
      %v2317 = vperm.slane %v1109, 0
      %v2318 = vperm.slane %v1110, 0
      %v2319 = vperm.slane %v1111, 0
      %v2320 = vperm.slane %v1112, 0
      %v2321 = vperm.slane %v1115, 0
      %v2322 = vperm.slane %v1116, 0
      %v2323 = vperm.slane %v1117, 0
      %v2324 = vperm.slane %v1118, 0
      %v2325 = vperm.slane %v1119, 0
      %v2326 = vperm.slane %v1120, 0
      %v2327 = vperm.slane %v1121, 0
      %v2328 = vperm.slane %v1124, 0
      %v2329 = vperm.slane %v1125, 0
      %v2330 = vperm.slane %v1126, 0
      %v2331 = vperm.slane %v1127, 0
      %v2332 = vperm.slane %v1128, 0
      %v2333 = vperm.slane %v1129, 0
      %v2334 = vperm.slane %v1130, 0
      %v2335 = vperm.slane %v1133, 0
      %v2336 = vperm.slane %v1134, 0
      %v2337 = vperm.slane %v1135, 0
      %v2338 = vperm.slane %v1136, 0
      %v2339 = vperm.slane %v1137, 0
      %v2340 = vperm.slane %v1138, 0
      %v2341 = vperm.slane %v1139, 0
      %v2342 = vperm.slane %v1142, 0
      %v2343 = vperm.slane %v1143, 0
      %v2344 = vperm.slane %v1144, 0
      %v2345 = vperm.slane %v1145, 0
      %v2346 = vperm.slane %v1146, 0
      %v2347 = vperm.slane %v1147, 0
      %v2348 = vperm.slane %v1148, 0
      %v2349 = vsel %vm1800, %v2301, %v2300
      %v2350 = vsel %vm457, %v2302, %v2349
      %v2351 = vsel %vm1803, %v2303, %v2350
      %v2352 = vsel %vm459, %v2304, %v2351
      %v2353 = vsel %vm1806, %v2305, %v2352
      %v2354 = vsel %vm461, %v2306, %v2353
      %v2355 = vsel %vm1800, %v2308, %v2307
      %v2356 = vsel %vm457, %v2309, %v2355
      %v2357 = vsel %vm1803, %v2310, %v2356
      %v2358 = vsel %vm459, %v2311, %v2357
      %v2359 = vsel %vm1806, %v2312, %v2358
      %v2360 = vsel %vm461, %v2313, %v2359
      %v2361 = vsel %vm1800, %v2315, %v2314
      %v2362 = vsel %vm457, %v2316, %v2361
      %v2363 = vsel %vm1803, %v2317, %v2362
      %v2364 = vsel %vm459, %v2318, %v2363
      %v2365 = vsel %vm1806, %v2319, %v2364
      %v2366 = vsel %vm461, %v2320, %v2365
      %v2367 = vsel %vm1800, %v2322, %v2321
      %v2368 = vsel %vm457, %v2323, %v2367
      %v2369 = vsel %vm1803, %v2324, %v2368
      %v2370 = vsel %vm459, %v2325, %v2369
      %v2371 = vsel %vm1806, %v2326, %v2370
      %v2372 = vsel %vm461, %v2327, %v2371
      %v2373 = vsel %vm1800, %v2329, %v2328
      %v2374 = vsel %vm457, %v2330, %v2373
      %v2375 = vsel %vm1803, %v2331, %v2374
      %v2376 = vsel %vm459, %v2332, %v2375
      %v2377 = vsel %vm1806, %v2333, %v2376
      %v2378 = vsel %vm461, %v2334, %v2377
      %v2379 = vsel %vm1800, %v2336, %v2335
      %v2380 = vsel %vm457, %v2337, %v2379
      %v2381 = vsel %vm1803, %v2338, %v2380
      %v2382 = vsel %vm459, %v2339, %v2381
      %v2383 = vsel %vm1806, %v2340, %v2382
      %v2384 = vsel %vm461, %v2341, %v2383
      %v2385 = vsel %vm1800, %v2343, %v2342
      %v2386 = vsel %vm457, %v2344, %v2385
      %v2387 = vsel %vm1803, %v2345, %v2386
      %v2388 = vsel %vm459, %v2346, %v2387
      %v2389 = vsel %vm1806, %v2347, %v2388
      %v2390 = vsel %vm461, %v2348, %v2389
      %2391 = vrot.lane.b32.xlu0 %v2354, 20
      %v2392 = vpop.permute.xlu0 %2391
      %2393 = vrot.lane.b32.xlu0 %v2360, 20
      %v2394 = vpop.permute.xlu0 %2393
      %2395 = vrot.lane.b32.xlu0 %v2366, 20
      %v2396 = vpop.permute.xlu0 %2395
      %2397 = vrot.lane.b32.xlu0 %v2372, 20
      %v2398 = vpop.permute.xlu0 %2397
      %2399 = vrot.lane.b32.xlu0 %v2378, 20
      %v2400 = vpop.permute.xlu0 %2399
      %2401 = vrot.lane.b32.xlu0 %v2384, 20
      %v2402 = vpop.permute.xlu0 %2401
      %2403 = vrot.lane.b32.xlu0 %v2390, 20
      %v2404 = vpop.permute.xlu0 %2403
      %v2412 = vperm.slane %v361, 0
      %v2413 = vperm.slane %v1200, 0
      %v2414 = vperm.slane %v1201, 0
      %v2415 = vperm.slane %v1202, 0
      %v2416 = vperm.slane %v362, 0
      %v2417 = vperm.slane %v1203, 0
      %v2418 = vperm.slane %v1204, 0
      %v2419 = vsel %vm1800, %v2413, %v2412
      %v2420 = vsel %vm457, %v2414, %v2419
      %v2421 = vsel %vm1803, %v2415, %v2420
      %v2422 = vsel %vm459, %v2416, %v2421
      %v2423 = vsel %vm1806, %v2417, %v2422
      %v2424 = vsel %vm461, %v2418, %v2423
      %2425 = vrot.lane.b32.xlu0 %v1814, 24
      %v2426 = vpop.permute.xlu0 %2425
      %2427 = vrot.lane.b32.xlu0 %v1820, 24
      %v2428 = vpop.permute.xlu0 %2427
      %2429 = vrot.lane.b32.xlu0 %v1826, 24
      %v2430 = vpop.permute.xlu0 %2429
      %2431 = vrot.lane.b32.xlu0 %v1832, 24
      %v2432 = vpop.permute.xlu0 %2431
      %2433 = vrot.lane.b32.xlu0 %v1838, 24
      %v2434 = vpop.permute.xlu0 %2433
      %2435 = vrot.lane.b32.xlu0 %v1844, 24
      %v2436 = vpop.permute.xlu0 %2435
      %2437 = vrot.lane.b32.xlu0 %v2424, 24
      %v2438 = vpop.permute.xlu0 %2437
      %v2446 = vperm.slane %v1214, 0
      %v2447 = vperm.slane %v1217, 0
      %v2448 = vperm.slane %v1220, 0
      %v2449 = vperm.slane %v1223, 0
      %v2450 = vperm.slane %v1226, 0
      %v2451 = vperm.slane %v1229, 0
      %v2452 = vperm.slane %v1232, 0
      %v2453 = vsel %vm1800, %v2447, %v2446
      %v2454 = vsel %vm457, %v2448, %v2453
      %v2455 = vsel %vm1803, %v2449, %v2454
      %v2456 = vsel %vm459, %v2450, %v2455
      %v2457 = vsel %vm1806, %v2451, %v2456
      %v2458 = vsel %vm461, %v2452, %v2457
      %2459 = vrot.lane.b32.xlu0 %v1912, 28
      %v2460 = vpop.permute.xlu0 %2459
      %2461 = vrot.lane.b32.xlu0 %v1918, 28
      %v2462 = vpop.permute.xlu0 %2461
      %2463 = vrot.lane.b32.xlu0 %v1924, 28
      %v2464 = vpop.permute.xlu0 %2463
      %2465 = vrot.lane.b32.xlu0 %v1930, 28
      %v2466 = vpop.permute.xlu0 %2465
      %2467 = vrot.lane.b32.xlu0 %v1936, 28
      %v2468 = vpop.permute.xlu0 %2467
      %2469 = vrot.lane.b32.xlu0 %v1942, 28
      %v2470 = vpop.permute.xlu0 %2469
      %2471 = vrot.lane.b32.xlu0 %v2458, 28
      %v2472 = vpop.permute.xlu0 %2471
      %v2480 = vperm.slane %v1243, 0
      %v2481 = vperm.slane %v1245, 0
      %v2482 = vperm.slane %v1247, 0
      %v2483 = vperm.slane %v1249, 0
      %v2484 = vperm.slane %v1251, 0
      %v2485 = vperm.slane %v1253, 0
      %v2486 = vperm.slane %v1255, 0
      %v2487 = vperm.slane %v1258, 0
      %v2488 = vperm.slane %v1259, 0
      %v2489 = vperm.slane %v1260, 0
      %v2490 = vperm.slane %v1261, 0
      %v2491 = vperm.slane %v1262, 0
      %v2492 = vperm.slane %v1263, 0
      %v2493 = vperm.slane %v1264, 0
      %v2494 = vperm.slane %v1267, 0
      %v2495 = vperm.slane %v1268, 0
      %v2496 = vperm.slane %v1269, 0
      %v2497 = vperm.slane %v1270, 0
      %v2498 = vperm.slane %v1271, 0
      %v2499 = vperm.slane %v1272, 0
      %v2500 = vperm.slane %v1273, 0
      %v2501 = vperm.slane %v1276, 0
      %v2502 = vperm.slane %v1277, 0
      %v2503 = vperm.slane %v1278, 0
      %v2504 = vperm.slane %v1279, 0
      %v2505 = vperm.slane %v1280, 0
      %v2506 = vperm.slane %v1281, 0
      %v2507 = vperm.slane %v1282, 0
      %v2508 = vperm.slane %v1285, 0
      %v2509 = vperm.slane %v1286, 0
      %v2510 = vperm.slane %v1287, 0
      %v2511 = vperm.slane %v1288, 0
      %v2512 = vperm.slane %v1289, 0
      %v2513 = vperm.slane %v1290, 0
      %v2514 = vperm.slane %v1291, 0
      %v2515 = vperm.slane %v1294, 0
      %v2516 = vperm.slane %v1295, 0
      %v2517 = vperm.slane %v1296, 0
      %v2518 = vperm.slane %v1297, 0
      %v2519 = vperm.slane %v1298, 0
      %v2520 = vperm.slane %v1299, 0
      %v2521 = vperm.slane %v1300, 0
      %v2522 = vperm.slane %v1303, 0
      %v2523 = vperm.slane %v1304, 0
      %v2524 = vperm.slane %v1305, 0
      %v2525 = vperm.slane %v1306, 0
      %v2526 = vperm.slane %v1307, 0
      %v2527 = vperm.slane %v1308, 0
      %v2528 = vperm.slane %v1309, 0
      %v2529 = vsel %vm1800, %v2481, %v2480
      %v2530 = vsel %vm457, %v2482, %v2529
      %v2531 = vsel %vm1803, %v2483, %v2530
      %v2532 = vsel %vm459, %v2484, %v2531
      %v2533 = vsel %vm1806, %v2485, %v2532
      %v2534 = vsel %vm461, %v2486, %v2533
      %v2535 = vsel %vm1800, %v2488, %v2487
      %v2536 = vsel %vm457, %v2489, %v2535
      %v2537 = vsel %vm1803, %v2490, %v2536
      %v2538 = vsel %vm459, %v2491, %v2537
      %v2539 = vsel %vm1806, %v2492, %v2538
      %v2540 = vsel %vm461, %v2493, %v2539
      %v2541 = vsel %vm1800, %v2495, %v2494
      %v2542 = vsel %vm457, %v2496, %v2541
      %v2543 = vsel %vm1803, %v2497, %v2542
      %v2544 = vsel %vm459, %v2498, %v2543
      %v2545 = vsel %vm1806, %v2499, %v2544
      %v2546 = vsel %vm461, %v2500, %v2545
      %v2547 = vsel %vm1800, %v2502, %v2501
      %v2548 = vsel %vm457, %v2503, %v2547
      %v2549 = vsel %vm1803, %v2504, %v2548
      %v2550 = vsel %vm459, %v2505, %v2549
      %v2551 = vsel %vm1806, %v2506, %v2550
      %v2552 = vsel %vm461, %v2507, %v2551
      %v2553 = vsel %vm1800, %v2509, %v2508
      %v2554 = vsel %vm457, %v2510, %v2553
      %v2555 = vsel %vm1803, %v2511, %v2554
      %v2556 = vsel %vm459, %v2512, %v2555
      %v2557 = vsel %vm1806, %v2513, %v2556
      %v2558 = vsel %vm461, %v2514, %v2557
      %v2559 = vsel %vm1800, %v2516, %v2515
      %v2560 = vsel %vm457, %v2517, %v2559
      %v2561 = vsel %vm1803, %v2518, %v2560
      %v2562 = vsel %vm459, %v2519, %v2561
      %v2563 = vsel %vm1806, %v2520, %v2562
      %v2564 = vsel %vm461, %v2521, %v2563
      %v2565 = vsel %vm1800, %v2523, %v2522
      %v2566 = vsel %vm457, %v2524, %v2565
      %v2567 = vsel %vm1803, %v2525, %v2566
      %v2568 = vsel %vm459, %v2526, %v2567
      %v2569 = vsel %vm1806, %v2527, %v2568
      %v2570 = vsel %vm461, %v2528, %v2569
      %2571 = vrot.lane.b32.xlu0 %v2534, 32
      %v2572 = vpop.permute.xlu0 %2571
      %2573 = vrot.lane.b32.xlu0 %v2540, 32
      %v2574 = vpop.permute.xlu0 %2573
      %2575 = vrot.lane.b32.xlu0 %v2546, 32
      %v2576 = vpop.permute.xlu0 %2575
      %2577 = vrot.lane.b32.xlu0 %v2552, 32
      %v2578 = vpop.permute.xlu0 %2577
      %2579 = vrot.lane.b32.xlu0 %v2558, 32
      %v2580 = vpop.permute.xlu0 %2579
      %2581 = vrot.lane.b32.xlu0 %v2564, 32
      %v2582 = vpop.permute.xlu0 %2581
      %2583 = vrot.lane.b32.xlu0 %v2570, 32
      %v2584 = vpop.permute.xlu0 %2583
      %vm2592 = vcmask 31744
      %v2593 = vsel %vm2592, %v1808, %v1944
      %v2594 = vsel %vm2592, %v1814, %v1946
      %v2595 = vsel %vm2592, %v1820, %v1948
      %v2596 = vsel %vm2592, %v1826, %v1950
      %v2597 = vsel %vm2592, %v1832, %v1952
      %v2598 = vsel %vm2592, %v1838, %v1954
      %v2599 = vsel %vm2592, %v1844, %v1956
      %vm2600 = vcmask 64512
      %v2601 = vsel %vm2600, %v2593, %v2056
      %v2602 = vsel %vm2600, %v2594, %v2058
      %v2603 = vsel %vm2600, %v2595, %v2060
      %v2604 = vsel %vm2600, %v2596, %v2062
      %v2605 = vsel %vm2600, %v2597, %v2064
      %v2606 = vsel %vm2600, %v2598, %v2066
      %v2607 = vsel %vm2600, %v2599, %v2068
      %vm2608 = vcmask 97280
      %v2609 = vsel %vm2608, %v2601, %v2168
      %v2610 = vsel %vm2608, %v2602, %v2170
      %v2611 = vsel %vm2608, %v2603, %v2172
      %v2612 = vsel %vm2608, %v2604, %v2174
      %v2613 = vsel %vm2608, %v2605, %v2176
      %v2614 = vsel %vm2608, %v2606, %v2178
      %v2615 = vsel %vm2608, %v2607, %v2180
      %vm2616 = vcmask 130048
      %v2617 = vsel %vm2616, %v2609, %v2280
      %v2618 = vsel %vm2616, %v2610, %v2282
      %v2619 = vsel %vm2616, %v2611, %v2284
      %v2620 = vsel %vm2616, %v2612, %v2286
      %v2621 = vsel %vm2616, %v2613, %v2288
      %v2622 = vsel %vm2616, %v2614, %v2290
      %v2623 = vsel %vm2616, %v2615, %v2292
      %vm2624 = vcmask 162816
      %v2625 = vsel %vm2624, %v2617, %v2392
      %v2626 = vsel %vm2624, %v2618, %v2394
      %v2627 = vsel %vm2624, %v2619, %v2396
      %v2628 = vsel %vm2624, %v2620, %v2398
      %v2629 = vsel %vm2624, %v2621, %v2400
      %v2630 = vsel %vm2624, %v2622, %v2402
      %v2631 = vsel %vm2624, %v2623, %v2404
      %vm2632 = vcmask 195584
      %v2633 = vsel %vm2632, %v2625, %v2426
      %v2634 = vsel %vm2632, %v2626, %v2428
      %v2635 = vsel %vm2632, %v2627, %v2430
      %v2636 = vsel %vm2632, %v2628, %v2432
      %v2637 = vsel %vm2632, %v2629, %v2434
      %v2638 = vsel %vm2632, %v2630, %v2436
      %v2639 = vsel %vm2632, %v2631, %v2438
      %vm2640 = vcmask 228352
      %v2641 = vsel %vm2640, %v2633, %v2460
      %v2642 = vsel %vm2640, %v2634, %v2462
      %v2643 = vsel %vm2640, %v2635, %v2464
      %v2644 = vsel %vm2640, %v2636, %v2466
      %v2645 = vsel %vm2640, %v2637, %v2468
      %v2646 = vsel %vm2640, %v2638, %v2470
      %v2647 = vsel %vm2640, %v2639, %v2472
      %vm2648 = vcmask 261120
      %v2649 = vsel %vm2648, %v2641, %v2572
      %v2650 = vsel %vm2648, %v2642, %v2574
      %v2651 = vsel %vm2648, %v2643, %v2576
      %v2652 = vsel %vm2648, %v2644, %v2578
      %v2653 = vsel %vm2648, %v2645, %v2580
      %v2654 = vsel %vm2648, %v2646, %v2582
      %v2655 = vsel %vm2648, %v2647, %v2584
      %v2663 = vrot.slane %v2649, 1
      %v2664 = vrot.slane %v2649, 2
      %v2665 = vrot.slane %v2649, 3
      %v2666 = vrot.slane %v2649, 4
      %v2667 = vrot.slane %v2649, 5
      %v2668 = vrot.slane %v2649, 6
      %v2669 = vrot.slane %v2650, 1
      %v2670 = vrot.slane %v2650, 2
      %v2671 = vrot.slane %v2650, 3
      %v2672 = vrot.slane %v2650, 4
      %v2673 = vrot.slane %v2650, 5
      %v2674 = vrot.slane %v2650, 6
      %v2675 = vrot.slane %v2651, 1
      %v2676 = vrot.slane %v2651, 2
      %v2677 = vrot.slane %v2651, 3
      %v2678 = vrot.slane %v2651, 4
      %v2679 = vrot.slane %v2651, 5
      %v2680 = vrot.slane %v2651, 6
      %v2681 = vrot.slane %v2652, 1
      %v2682 = vrot.slane %v2652, 2
      %v2683 = vrot.slane %v2652, 3
      %v2684 = vrot.slane %v2652, 4
      %v2685 = vrot.slane %v2652, 5
      %v2686 = vrot.slane %v2652, 6
      %v2687 = vrot.slane %v2653, 1
      %v2688 = vrot.slane %v2653, 2
      %v2689 = vrot.slane %v2653, 3
      %v2690 = vrot.slane %v2653, 4
      %v2691 = vrot.slane %v2653, 5
      %v2692 = vrot.slane %v2653, 6
      %v2693 = vrot.slane %v2654, 1
      %v2694 = vrot.slane %v2654, 2
      %v2695 = vrot.slane %v2654, 3
      %v2696 = vrot.slane %v2654, 4
      %v2697 = vrot.slane %v2654, 5
      %v2698 = vrot.slane %v2654, 6
      %v2699 = vrot.slane %v2655, 1
      %v2700 = vrot.slane %v2655, 2
      %v2701 = vrot.slane %v2655, 3
      %v2702 = vrot.slane %v2655, 4
      %v2703 = vrot.slane %v2655, 5
      %v2704 = vrot.slane %v2655, 6
      %v2705 = vld [vmem:[%s1] sm:$0xff]
      %v2706 = vld [vmem:[%s1 + $0x8] sm:$0xff]
      %v2707 = vld [vmem:[%s1 + $0x10] sm:$0xff]
      %v2708 = vld [vmem:[%s1 + $0x18] sm:$0xff]
      %v2709 = vld [vmem:[%s1 + $0x20] sm:$0xf]
      %2710 = vst [vmem:[#allocation1] ss:$9 sm:$0xff] %v2649
      %s2711 = scalar_lea.vmem [#allocation1], 1
      %2712 = vst [vmem:[%s2711] ss:$9 sm:$0xff] %v2663
      %s2713 = scalar_lea.vmem [#allocation1], 2
      %2714 = vst [vmem:[%s2713] ss:$9 sm:$0xff] %v2664
      %s2715 = scalar_lea.vmem [#allocation1], 3
      %2716 = vst [vmem:[%s2715] ss:$9 sm:$0xff] %v2665
      %s2717 = scalar_lea.vmem [#allocation1], 4
      %2718 = vst [vmem:[%s2717] ss:$9 sm:$0xff] %v2666
      %s2719 = scalar_lea.vmem [#allocation1], 5
      %2720 = vst [vmem:[%s2719] ss:$9 sm:$0xff] %v2667
      %s2721 = scalar_lea.vmem [#allocation1], 6
      %2722 = vst [vmem:[%s2721] ss:$9 sm:$0xff] %v2668
      %s2723 = scalar_lea.vmem [#allocation1], 7
      %2724 = vst [vmem:[%s2723] ss:$9 sm:$0xff] %v2650
      %v2725 = vld [vmem:[#allocation1] sm:$0xff]
      %2726 = vst [vmem:[#allocation1] ss:$9 sm:$0xff] %v2669
      %2727 = vst [vmem:[%s2711] ss:$9 sm:$0xff] %v2670
      %2728 = vst [vmem:[%s2713] ss:$9 sm:$0xff] %v2671
      %2729 = vst [vmem:[%s2715] ss:$9 sm:$0xff] %v2672
      %2730 = vst [vmem:[%s2717] ss:$9 sm:$0xff] %v2673
      %2731 = vst [vmem:[%s2719] ss:$9 sm:$0xff] %v2674
      %2732 = vst [vmem:[%s2721] ss:$9 sm:$0xff] %v2651
      %2733 = vst [vmem:[%s2723] ss:$9 sm:$0xff] %v2675
      %v2734 = vld [vmem:[#allocation1] sm:$0xff]
      %2735 = vst [vmem:[#allocation1] ss:$9 sm:$0xff] %v2676
      %2736 = vst [vmem:[%s2711] ss:$9 sm:$0xff] %v2677
      %2737 = vst [vmem:[%s2713] ss:$9 sm:$0xff] %v2678
      %2738 = vst [vmem:[%s2715] ss:$9 sm:$0xff] %v2679
      %2739 = vst [vmem:[%s2717] ss:$9 sm:$0xff] %v2680
      %2740 = vst [vmem:[%s2719] ss:$9 sm:$0xff] %v2652
      %2741 = vst [vmem:[%s2721] ss:$9 sm:$0xff] %v2681
      %2742 = vst [vmem:[%s2723] ss:$9 sm:$0xff] %v2682
      %v2743 = vld [vmem:[#allocation1] sm:$0xff]
      %2744 = vst [vmem:[#allocation1] ss:$9 sm:$0xff] %v2683
      %2745 = vst [vmem:[%s2711] ss:$9 sm:$0xff] %v2684
      %2746 = vst [vmem:[%s2713] ss:$9 sm:$0xff] %v2685
      %2747 = vst [vmem:[%s2715] ss:$9 sm:$0xff] %v2686
      %2748 = vst [vmem:[%s2717] ss:$9 sm:$0xff] %v2653
      %2749 = vst [vmem:[%s2719] ss:$9 sm:$0xff] %v2687
      %2750 = vst [vmem:[%s2721] ss:$9 sm:$0xff] %v2688
      %2751 = vst [vmem:[%s2723] ss:$9 sm:$0xff] %v2689
      %v2752 = vld [vmem:[#allocation1] sm:$0xff]
      %2753 = vst [vmem:[#allocation1] ss:$9 sm:$0xff] %v2690
      %2754 = vst [vmem:[%s2711] ss:$9 sm:$0xff] %v2691
      %2755 = vst [vmem:[%s2713] ss:$9 sm:$0xff] %v2692
      %2756 = vst [vmem:[%s2715] ss:$9 sm:$0xff] %v2654
      %2757 = vst [vmem:[%s2717] ss:$9 sm:$0xff] %v2693
      %2758 = vst [vmem:[%s2719] ss:$9 sm:$0xff] %v2694
      %2759 = vst [vmem:[%s2721] ss:$9 sm:$0xff] %v2695
      %2760 = vst [vmem:[%s2723] ss:$9 sm:$0xff] %v2696
      %v2761 = vld [vmem:[#allocation1] sm:$0xff]
      %2762 = vst [vmem:[#allocation1] ss:$9 sm:$0xff] %v2697
      %2763 = vst [vmem:[%s2711] ss:$9 sm:$0xff] %v2698
      %2764 = vst [vmem:[%s2713] ss:$9 sm:$0xff] %v2655
      %2765 = vst [vmem:[%s2715] ss:$9 sm:$0xff] %v2699
      %2766 = vst [vmem:[%s2717] ss:$9 sm:$0xff] %v2700
      %2767 = vst [vmem:[%s2719] ss:$9 sm:$0xff] %v2701
      %2768 = vst [vmem:[%s2721] ss:$9 sm:$0xff] %v2702
      %2769 = vst [vmem:[%s2723] ss:$9 sm:$0xff] %v2703
      %v2770 = vld [vmem:[#allocation1] sm:$0xff]
      %2771 = vst [vmem:[#allocation1] ss:$9 sm:$0xff] %v2704
      %v2772 = vld [vmem:[#allocation1] sm:$0xff]
      %vm2773 = vcmask 293888
      %v2774 = vsel %vm2773, %v2725, 0
      %v2776 = vsel %vm2773, %v2734, 0
      %v2778 = vsel %vm2773, %v2743, 0
      %v2780 = vsel %vm2773, %v2752, 0
      %v2782 = vsel %vm2773, %v2761, 0
      %v2784 = vsel %vm2773, %v2770, 0
      %v2786 = vsel %vm2773, %v2772, 0
      %vm2788 = vcmask 1043456
      %v2790 = vsel %vm2788, %v2709, 0
      %2792 = vmatpush.msra.mxu0 0.0
      %2793 = vmatpush.msra.mxu0 0.0
      %2794 = vmatpush.msra.mxu0 0.0
      %2795 = vmatpush.msra.mxu0 0.0
      %2796 = vmatpush.msra.mxu0 0.0
      %2797 = vmatpush.msra.mxu0 0.0
      %2798 = vmatpush.msra.mxu0 0.0
      %2799 = vmatpush.msra.mxu0 0.0
      %2800 = vmatpush.msra.mxu0 0.0
      %2801 = vmatpush.msra.mxu0 0.0
      %2802 = vmatpush.msra.mxu0 0.0
      %2803 = vmatpush.msra.mxu0 %v2790
      %2804 = vmatpush.msra.mxu0 %v2708
      %2805 = vmatpush.msra.mxu0 %v2707
      %2806 = vmatpush.msra.mxu0 %v2706
      %2807 = vmatpush.msra.mxu0 %v2705
      %2808 = vmatmul.f32.gmra.mxu0 %v2774
      %v2809 = vpop.f32.mrf.mxu0
      %v2810 = vadd.f32 0.0, %v2809
      %2811 = vmatmul.f32.gmra.mxu0 %v2776
      %v2812 = vpop.f32.mrf.mxu0
      %v2813 = vadd.f32 0.0, %v2812
      %2814 = vmatmul.f32.gmra.mxu0 %v2778
      %v2815 = vpop.f32.mrf.mxu0
      %v2816 = vadd.f32 0.0, %v2815
      %2817 = vmatmul.f32.gmra.mxu0 %v2780
      %v2818 = vpop.f32.mrf.mxu0
      %v2819 = vadd.f32 0.0, %v2818
      %2820 = vmatmul.f32.gmra.mxu0 %v2782
      %v2821 = vpop.f32.mrf.mxu0
      %v2822 = vadd.f32 0.0, %v2821
      %2823 = vmatmul.f32.gmra.mxu0 %v2784
      %v2824 = vpop.f32.mrf.mxu0
      %v2825 = vadd.f32 0.0, %v2824
      %2826 = vmatmul.f32.gmra.mxu0 %v2786
      %v2827 = vpop.f32.mrf.mxu0
      %v2828 = vadd.f32 0.0, %v2827
      %2829 = vdwg.mxu0
      %v2830 = vld [vmem:[%s2] sm:$0x1]
      %v2831 = vperm.slane %v2830, 0
      %v2832 = vmul.f32 %v2810, %v2831
      %v2833 = vmul.f32 %v2813, %v2831
      %v2834 = vmul.f32 %v2816, %v2831
      %v2835 = vmul.f32 %v2819, %v2831
      %v2836 = vmul.f32 %v2822, %v2831
      %v2837 = vmul.f32 %v2825, %v2831
      %v2838 = vmul.f32 %v2828, %v2831
      %v2839 = vld [vmem:[%s2 + $0x1] sm:$0x1]
      %v2840 = vperm.slane %v2839, 0
      %v2841 = vadd.f32 %v2832, %v2840
      %v2842 = vadd.f32 %v2833, %v2840
      %v2843 = vadd.f32 %v2834, %v2840
      %v2844 = vadd.f32 %v2835, %v2840
      %v2845 = vadd.f32 %v2836, %v2840
      %v2846 = vadd.f32 %v2837, %v2840
      %v2847 = vadd.f32 %v2838, %v2840
      %v2848 = vmax.f32 %v2841, 0.0
      %v2849 = vmax.f32 %v2842, 0.0
      %v2850 = vmax.f32 %v2843, 0.0
      %v2851 = vmax.f32 %v2844, 0.0
      %v2852 = vmax.f32 %v2845, 0.0
      %v2853 = vmax.f32 %v2846, 0.0
      %v2854 = vmax.f32 %v2847, 0.0
      %v2855 = vld [vmem:[%s3] sm:$0xf]
      %v2856 = vsel %vm2592, %v333, 0
      %v2858 = vsel %vm2592, %v334, 0
      %v2860 = vsel %vm2592, %v335, 0
      %v2862 = vsel %vm2592, %v336, 0
      %v2864 = vsel %vm2592, %v337, 0
      %v2866 = vsel %vm2592, %v338, 0
      %v2868 = vsel %vm2592, %v339, 0
      %v2870 = vsel %vm2592, %v340, 0
      %v2872 = vsel %vm2592, %v341, 0
      %v2874 = vsel %vm2592, %v342, 0
      %v2876 = vsel %vm2592, %v343, 0
      %v2878 = vsel %vm2592, %v344, 0
      %v2880 = vsel %vm2592, %v345, 0
      %v2882 = vsel %vm2592, %v346, 0
      %v2884 = vsel %vm2592, %v347, 0
      %v2886 = vsel %vm2592, %v348, 0
      %v2888 = vsel %vm2592, %v349, 0
      %v2890 = vsel %vm2592, %v350, 0
      %v2892 = vsel %vm2592, %v351, 0
      %v2894 = vsel %vm2592, %v352, 0
      %v2896 = vsel %vm2592, %v353, 0
      %v2898 = vsel %vm2592, %v354, 0
      %v2900 = vsel %vm2592, %v355, 0
      %v2902 = vsel %vm2592, %v356, 0
      %v2904 = vsel %vm2592, %v357, 0
      %v2906 = vsel %vm2592, %v358, 0
      %v2908 = vsel %vm2592, %v359, 0
      %v2910 = vsel %vm2592, %v360, 0
      %v2912 = vsel %vm2592, %v361, 0
      %v2914 = vsel %vm2592, %v362, 0
      %v2917 = vsel %vm2592, %v363, 0
      %v2920 = vsel %vm2592, %v364, 0
      %v2923 = vsel %vm2788, %v2855, 0
      %2925 = vmatpush.msra.mxu0 0.0
      %2926 = vmatpush.msra.mxu0 0.0
      %2927 = vmatpush.msra.mxu0 0.0
      %2928 = vmatpush.msra.mxu0 0.0
      %2929 = vmatpush.msra.mxu0 0.0
      %2930 = vmatpush.msra.mxu0 0.0
      %2931 = vmatpush.msra.mxu0 0.0
      %2932 = vmatpush.msra.mxu0 0.0
      %2933 = vmatpush.msra.mxu0 0.0
      %2934 = vmatpush.msra.mxu0 0.0
      %2935 = vmatpush.msra.mxu0 0.0
      %2936 = vmatpush.msra.mxu0 0.0
      %2937 = vmatpush.msra.mxu0 0.0
      %2938 = vmatpush.msra.mxu0 0.0
      %2939 = vmatpush.msra.mxu0 0.0
      %2940 = vmatpush.msra.mxu0 %v2923
      %2941 = vmatmul.f32.gmra.mxu0 %v2856
      %v2942 = vpop.f32.mrf.mxu0
      %v2943 = vadd.f32 0.0, %v2942
      %2944 = vmatmul.f32.gmra.mxu0 %v2858
      %v2945 = vpop.f32.mrf.mxu0
      %v2946 = vadd.f32 0.0, %v2945
      %2947 = vmatmul.f32.gmra.mxu0 %v2860
      %v2948 = vpop.f32.mrf.mxu0
      %v2949 = vadd.f32 0.0, %v2948
      %2950 = vmatmul.f32.gmra.mxu0 %v2862
      %v2951 = vpop.f32.mrf.mxu0
      %v2952 = vadd.f32 0.0, %v2951
      %2953 = vmatmul.f32.gmra.mxu0 %v2864
      %v2954 = vpop.f32.mrf.mxu0
      %v2955 = vadd.f32 0.0, %v2954
      %2956 = vmatmul.f32.gmra.mxu0 %v2866
      %v2957 = vpop.f32.mrf.mxu0
      %v2958 = vadd.f32 0.0, %v2957
      %2959 = vmatmul.f32.gmra.mxu0 %v2868
      %v2960 = vpop.f32.mrf.mxu0
      %v2961 = vadd.f32 0.0, %v2960
      %2962 = vmatmul.f32.gmra.mxu0 %v2870
      %v2963 = vpop.f32.mrf.mxu0
      %v2964 = vadd.f32 0.0, %v2963
      %2965 = vmatmul.f32.gmra.mxu0 %v2872
      %v2966 = vpop.f32.mrf.mxu0
      %v2967 = vadd.f32 0.0, %v2966
      %2968 = vmatmul.f32.gmra.mxu0 %v2874
      %v2969 = vpop.f32.mrf.mxu0
      %v2970 = vadd.f32 0.0, %v2969
      %2971 = vmatmul.f32.gmra.mxu0 %v2876
      %v2972 = vpop.f32.mrf.mxu0
      %v2973 = vadd.f32 0.0, %v2972
      %2974 = vmatmul.f32.gmra.mxu0 %v2878
      %v2975 = vpop.f32.mrf.mxu0
      %v2976 = vadd.f32 0.0, %v2975
      %2977 = vmatmul.f32.gmra.mxu0 %v2880
      %v2978 = vpop.f32.mrf.mxu0
      %v2979 = vadd.f32 0.0, %v2978
      %2980 = vmatmul.f32.gmra.mxu0 %v2882
      %v2981 = vpop.f32.mrf.mxu0
      %v2982 = vadd.f32 0.0, %v2981
      %2983 = vmatmul.f32.gmra.mxu0 %v2884
      %v2984 = vpop.f32.mrf.mxu0
      %v2985 = vadd.f32 0.0, %v2984
      %2986 = vmatmul.f32.gmra.mxu0 %v2886
      %v2987 = vpop.f32.mrf.mxu0
      %v2988 = vadd.f32 0.0, %v2987
      %2989 = vmatmul.f32.gmra.mxu0 %v2888
      %v2990 = vpop.f32.mrf.mxu0
      %v2991 = vadd.f32 0.0, %v2990
      %2992 = vmatmul.f32.gmra.mxu0 %v2890
      %v2993 = vpop.f32.mrf.mxu0
      %v2994 = vadd.f32 0.0, %v2993
      %2995 = vmatmul.f32.gmra.mxu0 %v2892
      %v2996 = vpop.f32.mrf.mxu0
      %v2997 = vadd.f32 0.0, %v2996
      %2998 = vmatmul.f32.gmra.mxu0 %v2894
      %v2999 = vpop.f32.mrf.mxu0
      %v3000 = vadd.f32 0.0, %v2999
      %3001 = vmatmul.f32.gmra.mxu0 %v2896
      %v3002 = vpop.f32.mrf.mxu0
      %v3003 = vadd.f32 0.0, %v3002
      %3004 = vmatmul.f32.gmra.mxu0 %v2898
      %v3005 = vpop.f32.mrf.mxu0
      %v3006 = vadd.f32 0.0, %v3005
      %3007 = vmatmul.f32.gmra.mxu0 %v2900
      %v3008 = vpop.f32.mrf.mxu0
      %v3009 = vadd.f32 0.0, %v3008
      %3010 = vmatmul.f32.gmra.mxu0 %v2902
      %v3011 = vpop.f32.mrf.mxu0
      %v3012 = vadd.f32 0.0, %v3011
      %3013 = vmatmul.f32.gmra.mxu0 %v2904
      %v3014 = vpop.f32.mrf.mxu0
      %v3015 = vadd.f32 0.0, %v3014
      %3016 = vmatmul.f32.gmra.mxu0 %v2906
      %v3017 = vpop.f32.mrf.mxu0
      %v3018 = vadd.f32 0.0, %v3017
      %3019 = vmatmul.f32.gmra.mxu0 %v2908
      %v3020 = vpop.f32.mrf.mxu0
      %v3021 = vadd.f32 0.0, %v3020
      %3022 = vmatmul.f32.gmra.mxu0 %v2910
      %v3023 = vpop.f32.mrf.mxu0
      %v3024 = vadd.f32 0.0, %v3023
      %3025 = vmatmul.f32.gmra.mxu0 %v2912
      %v3026 = vpop.f32.mrf.mxu0
      %v3027 = vadd.f32 0.0, %v3026
      %3028 = vmatmul.f32.gmra.mxu0 %v2914
      %v3029 = vpop.f32.mrf.mxu0
      %v3030 = vadd.f32 0.0, %v3029
      %3031 = vmatmul.f32.gmra.mxu0 %v2917
      %v3032 = vpop.f32.mrf.mxu0
      %v3033 = vadd.f32 0.0, %v3032
      %3034 = vmatmul.f32.gmra.mxu0 %v2920
      %v3035 = vpop.f32.mrf.mxu0
      %v3036 = vadd.f32 0.0, %v3035
      %3037 = vdwg.mxu0
      %v3038 = vld [vmem:[%s4] sm:$0x1]
      %v3039 = vperm.slane %v3038, 0
      %v3040 = vmul.f32 %v2943, %v3039
      %v3041 = vmul.f32 %v2946, %v3039
      %v3042 = vmul.f32 %v2949, %v3039
      %v3043 = vmul.f32 %v2952, %v3039
      %v3044 = vmul.f32 %v2955, %v3039
      %v3045 = vmul.f32 %v2958, %v3039
      %v3046 = vmul.f32 %v2961, %v3039
      %v3047 = vmul.f32 %v2964, %v3039
      %v3048 = vmul.f32 %v2967, %v3039
      %v3049 = vmul.f32 %v2970, %v3039
      %v3050 = vmul.f32 %v2973, %v3039
      %v3051 = vmul.f32 %v2976, %v3039
      %v3052 = vmul.f32 %v2979, %v3039
      %v3053 = vmul.f32 %v2982, %v3039
      %v3054 = vmul.f32 %v2985, %v3039
      %v3055 = vmul.f32 %v2988, %v3039
      %v3056 = vmul.f32 %v2991, %v3039
      %v3057 = vmul.f32 %v2994, %v3039
      %v3058 = vmul.f32 %v2997, %v3039
      %v3059 = vmul.f32 %v3000, %v3039
      %v3060 = vmul.f32 %v3003, %v3039
      %v3061 = vmul.f32 %v3006, %v3039
      %v3062 = vmul.f32 %v3009, %v3039
      %v3063 = vmul.f32 %v3012, %v3039
      %v3064 = vmul.f32 %v3015, %v3039
      %v3065 = vmul.f32 %v3018, %v3039
      %v3066 = vmul.f32 %v3021, %v3039
      %v3067 = vmul.f32 %v3024, %v3039
      %v3068 = vmul.f32 %v3027, %v3039
      %v3069 = vmul.f32 %v3030, %v3039
      %v3070 = vmul.f32 %v3033, %v3039
      %v3071 = vmul.f32 %v3036, %v3039
      %v3072 = vld [vmem:[%s4 + $0x1] sm:$0x1]
      %v3073 = vperm.slane %v3072, 0
      %v3074 = vadd.f32 %v3040, %v3073
      %v3075 = vadd.f32 %v3041, %v3073
      %v3076 = vadd.f32 %v3042, %v3073
      %v3077 = vadd.f32 %v3043, %v3073
      %v3078 = vadd.f32 %v3044, %v3073
      %v3079 = vadd.f32 %v3045, %v3073
      %v3080 = vadd.f32 %v3046, %v3073
      %v3081 = vadd.f32 %v3047, %v3073
      %v3082 = vadd.f32 %v3048, %v3073
      %v3083 = vadd.f32 %v3049, %v3073
      %v3084 = vadd.f32 %v3050, %v3073
      %v3085 = vadd.f32 %v3051, %v3073
      %v3086 = vadd.f32 %v3052, %v3073
      %v3087 = vadd.f32 %v3053, %v3073
      %v3088 = vadd.f32 %v3054, %v3073
      %v3089 = vadd.f32 %v3055, %v3073
      %v3090 = vadd.f32 %v3056, %v3073
      %v3091 = vadd.f32 %v3057, %v3073
      %v3092 = vadd.f32 %v3058, %v3073
      %v3093 = vadd.f32 %v3059, %v3073
      %v3094 = vadd.f32 %v3060, %v3073
      %v3095 = vadd.f32 %v3061, %v3073
      %v3096 = vadd.f32 %v3062, %v3073
      %v3097 = vadd.f32 %v3063, %v3073
      %v3098 = vadd.f32 %v3064, %v3073
      %v3099 = vadd.f32 %v3065, %v3073
      %v3100 = vadd.f32 %v3066, %v3073
      %v3101 = vadd.f32 %v3067, %v3073
      %v3102 = vadd.f32 %v3068, %v3073
      %v3103 = vadd.f32 %v3069, %v3073
      %v3104 = vadd.f32 %v3070, %v3073
      %v3105 = vadd.f32 %v3071, %v3073
      %v3106 = vmax.f32 %v3074, 0.0
      %v3107 = vmax.f32 %v3075, 0.0
      %v3108 = vmax.f32 %v3076, 0.0
      %v3109 = vmax.f32 %v3077, 0.0
      %v3110 = vmax.f32 %v3078, 0.0
      %v3111 = vmax.f32 %v3079, 0.0
      %v3112 = vmax.f32 %v3080, 0.0
      %v3113 = vmax.f32 %v3081, 0.0
      %v3114 = vmax.f32 %v3082, 0.0
      %v3115 = vmax.f32 %v3083, 0.0
      %v3116 = vmax.f32 %v3084, 0.0
      %v3117 = vmax.f32 %v3085, 0.0
      %v3118 = vmax.f32 %v3086, 0.0
      %v3119 = vmax.f32 %v3087, 0.0
      %v3120 = vmax.f32 %v3088, 0.0
      %v3121 = vmax.f32 %v3089, 0.0
      %v3122 = vmax.f32 %v3090, 0.0
      %v3123 = vmax.f32 %v3091, 0.0
      %v3124 = vmax.f32 %v3092, 0.0
      %v3125 = vmax.f32 %v3093, 0.0
      %v3126 = vmax.f32 %v3094, 0.0
      %v3127 = vmax.f32 %v3095, 0.0
      %v3128 = vmax.f32 %v3096, 0.0
      %v3129 = vmax.f32 %v3097, 0.0
      %v3130 = vmax.f32 %v3098, 0.0
      %v3131 = vmax.f32 %v3099, 0.0
      %v3132 = vmax.f32 %v3100, 0.0
      %v3133 = vmax.f32 %v3101, 0.0
      %v3134 = vmax.f32 %v3102, 0.0
      %v3135 = vmax.f32 %v3103, 0.0
      %v3136 = vmax.f32 %v3104, 0.0
      %v3137 = vmax.f32 %v3105, 0.0
      %3138 = vst.msk [vmem:[#allocation2] sm:$0xff] %vm2600, 0.0
      %3139 = vst.msk [vmem:[#allocation2 + $0x8] sm:$0xff] %vm2600, 0.0
      %vm3140 = vcmask 58368
      %3141 = vst.msk [vmem:[#allocation2 + $0x10] sm:$0x3] %vm3140, 0.0
      %3142 = vst.msk [vmem:[#allocation2 + $0x18] sm:$0xff] %vm2600, 0.0
      %3143 = vst.msk [vmem:[#allocation2 + $0x20] sm:$0xff] %vm2600, 0.0
      %3144 = vst.msk [vmem:[#allocation2 + $0x28] sm:$0x3] %vm3140, 0.0
      %3145 = vst.msk [vmem:[#allocation2 + $0x30] sm:$0xff] %vm2600, 0.0
      %3146 = vst.msk [vmem:[#allocation2 + $0x38] sm:$0xff] %vm2600, 0.0
      %3147 = vst.msk [vmem:[#allocation2 + $0x40] sm:$0x3] %vm3140, 0.0
      %3148 = vst.msk [vmem:[#allocation2 + $0x48] sm:$0xff] %vm2600, 0.0
      %3149 = vst.msk [vmem:[#allocation2 + $0x50] sm:$0xff] %vm2600, 0.0
      %3150 = vst.msk [vmem:[#allocation2 + $0x58] sm:$0x3] %vm3140, 0.0
      %3151 = vst.msk [vmem:[#allocation2 + $0x60] sm:$0xff] %vm2600, 0.0
      %3152 = vst.msk [vmem:[#allocation2 + $0x68] sm:$0xff] %vm2600, 0.0
      %3153 = vst.msk [vmem:[#allocation2 + $0x70] sm:$0x3] %vm3140, 0.0
      %3154 = vst.msk [vmem:[#allocation2 + $0x78] sm:$0xff] %vm2600, 0.0
      %3155 = vst.msk [vmem:[#allocation2 + $0x80] sm:$0xff] %vm2600, 0.0
      %3156 = vst.msk [vmem:[#allocation2 + $0x88] sm:$0x3] %vm3140, 0.0
      %3157 = vst.msk [vmem:[#allocation2 + $0x90] sm:$0xff] %vm2600, 0.0
      %3158 = vst.msk [vmem:[#allocation2 + $0x98] sm:$0xff] %vm2600, 0.0
      %3159 = vst.msk [vmem:[#allocation2 + $0xa0] sm:$0x3] %vm3140, 0.0
      %3160 = vst.msk [vmem:[#allocation2 + $0xa8] sm:$0xff] %vm2600, 0.0
      %3161 = vst.msk [vmem:[#allocation2 + $0xb0] sm:$0xff] %vm2600, 0.0
      %3162 = vst.msk [vmem:[#allocation2 + $0xb8] sm:$0x3] %vm3140, 0.0
      %3163 = vst.msk [vmem:[#allocation2 + $0xc0] sm:$0xff] %vm2600, 0.0
      %3164 = vst.msk [vmem:[#allocation2 + $0xc8] sm:$0xff] %vm2600, 0.0
      %3165 = vst.msk [vmem:[#allocation2 + $0xd0] sm:$0x3] %vm3140, 0.0
      %3166 = vst.msk [vmem:[#allocation2 + $0xd8] sm:$0xff] %vm2600, 0.0
      %3167 = vst.msk [vmem:[#allocation2 + $0xe0] sm:$0xff] %vm2600, 0.0
      %3168 = vst.msk [vmem:[#allocation2 + $0xe8] sm:$0x3] %vm3140, 0.0
      %3169 = vst.msk [vmem:[#allocation2 + $0xf0] sm:$0xff] %vm2600, 0.0
      %3170 = vst.msk [vmem:[#allocation2 + $0xf8] sm:$0xff] %vm2600, 0.0
      %3171 = vst.msk [vmem:[#allocation2 + $0x100] sm:$0x3] %vm3140, 0.0
      %3172 = vst.msk [vmem:[#allocation2 + $0x108] sm:$0xff] %vm2600, 0.0
      %3173 = vst.msk [vmem:[#allocation2 + $0x110] sm:$0xff] %vm2600, 0.0
      %3174 = vst.msk [vmem:[#allocation2 + $0x118] sm:$0x3] %vm3140, 0.0
      %3175 = vst.msk [vmem:[#allocation2 + $0x120] sm:$0xff] %vm2600, 0.0
      %3176 = vst.msk [vmem:[#allocation2 + $0x128] sm:$0xff] %vm2600, 0.0
      %3177 = vst.msk [vmem:[#allocation2 + $0x130] sm:$0x3] %vm3140, 0.0
      %3178 = vst.msk [vmem:[#allocation2 + $0x138] sm:$0xff] %vm2600, 0.0
      %3179 = vst.msk [vmem:[#allocation2 + $0x140] sm:$0xff] %vm2600, 0.0
      %3180 = vst.msk [vmem:[#allocation2 + $0x148] sm:$0x3] %vm3140, 0.0
      %3181 = vst.msk [vmem:[#allocation2 + $0x150] sm:$0xff] %vm2600, 0.0
      %3182 = vst.msk [vmem:[#allocation2 + $0x158] sm:$0xff] %vm2600, 0.0
      %3183 = vst.msk [vmem:[#allocation2 + $0x160] sm:$0x3] %vm3140, 0.0
      %3184 = vst.msk [vmem:[#allocation2 + $0x168] sm:$0xff] %vm2600, 0.0
      %3185 = vst.msk [vmem:[#allocation2 + $0x170] sm:$0xff] %vm2600, 0.0
      %3186 = vst.msk [vmem:[#allocation2 + $0x178] sm:$0x3] %vm3140, 0.0
      %3187 = vst.msk [vmem:[#allocation2 + $0x180] sm:$0xff] %vm2600, 0.0
      %3188 = vst.msk [vmem:[#allocation2 + $0x188] sm:$0xff] %vm2600, 0.0
      %3189 = vst.msk [vmem:[#allocation2 + $0x190] sm:$0x3] %vm3140, 0.0
      %3190 = vst.msk [vmem:[#allocation2 + $0x198] sm:$0xff] %vm2600, 0.0
      %3191 = vst.msk [vmem:[#allocation2 + $0x1a0] sm:$0xff] %vm2600, 0.0
      %3192 = vst.msk [vmem:[#allocation2 + $0x1a8] sm:$0x3] %vm3140, 0.0
      %s3193 = scalar_lea.vmem [#allocation2], 24
      %3194 = vst.msk [vmem:[%s3193 + $0x1] sm:$0xff] %vm2600, %v3106
      %3195 = vst.msk [vmem:[%s3193 + $0x9] sm:$0xff] %vm2600, %v3107
      %3196 = vst.msk [vmem:[%s3193 + $0x19] sm:$0xff] %vm2600, %v3108
      %3197 = vst.msk [vmem:[%s3193 + $0x21] sm:$0xff] %vm2600, %v3109
      %3198 = vst.msk [vmem:[%s3193 + $0x31] sm:$0xff] %vm2600, %v3110
      %3199 = vst.msk [vmem:[%s3193 + $0x39] sm:$0xff] %vm2600, %v3111
      %3200 = vst.msk [vmem:[%s3193 + $0x49] sm:$0xff] %vm2600, %v3112
      %3201 = vst.msk [vmem:[%s3193 + $0x51] sm:$0xff] %vm2600, %v3113
      %3202 = vst.msk [vmem:[%s3193 + $0x61] sm:$0xff] %vm2600, %v3114
      %3203 = vst.msk [vmem:[%s3193 + $0x69] sm:$0xff] %vm2600, %v3115
      %3204 = vst.msk [vmem:[%s3193 + $0x79] sm:$0xff] %vm2600, %v3116
      %3205 = vst.msk [vmem:[%s3193 + $0x81] sm:$0xff] %vm2600, %v3117
      %3206 = vst.msk [vmem:[%s3193 + $0x91] sm:$0xff] %vm2600, %v3118
      %3207 = vst.msk [vmem:[%s3193 + $0x99] sm:$0xff] %vm2600, %v3119
      %3208 = vst.msk [vmem:[%s3193 + $0xa9] sm:$0xff] %vm2600, %v3120
      %3209 = vst.msk [vmem:[%s3193 + $0xb1] sm:$0xff] %vm2600, %v3121
      %3210 = vst.msk [vmem:[%s3193 + $0xc1] sm:$0xff] %vm2600, %v3122
      %3211 = vst.msk [vmem:[%s3193 + $0xc9] sm:$0xff] %vm2600, %v3123
      %3212 = vst.msk [vmem:[%s3193 + $0xd9] sm:$0xff] %vm2600, %v3124
      %3213 = vst.msk [vmem:[%s3193 + $0xe1] sm:$0xff] %vm2600, %v3125
      %3214 = vst.msk [vmem:[%s3193 + $0xf1] sm:$0xff] %vm2600, %v3126
      %3215 = vst.msk [vmem:[%s3193 + $0xf9] sm:$0xff] %vm2600, %v3127
      %3216 = vst.msk [vmem:[%s3193 + $0x109] sm:$0xff] %vm2600, %v3128
      %3217 = vst.msk [vmem:[%s3193 + $0x111] sm:$0xff] %vm2600, %v3129
      %3218 = vst.msk [vmem:[%s3193 + $0x121] sm:$0xff] %vm2600, %v3130
      %3219 = vst.msk [vmem:[%s3193 + $0x129] sm:$0xff] %vm2600, %v3131
      %3220 = vst.msk [vmem:[%s3193 + $0x139] sm:$0xff] %vm2600, %v3132
      %3221 = vst.msk [vmem:[%s3193 + $0x141] sm:$0xff] %vm2600, %v3133
      %3222 = vst.msk [vmem:[%s3193 + $0x151] sm:$0xff] %vm2600, %v3134
      %3223 = vst.msk [vmem:[%s3193 + $0x159] sm:$0xff] %vm2600, %v3135
      %3224 = vst.msk [vmem:[%s3193 + $0x169] sm:$0xff] %vm2600, %v3136
      %3225 = vst.msk [vmem:[%s3193 + $0x171] sm:$0xff] %vm2600, %v3137
      %v3226 = vld [vmem:[#allocation2] sm:$0xff]
      %v3227 = vld [vmem:[#allocation2 + $0x8] sm:$0xff]
      %v3228 = vld [vmem:[#allocation2 + $0x18] sm:$0xff]
      %v3229 = vld [vmem:[#allocation2 + $0x20] sm:$0xff]
      %v3230 = vld [vmem:[#allocation2 + $0x30] sm:$0xff]
      %v3231 = vld [vmem:[#allocation2 + $0x38] sm:$0xff]
      %v3232 = vld [vmem:[#allocation2 + $0x48] sm:$0xff]
      %v3233 = vld [vmem:[#allocation2 + $0x50] sm:$0xff]
      %v3234 = vld [vmem:[#allocation2 + $0x60] sm:$0xff]
      %v3235 = vld [vmem:[#allocation2 + $0x68] sm:$0xff]
      %v3236 = vld [vmem:[#allocation2 + $0x78] sm:$0xff]
      %v3237 = vld [vmem:[#allocation2 + $0x80] sm:$0xff]
      %v3238 = vld [vmem:[#allocation2 + $0x90] sm:$0xff]
      %v3239 = vld [vmem:[#allocation2 + $0x98] sm:$0xff]
      %v3240 = vld [vmem:[#allocation2 + $0xa8] sm:$0xff]
      %v3241 = vld [vmem:[#allocation2 + $0xb0] sm:$0xff]
      %v3242 = vld [vmem:[#allocation2 + $0xc0] sm:$0xff]
      %v3243 = vld [vmem:[#allocation2 + $0xc8] sm:$0xff]
      %v3244 = vld [vmem:[#allocation2 + $0xd8] sm:$0xff]
      %v3245 = vld [vmem:[#allocation2 + $0xe0] sm:$0xff]
      %v3246 = vld [vmem:[#allocation2 + $0xf0] sm:$0xff]
      %v3247 = vld [vmem:[#allocation2 + $0xf8] sm:$0xff]
      %v3248 = vld [vmem:[#allocation2 + $0x108] sm:$0xff]
      %v3249 = vld [vmem:[#allocation2 + $0x110] sm:$0xff]
      %v3250 = vld [vmem:[#allocation2 + $0x120] sm:$0xff]
      %v3251 = vld [vmem:[#allocation2 + $0x128] sm:$0xff]
      %v3252 = vld [vmem:[#allocation2 + $0x138] sm:$0xff]
      %v3253 = vld [vmem:[#allocation2 + $0x140] sm:$0xff]
      %v3254 = vld [vmem:[#allocation2 + $0x150] sm:$0xff]
      %v3255 = vld [vmem:[#allocation2 + $0x158] sm:$0xff]
      %v3256 = vld [vmem:[#allocation2 + $0x168] sm:$0xff]
      %v3257 = vld [vmem:[#allocation2 + $0x170] sm:$0xff]
      %v3258 = vld [vmem:[#allocation2 + $0x1] sm:$0xff]
      %v3259 = vld [vmem:[#allocation2 + $0x9] sm:$0xff]
      %v3260 = vld [vmem:[#allocation2 + $0x19] sm:$0xff]
      %v3261 = vld [vmem:[#allocation2 + $0x21] sm:$0xff]
      %v3262 = vld [vmem:[#allocation2 + $0x31] sm:$0xff]
      %v3263 = vld [vmem:[#allocation2 + $0x39] sm:$0xff]
      %v3264 = vld [vmem:[#allocation2 + $0x49] sm:$0xff]
      %v3265 = vld [vmem:[#allocation2 + $0x51] sm:$0xff]
      %v3266 = vld [vmem:[#allocation2 + $0x61] sm:$0xff]
      %v3267 = vld [vmem:[#allocation2 + $0x69] sm:$0xff]
      %v3268 = vld [vmem:[#allocation2 + $0x79] sm:$0xff]
      %v3269 = vld [vmem:[#allocation2 + $0x81] sm:$0xff]
      %v3270 = vld [vmem:[#allocation2 + $0x91] sm:$0xff]
      %v3271 = vld [vmem:[#allocation2 + $0x99] sm:$0xff]
      %v3272 = vld [vmem:[#allocation2 + $0xa9] sm:$0xff]
      %v3273 = vld [vmem:[#allocation2 + $0xb1] sm:$0xff]
      %v3274 = vld [vmem:[#allocation2 + $0xc1] sm:$0xff]
      %v3275 = vld [vmem:[#allocation2 + $0xc9] sm:$0xff]
      %v3276 = vld [vmem:[#allocation2 + $0xd9] sm:$0xff]
      %v3277 = vld [vmem:[#allocation2 + $0xe1] sm:$0xff]
      %v3278 = vld [vmem:[#allocation2 + $0xf1] sm:$0xff]
      %v3279 = vld [vmem:[#allocation2 + $0xf9] sm:$0xff]
      %v3280 = vld [vmem:[#allocation2 + $0x109] sm:$0xff]
      %v3281 = vld [vmem:[#allocation2 + $0x111] sm:$0xff]
      %v3282 = vld [vmem:[#allocation2 + $0x121] sm:$0xff]
      %v3283 = vld [vmem:[#allocation2 + $0x129] sm:$0xff]
      %v3284 = vld [vmem:[#allocation2 + $0x139] sm:$0xff]
      %v3285 = vld [vmem:[#allocation2 + $0x141] sm:$0xff]
      %v3286 = vld [vmem:[#allocation2 + $0x151] sm:$0xff]
      %v3287 = vld [vmem:[#allocation2 + $0x159] sm:$0xff]
      %v3288 = vld [vmem:[#allocation2 + $0x169] sm:$0xff]
      %v3289 = vld [vmem:[#allocation2 + $0x171] sm:$0xff]
      %v3290 = vld [vmem:[#allocation2 + $0x2] sm:$0xff]
      %v3291 = vld [vmem:[#allocation2 + $0xa] sm:$0xff]
      %v3292 = vld [vmem:[#allocation2 + $0x1a] sm:$0xff]
      %v3293 = vld [vmem:[#allocation2 + $0x22] sm:$0xff]
      %v3294 = vld [vmem:[#allocation2 + $0x32] sm:$0xff]
      %v3295 = vld [vmem:[#allocation2 + $0x3a] sm:$0xff]
      %v3296 = vld [vmem:[#allocation2 + $0x4a] sm:$0xff]
      %v3297 = vld [vmem:[#allocation2 + $0x52] sm:$0xff]
      %v3298 = vld [vmem:[#allocation2 + $0x62] sm:$0xff]
      %v3299 = vld [vmem:[#allocation2 + $0x6a] sm:$0xff]
      %v3300 = vld [vmem:[#allocation2 + $0x7a] sm:$0xff]
      %v3301 = vld [vmem:[#allocation2 + $0x82] sm:$0xff]
      %v3302 = vld [vmem:[#allocation2 + $0x92] sm:$0xff]
      %v3303 = vld [vmem:[#allocation2 + $0x9a] sm:$0xff]
      %v3304 = vld [vmem:[#allocation2 + $0xaa] sm:$0xff]
      %v3305 = vld [vmem:[#allocation2 + $0xb2] sm:$0xff]
      %v3306 = vld [vmem:[#allocation2 + $0xc2] sm:$0xff]
      %v3307 = vld [vmem:[#allocation2 + $0xca] sm:$0xff]
      %v3308 = vld [vmem:[#allocation2 + $0xda] sm:$0xff]
      %v3309 = vld [vmem:[#allocation2 + $0xe2] sm:$0xff]
      %v3310 = vld [vmem:[#allocation2 + $0xf2] sm:$0xff]
      %v3311 = vld [vmem:[#allocation2 + $0xfa] sm:$0xff]
      %v3312 = vld [vmem:[#allocation2 + $0x10a] sm:$0xff]
      %v3313 = vld [vmem:[#allocation2 + $0x112] sm:$0xff]
      %v3314 = vld [vmem:[#allocation2 + $0x122] sm:$0xff]
      %v3315 = vld [vmem:[#allocation2 + $0x12a] sm:$0xff]
      %v3316 = vld [vmem:[#allocation2 + $0x13a] sm:$0xff]
      %v3317 = vld [vmem:[#allocation2 + $0x142] sm:$0xff]
      %v3318 = vld [vmem:[#allocation2 + $0x152] sm:$0xff]
      %v3319 = vld [vmem:[#allocation2 + $0x15a] sm:$0xff]
      %v3320 = vld [vmem:[#allocation2 + $0x16a] sm:$0xff]
      %v3321 = vld [vmem:[#allocation2 + $0x172] sm:$0xff]
      %v3322 = vld [vmem:[%s3193] sm:$0xff]
      %v3323 = vld [vmem:[%s3193 + $0x8] sm:$0xff]
      %v3324 = vld [vmem:[%s3193 + $0x18] sm:$0xff]
      %v3325 = vld [vmem:[%s3193 + $0x20] sm:$0xff]
      %v3326 = vld [vmem:[%s3193 + $0x30] sm:$0xff]
      %v3327 = vld [vmem:[%s3193 + $0x38] sm:$0xff]
      %v3328 = vld [vmem:[%s3193 + $0x48] sm:$0xff]
      %v3329 = vld [vmem:[%s3193 + $0x50] sm:$0xff]
      %v3330 = vld [vmem:[%s3193 + $0x60] sm:$0xff]
      %v3331 = vld [vmem:[%s3193 + $0x68] sm:$0xff]
      %v3332 = vld [vmem:[%s3193 + $0x78] sm:$0xff]
      %v3333 = vld [vmem:[%s3193 + $0x80] sm:$0xff]
      %v3334 = vld [vmem:[%s3193 + $0x90] sm:$0xff]
      %v3335 = vld [vmem:[%s3193 + $0x98] sm:$0xff]
      %v3336 = vld [vmem:[%s3193 + $0xa8] sm:$0xff]
      %v3337 = vld [vmem:[%s3193 + $0xb0] sm:$0xff]
      %v3338 = vld [vmem:[%s3193 + $0xc0] sm:$0xff]
      %v3339 = vld [vmem:[%s3193 + $0xc8] sm:$0xff]
      %v3340 = vld [vmem:[%s3193 + $0xd8] sm:$0xff]
      %v3341 = vld [vmem:[%s3193 + $0xe0] sm:$0xff]
      %v3342 = vld [vmem:[%s3193 + $0xf0] sm:$0xff]
      %v3343 = vld [vmem:[%s3193 + $0xf8] sm:$0xff]
      %v3344 = vld [vmem:[%s3193 + $0x108] sm:$0xff]
      %v3345 = vld [vmem:[%s3193 + $0x110] sm:$0xff]
      %v3346 = vld [vmem:[%s3193 + $0x120] sm:$0xff]
      %v3347 = vld [vmem:[%s3193 + $0x128] sm:$0xff]
      %v3348 = vld [vmem:[%s3193 + $0x138] sm:$0xff]
      %v3349 = vld [vmem:[%s3193 + $0x140] sm:$0xff]
      %v3350 = vld [vmem:[%s3193 + $0x150] sm:$0xff]
      %v3351 = vld [vmem:[%s3193 + $0x158] sm:$0xff]
      %v3352 = vld [vmem:[%s3193 + $0x168] sm:$0xff]
      %v3353 = vld [vmem:[%s3193 + $0x170] sm:$0xff]
      %v3354 = vld [vmem:[%s3193 + $0x1] sm:$0xff]
      %v3355 = vld [vmem:[%s3193 + $0x9] sm:$0xff]
      %v3356 = vld [vmem:[%s3193 + $0x19] sm:$0xff]
      %v3357 = vld [vmem:[%s3193 + $0x21] sm:$0xff]
      %v3358 = vld [vmem:[%s3193 + $0x31] sm:$0xff]
      %v3359 = vld [vmem:[%s3193 + $0x39] sm:$0xff]
      %v3360 = vld [vmem:[%s3193 + $0x49] sm:$0xff]
      %v3361 = vld [vmem:[%s3193 + $0x51] sm:$0xff]
      %v3362 = vld [vmem:[%s3193 + $0x61] sm:$0xff]
      %v3363 = vld [vmem:[%s3193 + $0x69] sm:$0xff]
      %v3364 = vld [vmem:[%s3193 + $0x79] sm:$0xff]
      %v3365 = vld [vmem:[%s3193 + $0x81] sm:$0xff]
      %v3366 = vld [vmem:[%s3193 + $0x91] sm:$0xff]
      %v3367 = vld [vmem:[%s3193 + $0x99] sm:$0xff]
      %v3368 = vld [vmem:[%s3193 + $0xa9] sm:$0xff]
      %v3369 = vld [vmem:[%s3193 + $0xb1] sm:$0xff]
      %v3370 = vld [vmem:[%s3193 + $0xc1] sm:$0xff]
      %v3371 = vld [vmem:[%s3193 + $0xc9] sm:$0xff]
      %v3372 = vld [vmem:[%s3193 + $0xd9] sm:$0xff]
      %v3373 = vld [vmem:[%s3193 + $0xe1] sm:$0xff]
      %v3374 = vld [vmem:[%s3193 + $0xf1] sm:$0xff]
      %v3375 = vld [vmem:[%s3193 + $0xf9] sm:$0xff]
      %v3376 = vld [vmem:[%s3193 + $0x109] sm:$0xff]
      %v3377 = vld [vmem:[%s3193 + $0x111] sm:$0xff]
      %v3378 = vld [vmem:[%s3193 + $0x121] sm:$0xff]
      %v3379 = vld [vmem:[%s3193 + $0x129] sm:$0xff]
      %v3380 = vld [vmem:[%s3193 + $0x139] sm:$0xff]
      %v3381 = vld [vmem:[%s3193 + $0x141] sm:$0xff]
      %v3382 = vld [vmem:[%s3193 + $0x151] sm:$0xff]
      %v3383 = vld [vmem:[%s3193 + $0x159] sm:$0xff]
      %v3384 = vld [vmem:[%s3193 + $0x169] sm:$0xff]
      %v3385 = vld [vmem:[%s3193 + $0x171] sm:$0xff]
      %v3386 = vld [vmem:[%s3193 + $0x2] sm:$0xff]
      %v3387 = vld [vmem:[%s3193 + $0xa] sm:$0xff]
      %v3388 = vld [vmem:[%s3193 + $0x1a] sm:$0xff]
      %v3389 = vld [vmem:[%s3193 + $0x22] sm:$0xff]
      %v3390 = vld [vmem:[%s3193 + $0x32] sm:$0xff]
      %v3391 = vld [vmem:[%s3193 + $0x3a] sm:$0xff]
      %v3392 = vld [vmem:[%s3193 + $0x4a] sm:$0xff]
      %v3393 = vld [vmem:[%s3193 + $0x52] sm:$0xff]
      %v3394 = vld [vmem:[%s3193 + $0x62] sm:$0xff]
      %v3395 = vld [vmem:[%s3193 + $0x6a] sm:$0xff]
      %v3396 = vld [vmem:[%s3193 + $0x7a] sm:$0xff]
      %v3397 = vld [vmem:[%s3193 + $0x82] sm:$0xff]
      %v3398 = vld [vmem:[%s3193 + $0x92] sm:$0xff]
      %v3399 = vld [vmem:[%s3193 + $0x9a] sm:$0xff]
      %v3400 = vld [vmem:[%s3193 + $0xaa] sm:$0xff]
      %v3401 = vld [vmem:[%s3193 + $0xb2] sm:$0xff]
      %v3402 = vld [vmem:[%s3193 + $0xc2] sm:$0xff]
      %v3403 = vld [vmem:[%s3193 + $0xca] sm:$0xff]
      %v3404 = vld [vmem:[%s3193 + $0xda] sm:$0xff]
      %v3405 = vld [vmem:[%s3193 + $0xe2] sm:$0xff]
      %v3406 = vld [vmem:[%s3193 + $0xf2] sm:$0xff]
      %v3407 = vld [vmem:[%s3193 + $0xfa] sm:$0xff]
      %v3408 = vld [vmem:[%s3193 + $0x10a] sm:$0xff]
      %v3409 = vld [vmem:[%s3193 + $0x112] sm:$0xff]
      %v3410 = vld [vmem:[%s3193 + $0x122] sm:$0xff]
      %v3411 = vld [vmem:[%s3193 + $0x12a] sm:$0xff]
      %v3412 = vld [vmem:[%s3193 + $0x13a] sm:$0xff]
      %v3413 = vld [vmem:[%s3193 + $0x142] sm:$0xff]
      %v3414 = vld [vmem:[%s3193 + $0x152] sm:$0xff]
      %v3415 = vld [vmem:[%s3193 + $0x15a] sm:$0xff]
      %v3416 = vld [vmem:[%s3193 + $0x16a] sm:$0xff]
      %v3417 = vld [vmem:[%s3193 + $0x172] sm:$0xff]
      %s3418 = scalar_lea.vmem [#allocation2], 48
      %v3419 = vld [vmem:[%s3418] sm:$0xff]
      %v3420 = vld [vmem:[%s3418 + $0x8] sm:$0xff]
      %v3421 = vld [vmem:[%s3418 + $0x18] sm:$0xff]
      %v3422 = vld [vmem:[%s3418 + $0x20] sm:$0xff]
      %v3423 = vld [vmem:[%s3418 + $0x30] sm:$0xff]
      %v3424 = vld [vmem:[%s3418 + $0x38] sm:$0xff]
      %v3425 = vld [vmem:[%s3418 + $0x48] sm:$0xff]
      %v3426 = vld [vmem:[%s3418 + $0x50] sm:$0xff]
      %v3427 = vld [vmem:[%s3418 + $0x60] sm:$0xff]
      %v3428 = vld [vmem:[%s3418 + $0x68] sm:$0xff]
      %v3429 = vld [vmem:[%s3418 + $0x78] sm:$0xff]
      %v3430 = vld [vmem:[%s3418 + $0x80] sm:$0xff]
      %v3431 = vld [vmem:[%s3418 + $0x90] sm:$0xff]
      %v3432 = vld [vmem:[%s3418 + $0x98] sm:$0xff]
      %v3433 = vld [vmem:[%s3418 + $0xa8] sm:$0xff]
      %v3434 = vld [vmem:[%s3418 + $0xb0] sm:$0xff]
      %v3435 = vld [vmem:[%s3418 + $0xc0] sm:$0xff]
      %v3436 = vld [vmem:[%s3418 + $0xc8] sm:$0xff]
      %v3437 = vld [vmem:[%s3418 + $0xd8] sm:$0xff]
      %v3438 = vld [vmem:[%s3418 + $0xe0] sm:$0xff]
      %v3439 = vld [vmem:[%s3418 + $0xf0] sm:$0xff]
      %v3440 = vld [vmem:[%s3418 + $0xf8] sm:$0xff]
      %v3441 = vld [vmem:[%s3418 + $0x108] sm:$0xff]
      %v3442 = vld [vmem:[%s3418 + $0x110] sm:$0xff]
      %v3443 = vld [vmem:[%s3418 + $0x120] sm:$0xff]
      %v3444 = vld [vmem:[%s3418 + $0x128] sm:$0xff]
      %v3445 = vld [vmem:[%s3418 + $0x138] sm:$0xff]
      %v3446 = vld [vmem:[%s3418 + $0x140] sm:$0xff]
      %v3447 = vld [vmem:[%s3418 + $0x150] sm:$0xff]
      %v3448 = vld [vmem:[%s3418 + $0x158] sm:$0xff]
      %v3449 = vld [vmem:[%s3418 + $0x168] sm:$0xff]
      %v3450 = vld [vmem:[%s3418 + $0x170] sm:$0xff]
      %v3451 = vld [vmem:[%s3418 + $0x1] sm:$0xff]
      %v3452 = vld [vmem:[%s3418 + $0x9] sm:$0xff]
      %v3453 = vld [vmem:[%s3418 + $0x19] sm:$0xff]
      %v3454 = vld [vmem:[%s3418 + $0x21] sm:$0xff]
      %v3455 = vld [vmem:[%s3418 + $0x31] sm:$0xff]
      %v3456 = vld [vmem:[%s3418 + $0x39] sm:$0xff]
      %v3457 = vld [vmem:[%s3418 + $0x49] sm:$0xff]
      %v3458 = vld [vmem:[%s3418 + $0x51] sm:$0xff]
      %v3459 = vld [vmem:[%s3418 + $0x61] sm:$0xff]
      %v3460 = vld [vmem:[%s3418 + $0x69] sm:$0xff]
      %v3461 = vld [vmem:[%s3418 + $0x79] sm:$0xff]
      %v3462 = vld [vmem:[%s3418 + $0x81] sm:$0xff]
      %v3463 = vld [vmem:[%s3418 + $0x91] sm:$0xff]
      %v3464 = vld [vmem:[%s3418 + $0x99] sm:$0xff]
      %v3465 = vld [vmem:[%s3418 + $0xa9] sm:$0xff]
      %v3466 = vld [vmem:[%s3418 + $0xb1] sm:$0xff]
      %v3467 = vld [vmem:[%s3418 + $0xc1] sm:$0xff]
      %v3468 = vld [vmem:[%s3418 + $0xc9] sm:$0xff]
      %v3469 = vld [vmem:[%s3418 + $0xd9] sm:$0xff]
      %v3470 = vld [vmem:[%s3418 + $0xe1] sm:$0xff]
      %v3471 = vld [vmem:[%s3418 + $0xf1] sm:$0xff]
      %v3472 = vld [vmem:[%s3418 + $0xf9] sm:$0xff]
      %v3473 = vld [vmem:[%s3418 + $0x109] sm:$0xff]
      %v3474 = vld [vmem:[%s3418 + $0x111] sm:$0xff]
      %v3475 = vld [vmem:[%s3418 + $0x121] sm:$0xff]
      %v3476 = vld [vmem:[%s3418 + $0x129] sm:$0xff]
      %v3477 = vld [vmem:[%s3418 + $0x139] sm:$0xff]
      %v3478 = vld [vmem:[%s3418 + $0x141] sm:$0xff]
      %v3479 = vld [vmem:[%s3418 + $0x151] sm:$0xff]
      %v3480 = vld [vmem:[%s3418 + $0x159] sm:$0xff]
      %v3481 = vld [vmem:[%s3418 + $0x169] sm:$0xff]
      %v3482 = vld [vmem:[%s3418 + $0x171] sm:$0xff]
      %v3483 = vld [vmem:[%s3418 + $0x2] sm:$0xff]
      %v3484 = vld [vmem:[%s3418 + $0xa] sm:$0xff]
      %v3485 = vld [vmem:[%s3418 + $0x1a] sm:$0xff]
      %v3486 = vld [vmem:[%s3418 + $0x22] sm:$0xff]
      %v3487 = vld [vmem:[%s3418 + $0x32] sm:$0xff]
      %v3488 = vld [vmem:[%s3418 + $0x3a] sm:$0xff]
      %v3489 = vld [vmem:[%s3418 + $0x4a] sm:$0xff]
      %v3490 = vld [vmem:[%s3418 + $0x52] sm:$0xff]
      %v3491 = vld [vmem:[%s3418 + $0x62] sm:$0xff]
      %v3492 = vld [vmem:[%s3418 + $0x6a] sm:$0xff]
      %v3493 = vld [vmem:[%s3418 + $0x7a] sm:$0xff]
      %v3494 = vld [vmem:[%s3418 + $0x82] sm:$0xff]
      %v3495 = vld [vmem:[%s3418 + $0x92] sm:$0xff]
      %v3496 = vld [vmem:[%s3418 + $0x9a] sm:$0xff]
      %v3497 = vld [vmem:[%s3418 + $0xaa] sm:$0xff]
      %v3498 = vld [vmem:[%s3418 + $0xb2] sm:$0xff]
      %v3499 = vld [vmem:[%s3418 + $0xc2] sm:$0xff]
      %v3500 = vld [vmem:[%s3418 + $0xca] sm:$0xff]
      %v3501 = vld [vmem:[%s3418 + $0xda] sm:$0xff]
      %v3502 = vld [vmem:[%s3418 + $0xe2] sm:$0xff]
      %v3503 = vld [vmem:[%s3418 + $0xf2] sm:$0xff]
      %v3504 = vld [vmem:[%s3418 + $0xfa] sm:$0xff]
      %v3505 = vld [vmem:[%s3418 + $0x10a] sm:$0xff]
      %v3506 = vld [vmem:[%s3418 + $0x112] sm:$0xff]
      %v3507 = vld [vmem:[%s3418 + $0x122] sm:$0xff]
      %v3508 = vld [vmem:[%s3418 + $0x12a] sm:$0xff]
      %v3509 = vld [vmem:[%s3418 + $0x13a] sm:$0xff]
      %v3510 = vld [vmem:[%s3418 + $0x142] sm:$0xff]
      %v3511 = vld [vmem:[%s3418 + $0x152] sm:$0xff]
      %v3512 = vld [vmem:[%s3418 + $0x15a] sm:$0xff]
      %v3513 = vld [vmem:[%s3418 + $0x16a] sm:$0xff]
      %v3514 = vld [vmem:[%s3418 + $0x172] sm:$0xff]
      %3547 = vrot.lane.b32.xlu0 %v3258, 8
      %v3548 = vpop.permute.xlu0 %3547
      %3549 = vrot.lane.b32.xlu0 %v3259, 8
      %v3550 = vpop.permute.xlu0 %3549
      %3551 = vrot.lane.b32.xlu0 %v3260, 8
      %v3552 = vpop.permute.xlu0 %3551
      %3553 = vrot.lane.b32.xlu0 %v3261, 8
      %v3554 = vpop.permute.xlu0 %3553
      %3555 = vrot.lane.b32.xlu0 %v3262, 8
      %v3556 = vpop.permute.xlu0 %3555
      %3557 = vrot.lane.b32.xlu0 %v3263, 8
      %v3558 = vpop.permute.xlu0 %3557
      %3559 = vrot.lane.b32.xlu0 %v3264, 8
      %v3560 = vpop.permute.xlu0 %3559
      %3561 = vrot.lane.b32.xlu0 %v3265, 8
      %v3562 = vpop.permute.xlu0 %3561
      %3563 = vrot.lane.b32.xlu0 %v3266, 8
      %v3564 = vpop.permute.xlu0 %3563
      %3565 = vrot.lane.b32.xlu0 %v3267, 8
      %v3566 = vpop.permute.xlu0 %3565
      %3567 = vrot.lane.b32.xlu0 %v3268, 8
      %v3568 = vpop.permute.xlu0 %3567
      %3569 = vrot.lane.b32.xlu0 %v3269, 8
      %v3570 = vpop.permute.xlu0 %3569
      %3571 = vrot.lane.b32.xlu0 %v3270, 8
      %v3572 = vpop.permute.xlu0 %3571
      %3573 = vrot.lane.b32.xlu0 %v3271, 8
      %v3574 = vpop.permute.xlu0 %3573
      %3575 = vrot.lane.b32.xlu0 %v3272, 8
      %v3576 = vpop.permute.xlu0 %3575
      %3577 = vrot.lane.b32.xlu0 %v3273, 8
      %v3578 = vpop.permute.xlu0 %3577
      %3579 = vrot.lane.b32.xlu0 %v3274, 8
      %v3580 = vpop.permute.xlu0 %3579
      %3581 = vrot.lane.b32.xlu0 %v3275, 8
      %v3582 = vpop.permute.xlu0 %3581
      %3583 = vrot.lane.b32.xlu0 %v3276, 8
      %v3584 = vpop.permute.xlu0 %3583
      %3585 = vrot.lane.b32.xlu0 %v3277, 8
      %v3586 = vpop.permute.xlu0 %3585
      %3587 = vrot.lane.b32.xlu0 %v3278, 8
      %v3588 = vpop.permute.xlu0 %3587
      %3589 = vrot.lane.b32.xlu0 %v3279, 8
      %v3590 = vpop.permute.xlu0 %3589
      %3591 = vrot.lane.b32.xlu0 %v3280, 8
      %v3592 = vpop.permute.xlu0 %3591
      %3593 = vrot.lane.b32.xlu0 %v3281, 8
      %v3594 = vpop.permute.xlu0 %3593
      %3595 = vrot.lane.b32.xlu0 %v3282, 8
      %v3596 = vpop.permute.xlu0 %3595
      %3597 = vrot.lane.b32.xlu0 %v3283, 8
      %v3598 = vpop.permute.xlu0 %3597
      %3599 = vrot.lane.b32.xlu0 %v3284, 8
      %v3600 = vpop.permute.xlu0 %3599
      %3601 = vrot.lane.b32.xlu0 %v3285, 8
      %v3602 = vpop.permute.xlu0 %3601
      %3603 = vrot.lane.b32.xlu0 %v3286, 8
      %v3604 = vpop.permute.xlu0 %3603
      %3605 = vrot.lane.b32.xlu0 %v3287, 8
      %v3606 = vpop.permute.xlu0 %3605
      %3607 = vrot.lane.b32.xlu0 %v3288, 8
      %v3608 = vpop.permute.xlu0 %3607
      %3609 = vrot.lane.b32.xlu0 %v3289, 8
      %v3610 = vpop.permute.xlu0 %3609
      %3675 = vrot.lane.b32.xlu0 %v3290, 16
      %v3676 = vpop.permute.xlu0 %3675
      %3677 = vrot.lane.b32.xlu0 %v3291, 16
      %v3678 = vpop.permute.xlu0 %3677
      %3679 = vrot.lane.b32.xlu0 %v3292, 16
      %v3680 = vpop.permute.xlu0 %3679
      %3681 = vrot.lane.b32.xlu0 %v3293, 16
      %v3682 = vpop.permute.xlu0 %3681
      %3683 = vrot.lane.b32.xlu0 %v3294, 16
      %v3684 = vpop.permute.xlu0 %3683
      %3685 = vrot.lane.b32.xlu0 %v3295, 16
      %v3686 = vpop.permute.xlu0 %3685
      %3687 = vrot.lane.b32.xlu0 %v3296, 16
      %v3688 = vpop.permute.xlu0 %3687
      %3689 = vrot.lane.b32.xlu0 %v3297, 16
      %v3690 = vpop.permute.xlu0 %3689
      %3691 = vrot.lane.b32.xlu0 %v3298, 16
      %v3692 = vpop.permute.xlu0 %3691
      %3693 = vrot.lane.b32.xlu0 %v3299, 16
      %v3694 = vpop.permute.xlu0 %3693
      %3695 = vrot.lane.b32.xlu0 %v3300, 16
      %v3696 = vpop.permute.xlu0 %3695
      %3697 = vrot.lane.b32.xlu0 %v3301, 16
      %v3698 = vpop.permute.xlu0 %3697
      %3699 = vrot.lane.b32.xlu0 %v3302, 16
      %v3700 = vpop.permute.xlu0 %3699
      %3701 = vrot.lane.b32.xlu0 %v3303, 16
      %v3702 = vpop.permute.xlu0 %3701
      %3703 = vrot.lane.b32.xlu0 %v3304, 16
      %v3704 = vpop.permute.xlu0 %3703
      %3705 = vrot.lane.b32.xlu0 %v3305, 16
      %v3706 = vpop.permute.xlu0 %3705
      %3707 = vrot.lane.b32.xlu0 %v3306, 16
      %v3708 = vpop.permute.xlu0 %3707
      %3709 = vrot.lane.b32.xlu0 %v3307, 16
      %v3710 = vpop.permute.xlu0 %3709
      %3711 = vrot.lane.b32.xlu0 %v3308, 16
      %v3712 = vpop.permute.xlu0 %3711
      %3713 = vrot.lane.b32.xlu0 %v3309, 16
      %v3714 = vpop.permute.xlu0 %3713
      %3715 = vrot.lane.b32.xlu0 %v3310, 16
      %v3716 = vpop.permute.xlu0 %3715
      %3717 = vrot.lane.b32.xlu0 %v3311, 16
      %v3718 = vpop.permute.xlu0 %3717
      %3719 = vrot.lane.b32.xlu0 %v3312, 16
      %v3720 = vpop.permute.xlu0 %3719
      %3721 = vrot.lane.b32.xlu0 %v3313, 16
      %v3722 = vpop.permute.xlu0 %3721
      %3723 = vrot.lane.b32.xlu0 %v3314, 16
      %v3724 = vpop.permute.xlu0 %3723
      %3725 = vrot.lane.b32.xlu0 %v3315, 16
      %v3726 = vpop.permute.xlu0 %3725
      %3727 = vrot.lane.b32.xlu0 %v3316, 16
      %v3728 = vpop.permute.xlu0 %3727
      %3729 = vrot.lane.b32.xlu0 %v3317, 16
      %v3730 = vpop.permute.xlu0 %3729
      %3731 = vrot.lane.b32.xlu0 %v3318, 16
      %v3732 = vpop.permute.xlu0 %3731
      %3733 = vrot.lane.b32.xlu0 %v3319, 16
      %v3734 = vpop.permute.xlu0 %3733
      %3735 = vrot.lane.b32.xlu0 %v3320, 16
      %v3736 = vpop.permute.xlu0 %3735
      %3737 = vrot.lane.b32.xlu0 %v3321, 16
      %v3738 = vpop.permute.xlu0 %3737
      %3803 = vrot.lane.b32.xlu0 %v3322, 24
      %v3804 = vpop.permute.xlu0 %3803
      %3805 = vrot.lane.b32.xlu0 %v3323, 24
      %v3806 = vpop.permute.xlu0 %3805
      %3807 = vrot.lane.b32.xlu0 %v3324, 24
      %v3808 = vpop.permute.xlu0 %3807
      %3809 = vrot.lane.b32.xlu0 %v3325, 24
      %v3810 = vpop.permute.xlu0 %3809
      %3811 = vrot.lane.b32.xlu0 %v3326, 24
      %v3812 = vpop.permute.xlu0 %3811
      %3813 = vrot.lane.b32.xlu0 %v3327, 24
      %v3814 = vpop.permute.xlu0 %3813
      %3815 = vrot.lane.b32.xlu0 %v3328, 24
      %v3816 = vpop.permute.xlu0 %3815
      %3817 = vrot.lane.b32.xlu0 %v3329, 24
      %v3818 = vpop.permute.xlu0 %3817
      %3819 = vrot.lane.b32.xlu0 %v3330, 24
      %v3820 = vpop.permute.xlu0 %3819
      %3821 = vrot.lane.b32.xlu0 %v3331, 24
      %v3822 = vpop.permute.xlu0 %3821
      %3823 = vrot.lane.b32.xlu0 %v3332, 24
      %v3824 = vpop.permute.xlu0 %3823
      %3825 = vrot.lane.b32.xlu0 %v3333, 24
      %v3826 = vpop.permute.xlu0 %3825
      %3827 = vrot.lane.b32.xlu0 %v3334, 24
      %v3828 = vpop.permute.xlu0 %3827
      %3829 = vrot.lane.b32.xlu0 %v3335, 24
      %v3830 = vpop.permute.xlu0 %3829
      %3831 = vrot.lane.b32.xlu0 %v3336, 24
      %v3832 = vpop.permute.xlu0 %3831
      %3833 = vrot.lane.b32.xlu0 %v3337, 24
      %v3834 = vpop.permute.xlu0 %3833
      %3835 = vrot.lane.b32.xlu0 %v3338, 24
      %v3836 = vpop.permute.xlu0 %3835
      %3837 = vrot.lane.b32.xlu0 %v3339, 24
      %v3838 = vpop.permute.xlu0 %3837
      %3839 = vrot.lane.b32.xlu0 %v3340, 24
      %v3840 = vpop.permute.xlu0 %3839
      %3841 = vrot.lane.b32.xlu0 %v3341, 24
      %v3842 = vpop.permute.xlu0 %3841
      %3843 = vrot.lane.b32.xlu0 %v3342, 24
      %v3844 = vpop.permute.xlu0 %3843
      %3845 = vrot.lane.b32.xlu0 %v3343, 24
      %v3846 = vpop.permute.xlu0 %3845
      %3847 = vrot.lane.b32.xlu0 %v3344, 24
      %v3848 = vpop.permute.xlu0 %3847
      %3849 = vrot.lane.b32.xlu0 %v3345, 24
      %v3850 = vpop.permute.xlu0 %3849
      %3851 = vrot.lane.b32.xlu0 %v3346, 24
      %v3852 = vpop.permute.xlu0 %3851
      %3853 = vrot.lane.b32.xlu0 %v3347, 24
      %v3854 = vpop.permute.xlu0 %3853
      %3855 = vrot.lane.b32.xlu0 %v3348, 24
      %v3856 = vpop.permute.xlu0 %3855
      %3857 = vrot.lane.b32.xlu0 %v3349, 24
      %v3858 = vpop.permute.xlu0 %3857
      %3859 = vrot.lane.b32.xlu0 %v3350, 24
      %v3860 = vpop.permute.xlu0 %3859
      %3861 = vrot.lane.b32.xlu0 %v3351, 24
      %v3862 = vpop.permute.xlu0 %3861
      %3863 = vrot.lane.b32.xlu0 %v3352, 24
      %v3864 = vpop.permute.xlu0 %3863
      %3865 = vrot.lane.b32.xlu0 %v3353, 24
      %v3866 = vpop.permute.xlu0 %3865
      %3931 = vrot.lane.b32.xlu0 %v3354, 32
      %v3932 = vpop.permute.xlu0 %3931
      %3933 = vrot.lane.b32.xlu0 %v3355, 32
      %v3934 = vpop.permute.xlu0 %3933
      %3935 = vrot.lane.b32.xlu0 %v3356, 32
      %v3936 = vpop.permute.xlu0 %3935
      %3937 = vrot.lane.b32.xlu0 %v3357, 32
      %v3938 = vpop.permute.xlu0 %3937
      %3939 = vrot.lane.b32.xlu0 %v3358, 32
      %v3940 = vpop.permute.xlu0 %3939
      %3941 = vrot.lane.b32.xlu0 %v3359, 32
      %v3942 = vpop.permute.xlu0 %3941
      %3943 = vrot.lane.b32.xlu0 %v3360, 32
      %v3944 = vpop.permute.xlu0 %3943
      %3945 = vrot.lane.b32.xlu0 %v3361, 32
      %v3946 = vpop.permute.xlu0 %3945
      %3947 = vrot.lane.b32.xlu0 %v3362, 32
      %v3948 = vpop.permute.xlu0 %3947
      %3949 = vrot.lane.b32.xlu0 %v3363, 32
      %v3950 = vpop.permute.xlu0 %3949
      %3951 = vrot.lane.b32.xlu0 %v3364, 32
      %v3952 = vpop.permute.xlu0 %3951
      %3953 = vrot.lane.b32.xlu0 %v3365, 32
      %v3954 = vpop.permute.xlu0 %3953
      %3955 = vrot.lane.b32.xlu0 %v3366, 32
      %v3956 = vpop.permute.xlu0 %3955
      %3957 = vrot.lane.b32.xlu0 %v3367, 32
      %v3958 = vpop.permute.xlu0 %3957
      %3959 = vrot.lane.b32.xlu0 %v3368, 32
      %v3960 = vpop.permute.xlu0 %3959
      %3961 = vrot.lane.b32.xlu0 %v3369, 32
      %v3962 = vpop.permute.xlu0 %3961
      %3963 = vrot.lane.b32.xlu0 %v3370, 32
      %v3964 = vpop.permute.xlu0 %3963
      %3965 = vrot.lane.b32.xlu0 %v3371, 32
      %v3966 = vpop.permute.xlu0 %3965
      %3967 = vrot.lane.b32.xlu0 %v3372, 32
      %v3968 = vpop.permute.xlu0 %3967
      %3969 = vrot.lane.b32.xlu0 %v3373, 32
      %v3970 = vpop.permute.xlu0 %3969
      %3971 = vrot.lane.b32.xlu0 %v3374, 32
      %v3972 = vpop.permute.xlu0 %3971
      %3973 = vrot.lane.b32.xlu0 %v3375, 32
      %v3974 = vpop.permute.xlu0 %3973
      %3975 = vrot.lane.b32.xlu0 %v3376, 32
      %v3976 = vpop.permute.xlu0 %3975
      %3977 = vrot.lane.b32.xlu0 %v3377, 32
      %v3978 = vpop.permute.xlu0 %3977
      %3979 = vrot.lane.b32.xlu0 %v3378, 32
      %v3980 = vpop.permute.xlu0 %3979
      %3981 = vrot.lane.b32.xlu0 %v3379, 32
      %v3982 = vpop.permute.xlu0 %3981
      %3983 = vrot.lane.b32.xlu0 %v3380, 32
      %v3984 = vpop.permute.xlu0 %3983
      %3985 = vrot.lane.b32.xlu0 %v3381, 32
      %v3986 = vpop.permute.xlu0 %3985
      %3987 = vrot.lane.b32.xlu0 %v3382, 32
      %v3988 = vpop.permute.xlu0 %3987
      %3989 = vrot.lane.b32.xlu0 %v3383, 32
      %v3990 = vpop.permute.xlu0 %3989
      %3991 = vrot.lane.b32.xlu0 %v3384, 32
      %v3992 = vpop.permute.xlu0 %3991
      %3993 = vrot.lane.b32.xlu0 %v3385, 32
      %v3994 = vpop.permute.xlu0 %3993
      %4059 = vrot.lane.b32.xlu0 %v3386, 40
      %v4060 = vpop.permute.xlu0 %4059
      %4061 = vrot.lane.b32.xlu0 %v3387, 40
      %v4062 = vpop.permute.xlu0 %4061
      %4063 = vrot.lane.b32.xlu0 %v3388, 40
      %v4064 = vpop.permute.xlu0 %4063
      %4065 = vrot.lane.b32.xlu0 %v3389, 40
      %v4066 = vpop.permute.xlu0 %4065
      %4067 = vrot.lane.b32.xlu0 %v3390, 40
      %v4068 = vpop.permute.xlu0 %4067
      %4069 = vrot.lane.b32.xlu0 %v3391, 40
      %v4070 = vpop.permute.xlu0 %4069
      %4071 = vrot.lane.b32.xlu0 %v3392, 40
      %v4072 = vpop.permute.xlu0 %4071
      %4073 = vrot.lane.b32.xlu0 %v3393, 40
      %v4074 = vpop.permute.xlu0 %4073
      %4075 = vrot.lane.b32.xlu0 %v3394, 40
      %v4076 = vpop.permute.xlu0 %4075
      %4077 = vrot.lane.b32.xlu0 %v3395, 40
      %v4078 = vpop.permute.xlu0 %4077
      %4079 = vrot.lane.b32.xlu0 %v3396, 40
      %v4080 = vpop.permute.xlu0 %4079
      %4081 = vrot.lane.b32.xlu0 %v3397, 40
      %v4082 = vpop.permute.xlu0 %4081
      %4083 = vrot.lane.b32.xlu0 %v3398, 40
      %v4084 = vpop.permute.xlu0 %4083
      %4085 = vrot.lane.b32.xlu0 %v3399, 40
      %v4086 = vpop.permute.xlu0 %4085
      %4087 = vrot.lane.b32.xlu0 %v3400, 40
      %v4088 = vpop.permute.xlu0 %4087
      %4089 = vrot.lane.b32.xlu0 %v3401, 40
      %v4090 = vpop.permute.xlu0 %4089
      %4091 = vrot.lane.b32.xlu0 %v3402, 40
      %v4092 = vpop.permute.xlu0 %4091
      %4093 = vrot.lane.b32.xlu0 %v3403, 40
      %v4094 = vpop.permute.xlu0 %4093
      %4095 = vrot.lane.b32.xlu0 %v3404, 40
      %v4096 = vpop.permute.xlu0 %4095
      %4097 = vrot.lane.b32.xlu0 %v3405, 40
      %v4098 = vpop.permute.xlu0 %4097
      %4099 = vrot.lane.b32.xlu0 %v3406, 40
      %v4100 = vpop.permute.xlu0 %4099
      %4101 = vrot.lane.b32.xlu0 %v3407, 40
      %v4102 = vpop.permute.xlu0 %4101
      %4103 = vrot.lane.b32.xlu0 %v3408, 40
      %v4104 = vpop.permute.xlu0 %4103
      %4105 = vrot.lane.b32.xlu0 %v3409, 40
      %v4106 = vpop.permute.xlu0 %4105
      %4107 = vrot.lane.b32.xlu0 %v3410, 40
      %v4108 = vpop.permute.xlu0 %4107
      %4109 = vrot.lane.b32.xlu0 %v3411, 40
      %v4110 = vpop.permute.xlu0 %4109
      %4111 = vrot.lane.b32.xlu0 %v3412, 40
      %v4112 = vpop.permute.xlu0 %4111
      %4113 = vrot.lane.b32.xlu0 %v3413, 40
      %v4114 = vpop.permute.xlu0 %4113
      %4115 = vrot.lane.b32.xlu0 %v3414, 40
      %v4116 = vpop.permute.xlu0 %4115
      %4117 = vrot.lane.b32.xlu0 %v3415, 40
      %v4118 = vpop.permute.xlu0 %4117
      %4119 = vrot.lane.b32.xlu0 %v3416, 40
      %v4120 = vpop.permute.xlu0 %4119
      %4121 = vrot.lane.b32.xlu0 %v3417, 40
      %v4122 = vpop.permute.xlu0 %4121
      %4187 = vrot.lane.b32.xlu0 %v3419, 48
      %v4188 = vpop.permute.xlu0 %4187
      %4189 = vrot.lane.b32.xlu0 %v3420, 48
      %v4190 = vpop.permute.xlu0 %4189
      %4191 = vrot.lane.b32.xlu0 %v3421, 48
      %v4192 = vpop.permute.xlu0 %4191
      %4193 = vrot.lane.b32.xlu0 %v3422, 48
      %v4194 = vpop.permute.xlu0 %4193
      %4195 = vrot.lane.b32.xlu0 %v3423, 48
      %v4196 = vpop.permute.xlu0 %4195
      %4197 = vrot.lane.b32.xlu0 %v3424, 48
      %v4198 = vpop.permute.xlu0 %4197
      %4199 = vrot.lane.b32.xlu0 %v3425, 48
      %v4200 = vpop.permute.xlu0 %4199
      %4201 = vrot.lane.b32.xlu0 %v3426, 48
      %v4202 = vpop.permute.xlu0 %4201
      %4203 = vrot.lane.b32.xlu0 %v3427, 48
      %v4204 = vpop.permute.xlu0 %4203
      %4205 = vrot.lane.b32.xlu0 %v3428, 48
      %v4206 = vpop.permute.xlu0 %4205
      %4207 = vrot.lane.b32.xlu0 %v3429, 48
      %v4208 = vpop.permute.xlu0 %4207
      %4209 = vrot.lane.b32.xlu0 %v3430, 48
      %v4210 = vpop.permute.xlu0 %4209
      %4211 = vrot.lane.b32.xlu0 %v3431, 48
      %v4212 = vpop.permute.xlu0 %4211
      %4213 = vrot.lane.b32.xlu0 %v3432, 48
      %v4214 = vpop.permute.xlu0 %4213
      %4215 = vrot.lane.b32.xlu0 %v3433, 48
      %v4216 = vpop.permute.xlu0 %4215
      %4217 = vrot.lane.b32.xlu0 %v3434, 48
      %v4218 = vpop.permute.xlu0 %4217
      %4219 = vrot.lane.b32.xlu0 %v3435, 48
      %v4220 = vpop.permute.xlu0 %4219
      %4221 = vrot.lane.b32.xlu0 %v3436, 48
      %v4222 = vpop.permute.xlu0 %4221
      %4223 = vrot.lane.b32.xlu0 %v3437, 48
      %v4224 = vpop.permute.xlu0 %4223
      %4225 = vrot.lane.b32.xlu0 %v3438, 48
      %v4226 = vpop.permute.xlu0 %4225
      %4227 = vrot.lane.b32.xlu0 %v3439, 48
      %v4228 = vpop.permute.xlu0 %4227
      %4229 = vrot.lane.b32.xlu0 %v3440, 48
      %v4230 = vpop.permute.xlu0 %4229
      %4231 = vrot.lane.b32.xlu0 %v3441, 48
      %v4232 = vpop.permute.xlu0 %4231
      %4233 = vrot.lane.b32.xlu0 %v3442, 48
      %v4234 = vpop.permute.xlu0 %4233
      %4235 = vrot.lane.b32.xlu0 %v3443, 48
      %v4236 = vpop.permute.xlu0 %4235
      %4237 = vrot.lane.b32.xlu0 %v3444, 48
      %v4238 = vpop.permute.xlu0 %4237
      %4239 = vrot.lane.b32.xlu0 %v3445, 48
      %v4240 = vpop.permute.xlu0 %4239
      %4241 = vrot.lane.b32.xlu0 %v3446, 48
      %v4242 = vpop.permute.xlu0 %4241
      %4243 = vrot.lane.b32.xlu0 %v3447, 48
      %v4244 = vpop.permute.xlu0 %4243
      %4245 = vrot.lane.b32.xlu0 %v3448, 48
      %v4246 = vpop.permute.xlu0 %4245
      %4247 = vrot.lane.b32.xlu0 %v3449, 48
      %v4248 = vpop.permute.xlu0 %4247
      %4249 = vrot.lane.b32.xlu0 %v3450, 48
      %v4250 = vpop.permute.xlu0 %4249
      %4315 = vrot.lane.b32.xlu0 %v3451, 56
      %v4316 = vpop.permute.xlu0 %4315
      %4317 = vrot.lane.b32.xlu0 %v3452, 56
      %v4318 = vpop.permute.xlu0 %4317
      %4319 = vrot.lane.b32.xlu0 %v3453, 56
      %v4320 = vpop.permute.xlu0 %4319
      %4321 = vrot.lane.b32.xlu0 %v3454, 56
      %v4322 = vpop.permute.xlu0 %4321
      %4323 = vrot.lane.b32.xlu0 %v3455, 56
      %v4324 = vpop.permute.xlu0 %4323
      %4325 = vrot.lane.b32.xlu0 %v3456, 56
      %v4326 = vpop.permute.xlu0 %4325
      %4327 = vrot.lane.b32.xlu0 %v3457, 56
      %v4328 = vpop.permute.xlu0 %4327
      %4329 = vrot.lane.b32.xlu0 %v3458, 56
      %v4330 = vpop.permute.xlu0 %4329
      %4331 = vrot.lane.b32.xlu0 %v3459, 56
      %v4332 = vpop.permute.xlu0 %4331
      %4333 = vrot.lane.b32.xlu0 %v3460, 56
      %v4334 = vpop.permute.xlu0 %4333
      %4335 = vrot.lane.b32.xlu0 %v3461, 56
      %v4336 = vpop.permute.xlu0 %4335
      %4337 = vrot.lane.b32.xlu0 %v3462, 56
      %v4338 = vpop.permute.xlu0 %4337
      %4339 = vrot.lane.b32.xlu0 %v3463, 56
      %v4340 = vpop.permute.xlu0 %4339
      %4341 = vrot.lane.b32.xlu0 %v3464, 56
      %v4342 = vpop.permute.xlu0 %4341
      %4343 = vrot.lane.b32.xlu0 %v3465, 56
      %v4344 = vpop.permute.xlu0 %4343
      %4345 = vrot.lane.b32.xlu0 %v3466, 56
      %v4346 = vpop.permute.xlu0 %4345
      %4347 = vrot.lane.b32.xlu0 %v3467, 56
      %v4348 = vpop.permute.xlu0 %4347
      %4349 = vrot.lane.b32.xlu0 %v3468, 56
      %v4350 = vpop.permute.xlu0 %4349
      %4351 = vrot.lane.b32.xlu0 %v3469, 56
      %v4352 = vpop.permute.xlu0 %4351
      %4353 = vrot.lane.b32.xlu0 %v3470, 56
      %v4354 = vpop.permute.xlu0 %4353
      %4355 = vrot.lane.b32.xlu0 %v3471, 56
      %v4356 = vpop.permute.xlu0 %4355
      %4357 = vrot.lane.b32.xlu0 %v3472, 56
      %v4358 = vpop.permute.xlu0 %4357
      %4359 = vrot.lane.b32.xlu0 %v3473, 56
      %v4360 = vpop.permute.xlu0 %4359
      %4361 = vrot.lane.b32.xlu0 %v3474, 56
      %v4362 = vpop.permute.xlu0 %4361
      %4363 = vrot.lane.b32.xlu0 %v3475, 56
      %v4364 = vpop.permute.xlu0 %4363
      %4365 = vrot.lane.b32.xlu0 %v3476, 56
      %v4366 = vpop.permute.xlu0 %4365
      %4367 = vrot.lane.b32.xlu0 %v3477, 56
      %v4368 = vpop.permute.xlu0 %4367
      %4369 = vrot.lane.b32.xlu0 %v3478, 56
      %v4370 = vpop.permute.xlu0 %4369
      %4371 = vrot.lane.b32.xlu0 %v3479, 56
      %v4372 = vpop.permute.xlu0 %4371
      %4373 = vrot.lane.b32.xlu0 %v3480, 56
      %v4374 = vpop.permute.xlu0 %4373
      %4375 = vrot.lane.b32.xlu0 %v3481, 56
      %v4376 = vpop.permute.xlu0 %4375
      %4377 = vrot.lane.b32.xlu0 %v3482, 56
      %v4378 = vpop.permute.xlu0 %4377
      %4443 = vrot.lane.b32.xlu0 %v3483, 64
      %v4444 = vpop.permute.xlu0 %4443
      %4445 = vrot.lane.b32.xlu0 %v3484, 64
      %v4446 = vpop.permute.xlu0 %4445
      %4447 = vrot.lane.b32.xlu0 %v3485, 64
      %v4448 = vpop.permute.xlu0 %4447
      %4449 = vrot.lane.b32.xlu0 %v3486, 64
      %v4450 = vpop.permute.xlu0 %4449
      %4451 = vrot.lane.b32.xlu0 %v3487, 64
      %v4452 = vpop.permute.xlu0 %4451
      %4453 = vrot.lane.b32.xlu0 %v3488, 64
      %v4454 = vpop.permute.xlu0 %4453
      %4455 = vrot.lane.b32.xlu0 %v3489, 64
      %v4456 = vpop.permute.xlu0 %4455
      %4457 = vrot.lane.b32.xlu0 %v3490, 64
      %v4458 = vpop.permute.xlu0 %4457
      %4459 = vrot.lane.b32.xlu0 %v3491, 64
      %v4460 = vpop.permute.xlu0 %4459
      %4461 = vrot.lane.b32.xlu0 %v3492, 64
      %v4462 = vpop.permute.xlu0 %4461
      %4463 = vrot.lane.b32.xlu0 %v3493, 64
      %v4464 = vpop.permute.xlu0 %4463
      %4465 = vrot.lane.b32.xlu0 %v3494, 64
      %v4466 = vpop.permute.xlu0 %4465
      %4467 = vrot.lane.b32.xlu0 %v3495, 64
      %v4468 = vpop.permute.xlu0 %4467
      %4469 = vrot.lane.b32.xlu0 %v3496, 64
      %v4470 = vpop.permute.xlu0 %4469
      %4471 = vrot.lane.b32.xlu0 %v3497, 64
      %v4472 = vpop.permute.xlu0 %4471
      %4473 = vrot.lane.b32.xlu0 %v3498, 64
      %v4474 = vpop.permute.xlu0 %4473
      %4475 = vrot.lane.b32.xlu0 %v3499, 64
      %v4476 = vpop.permute.xlu0 %4475
      %4477 = vrot.lane.b32.xlu0 %v3500, 64
      %v4478 = vpop.permute.xlu0 %4477
      %4479 = vrot.lane.b32.xlu0 %v3501, 64
      %v4480 = vpop.permute.xlu0 %4479
      %4481 = vrot.lane.b32.xlu0 %v3502, 64
      %v4482 = vpop.permute.xlu0 %4481
      %4483 = vrot.lane.b32.xlu0 %v3503, 64
      %v4484 = vpop.permute.xlu0 %4483
      %4485 = vrot.lane.b32.xlu0 %v3504, 64
      %v4486 = vpop.permute.xlu0 %4485
      %4487 = vrot.lane.b32.xlu0 %v3505, 64
      %v4488 = vpop.permute.xlu0 %4487
      %4489 = vrot.lane.b32.xlu0 %v3506, 64
      %v4490 = vpop.permute.xlu0 %4489
      %4491 = vrot.lane.b32.xlu0 %v3507, 64
      %v4492 = vpop.permute.xlu0 %4491
      %4493 = vrot.lane.b32.xlu0 %v3508, 64
      %v4494 = vpop.permute.xlu0 %4493
      %4495 = vrot.lane.b32.xlu0 %v3509, 64
      %v4496 = vpop.permute.xlu0 %4495
      %4497 = vrot.lane.b32.xlu0 %v3510, 64
      %v4498 = vpop.permute.xlu0 %4497
      %4499 = vrot.lane.b32.xlu0 %v3511, 64
      %v4500 = vpop.permute.xlu0 %4499
      %4501 = vrot.lane.b32.xlu0 %v3512, 64
      %v4502 = vpop.permute.xlu0 %4501
      %4503 = vrot.lane.b32.xlu0 %v3513, 64
      %v4504 = vpop.permute.xlu0 %4503
      %4505 = vrot.lane.b32.xlu0 %v3514, 64
      %v4506 = vpop.permute.xlu0 %4505
      %v4539 = vsel %vm2600, %v3226, %v3548
      %v4540 = vsel %vm2600, %v3227, %v3550
      %v4541 = vsel %vm2600, %v3228, %v3552
      %v4542 = vsel %vm2600, %v3229, %v3554
      %v4543 = vsel %vm2600, %v3230, %v3556
      %v4544 = vsel %vm2600, %v3231, %v3558
      %v4545 = vsel %vm2600, %v3232, %v3560
      %v4546 = vsel %vm2600, %v3233, %v3562
      %v4547 = vsel %vm2600, %v3234, %v3564
      %v4548 = vsel %vm2600, %v3235, %v3566
      %v4549 = vsel %vm2600, %v3236, %v3568
      %v4550 = vsel %vm2600, %v3237, %v3570
      %v4551 = vsel %vm2600, %v3238, %v3572
      %v4552 = vsel %vm2600, %v3239, %v3574
      %v4553 = vsel %vm2600, %v3240, %v3576
      %v4554 = vsel %vm2600, %v3241, %v3578
      %v4555 = vsel %vm2600, %v3242, %v3580
      %v4556 = vsel %vm2600, %v3243, %v3582
      %v4557 = vsel %vm2600, %v3244, %v3584
      %v4558 = vsel %vm2600, %v3245, %v3586
      %v4559 = vsel %vm2600, %v3246, %v3588
      %v4560 = vsel %vm2600, %v3247, %v3590
      %v4561 = vsel %vm2600, %v3248, %v3592
      %v4562 = vsel %vm2600, %v3249, %v3594
      %v4563 = vsel %vm2600, %v3250, %v3596
      %v4564 = vsel %vm2600, %v3251, %v3598
      %v4565 = vsel %vm2600, %v3252, %v3600
      %v4566 = vsel %vm2600, %v3253, %v3602
      %v4567 = vsel %vm2600, %v3254, %v3604
      %v4568 = vsel %vm2600, %v3255, %v3606
      %v4569 = vsel %vm2600, %v3256, %v3608
      %v4570 = vsel %vm2600, %v3257, %v3610
      %v4571 = vsel %vm2616, %v4539, %v3676
      %v4572 = vsel %vm2616, %v4540, %v3678
      %v4573 = vsel %vm2616, %v4541, %v3680
      %v4574 = vsel %vm2616, %v4542, %v3682
      %v4575 = vsel %vm2616, %v4543, %v3684
      %v4576 = vsel %vm2616, %v4544, %v3686
      %v4577 = vsel %vm2616, %v4545, %v3688
      %v4578 = vsel %vm2616, %v4546, %v3690
      %v4579 = vsel %vm2616, %v4547, %v3692
      %v4580 = vsel %vm2616, %v4548, %v3694
      %v4581 = vsel %vm2616, %v4549, %v3696
      %v4582 = vsel %vm2616, %v4550, %v3698
      %v4583 = vsel %vm2616, %v4551, %v3700
      %v4584 = vsel %vm2616, %v4552, %v3702
      %v4585 = vsel %vm2616, %v4553, %v3704
      %v4586 = vsel %vm2616, %v4554, %v3706
      %v4587 = vsel %vm2616, %v4555, %v3708
      %v4588 = vsel %vm2616, %v4556, %v3710
      %v4589 = vsel %vm2616, %v4557, %v3712
      %v4590 = vsel %vm2616, %v4558, %v3714
      %v4591 = vsel %vm2616, %v4559, %v3716
      %v4592 = vsel %vm2616, %v4560, %v3718
      %v4593 = vsel %vm2616, %v4561, %v3720
      %v4594 = vsel %vm2616, %v4562, %v3722
      %v4595 = vsel %vm2616, %v4563, %v3724
      %v4596 = vsel %vm2616, %v4564, %v3726
      %v4597 = vsel %vm2616, %v4565, %v3728
      %v4598 = vsel %vm2616, %v4566, %v3730
      %v4599 = vsel %vm2616, %v4567, %v3732
      %v4600 = vsel %vm2616, %v4568, %v3734
      %v4601 = vsel %vm2616, %v4569, %v3736
      %v4602 = vsel %vm2616, %v4570, %v3738
      %v4603 = vsel %vm2632, %v4571, %v3804
      %v4604 = vsel %vm2632, %v4572, %v3806
      %v4605 = vsel %vm2632, %v4573, %v3808
      %v4606 = vsel %vm2632, %v4574, %v3810
      %v4607 = vsel %vm2632, %v4575, %v3812
      %v4608 = vsel %vm2632, %v4576, %v3814
      %v4609 = vsel %vm2632, %v4577, %v3816
      %v4610 = vsel %vm2632, %v4578, %v3818
      %v4611 = vsel %vm2632, %v4579, %v3820
      %v4612 = vsel %vm2632, %v4580, %v3822
      %v4613 = vsel %vm2632, %v4581, %v3824
      %v4614 = vsel %vm2632, %v4582, %v3826
      %v4615 = vsel %vm2632, %v4583, %v3828
      %v4616 = vsel %vm2632, %v4584, %v3830
      %v4617 = vsel %vm2632, %v4585, %v3832
      %v4618 = vsel %vm2632, %v4586, %v3834
      %v4619 = vsel %vm2632, %v4587, %v3836
      %v4620 = vsel %vm2632, %v4588, %v3838
      %v4621 = vsel %vm2632, %v4589, %v3840
      %v4622 = vsel %vm2632, %v4590, %v3842
      %v4623 = vsel %vm2632, %v4591, %v3844
      %v4624 = vsel %vm2632, %v4592, %v3846
      %v4625 = vsel %vm2632, %v4593, %v3848
      %v4626 = vsel %vm2632, %v4594, %v3850
      %v4627 = vsel %vm2632, %v4595, %v3852
      %v4628 = vsel %vm2632, %v4596, %v3854
      %v4629 = vsel %vm2632, %v4597, %v3856
      %v4630 = vsel %vm2632, %v4598, %v3858
      %v4631 = vsel %vm2632, %v4599, %v3860
      %v4632 = vsel %vm2632, %v4600, %v3862
      %v4633 = vsel %vm2632, %v4601, %v3864
      %v4634 = vsel %vm2632, %v4602, %v3866
      %v4635 = vsel %vm2648, %v4603, %v3932
      %v4636 = vsel %vm2648, %v4604, %v3934
      %v4637 = vsel %vm2648, %v4605, %v3936
      %v4638 = vsel %vm2648, %v4606, %v3938
      %v4639 = vsel %vm2648, %v4607, %v3940
      %v4640 = vsel %vm2648, %v4608, %v3942
      %v4641 = vsel %vm2648, %v4609, %v3944
      %v4642 = vsel %vm2648, %v4610, %v3946
      %v4643 = vsel %vm2648, %v4611, %v3948
      %v4644 = vsel %vm2648, %v4612, %v3950
      %v4645 = vsel %vm2648, %v4613, %v3952
      %v4646 = vsel %vm2648, %v4614, %v3954
      %v4647 = vsel %vm2648, %v4615, %v3956
      %v4648 = vsel %vm2648, %v4616, %v3958
      %v4649 = vsel %vm2648, %v4617, %v3960
      %v4650 = vsel %vm2648, %v4618, %v3962
      %v4651 = vsel %vm2648, %v4619, %v3964
      %v4652 = vsel %vm2648, %v4620, %v3966
      %v4653 = vsel %vm2648, %v4621, %v3968
      %v4654 = vsel %vm2648, %v4622, %v3970
      %v4655 = vsel %vm2648, %v4623, %v3972
      %v4656 = vsel %vm2648, %v4624, %v3974
      %v4657 = vsel %vm2648, %v4625, %v3976
      %v4658 = vsel %vm2648, %v4626, %v3978
      %v4659 = vsel %vm2648, %v4627, %v3980
      %v4660 = vsel %vm2648, %v4628, %v3982
      %v4661 = vsel %vm2648, %v4629, %v3984
      %v4662 = vsel %vm2648, %v4630, %v3986
      %v4663 = vsel %vm2648, %v4631, %v3988
      %v4664 = vsel %vm2648, %v4632, %v3990
      %v4665 = vsel %vm2648, %v4633, %v3992
      %v4666 = vsel %vm2648, %v4634, %v3994
      %vm4667 = vcmask 326656
      %v4668 = vsel %vm4667, %v4635, %v4060
      %v4669 = vsel %vm4667, %v4636, %v4062
      %v4670 = vsel %vm4667, %v4637, %v4064
      %v4671 = vsel %vm4667, %v4638, %v4066
      %v4672 = vsel %vm4667, %v4639, %v4068
      %v4673 = vsel %vm4667, %v4640, %v4070
      %v4674 = vsel %vm4667, %v4641, %v4072
      %v4675 = vsel %vm4667, %v4642, %v4074
      %v4676 = vsel %vm4667, %v4643, %v4076
      %v4677 = vsel %vm4667, %v4644, %v4078
      %v4678 = vsel %vm4667, %v4645, %v4080
      %v4679 = vsel %vm4667, %v4646, %v4082
      %v4680 = vsel %vm4667, %v4647, %v4084
      %v4681 = vsel %vm4667, %v4648, %v4086
      %v4682 = vsel %vm4667, %v4649, %v4088
      %v4683 = vsel %vm4667, %v4650, %v4090
      %v4684 = vsel %vm4667, %v4651, %v4092
      %v4685 = vsel %vm4667, %v4652, %v4094
      %v4686 = vsel %vm4667, %v4653, %v4096
      %v4687 = vsel %vm4667, %v4654, %v4098
      %v4688 = vsel %vm4667, %v4655, %v4100
      %v4689 = vsel %vm4667, %v4656, %v4102
      %v4690 = vsel %vm4667, %v4657, %v4104
      %v4691 = vsel %vm4667, %v4658, %v4106
      %v4692 = vsel %vm4667, %v4659, %v4108
      %v4693 = vsel %vm4667, %v4660, %v4110
      %v4694 = vsel %vm4667, %v4661, %v4112
      %v4695 = vsel %vm4667, %v4662, %v4114
      %v4696 = vsel %vm4667, %v4663, %v4116
      %v4697 = vsel %vm4667, %v4664, %v4118
      %v4698 = vsel %vm4667, %v4665, %v4120
      %v4699 = vsel %vm4667, %v4666, %v4122
      %vm4700 = vcmask 392192
      %v4701 = vsel %vm4700, %v4668, %v4188
      %v4702 = vsel %vm4700, %v4669, %v4190
      %v4703 = vsel %vm4700, %v4670, %v4192
      %v4704 = vsel %vm4700, %v4671, %v4194
      %v4705 = vsel %vm4700, %v4672, %v4196
      %v4706 = vsel %vm4700, %v4673, %v4198
      %v4707 = vsel %vm4700, %v4674, %v4200
      %v4708 = vsel %vm4700, %v4675, %v4202
      %v4709 = vsel %vm4700, %v4676, %v4204
      %v4710 = vsel %vm4700, %v4677, %v4206
      %v4711 = vsel %vm4700, %v4678, %v4208
      %v4712 = vsel %vm4700, %v4679, %v4210
      %v4713 = vsel %vm4700, %v4680, %v4212
      %v4714 = vsel %vm4700, %v4681, %v4214
      %v4715 = vsel %vm4700, %v4682, %v4216
      %v4716 = vsel %vm4700, %v4683, %v4218
      %v4717 = vsel %vm4700, %v4684, %v4220
      %v4718 = vsel %vm4700, %v4685, %v4222
      %v4719 = vsel %vm4700, %v4686, %v4224
      %v4720 = vsel %vm4700, %v4687, %v4226
      %v4721 = vsel %vm4700, %v4688, %v4228
      %v4722 = vsel %vm4700, %v4689, %v4230
      %v4723 = vsel %vm4700, %v4690, %v4232
      %v4724 = vsel %vm4700, %v4691, %v4234
      %v4725 = vsel %vm4700, %v4692, %v4236
      %v4726 = vsel %vm4700, %v4693, %v4238
      %v4727 = vsel %vm4700, %v4694, %v4240
      %v4728 = vsel %vm4700, %v4695, %v4242
      %v4729 = vsel %vm4700, %v4696, %v4244
      %v4730 = vsel %vm4700, %v4697, %v4246
      %v4731 = vsel %vm4700, %v4698, %v4248
      %v4732 = vsel %vm4700, %v4699, %v4250
      %vm4733 = vcmask 457728
      %v4734 = vsel %vm4733, %v4701, %v4316
      %v4735 = vsel %vm4733, %v4702, %v4318
      %v4736 = vsel %vm4733, %v4703, %v4320
      %v4737 = vsel %vm4733, %v4704, %v4322
      %v4738 = vsel %vm4733, %v4705, %v4324
      %v4739 = vsel %vm4733, %v4706, %v4326
      %v4740 = vsel %vm4733, %v4707, %v4328
      %v4741 = vsel %vm4733, %v4708, %v4330
      %v4742 = vsel %vm4733, %v4709, %v4332
      %v4743 = vsel %vm4733, %v4710, %v4334
      %v4744 = vsel %vm4733, %v4711, %v4336
      %v4745 = vsel %vm4733, %v4712, %v4338
      %v4746 = vsel %vm4733, %v4713, %v4340
      %v4747 = vsel %vm4733, %v4714, %v4342
      %v4748 = vsel %vm4733, %v4715, %v4344
      %v4749 = vsel %vm4733, %v4716, %v4346
      %v4750 = vsel %vm4733, %v4717, %v4348
      %v4751 = vsel %vm4733, %v4718, %v4350
      %v4752 = vsel %vm4733, %v4719, %v4352
      %v4753 = vsel %vm4733, %v4720, %v4354
      %v4754 = vsel %vm4733, %v4721, %v4356
      %v4755 = vsel %vm4733, %v4722, %v4358
      %v4756 = vsel %vm4733, %v4723, %v4360
      %v4757 = vsel %vm4733, %v4724, %v4362
      %v4758 = vsel %vm4733, %v4725, %v4364
      %v4759 = vsel %vm4733, %v4726, %v4366
      %v4760 = vsel %vm4733, %v4727, %v4368
      %v4761 = vsel %vm4733, %v4728, %v4370
      %v4762 = vsel %vm4733, %v4729, %v4372
      %v4763 = vsel %vm4733, %v4730, %v4374
      %v4764 = vsel %vm4733, %v4731, %v4376
      %v4765 = vsel %vm4733, %v4732, %v4378
      %vm4766 = vcmask 523264
      %v4767 = vsel %vm4766, %v4734, %v4444
      %v4768 = vsel %vm4766, %v4735, %v4446
      %v4769 = vsel %vm4766, %v4736, %v4448
      %v4770 = vsel %vm4766, %v4737, %v4450
      %v4771 = vsel %vm4766, %v4738, %v4452
      %v4772 = vsel %vm4766, %v4739, %v4454
      %v4773 = vsel %vm4766, %v4740, %v4456
      %v4774 = vsel %vm4766, %v4741, %v4458
      %v4775 = vsel %vm4766, %v4742, %v4460
      %v4776 = vsel %vm4766, %v4743, %v4462
      %v4777 = vsel %vm4766, %v4744, %v4464
      %v4778 = vsel %vm4766, %v4745, %v4466
      %v4779 = vsel %vm4766, %v4746, %v4468
      %v4780 = vsel %vm4766, %v4747, %v4470
      %v4781 = vsel %vm4766, %v4748, %v4472
      %v4782 = vsel %vm4766, %v4749, %v4474
      %v4783 = vsel %vm4766, %v4750, %v4476
      %v4784 = vsel %vm4766, %v4751, %v4478
      %v4785 = vsel %vm4766, %v4752, %v4480
      %v4786 = vsel %vm4766, %v4753, %v4482
      %v4787 = vsel %vm4766, %v4754, %v4484
      %v4788 = vsel %vm4766, %v4755, %v4486
      %v4789 = vsel %vm4766, %v4756, %v4488
      %v4790 = vsel %vm4766, %v4757, %v4490
      %v4791 = vsel %vm4766, %v4758, %v4492
      %v4792 = vsel %vm4766, %v4759, %v4494
      %v4793 = vsel %vm4766, %v4760, %v4496
      %v4794 = vsel %vm4766, %v4761, %v4498
      %v4795 = vsel %vm4766, %v4762, %v4500
      %v4796 = vsel %vm4766, %v4763, %v4502
      %v4797 = vsel %vm4766, %v4764, %v4504
      %v4798 = vsel %vm4766, %v4765, %v4506
      %v4799 = vld [vmem:[%s5] sm:$0xff]
      %v4800 = vld [vmem:[%s5 + $0x8] sm:$0xff]
      %v4801 = vld [vmem:[%s5 + $0x10] sm:$0xff]
      %v4802 = vld [vmem:[%s5 + $0x18] sm:$0xff]
      %v4803 = vld [vmem:[%s5 + $0x20] sm:$0xff]
      %v4804 = vld [vmem:[%s5 + $0x28] sm:$0xff]
      %v4805 = vld [vmem:[%s5 + $0x30] sm:$0xff]
      %v4806 = vld [vmem:[%s5 + $0x38] sm:$0xff]
      %v4807 = vld [vmem:[%s5 + $0x40] sm:$0xff]
      %vm4808 = vcmask 588800
      %v4810 = vsel %vm4808, %v4767, 0
      %v4813 = vsel %vm4808, %v4768, 0
      %v4816 = vsel %vm4808, %v4769, 0
      %v4819 = vsel %vm4808, %v4770, 0
      %v4822 = vsel %vm4808, %v4771, 0
      %v4825 = vsel %vm4808, %v4772, 0
      %v4828 = vsel %vm4808, %v4773, 0
      %v4831 = vsel %vm4808, %v4774, 0
      %v4834 = vsel %vm4808, %v4775, 0
      %v4837 = vsel %vm4808, %v4776, 0
      %v4840 = vsel %vm4808, %v4777, 0
      %v4843 = vsel %vm4808, %v4778, 0
      %v4846 = vsel %vm4808, %v4779, 0
      %v4849 = vsel %vm4808, %v4780, 0
      %v4852 = vsel %vm4808, %v4781, 0
      %v4855 = vsel %vm4808, %v4782, 0
      %v4858 = vsel %vm4808, %v4783, 0
      %v4861 = vsel %vm4808, %v4784, 0
      %v4864 = vsel %vm4808, %v4785, 0
      %v4867 = vsel %vm4808, %v4786, 0
      %v4870 = vsel %vm4808, %v4787, 0
      %v4873 = vsel %vm4808, %v4788, 0
      %v4876 = vsel %vm4808, %v4789, 0
      %v4879 = vsel %vm4808, %v4790, 0
      %v4882 = vsel %vm4808, %v4791, 0
      %v4885 = vsel %vm4808, %v4792, 0
      %v4888 = vsel %vm4808, %v4793, 0
      %v4891 = vsel %vm4808, %v4794, 0
      %v4894 = vsel %vm4808, %v4795, 0
      %v4897 = vsel %vm4808, %v4796, 0
      %v4900 = vsel %vm4808, %v4797, 0
      %v4903 = vsel %vm4808, %v4798, 0
      %4905 = vmatpush.msra.mxu0 0.0
      %4906 = vmatpush.msra.mxu0 0.0
      %4907 = vmatpush.msra.mxu0 0.0
      %4908 = vmatpush.msra.mxu0 0.0
      %4909 = vmatpush.msra.mxu0 0.0
      %4910 = vmatpush.msra.mxu0 0.0
      %4911 = vmatpush.msra.mxu0 0.0
      %4912 = vmatpush.msra.mxu0 %v4807
      %4913 = vmatpush.msra.mxu0 %v4806
      %4914 = vmatpush.msra.mxu0 %v4805
      %4915 = vmatpush.msra.mxu0 %v4804
      %4916 = vmatpush.msra.mxu0 %v4803
      %4917 = vmatpush.msra.mxu0 %v4802
      %4918 = vmatpush.msra.mxu0 %v4801
      %4919 = vmatpush.msra.mxu0 %v4800
      %4920 = vmatpush.msra.mxu0 %v4799
      %4921 = vmatmul.f32.gmra.mxu0 %v4810
      %v4922 = vpop.f32.mrf.mxu0
      %v4923 = vadd.f32 0.0, %v4922
      %4924 = vmatmul.f32.gmra.mxu0 %v4813
      %v4925 = vpop.f32.mrf.mxu0
      %v4926 = vadd.f32 0.0, %v4925
      %4927 = vmatmul.f32.gmra.mxu0 %v4816
      %v4928 = vpop.f32.mrf.mxu0
      %v4929 = vadd.f32 0.0, %v4928
      %4930 = vmatmul.f32.gmra.mxu0 %v4819
      %v4931 = vpop.f32.mrf.mxu0
      %v4932 = vadd.f32 0.0, %v4931
      %4933 = vmatmul.f32.gmra.mxu0 %v4822
      %v4934 = vpop.f32.mrf.mxu0
      %v4935 = vadd.f32 0.0, %v4934
      %4936 = vmatmul.f32.gmra.mxu0 %v4825
      %v4937 = vpop.f32.mrf.mxu0
      %v4938 = vadd.f32 0.0, %v4937
      %4939 = vmatmul.f32.gmra.mxu0 %v4828
      %v4940 = vpop.f32.mrf.mxu0
      %v4941 = vadd.f32 0.0, %v4940
      %4942 = vmatmul.f32.gmra.mxu0 %v4831
      %v4943 = vpop.f32.mrf.mxu0
      %v4944 = vadd.f32 0.0, %v4943
      %4945 = vmatmul.f32.gmra.mxu0 %v4834
      %v4946 = vpop.f32.mrf.mxu0
      %v4947 = vadd.f32 0.0, %v4946
      %4948 = vmatmul.f32.gmra.mxu0 %v4837
      %v4949 = vpop.f32.mrf.mxu0
      %v4950 = vadd.f32 0.0, %v4949
      %4951 = vmatmul.f32.gmra.mxu0 %v4840
      %v4952 = vpop.f32.mrf.mxu0
      %v4953 = vadd.f32 0.0, %v4952
      %4954 = vmatmul.f32.gmra.mxu0 %v4843
      %v4955 = vpop.f32.mrf.mxu0
      %v4956 = vadd.f32 0.0, %v4955
      %4957 = vmatmul.f32.gmra.mxu0 %v4846
      %v4958 = vpop.f32.mrf.mxu0
      %v4959 = vadd.f32 0.0, %v4958
      %4960 = vmatmul.f32.gmra.mxu0 %v4849
      %v4961 = vpop.f32.mrf.mxu0
      %v4962 = vadd.f32 0.0, %v4961
      %4963 = vmatmul.f32.gmra.mxu0 %v4852
      %v4964 = vpop.f32.mrf.mxu0
      %v4965 = vadd.f32 0.0, %v4964
      %4966 = vmatmul.f32.gmra.mxu0 %v4855
      %v4967 = vpop.f32.mrf.mxu0
      %v4968 = vadd.f32 0.0, %v4967
      %4969 = vmatmul.f32.gmra.mxu0 %v4858
      %v4970 = vpop.f32.mrf.mxu0
      %v4971 = vadd.f32 0.0, %v4970
      %4972 = vmatmul.f32.gmra.mxu0 %v4861
      %v4973 = vpop.f32.mrf.mxu0
      %v4974 = vadd.f32 0.0, %v4973
      %4975 = vmatmul.f32.gmra.mxu0 %v4864
      %v4976 = vpop.f32.mrf.mxu0
      %v4977 = vadd.f32 0.0, %v4976
      %4978 = vmatmul.f32.gmra.mxu0 %v4867
      %v4979 = vpop.f32.mrf.mxu0
      %v4980 = vadd.f32 0.0, %v4979
      %4981 = vmatmul.f32.gmra.mxu0 %v4870
      %v4982 = vpop.f32.mrf.mxu0
      %v4983 = vadd.f32 0.0, %v4982
      %4984 = vmatmul.f32.gmra.mxu0 %v4873
      %v4985 = vpop.f32.mrf.mxu0
      %v4986 = vadd.f32 0.0, %v4985
      %4987 = vmatmul.f32.gmra.mxu0 %v4876
      %v4988 = vpop.f32.mrf.mxu0
      %v4989 = vadd.f32 0.0, %v4988
      %4990 = vmatmul.f32.gmra.mxu0 %v4879
      %v4991 = vpop.f32.mrf.mxu0
      %v4992 = vadd.f32 0.0, %v4991
      %4993 = vmatmul.f32.gmra.mxu0 %v4882
      %v4994 = vpop.f32.mrf.mxu0
      %v4995 = vadd.f32 0.0, %v4994
      %4996 = vmatmul.f32.gmra.mxu0 %v4885
      %v4997 = vpop.f32.mrf.mxu0
      %v4998 = vadd.f32 0.0, %v4997
      %4999 = vmatmul.f32.gmra.mxu0 %v4888
      %v5000 = vpop.f32.mrf.mxu0
      %v5001 = vadd.f32 0.0, %v5000
      %5002 = vmatmul.f32.gmra.mxu0 %v4891
      %v5003 = vpop.f32.mrf.mxu0
      %v5004 = vadd.f32 0.0, %v5003
      %5005 = vmatmul.f32.gmra.mxu0 %v4894
      %v5006 = vpop.f32.mrf.mxu0
      %v5007 = vadd.f32 0.0, %v5006
      %5008 = vmatmul.f32.gmra.mxu0 %v4897
      %v5009 = vpop.f32.mrf.mxu0
      %v5010 = vadd.f32 0.0, %v5009
      %5011 = vmatmul.f32.gmra.mxu0 %v4900
      %v5012 = vpop.f32.mrf.mxu0
      %5013 = vmatmul.f32.gmra.mxu0 %v4903
      %v5014 = vpop.f32.mrf.mxu0
      %5015 = vdwg.mxu0
      %v5016 = vld [vmem:[%s6] sm:$0x1]
      %v5017 = vperm.slane %v5016, 0
      %v5018 = vmul.f32 %v4923, %v5017
      %v5019 = vmul.f32 %v4926, %v5017
      %v5020 = vmul.f32 %v4929, %v5017
      %v5021 = vmul.f32 %v4932, %v5017
      %v5022 = vmul.f32 %v4935, %v5017
      %v5023 = vmul.f32 %v4938, %v5017
      %v5024 = vmul.f32 %v4941, %v5017
      %v5025 = vmul.f32 %v4944, %v5017
      %v5026 = vmul.f32 %v4947, %v5017
      %v5027 = vmul.f32 %v4950, %v5017
      %v5028 = vmul.f32 %v4953, %v5017
      %v5029 = vmul.f32 %v4956, %v5017
      %v5030 = vmul.f32 %v4959, %v5017
      %v5031 = vmul.f32 %v4962, %v5017
      %v5032 = vmul.f32 %v4965, %v5017
      %v5033 = vmul.f32 %v4968, %v5017
      %v5034 = vmul.f32 %v4971, %v5017
      %v5035 = vmul.f32 %v4974, %v5017
      %v5036 = vmul.f32 %v4977, %v5017
      %v5037 = vmul.f32 %v4980, %v5017
      %v5038 = vmul.f32 %v4983, %v5017
      %v5039 = vmul.f32 %v4986, %v5017
      %v5040 = vmul.f32 %v4989, %v5017
      %v5041 = vmul.f32 %v4992, %v5017
      %v5042 = vmul.f32 %v4995, %v5017
      %v5043 = vmul.f32 %v4998, %v5017
      %v5044 = vmul.f32 %v5001, %v5017
      %v5045 = vmul.f32 %v5004, %v5017
      %v5046 = vmul.f32 %v5007, %v5017
      %v5047 = vmul.f32 %v5010, %v5017
      %v5048 = vld [vmem:[%s6 + $0x1] sm:$0x1]
      %v5049 = vperm.slane %v5048, 0
      %v5050 = vadd.f32 %v5018, %v5049
      %v5051 = vadd.f32 %v5019, %v5049
      %v5052 = vadd.f32 %v5020, %v5049
      %v5053 = vadd.f32 %v5021, %v5049
      %v5054 = vadd.f32 %v5022, %v5049
      %v5055 = vadd.f32 %v5023, %v5049
      %v5056 = vadd.f32 %v5024, %v5049
      %v5057 = vadd.f32 %v5025, %v5049
      %v5058 = vadd.f32 %v5026, %v5049
      %v5059 = vadd.f32 %v5027, %v5049
      %v5060 = vadd.f32 %v5028, %v5049
      %v5061 = vadd.f32 %v5029, %v5049
      %v5062 = vadd.f32 %v5030, %v5049
      %v5063 = vadd.f32 %v5031, %v5049
      %v5064 = vadd.f32 %v5032, %v5049
      %v5065 = vadd.f32 %v5033, %v5049
      %v5066 = vadd.f32 %v5034, %v5049
      %v5067 = vadd.f32 %v5035, %v5049
      %v5068 = vadd.f32 %v5036, %v5049
      %v5069 = vadd.f32 %v5037, %v5049
      %v5070 = vadd.f32 %v5038, %v5049
      %v5071 = vadd.f32 %v5039, %v5049
      %v5072 = vadd.f32 %v5040, %v5049
      %v5073 = vadd.f32 %v5041, %v5049
      %v5074 = vadd.f32 %v5042, %v5049
      %v5075 = vadd.f32 %v5043, %v5049
      %v5076 = vadd.f32 %v5044, %v5049
      %v5077 = vadd.f32 %v5045, %v5049
      %v5078 = vadd.f32 %v5046, %v5049
      %v5079 = vadd.f32 %v5047, %v5049
      %v5080 = vmax.f32 %v5050, 0.0
      %v5081 = vmax.f32 %v5051, 0.0
      %v5082 = vmax.f32 %v5052, 0.0
      %v5083 = vmax.f32 %v5053, 0.0
      %v5084 = vmax.f32 %v5054, 0.0
      %v5085 = vmax.f32 %v5055, 0.0
      %v5086 = vmax.f32 %v5056, 0.0
      %v5087 = vmax.f32 %v5057, 0.0
      %v5088 = vmax.f32 %v5058, 0.0
      %v5089 = vmax.f32 %v5059, 0.0
      %v5090 = vmax.f32 %v5060, 0.0
      %v5091 = vmax.f32 %v5061, 0.0
      %v5092 = vmax.f32 %v5062, 0.0
      %v5093 = vmax.f32 %v5063, 0.0
      %v5094 = vmax.f32 %v5064, 0.0
      %v5095 = vmax.f32 %v5065, 0.0
      %v5096 = vmax.f32 %v5066, 0.0
      %v5097 = vmax.f32 %v5067, 0.0
      %v5098 = vmax.f32 %v5068, 0.0
      %v5099 = vmax.f32 %v5069, 0.0
      %v5100 = vmax.f32 %v5070, 0.0
      %v5101 = vmax.f32 %v5071, 0.0
      %v5102 = vmax.f32 %v5072, 0.0
      %v5103 = vmax.f32 %v5073, 0.0
      %v5104 = vmax.f32 %v5074, 0.0
      %v5105 = vmax.f32 %v5075, 0.0
      %v5106 = vmax.f32 %v5076, 0.0
      %v5107 = vmax.f32 %v5077, 0.0
      %v5108 = vmax.f32 %v5078, 0.0
      %v5109 = vmax.f32 %v5079, 0.0
      %v5124 = vrot.slane %v5080, 2
      %v5125 = vrot.slane %v5080, 4
      %v5126 = vrot.slane %v5080, 6
      %v5127 = vrot.slane %v5081, 2
      %v5128 = vrot.slane %v5081, 4
      %v5129 = vrot.slane %v5084, 2
      %v5130 = vrot.slane %v5084, 4
      %v5131 = vrot.slane %v5084, 6
      %v5132 = vrot.slane %v5085, 2
      %v5133 = vrot.slane %v5085, 4
      %v5134 = vrot.slane %v5088, 2
      %v5135 = vrot.slane %v5088, 4
      %v5136 = vrot.slane %v5088, 6
      %v5137 = vrot.slane %v5089, 2
      %v5138 = vrot.slane %v5089, 4
      %v5139 = vrot.slane %v5092, 2
      %v5140 = vrot.slane %v5092, 4
      %v5141 = vrot.slane %v5092, 6
      %v5142 = vrot.slane %v5093, 2
      %v5143 = vrot.slane %v5093, 4
      %v5144 = vrot.slane %v5096, 2
      %v5145 = vrot.slane %v5096, 4
      %v5146 = vrot.slane %v5096, 6
      %v5147 = vrot.slane %v5097, 2
      %v5148 = vrot.slane %v5097, 4
      %v5149 = vrot.slane %v5100, 2
      %v5150 = vrot.slane %v5100, 4
      %v5151 = vrot.slane %v5100, 6
      %v5152 = vrot.slane %v5101, 2
      %v5153 = vrot.slane %v5101, 4
      %v5154 = vrot.slane %v5104, 2
      %v5155 = vrot.slane %v5104, 4
      %v5156 = vrot.slane %v5104, 6
      %v5157 = vrot.slane %v5105, 2
      %v5158 = vrot.slane %v5105, 4
      %v5159 = vrot.slane %v5081, 6
      %v5160 = vrot.slane %v5085, 6
      %v5161 = vrot.slane %v5089, 6
      %v5162 = vrot.slane %v5093, 6
      %v5163 = vrot.slane %v5097, 6
      %v5164 = vrot.slane %v5101, 6
      %v5165 = vrot.slane %v5105, 6
      %v5166 = vrot.slane %v5080, 7
      %v5167 = vrot.slane %v5166, 2
      %v5168 = vrot.slane %v5124, 7
      %v5169 = vsel %vm462, %v5167, %v5168
      %v5170 = vrot.slane %v5168, 2
      %v5171 = vrot.slane %v5125, 7
      %v5172 = vsel %vm462, %v5170, %v5171
      %v5173 = vrot.slane %v5171, 2
      %v5174 = vrot.slane %v5126, 7
      %v5175 = vsel %vm462, %v5173, %v5174
      %v5176 = vrot.slane %v5174, 2
      %v5177 = vrot.slane %v5081, 7
      %v5178 = vsel %vm462, %v5176, %v5177
      %v5179 = vrot.slane %v5177, 2
      %v5180 = vrot.slane %v5127, 7
      %v5181 = vsel %vm462, %v5179, %v5180
      %v5182 = vrot.slane %v5180, 2
      %v5183 = vrot.slane %v5128, 7
      %v5184 = vsel %vm462, %v5182, %v5183
      %v5185 = vrot.slane %v5183, 2
      %v5186 = vrot.slane %v5159, 7
      %v5187 = vsel %vm462, %v5185, %v5186
      %v5188 = vrot.slane %v5084, 7
      %v5189 = vrot.slane %v5188, 2
      %v5190 = vrot.slane %v5129, 7
      %v5191 = vsel %vm462, %v5189, %v5190
      %v5192 = vrot.slane %v5190, 2
      %v5193 = vrot.slane %v5130, 7
      %v5194 = vsel %vm462, %v5192, %v5193
      %v5195 = vrot.slane %v5193, 2
      %v5196 = vrot.slane %v5131, 7
      %v5197 = vsel %vm462, %v5195, %v5196
      %v5198 = vrot.slane %v5196, 2
      %v5199 = vrot.slane %v5085, 7
      %v5200 = vsel %vm462, %v5198, %v5199
      %v5201 = vrot.slane %v5199, 2
      %v5202 = vrot.slane %v5132, 7
      %v5203 = vsel %vm462, %v5201, %v5202
      %v5204 = vrot.slane %v5202, 2
      %v5205 = vrot.slane %v5133, 7
      %v5206 = vsel %vm462, %v5204, %v5205
      %v5207 = vrot.slane %v5205, 2
      %v5208 = vrot.slane %v5160, 7
      %v5209 = vsel %vm462, %v5207, %v5208
      %v5210 = vrot.slane %v5088, 7
      %v5211 = vrot.slane %v5210, 2
      %v5212 = vrot.slane %v5134, 7
      %v5213 = vsel %vm462, %v5211, %v5212
      %v5214 = vrot.slane %v5212, 2
      %v5215 = vrot.slane %v5135, 7
      %v5216 = vsel %vm462, %v5214, %v5215
      %v5217 = vrot.slane %v5215, 2
      %v5218 = vrot.slane %v5136, 7
      %v5219 = vsel %vm462, %v5217, %v5218
      %v5220 = vrot.slane %v5218, 2
      %v5221 = vrot.slane %v5089, 7
      %v5222 = vsel %vm462, %v5220, %v5221
      %v5223 = vrot.slane %v5221, 2
      %v5224 = vrot.slane %v5137, 7
      %v5225 = vsel %vm462, %v5223, %v5224
      %v5226 = vrot.slane %v5224, 2
      %v5227 = vrot.slane %v5138, 7
      %v5228 = vsel %vm462, %v5226, %v5227
      %v5229 = vrot.slane %v5227, 2
      %v5230 = vrot.slane %v5161, 7
      %v5231 = vsel %vm462, %v5229, %v5230
      %v5232 = vrot.slane %v5092, 7
      %v5233 = vrot.slane %v5232, 2
      %v5234 = vrot.slane %v5139, 7
      %v5235 = vsel %vm462, %v5233, %v5234
      %v5236 = vrot.slane %v5234, 2
      %v5237 = vrot.slane %v5140, 7
      %v5238 = vsel %vm462, %v5236, %v5237
      %v5239 = vrot.slane %v5237, 2
      %v5240 = vrot.slane %v5141, 7
      %v5241 = vsel %vm462, %v5239, %v5240
      %v5242 = vrot.slane %v5240, 2
      %v5243 = vrot.slane %v5093, 7
      %v5244 = vsel %vm462, %v5242, %v5243
      %v5245 = vrot.slane %v5243, 2
      %v5246 = vrot.slane %v5142, 7
      %v5247 = vsel %vm462, %v5245, %v5246
      %v5248 = vrot.slane %v5246, 2
      %v5249 = vrot.slane %v5143, 7
      %v5250 = vsel %vm462, %v5248, %v5249
      %v5251 = vrot.slane %v5249, 2
      %v5252 = vrot.slane %v5162, 7
      %v5253 = vsel %vm462, %v5251, %v5252
      %v5254 = vrot.slane %v5096, 7
      %v5255 = vrot.slane %v5254, 2
      %v5256 = vrot.slane %v5144, 7
      %v5257 = vsel %vm462, %v5255, %v5256
      %v5258 = vrot.slane %v5256, 2
      %v5259 = vrot.slane %v5145, 7
      %v5260 = vsel %vm462, %v5258, %v5259
      %v5261 = vrot.slane %v5259, 2
      %v5262 = vrot.slane %v5146, 7
      %v5263 = vsel %vm462, %v5261, %v5262
      %v5264 = vrot.slane %v5262, 2
      %v5265 = vrot.slane %v5097, 7
      %v5266 = vsel %vm462, %v5264, %v5265
      %v5267 = vrot.slane %v5265, 2
      %v5268 = vrot.slane %v5147, 7
      %v5269 = vsel %vm462, %v5267, %v5268
      %v5270 = vrot.slane %v5268, 2
      %v5271 = vrot.slane %v5148, 7
      %v5272 = vsel %vm462, %v5270, %v5271
      %v5273 = vrot.slane %v5271, 2
      %v5274 = vrot.slane %v5163, 7
      %v5275 = vsel %vm462, %v5273, %v5274
      %v5276 = vrot.slane %v5100, 7
      %v5277 = vrot.slane %v5276, 2
      %v5278 = vrot.slane %v5149, 7
      %v5279 = vsel %vm462, %v5277, %v5278
      %v5280 = vrot.slane %v5278, 2
      %v5281 = vrot.slane %v5150, 7
      %v5282 = vsel %vm462, %v5280, %v5281
      %v5283 = vrot.slane %v5281, 2
      %v5284 = vrot.slane %v5151, 7
      %v5285 = vsel %vm462, %v5283, %v5284
      %v5286 = vrot.slane %v5284, 2
      %v5287 = vrot.slane %v5101, 7
      %v5288 = vsel %vm462, %v5286, %v5287
      %v5289 = vrot.slane %v5287, 2
      %v5290 = vrot.slane %v5152, 7
      %v5291 = vsel %vm462, %v5289, %v5290
      %v5292 = vrot.slane %v5290, 2
      %v5293 = vrot.slane %v5153, 7
      %v5294 = vsel %vm462, %v5292, %v5293
      %v5295 = vrot.slane %v5293, 2
      %v5296 = vrot.slane %v5164, 7
      %v5297 = vsel %vm462, %v5295, %v5296
      %v5298 = vrot.slane %v5104, 7
      %v5299 = vrot.slane %v5298, 2
      %v5300 = vrot.slane %v5154, 7
      %v5301 = vsel %vm462, %v5299, %v5300
      %v5302 = vrot.slane %v5300, 2
      %v5303 = vrot.slane %v5155, 7
      %v5304 = vsel %vm462, %v5302, %v5303
      %v5305 = vrot.slane %v5303, 2
      %v5306 = vrot.slane %v5156, 7
      %v5307 = vsel %vm462, %v5305, %v5306
      %v5308 = vrot.slane %v5306, 2
      %v5309 = vrot.slane %v5105, 7
      %v5310 = vsel %vm462, %v5308, %v5309
      %v5311 = vrot.slane %v5309, 2
      %v5312 = vrot.slane %v5157, 7
      %v5313 = vsel %vm462, %v5311, %v5312
      %v5314 = vrot.slane %v5312, 2
      %v5315 = vrot.slane %v5158, 7
      %v5316 = vsel %vm462, %v5314, %v5315
      %v5317 = vrot.slane %v5315, 2
      %v5318 = vrot.slane %v5165, 7
      %v5319 = vsel %vm462, %v5317, %v5318
      %5320 = vst.sshfl [vmem:[#allocation1] sm:$0xff pattern:$0x73625140] %v5080
      %5321 = vst.sshfl [vmem:[#allocation1 + $0x20] sm:$0xff pattern:$0x73625140] %v5081
      %s5322 = scalar_lea.vmem [#allocation1], 1
      %v5323 = vld [vmem:[%s5322] ss:$4 sm:$0xff]
      %s5324 = scalar_lea.vmem [#allocation1], 2
      %v5325 = vld [vmem:[%s5324] ss:$4 sm:$0xff]
      %s5326 = scalar_lea.vmem [#allocation1], 3
      %v5327 = vld [vmem:[%s5326] ss:$4 sm:$0xff]
      %s5328 = scalar_lea.vmem [#allocation1], 32
      %v5329 = vld [vmem:[%s5328] ss:$4 sm:$0xff]
      %s5330 = scalar_lea.vmem [#allocation1], 33
      %v5331 = vld [vmem:[%s5330] ss:$4 sm:$0xff]
      %s5332 = scalar_lea.vmem [#allocation1], 34
      %v5333 = vld [vmem:[%s5332] ss:$4 sm:$0xff]
      %s5334 = scalar_lea.vmem [#allocation1], 35
      %v5335 = vld [vmem:[%s5334] ss:$4 sm:$0xff]
      %5336 = vst.sshfl [vmem:[#allocation1] sm:$0xff pattern:$0x73625140] %v5084
      %5337 = vst.sshfl [vmem:[#allocation1 + $0x20] sm:$0xff pattern:$0x73625140] %v5085
      %v5338 = vld [vmem:[%s5322] ss:$4 sm:$0xff]
      %v5339 = vld [vmem:[%s5324] ss:$4 sm:$0xff]
      %v5340 = vld [vmem:[%s5326] ss:$4 sm:$0xff]
      %v5341 = vld [vmem:[%s5328] ss:$4 sm:$0xff]
      %v5342 = vld [vmem:[%s5330] ss:$4 sm:$0xff]
      %v5343 = vld [vmem:[%s5332] ss:$4 sm:$0xff]
      %v5344 = vld [vmem:[%s5334] ss:$4 sm:$0xff]
      %5345 = vst.sshfl [vmem:[#allocation1] sm:$0xff pattern:$0x73625140] %v5088
      %5346 = vst.sshfl [vmem:[#allocation1 + $0x20] sm:$0xff pattern:$0x73625140] %v5089
      %v5347 = vld [vmem:[%s5322] ss:$4 sm:$0xff]
      %v5348 = vld [vmem:[%s5324] ss:$4 sm:$0xff]
      %v5349 = vld [vmem:[%s5326] ss:$4 sm:$0xff]
      %v5350 = vld [vmem:[%s5328] ss:$4 sm:$0xff]
      %v5351 = vld [vmem:[%s5330] ss:$4 sm:$0xff]
      %v5352 = vld [vmem:[%s5332] ss:$4 sm:$0xff]
      %v5353 = vld [vmem:[%s5334] ss:$4 sm:$0xff]
      %5354 = vst.sshfl [vmem:[#allocation1] sm:$0xff pattern:$0x73625140] %v5092
      %5355 = vst.sshfl [vmem:[#allocation1 + $0x20] sm:$0xff pattern:$0x73625140] %v5093
      %v5356 = vld [vmem:[%s5322] ss:$4 sm:$0xff]
      %v5357 = vld [vmem:[%s5324] ss:$4 sm:$0xff]
      %v5358 = vld [vmem:[%s5326] ss:$4 sm:$0xff]
      %v5359 = vld [vmem:[%s5328] ss:$4 sm:$0xff]
      %v5360 = vld [vmem:[%s5330] ss:$4 sm:$0xff]
      %v5361 = vld [vmem:[%s5332] ss:$4 sm:$0xff]
      %v5362 = vld [vmem:[%s5334] ss:$4 sm:$0xff]
      %5363 = vst.sshfl [vmem:[#allocation1] sm:$0xff pattern:$0x73625140] %v5096
      %5364 = vst.sshfl [vmem:[#allocation1 + $0x20] sm:$0xff pattern:$0x73625140] %v5097
      %v5365 = vld [vmem:[%s5322] ss:$4 sm:$0xff]
      %v5366 = vld [vmem:[%s5324] ss:$4 sm:$0xff]
      %v5367 = vld [vmem:[%s5326] ss:$4 sm:$0xff]
      %v5368 = vld [vmem:[%s5328] ss:$4 sm:$0xff]
      %v5369 = vld [vmem:[%s5330] ss:$4 sm:$0xff]
      %v5370 = vld [vmem:[%s5332] ss:$4 sm:$0xff]
      %v5371 = vld [vmem:[%s5334] ss:$4 sm:$0xff]
      %5372 = vst.sshfl [vmem:[#allocation1] sm:$0xff pattern:$0x73625140] %v5100
      %5373 = vst.sshfl [vmem:[#allocation1 + $0x20] sm:$0xff pattern:$0x73625140] %v5101
      %v5374 = vld [vmem:[%s5322] ss:$4 sm:$0xff]
      %v5375 = vld [vmem:[%s5324] ss:$4 sm:$0xff]
      %v5376 = vld [vmem:[%s5326] ss:$4 sm:$0xff]
      %v5377 = vld [vmem:[%s5328] ss:$4 sm:$0xff]
      %v5378 = vld [vmem:[%s5330] ss:$4 sm:$0xff]
      %v5379 = vld [vmem:[%s5332] ss:$4 sm:$0xff]
      %v5380 = vld [vmem:[%s5334] ss:$4 sm:$0xff]
      %5381 = vst.sshfl [vmem:[#allocation1] sm:$0xff pattern:$0x73625140] %v5104
      %5382 = vst.sshfl [vmem:[#allocation1 + $0x20] sm:$0xff pattern:$0x73625140] %v5105
      %v5383 = vld [vmem:[%s5322] ss:$4 sm:$0xff]
      %v5384 = vld [vmem:[%s5324] ss:$4 sm:$0xff]
      %v5385 = vld [vmem:[%s5326] ss:$4 sm:$0xff]
      %v5386 = vld [vmem:[%s5328] ss:$4 sm:$0xff]
      %v5387 = vld [vmem:[%s5330] ss:$4 sm:$0xff]
      %v5388 = vld [vmem:[%s5332] ss:$4 sm:$0xff]
      %v5389 = vld [vmem:[%s5334] ss:$4 sm:$0xff]
      %v5404 = vrot.slane %v5082, 2
      %v5405 = vrot.slane %v5082, 4
      %v5406 = vrot.slane %v5082, 6
      %v5407 = vrot.slane %v5083, 2
      %v5408 = vrot.slane %v5083, 4
      %v5409 = vrot.slane %v5086, 2
      %v5410 = vrot.slane %v5086, 4
      %v5411 = vrot.slane %v5086, 6
      %v5412 = vrot.slane %v5087, 2
      %v5413 = vrot.slane %v5087, 4
      %v5414 = vrot.slane %v5090, 2
      %v5415 = vrot.slane %v5090, 4
      %v5416 = vrot.slane %v5090, 6
      %v5417 = vrot.slane %v5091, 2
      %v5418 = vrot.slane %v5091, 4
      %v5419 = vrot.slane %v5094, 2
      %v5420 = vrot.slane %v5094, 4
      %v5421 = vrot.slane %v5094, 6
      %v5422 = vrot.slane %v5095, 2
      %v5423 = vrot.slane %v5095, 4
      %v5424 = vrot.slane %v5098, 2
      %v5425 = vrot.slane %v5098, 4
      %v5426 = vrot.slane %v5098, 6
      %v5427 = vrot.slane %v5099, 2
      %v5428 = vrot.slane %v5099, 4
      %v5429 = vrot.slane %v5102, 2
      %v5430 = vrot.slane %v5102, 4
      %v5431 = vrot.slane %v5102, 6
      %v5432 = vrot.slane %v5103, 2
      %v5433 = vrot.slane %v5103, 4
      %v5434 = vrot.slane %v5106, 2
      %v5435 = vrot.slane %v5106, 4
      %v5436 = vrot.slane %v5106, 6
      %v5437 = vrot.slane %v5107, 2
      %v5438 = vrot.slane %v5107, 4
      %v5439 = vrot.slane %v5083, 6
      %v5440 = vrot.slane %v5087, 6
      %v5441 = vrot.slane %v5091, 6
      %v5442 = vrot.slane %v5095, 6
      %v5443 = vrot.slane %v5099, 6
      %v5444 = vrot.slane %v5103, 6
      %v5445 = vrot.slane %v5107, 6
      %v5446 = vrot.slane %v5082, 7
      %v5447 = vrot.slane %v5446, 2
      %v5448 = vrot.slane %v5404, 7
      %v5449 = vsel %vm462, %v5447, %v5448
      %v5450 = vrot.slane %v5448, 2
      %v5451 = vrot.slane %v5405, 7
      %v5452 = vsel %vm462, %v5450, %v5451
      %v5453 = vrot.slane %v5451, 2
      %v5454 = vrot.slane %v5406, 7
      %v5455 = vsel %vm462, %v5453, %v5454
      %v5456 = vrot.slane %v5454, 2
      %v5457 = vrot.slane %v5083, 7
      %v5458 = vsel %vm462, %v5456, %v5457
      %v5459 = vrot.slane %v5457, 2
      %v5460 = vrot.slane %v5407, 7
      %v5461 = vsel %vm462, %v5459, %v5460
      %v5462 = vrot.slane %v5460, 2
      %v5463 = vrot.slane %v5408, 7
      %v5464 = vsel %vm462, %v5462, %v5463
      %v5465 = vrot.slane %v5463, 2
      %v5466 = vrot.slane %v5439, 7
      %v5467 = vsel %vm462, %v5465, %v5466
      %v5468 = vrot.slane %v5086, 7
      %v5469 = vrot.slane %v5468, 2
      %v5470 = vrot.slane %v5409, 7
      %v5471 = vsel %vm462, %v5469, %v5470
      %v5472 = vrot.slane %v5470, 2
      %v5473 = vrot.slane %v5410, 7
      %v5474 = vsel %vm462, %v5472, %v5473
      %v5475 = vrot.slane %v5473, 2
      %v5476 = vrot.slane %v5411, 7
      %v5477 = vsel %vm462, %v5475, %v5476
      %v5478 = vrot.slane %v5476, 2
      %v5479 = vrot.slane %v5087, 7
      %v5480 = vsel %vm462, %v5478, %v5479
      %v5481 = vrot.slane %v5479, 2
      %v5482 = vrot.slane %v5412, 7
      %v5483 = vsel %vm462, %v5481, %v5482
      %v5484 = vrot.slane %v5482, 2
      %v5485 = vrot.slane %v5413, 7
      %v5486 = vsel %vm462, %v5484, %v5485
      %v5487 = vrot.slane %v5485, 2
      %v5488 = vrot.slane %v5440, 7
      %v5489 = vsel %vm462, %v5487, %v5488
      %v5490 = vrot.slane %v5090, 7
      %v5491 = vrot.slane %v5490, 2
      %v5492 = vrot.slane %v5414, 7
      %v5493 = vsel %vm462, %v5491, %v5492
      %v5494 = vrot.slane %v5492, 2
      %v5495 = vrot.slane %v5415, 7
      %v5496 = vsel %vm462, %v5494, %v5495
      %v5497 = vrot.slane %v5495, 2
      %v5498 = vrot.slane %v5416, 7
      %v5499 = vsel %vm462, %v5497, %v5498
      %v5500 = vrot.slane %v5498, 2
      %v5501 = vrot.slane %v5091, 7
      %v5502 = vsel %vm462, %v5500, %v5501
      %v5503 = vrot.slane %v5501, 2
      %v5504 = vrot.slane %v5417, 7
      %v5505 = vsel %vm462, %v5503, %v5504
      %v5506 = vrot.slane %v5504, 2
      %v5507 = vrot.slane %v5418, 7
      %v5508 = vsel %vm462, %v5506, %v5507
      %v5509 = vrot.slane %v5507, 2
      %v5510 = vrot.slane %v5441, 7
      %v5511 = vsel %vm462, %v5509, %v5510
      %v5512 = vrot.slane %v5094, 7
      %v5513 = vrot.slane %v5512, 2
      %v5514 = vrot.slane %v5419, 7
      %v5515 = vsel %vm462, %v5513, %v5514
      %v5516 = vrot.slane %v5514, 2
      %v5517 = vrot.slane %v5420, 7
      %v5518 = vsel %vm462, %v5516, %v5517
      %v5519 = vrot.slane %v5517, 2
      %v5520 = vrot.slane %v5421, 7
      %v5521 = vsel %vm462, %v5519, %v5520
      %v5522 = vrot.slane %v5520, 2
      %v5523 = vrot.slane %v5095, 7
      %v5524 = vsel %vm462, %v5522, %v5523
      %v5525 = vrot.slane %v5523, 2
      %v5526 = vrot.slane %v5422, 7
      %v5527 = vsel %vm462, %v5525, %v5526
      %v5528 = vrot.slane %v5526, 2
      %v5529 = vrot.slane %v5423, 7
      %v5530 = vsel %vm462, %v5528, %v5529
      %v5531 = vrot.slane %v5529, 2
      %v5532 = vrot.slane %v5442, 7
      %v5533 = vsel %vm462, %v5531, %v5532
      %v5534 = vrot.slane %v5098, 7
      %v5535 = vrot.slane %v5534, 2
      %v5536 = vrot.slane %v5424, 7
      %v5537 = vsel %vm462, %v5535, %v5536
      %v5538 = vrot.slane %v5536, 2
      %v5539 = vrot.slane %v5425, 7
      %v5540 = vsel %vm462, %v5538, %v5539
      %v5541 = vrot.slane %v5539, 2
      %v5542 = vrot.slane %v5426, 7
      %v5543 = vsel %vm462, %v5541, %v5542
      %v5544 = vrot.slane %v5542, 2
      %v5545 = vrot.slane %v5099, 7
      %v5546 = vsel %vm462, %v5544, %v5545
      %v5547 = vrot.slane %v5545, 2
      %v5548 = vrot.slane %v5427, 7
      %v5549 = vsel %vm462, %v5547, %v5548
      %v5550 = vrot.slane %v5548, 2
      %v5551 = vrot.slane %v5428, 7
      %v5552 = vsel %vm462, %v5550, %v5551
      %v5553 = vrot.slane %v5551, 2
      %v5554 = vrot.slane %v5443, 7
      %v5555 = vsel %vm462, %v5553, %v5554
      %v5556 = vrot.slane %v5102, 7
      %v5557 = vrot.slane %v5556, 2
      %v5558 = vrot.slane %v5429, 7
      %v5559 = vsel %vm462, %v5557, %v5558
      %v5560 = vrot.slane %v5558, 2
      %v5561 = vrot.slane %v5430, 7
      %v5562 = vsel %vm462, %v5560, %v5561
      %v5563 = vrot.slane %v5561, 2
      %v5564 = vrot.slane %v5431, 7
      %v5565 = vsel %vm462, %v5563, %v5564
      %v5566 = vrot.slane %v5564, 2
      %v5567 = vrot.slane %v5103, 7
      %v5568 = vsel %vm462, %v5566, %v5567
      %v5569 = vrot.slane %v5567, 2
      %v5570 = vrot.slane %v5432, 7
      %v5571 = vsel %vm462, %v5569, %v5570
      %v5572 = vrot.slane %v5570, 2
      %v5573 = vrot.slane %v5433, 7
      %v5574 = vsel %vm462, %v5572, %v5573
      %v5575 = vrot.slane %v5573, 2
      %v5576 = vrot.slane %v5444, 7
      %v5577 = vsel %vm462, %v5575, %v5576
      %v5578 = vrot.slane %v5106, 7
      %v5579 = vrot.slane %v5578, 2
      %v5580 = vrot.slane %v5434, 7
      %v5581 = vsel %vm462, %v5579, %v5580
      %v5582 = vrot.slane %v5580, 2
      %v5583 = vrot.slane %v5435, 7
      %v5584 = vsel %vm462, %v5582, %v5583
      %v5585 = vrot.slane %v5583, 2
      %v5586 = vrot.slane %v5436, 7
      %v5587 = vsel %vm462, %v5585, %v5586
      %v5588 = vrot.slane %v5586, 2
      %v5589 = vrot.slane %v5107, 7
      %v5590 = vsel %vm462, %v5588, %v5589
      %v5591 = vrot.slane %v5589, 2
      %v5592 = vrot.slane %v5437, 7
      %v5593 = vsel %vm462, %v5591, %v5592
      %v5594 = vrot.slane %v5592, 2
      %v5595 = vrot.slane %v5438, 7
      %v5596 = vsel %vm462, %v5594, %v5595
      %v5597 = vrot.slane %v5595, 2
      %v5598 = vrot.slane %v5445, 7
      %v5599 = vsel %vm462, %v5597, %v5598
      %5600 = vst.sshfl [vmem:[#allocation1] sm:$0xff pattern:$0x73625140] %v5082
      %5601 = vst.sshfl [vmem:[#allocation1 + $0x20] sm:$0xff pattern:$0x73625140] %v5083
      %s5602 = scalar_lea.vmem [#allocation1], 1
      %v5603 = vld [vmem:[%s5602] ss:$4 sm:$0xff]
      %s5604 = scalar_lea.vmem [#allocation1], 2
      %v5605 = vld [vmem:[%s5604] ss:$4 sm:$0xff]
      %s5606 = scalar_lea.vmem [#allocation1], 3
      %v5607 = vld [vmem:[%s5606] ss:$4 sm:$0xff]
      %s5608 = scalar_lea.vmem [#allocation1], 32
      %v5609 = vld [vmem:[%s5608] ss:$4 sm:$0xff]
      %s5610 = scalar_lea.vmem [#allocation1], 33
      %v5611 = vld [vmem:[%s5610] ss:$4 sm:$0xff]
      %s5612 = scalar_lea.vmem [#allocation1], 34
      %v5613 = vld [vmem:[%s5612] ss:$4 sm:$0xff]
      %s5614 = scalar_lea.vmem [#allocation1], 35
      %v5615 = vld [vmem:[%s5614] ss:$4 sm:$0xff]
      %5616 = vst.sshfl [vmem:[#allocation1] sm:$0xff pattern:$0x73625140] %v5086
      %5617 = vst.sshfl [vmem:[#allocation1 + $0x20] sm:$0xff pattern:$0x73625140] %v5087
      %v5618 = vld [vmem:[%s5602] ss:$4 sm:$0xff]
      %v5619 = vld [vmem:[%s5604] ss:$4 sm:$0xff]
      %v5620 = vld [vmem:[%s5606] ss:$4 sm:$0xff]
      %v5621 = vld [vmem:[%s5608] ss:$4 sm:$0xff]
      %v5622 = vld [vmem:[%s5610] ss:$4 sm:$0xff]
      %v5623 = vld [vmem:[%s5612] ss:$4 sm:$0xff]
      %v5624 = vld [vmem:[%s5614] ss:$4 sm:$0xff]
      %5625 = vst.sshfl [vmem:[#allocation1] sm:$0xff pattern:$0x73625140] %v5090
      %5626 = vst.sshfl [vmem:[#allocation1 + $0x20] sm:$0xff pattern:$0x73625140] %v5091
      %v5627 = vld [vmem:[%s5602] ss:$4 sm:$0xff]
      %v5628 = vld [vmem:[%s5604] ss:$4 sm:$0xff]
      %v5629 = vld [vmem:[%s5606] ss:$4 sm:$0xff]
      %v5630 = vld [vmem:[%s5608] ss:$4 sm:$0xff]
      %v5631 = vld [vmem:[%s5610] ss:$4 sm:$0xff]
      %v5632 = vld [vmem:[%s5612] ss:$4 sm:$0xff]
      %v5633 = vld [vmem:[%s5614] ss:$4 sm:$0xff]
      %5634 = vst.sshfl [vmem:[#allocation1] sm:$0xff pattern:$0x73625140] %v5094
      %5635 = vst.sshfl [vmem:[#allocation1 + $0x20] sm:$0xff pattern:$0x73625140] %v5095
      %v5636 = vld [vmem:[%s5602] ss:$4 sm:$0xff]
      %v5637 = vld [vmem:[%s5604] ss:$4 sm:$0xff]
      %v5638 = vld [vmem:[%s5606] ss:$4 sm:$0xff]
      %v5639 = vld [vmem:[%s5608] ss:$4 sm:$0xff]
      %v5640 = vld [vmem:[%s5610] ss:$4 sm:$0xff]
      %v5641 = vld [vmem:[%s5612] ss:$4 sm:$0xff]
      %v5642 = vld [vmem:[%s5614] ss:$4 sm:$0xff]
      %5643 = vst.sshfl [vmem:[#allocation1] sm:$0xff pattern:$0x73625140] %v5098
      %5644 = vst.sshfl [vmem:[#allocation1 + $0x20] sm:$0xff pattern:$0x73625140] %v5099
      %v5645 = vld [vmem:[%s5602] ss:$4 sm:$0xff]
      %v5646 = vld [vmem:[%s5604] ss:$4 sm:$0xff]
      %v5647 = vld [vmem:[%s5606] ss:$4 sm:$0xff]
      %v5648 = vld [vmem:[%s5608] ss:$4 sm:$0xff]
      %v5649 = vld [vmem:[%s5610] ss:$4 sm:$0xff]
      %v5650 = vld [vmem:[%s5612] ss:$4 sm:$0xff]
      %v5651 = vld [vmem:[%s5614] ss:$4 sm:$0xff]
      %5652 = vst.sshfl [vmem:[#allocation1] sm:$0xff pattern:$0x73625140] %v5102
      %5653 = vst.sshfl [vmem:[#allocation1 + $0x20] sm:$0xff pattern:$0x73625140] %v5103
      %v5654 = vld [vmem:[%s5602] ss:$4 sm:$0xff]
      %v5655 = vld [vmem:[%s5604] ss:$4 sm:$0xff]
      %v5656 = vld [vmem:[%s5606] ss:$4 sm:$0xff]
      %v5657 = vld [vmem:[%s5608] ss:$4 sm:$0xff]
      %v5658 = vld [vmem:[%s5610] ss:$4 sm:$0xff]
      %v5659 = vld [vmem:[%s5612] ss:$4 sm:$0xff]
      %v5660 = vld [vmem:[%s5614] ss:$4 sm:$0xff]
      %5661 = vst.sshfl [vmem:[#allocation1] sm:$0xff pattern:$0x73625140] %v5106
      %5662 = vst.sshfl [vmem:[#allocation1 + $0x20] sm:$0xff pattern:$0x73625140] %v5107
      %v5663 = vld [vmem:[%s5602] ss:$4 sm:$0xff]
      %v5664 = vld [vmem:[%s5604] ss:$4 sm:$0xff]
      %v5665 = vld [vmem:[%s5606] ss:$4 sm:$0xff]
      %v5666 = vld [vmem:[%s5608] ss:$4 sm:$0xff]
      %v5667 = vld [vmem:[%s5610] ss:$4 sm:$0xff]
      %v5668 = vld [vmem:[%s5612] ss:$4 sm:$0xff]
      %v5669 = vld [vmem:[%s5614] ss:$4 sm:$0xff]
      %v5672 = vrot.slane %v5108, 2
      %v5673 = vrot.slane %v5108, 4
      %v5674 = vrot.slane %v5108, 6
      %v5675 = vrot.slane %v5109, 2
      %v5676 = vrot.slane %v5109, 4
      %v5677 = vrot.slane %v5109, 6
      %v5678 = vrot.slane %v5108, 7
      %v5679 = vrot.slane %v5678, 2
      %v5680 = vrot.slane %v5672, 7
      %v5681 = vsel %vm462, %v5679, %v5680
      %v5682 = vrot.slane %v5680, 2
      %v5683 = vrot.slane %v5673, 7
      %v5684 = vsel %vm462, %v5682, %v5683
      %v5685 = vrot.slane %v5683, 2
      %v5686 = vrot.slane %v5674, 7
      %v5687 = vsel %vm462, %v5685, %v5686
      %v5688 = vrot.slane %v5686, 2
      %v5689 = vrot.slane %v5109, 7
      %v5690 = vsel %vm462, %v5688, %v5689
      %v5691 = vrot.slane %v5689, 2
      %v5692 = vrot.slane %v5675, 7
      %v5693 = vsel %vm462, %v5691, %v5692
      %v5694 = vrot.slane %v5692, 2
      %v5695 = vrot.slane %v5676, 7
      %v5696 = vsel %vm462, %v5694, %v5695
      %v5697 = vrot.slane %v5695, 2
      %v5698 = vrot.slane %v5677, 7
      %v5699 = vsel %vm462, %v5697, %v5698
      %5700 = vst.sshfl [vmem:[#allocation1] sm:$0xff pattern:$0x73625140] %v5084
      %5701 = vst.sshfl [vmem:[#allocation1 + $0x20] sm:$0xff pattern:$0x73625140] %v5085
      %s5702 = scalar_lea.vmem [#allocation1], 1
      %v5703 = vld [vmem:[%s5702] ss:$4 sm:$0xff]
      %s5704 = scalar_lea.vmem [#allocation1], 2
      %v5705 = vld [vmem:[%s5704] ss:$4 sm:$0xff]
      %s5706 = scalar_lea.vmem [#allocation1], 3
      %v5707 = vld [vmem:[%s5706] ss:$4 sm:$0xff]
      %s5708 = scalar_lea.vmem [#allocation1], 32
      %v5709 = vld [vmem:[%s5708] ss:$4 sm:$0xff]
      %s5710 = scalar_lea.vmem [#allocation1], 33
      %v5711 = vld [vmem:[%s5710] ss:$4 sm:$0xff]
      %s5712 = scalar_lea.vmem [#allocation1], 34
      %v5713 = vld [vmem:[%s5712] ss:$4 sm:$0xff]
      %s5714 = scalar_lea.vmem [#allocation1], 35
      %v5715 = vld [vmem:[%s5714] ss:$4 sm:$0xff]
      %5716 = vst.sshfl [vmem:[#allocation1] sm:$0xff pattern:$0x73625140] %v5088
      %5717 = vst.sshfl [vmem:[#allocation1 + $0x20] sm:$0xff pattern:$0x73625140] %v5089
      %v5718 = vld [vmem:[%s5702] ss:$4 sm:$0xff]
      %v5719 = vld [vmem:[%s5704] ss:$4 sm:$0xff]
      %v5720 = vld [vmem:[%s5706] ss:$4 sm:$0xff]
      %v5721 = vld [vmem:[%s5708] ss:$4 sm:$0xff]
      %v5722 = vld [vmem:[%s5710] ss:$4 sm:$0xff]
      %v5723 = vld [vmem:[%s5712] ss:$4 sm:$0xff]
      %v5724 = vld [vmem:[%s5714] ss:$4 sm:$0xff]
      %5725 = vst.sshfl [vmem:[#allocation1] sm:$0xff pattern:$0x73625140] %v5092
      %5726 = vst.sshfl [vmem:[#allocation1 + $0x20] sm:$0xff pattern:$0x73625140] %v5093
      %v5727 = vld [vmem:[%s5702] ss:$4 sm:$0xff]
      %v5728 = vld [vmem:[%s5704] ss:$4 sm:$0xff]
      %v5729 = vld [vmem:[%s5706] ss:$4 sm:$0xff]
      %v5730 = vld [vmem:[%s5708] ss:$4 sm:$0xff]
      %v5731 = vld [vmem:[%s5710] ss:$4 sm:$0xff]
      %v5732 = vld [vmem:[%s5712] ss:$4 sm:$0xff]
      %v5733 = vld [vmem:[%s5714] ss:$4 sm:$0xff]
      %5734 = vst.sshfl [vmem:[#allocation1] sm:$0xff pattern:$0x73625140] %v5096
      %5735 = vst.sshfl [vmem:[#allocation1 + $0x20] sm:$0xff pattern:$0x73625140] %v5097
      %v5736 = vld [vmem:[%s5702] ss:$4 sm:$0xff]
      %v5737 = vld [vmem:[%s5704] ss:$4 sm:$0xff]
      %v5738 = vld [vmem:[%s5706] ss:$4 sm:$0xff]
      %v5739 = vld [vmem:[%s5708] ss:$4 sm:$0xff]
      %v5740 = vld [vmem:[%s5710] ss:$4 sm:$0xff]
      %v5741 = vld [vmem:[%s5712] ss:$4 sm:$0xff]
      %v5742 = vld [vmem:[%s5714] ss:$4 sm:$0xff]
      %5743 = vst.sshfl [vmem:[#allocation1] sm:$0xff pattern:$0x73625140] %v5100
      %5744 = vst.sshfl [vmem:[#allocation1 + $0x20] sm:$0xff pattern:$0x73625140] %v5101
      %v5745 = vld [vmem:[%s5702] ss:$4 sm:$0xff]
      %v5746 = vld [vmem:[%s5704] ss:$4 sm:$0xff]
      %v5747 = vld [vmem:[%s5706] ss:$4 sm:$0xff]
      %v5748 = vld [vmem:[%s5708] ss:$4 sm:$0xff]
      %v5749 = vld [vmem:[%s5710] ss:$4 sm:$0xff]
      %v5750 = vld [vmem:[%s5712] ss:$4 sm:$0xff]
      %v5751 = vld [vmem:[%s5714] ss:$4 sm:$0xff]
      %5752 = vst.sshfl [vmem:[#allocation1] sm:$0xff pattern:$0x73625140] %v5104
      %5753 = vst.sshfl [vmem:[#allocation1 + $0x20] sm:$0xff pattern:$0x73625140] %v5105
      %v5754 = vld [vmem:[%s5702] ss:$4 sm:$0xff]
      %v5755 = vld [vmem:[%s5704] ss:$4 sm:$0xff]
      %v5756 = vld [vmem:[%s5706] ss:$4 sm:$0xff]
      %v5757 = vld [vmem:[%s5708] ss:$4 sm:$0xff]
      %v5758 = vld [vmem:[%s5710] ss:$4 sm:$0xff]
      %v5759 = vld [vmem:[%s5712] ss:$4 sm:$0xff]
      %v5760 = vld [vmem:[%s5714] ss:$4 sm:$0xff]
      %5761 = vst.sshfl [vmem:[#allocation1] sm:$0xff pattern:$0x73625140] %v5108
      %5762 = vst.sshfl [vmem:[#allocation1 + $0x20] sm:$0xff pattern:$0x73625140] %v5109
      %v5763 = vld [vmem:[%s5702] ss:$4 sm:$0xff]
      %v5764 = vld [vmem:[%s5704] ss:$4 sm:$0xff]
      %v5765 = vld [vmem:[%s5706] ss:$4 sm:$0xff]
      %v5766 = vld [vmem:[%s5708] ss:$4 sm:$0xff]
      %v5767 = vld [vmem:[%s5710] ss:$4 sm:$0xff]
      %v5768 = vld [vmem:[%s5712] ss:$4 sm:$0xff]
      %v5769 = vld [vmem:[%s5714] ss:$4 sm:$0xff]
      %v5770 = vperm.slane %v5080, 0
      %v5771 = vperm.slane %v5124, 0
      %v5772 = vperm.slane %v5125, 0
      %v5773 = vperm.slane %v5126, 0
      %v5774 = vperm.slane %v5081, 0
      %v5775 = vperm.slane %v5127, 0
      %v5776 = vperm.slane %v5128, 0
      %v5777 = vperm.slane %v5084, 0
      %v5778 = vperm.slane %v5129, 0
      %v5779 = vperm.slane %v5130, 0
      %v5780 = vperm.slane %v5131, 0
      %v5781 = vperm.slane %v5085, 0
      %v5782 = vperm.slane %v5132, 0
      %v5783 = vperm.slane %v5133, 0
      %v5784 = vperm.slane %v5088, 0
      %v5785 = vperm.slane %v5134, 0
      %v5786 = vperm.slane %v5135, 0
      %v5787 = vperm.slane %v5136, 0
      %v5788 = vperm.slane %v5089, 0
      %v5789 = vperm.slane %v5137, 0
      %v5790 = vperm.slane %v5138, 0
      %v5791 = vperm.slane %v5092, 0
      %v5792 = vperm.slane %v5139, 0
      %v5793 = vperm.slane %v5140, 0
      %v5794 = vperm.slane %v5141, 0
      %v5795 = vperm.slane %v5093, 0
      %v5796 = vperm.slane %v5142, 0
      %v5797 = vperm.slane %v5143, 0
      %v5798 = vperm.slane %v5096, 0
      %v5799 = vperm.slane %v5144, 0
      %v5800 = vperm.slane %v5145, 0
      %v5801 = vperm.slane %v5146, 0
      %v5802 = vperm.slane %v5097, 0
      %v5803 = vperm.slane %v5147, 0
      %v5804 = vperm.slane %v5148, 0
      %v5805 = vperm.slane %v5100, 0
      %v5806 = vperm.slane %v5149, 0
      %v5807 = vperm.slane %v5150, 0
      %v5808 = vperm.slane %v5151, 0
      %v5809 = vperm.slane %v5101, 0
      %v5810 = vperm.slane %v5152, 0
      %v5811 = vperm.slane %v5153, 0
      %v5812 = vperm.slane %v5104, 0
      %v5813 = vperm.slane %v5154, 0
      %v5814 = vperm.slane %v5155, 0
      %v5815 = vperm.slane %v5156, 0
      %v5816 = vperm.slane %v5105, 0
      %v5817 = vperm.slane %v5157, 0
      %v5818 = vperm.slane %v5158, 0
      %v5819 = vsel %vm1800, %v5771, %v5770
      %v5820 = vsel %vm457, %v5772, %v5819
      %v5821 = vsel %vm1803, %v5773, %v5820
      %v5822 = vsel %vm459, %v5774, %v5821
      %v5823 = vsel %vm1806, %v5775, %v5822
      %v5824 = vsel %vm461, %v5776, %v5823
      %v5825 = vsel %vm1800, %v5778, %v5777
      %v5826 = vsel %vm457, %v5779, %v5825
      %v5827 = vsel %vm1803, %v5780, %v5826
      %v5828 = vsel %vm459, %v5781, %v5827
      %v5829 = vsel %vm1806, %v5782, %v5828
      %v5830 = vsel %vm461, %v5783, %v5829
      %v5831 = vsel %vm1800, %v5785, %v5784
      %v5832 = vsel %vm457, %v5786, %v5831
      %v5833 = vsel %vm1803, %v5787, %v5832
      %v5834 = vsel %vm459, %v5788, %v5833
      %v5835 = vsel %vm1806, %v5789, %v5834
      %v5836 = vsel %vm461, %v5790, %v5835
      %v5837 = vsel %vm1800, %v5792, %v5791
      %v5838 = vsel %vm457, %v5793, %v5837
      %v5839 = vsel %vm1803, %v5794, %v5838
      %v5840 = vsel %vm459, %v5795, %v5839
      %v5841 = vsel %vm1806, %v5796, %v5840
      %v5842 = vsel %vm461, %v5797, %v5841
      %v5843 = vsel %vm1800, %v5799, %v5798
      %v5844 = vsel %vm457, %v5800, %v5843
      %v5845 = vsel %vm1803, %v5801, %v5844
      %v5846 = vsel %vm459, %v5802, %v5845
      %v5847 = vsel %vm1806, %v5803, %v5846
      %v5848 = vsel %vm461, %v5804, %v5847
      %v5849 = vsel %vm1800, %v5806, %v5805
      %v5850 = vsel %vm457, %v5807, %v5849
      %v5851 = vsel %vm1803, %v5808, %v5850
      %v5852 = vsel %vm459, %v5809, %v5851
      %v5853 = vsel %vm1806, %v5810, %v5852
      %v5854 = vsel %vm461, %v5811, %v5853
      %v5855 = vsel %vm1800, %v5813, %v5812
      %v5856 = vsel %vm457, %v5814, %v5855
      %v5857 = vsel %vm1803, %v5815, %v5856
      %v5858 = vsel %vm459, %v5816, %v5857
      %v5859 = vsel %vm1806, %v5817, %v5858
      %v5860 = vsel %vm461, %v5818, %v5859
      %v5868 = vperm.slane %v5169, 0
      %v5869 = vperm.slane %v5172, 0
      %v5870 = vperm.slane %v5175, 0
      %v5871 = vperm.slane %v5178, 0
      %v5872 = vperm.slane %v5181, 0
      %v5873 = vperm.slane %v5184, 0
      %v5874 = vperm.slane %v5187, 0
      %v5875 = vperm.slane %v5191, 0
      %v5876 = vperm.slane %v5194, 0
      %v5877 = vperm.slane %v5197, 0
      %v5878 = vperm.slane %v5200, 0
      %v5879 = vperm.slane %v5203, 0
      %v5880 = vperm.slane %v5206, 0
      %v5881 = vperm.slane %v5209, 0
      %v5882 = vperm.slane %v5213, 0
      %v5883 = vperm.slane %v5216, 0
      %v5884 = vperm.slane %v5219, 0
      %v5885 = vperm.slane %v5222, 0
      %v5886 = vperm.slane %v5225, 0
      %v5887 = vperm.slane %v5228, 0
      %v5888 = vperm.slane %v5231, 0
      %v5889 = vperm.slane %v5235, 0
      %v5890 = vperm.slane %v5238, 0
      %v5891 = vperm.slane %v5241, 0
      %v5892 = vperm.slane %v5244, 0
      %v5893 = vperm.slane %v5247, 0
      %v5894 = vperm.slane %v5250, 0
      %v5895 = vperm.slane %v5253, 0
      %v5896 = vperm.slane %v5257, 0
      %v5897 = vperm.slane %v5260, 0
      %v5898 = vperm.slane %v5263, 0
      %v5899 = vperm.slane %v5266, 0
      %v5900 = vperm.slane %v5269, 0
      %v5901 = vperm.slane %v5272, 0
      %v5902 = vperm.slane %v5275, 0
      %v5903 = vperm.slane %v5279, 0
      %v5904 = vperm.slane %v5282, 0
      %v5905 = vperm.slane %v5285, 0
      %v5906 = vperm.slane %v5288, 0
      %v5907 = vperm.slane %v5291, 0
      %v5908 = vperm.slane %v5294, 0
      %v5909 = vperm.slane %v5297, 0
      %v5910 = vperm.slane %v5301, 0
      %v5911 = vperm.slane %v5304, 0
      %v5912 = vperm.slane %v5307, 0
      %v5913 = vperm.slane %v5310, 0
      %v5914 = vperm.slane %v5313, 0
      %v5915 = vperm.slane %v5316, 0
      %v5916 = vperm.slane %v5319, 0
      %v5917 = vsel %vm1800, %v5869, %v5868
      %v5918 = vsel %vm457, %v5870, %v5917
      %v5919 = vsel %vm1803, %v5871, %v5918
      %v5920 = vsel %vm459, %v5872, %v5919
      %v5921 = vsel %vm1806, %v5873, %v5920
      %v5922 = vsel %vm461, %v5874, %v5921
      %v5923 = vsel %vm1800, %v5876, %v5875
      %v5924 = vsel %vm457, %v5877, %v5923
      %v5925 = vsel %vm1803, %v5878, %v5924
      %v5926 = vsel %vm459, %v5879, %v5925
      %v5927 = vsel %vm1806, %v5880, %v5926
      %v5928 = vsel %vm461, %v5881, %v5927
      %v5929 = vsel %vm1800, %v5883, %v5882
      %v5930 = vsel %vm457, %v5884, %v5929
      %v5931 = vsel %vm1803, %v5885, %v5930
      %v5932 = vsel %vm459, %v5886, %v5931
      %v5933 = vsel %vm1806, %v5887, %v5932
      %v5934 = vsel %vm461, %v5888, %v5933
      %v5935 = vsel %vm1800, %v5890, %v5889
      %v5936 = vsel %vm457, %v5891, %v5935
      %v5937 = vsel %vm1803, %v5892, %v5936
      %v5938 = vsel %vm459, %v5893, %v5937
      %v5939 = vsel %vm1806, %v5894, %v5938
      %v5940 = vsel %vm461, %v5895, %v5939
      %v5941 = vsel %vm1800, %v5897, %v5896
      %v5942 = vsel %vm457, %v5898, %v5941
      %v5943 = vsel %vm1803, %v5899, %v5942
      %v5944 = vsel %vm459, %v5900, %v5943
      %v5945 = vsel %vm1806, %v5901, %v5944
      %v5946 = vsel %vm461, %v5902, %v5945
      %v5947 = vsel %vm1800, %v5904, %v5903
      %v5948 = vsel %vm457, %v5905, %v5947
      %v5949 = vsel %vm1803, %v5906, %v5948
      %v5950 = vsel %vm459, %v5907, %v5949
      %v5951 = vsel %vm1806, %v5908, %v5950
      %v5952 = vsel %vm461, %v5909, %v5951
      %v5953 = vsel %vm1800, %v5911, %v5910
      %v5954 = vsel %vm457, %v5912, %v5953
      %v5955 = vsel %vm1803, %v5913, %v5954
      %v5956 = vsel %vm459, %v5914, %v5955
      %v5957 = vsel %vm1806, %v5915, %v5956
      %v5958 = vsel %vm461, %v5916, %v5957
      %5959 = vrot.lane.b32.xlu0 %v5922, 8
      %v5960 = vpop.permute.xlu0 %5959
      %5961 = vrot.lane.b32.xlu0 %v5928, 8
      %v5962 = vpop.permute.xlu0 %5961
      %5963 = vrot.lane.b32.xlu0 %v5934, 8
      %v5964 = vpop.permute.xlu0 %5963
      %5965 = vrot.lane.b32.xlu0 %v5940, 8
      %v5966 = vpop.permute.xlu0 %5965
      %5967 = vrot.lane.b32.xlu0 %v5946, 8
      %v5968 = vpop.permute.xlu0 %5967
      %5969 = vrot.lane.b32.xlu0 %v5952, 8
      %v5970 = vpop.permute.xlu0 %5969
      %5971 = vrot.lane.b32.xlu0 %v5958, 8
      %v5972 = vpop.permute.xlu0 %5971
      %v5980 = vperm.slane %v5323, 0
      %v5981 = vperm.slane %v5325, 0
      %v5982 = vperm.slane %v5327, 0
      %v5983 = vperm.slane %v5329, 0
      %v5984 = vperm.slane %v5331, 0
      %v5985 = vperm.slane %v5333, 0
      %v5986 = vperm.slane %v5335, 0
      %v5987 = vperm.slane %v5338, 0
      %v5988 = vperm.slane %v5339, 0
      %v5989 = vperm.slane %v5340, 0
      %v5990 = vperm.slane %v5341, 0
      %v5991 = vperm.slane %v5342, 0
      %v5992 = vperm.slane %v5343, 0
      %v5993 = vperm.slane %v5344, 0
      %v5994 = vperm.slane %v5347, 0
      %v5995 = vperm.slane %v5348, 0
      %v5996 = vperm.slane %v5349, 0
      %v5997 = vperm.slane %v5350, 0
      %v5998 = vperm.slane %v5351, 0
      %v5999 = vperm.slane %v5352, 0
      %v6000 = vperm.slane %v5353, 0
      %v6001 = vperm.slane %v5356, 0
      %v6002 = vperm.slane %v5357, 0
      %v6003 = vperm.slane %v5358, 0
      %v6004 = vperm.slane %v5359, 0
      %v6005 = vperm.slane %v5360, 0
      %v6006 = vperm.slane %v5361, 0
      %v6007 = vperm.slane %v5362, 0
      %v6008 = vperm.slane %v5365, 0
      %v6009 = vperm.slane %v5366, 0
      %v6010 = vperm.slane %v5367, 0
      %v6011 = vperm.slane %v5368, 0
      %v6012 = vperm.slane %v5369, 0
      %v6013 = vperm.slane %v5370, 0
      %v6014 = vperm.slane %v5371, 0
      %v6015 = vperm.slane %v5374, 0
      %v6016 = vperm.slane %v5375, 0
      %v6017 = vperm.slane %v5376, 0
      %v6018 = vperm.slane %v5377, 0
      %v6019 = vperm.slane %v5378, 0
      %v6020 = vperm.slane %v5379, 0
      %v6021 = vperm.slane %v5380, 0
      %v6022 = vperm.slane %v5383, 0
      %v6023 = vperm.slane %v5384, 0
      %v6024 = vperm.slane %v5385, 0
      %v6025 = vperm.slane %v5386, 0
      %v6026 = vperm.slane %v5387, 0
      %v6027 = vperm.slane %v5388, 0
      %v6028 = vperm.slane %v5389, 0
      %v6029 = vsel %vm1800, %v5981, %v5980
      %v6030 = vsel %vm457, %v5982, %v6029
      %v6031 = vsel %vm1803, %v5983, %v6030
      %v6032 = vsel %vm459, %v5984, %v6031
      %v6033 = vsel %vm1806, %v5985, %v6032
      %v6034 = vsel %vm461, %v5986, %v6033
      %v6035 = vsel %vm1800, %v5988, %v5987
      %v6036 = vsel %vm457, %v5989, %v6035
      %v6037 = vsel %vm1803, %v5990, %v6036
      %v6038 = vsel %vm459, %v5991, %v6037
      %v6039 = vsel %vm1806, %v5992, %v6038
      %v6040 = vsel %vm461, %v5993, %v6039
      %v6041 = vsel %vm1800, %v5995, %v5994
      %v6042 = vsel %vm457, %v5996, %v6041
      %v6043 = vsel %vm1803, %v5997, %v6042
      %v6044 = vsel %vm459, %v5998, %v6043
      %v6045 = vsel %vm1806, %v5999, %v6044
      %v6046 = vsel %vm461, %v6000, %v6045
      %v6047 = vsel %vm1800, %v6002, %v6001
      %v6048 = vsel %vm457, %v6003, %v6047
      %v6049 = vsel %vm1803, %v6004, %v6048
      %v6050 = vsel %vm459, %v6005, %v6049
      %v6051 = vsel %vm1806, %v6006, %v6050
      %v6052 = vsel %vm461, %v6007, %v6051
      %v6053 = vsel %vm1800, %v6009, %v6008
      %v6054 = vsel %vm457, %v6010, %v6053
      %v6055 = vsel %vm1803, %v6011, %v6054
      %v6056 = vsel %vm459, %v6012, %v6055
      %v6057 = vsel %vm1806, %v6013, %v6056
      %v6058 = vsel %vm461, %v6014, %v6057
      %v6059 = vsel %vm1800, %v6016, %v6015
      %v6060 = vsel %vm457, %v6017, %v6059
      %v6061 = vsel %vm1803, %v6018, %v6060
      %v6062 = vsel %vm459, %v6019, %v6061
      %v6063 = vsel %vm1806, %v6020, %v6062
      %v6064 = vsel %vm461, %v6021, %v6063
      %v6065 = vsel %vm1800, %v6023, %v6022
      %v6066 = vsel %vm457, %v6024, %v6065
      %v6067 = vsel %vm1803, %v6025, %v6066
      %v6068 = vsel %vm459, %v6026, %v6067
      %v6069 = vsel %vm1806, %v6027, %v6068
      %v6070 = vsel %vm461, %v6028, %v6069
      %6071 = vrot.lane.b32.xlu0 %v6034, 16
      %v6072 = vpop.permute.xlu0 %6071
      %6073 = vrot.lane.b32.xlu0 %v6040, 16
      %v6074 = vpop.permute.xlu0 %6073
      %6075 = vrot.lane.b32.xlu0 %v6046, 16
      %v6076 = vpop.permute.xlu0 %6075
      %6077 = vrot.lane.b32.xlu0 %v6052, 16
      %v6078 = vpop.permute.xlu0 %6077
      %6079 = vrot.lane.b32.xlu0 %v6058, 16
      %v6080 = vpop.permute.xlu0 %6079
      %6081 = vrot.lane.b32.xlu0 %v6064, 16
      %v6082 = vpop.permute.xlu0 %6081
      %6083 = vrot.lane.b32.xlu0 %v6070, 16
      %v6084 = vpop.permute.xlu0 %6083
      %v6092 = vperm.slane %v5082, 0
      %v6093 = vperm.slane %v5404, 0
      %v6094 = vperm.slane %v5405, 0
      %v6095 = vperm.slane %v5406, 0
      %v6096 = vperm.slane %v5083, 0
      %v6097 = vperm.slane %v5407, 0
      %v6098 = vperm.slane %v5408, 0
      %v6099 = vperm.slane %v5086, 0
      %v6100 = vperm.slane %v5409, 0
      %v6101 = vperm.slane %v5410, 0
      %v6102 = vperm.slane %v5411, 0
      %v6103 = vperm.slane %v5087, 0
      %v6104 = vperm.slane %v5412, 0
      %v6105 = vperm.slane %v5413, 0
      %v6106 = vperm.slane %v5090, 0
      %v6107 = vperm.slane %v5414, 0
      %v6108 = vperm.slane %v5415, 0
      %v6109 = vperm.slane %v5416, 0
      %v6110 = vperm.slane %v5091, 0
      %v6111 = vperm.slane %v5417, 0
      %v6112 = vperm.slane %v5418, 0
      %v6113 = vperm.slane %v5094, 0
      %v6114 = vperm.slane %v5419, 0
      %v6115 = vperm.slane %v5420, 0
      %v6116 = vperm.slane %v5421, 0
      %v6117 = vperm.slane %v5095, 0
      %v6118 = vperm.slane %v5422, 0
      %v6119 = vperm.slane %v5423, 0
      %v6120 = vperm.slane %v5098, 0
      %v6121 = vperm.slane %v5424, 0
      %v6122 = vperm.slane %v5425, 0
      %v6123 = vperm.slane %v5426, 0
      %v6124 = vperm.slane %v5099, 0
      %v6125 = vperm.slane %v5427, 0
      %v6126 = vperm.slane %v5428, 0
      %v6127 = vperm.slane %v5102, 0
      %v6128 = vperm.slane %v5429, 0
      %v6129 = vperm.slane %v5430, 0
      %v6130 = vperm.slane %v5431, 0
      %v6131 = vperm.slane %v5103, 0
      %v6132 = vperm.slane %v5432, 0
      %v6133 = vperm.slane %v5433, 0
      %v6134 = vperm.slane %v5106, 0
      %v6135 = vperm.slane %v5434, 0
      %v6136 = vperm.slane %v5435, 0
      %v6137 = vperm.slane %v5436, 0
      %v6138 = vperm.slane %v5107, 0
      %v6139 = vperm.slane %v5437, 0
      %v6140 = vperm.slane %v5438, 0
      %v6141 = vsel %vm1800, %v6093, %v6092
      %v6142 = vsel %vm457, %v6094, %v6141
      %v6143 = vsel %vm1803, %v6095, %v6142
      %v6144 = vsel %vm459, %v6096, %v6143
      %v6145 = vsel %vm1806, %v6097, %v6144
      %v6146 = vsel %vm461, %v6098, %v6145
      %v6147 = vsel %vm1800, %v6100, %v6099
      %v6148 = vsel %vm457, %v6101, %v6147
      %v6149 = vsel %vm1803, %v6102, %v6148
      %v6150 = vsel %vm459, %v6103, %v6149
      %v6151 = vsel %vm1806, %v6104, %v6150
      %v6152 = vsel %vm461, %v6105, %v6151
      %v6153 = vsel %vm1800, %v6107, %v6106
      %v6154 = vsel %vm457, %v6108, %v6153
      %v6155 = vsel %vm1803, %v6109, %v6154
      %v6156 = vsel %vm459, %v6110, %v6155
      %v6157 = vsel %vm1806, %v6111, %v6156
      %v6158 = vsel %vm461, %v6112, %v6157
      %v6159 = vsel %vm1800, %v6114, %v6113
      %v6160 = vsel %vm457, %v6115, %v6159
      %v6161 = vsel %vm1803, %v6116, %v6160
      %v6162 = vsel %vm459, %v6117, %v6161
      %v6163 = vsel %vm1806, %v6118, %v6162
      %v6164 = vsel %vm461, %v6119, %v6163
      %v6165 = vsel %vm1800, %v6121, %v6120
      %v6166 = vsel %vm457, %v6122, %v6165
      %v6167 = vsel %vm1803, %v6123, %v6166
      %v6168 = vsel %vm459, %v6124, %v6167
      %v6169 = vsel %vm1806, %v6125, %v6168
      %v6170 = vsel %vm461, %v6126, %v6169
      %v6171 = vsel %vm1800, %v6128, %v6127
      %v6172 = vsel %vm457, %v6129, %v6171
      %v6173 = vsel %vm1803, %v6130, %v6172
      %v6174 = vsel %vm459, %v6131, %v6173
      %v6175 = vsel %vm1806, %v6132, %v6174
      %v6176 = vsel %vm461, %v6133, %v6175
      %v6177 = vsel %vm1800, %v6135, %v6134
      %v6178 = vsel %vm457, %v6136, %v6177
      %v6179 = vsel %vm1803, %v6137, %v6178
      %v6180 = vsel %vm459, %v6138, %v6179
      %v6181 = vsel %vm1806, %v6139, %v6180
      %v6182 = vsel %vm461, %v6140, %v6181
      %6183 = vrot.lane.b32.xlu0 %v6146, 24
      %v6184 = vpop.permute.xlu0 %6183
      %6185 = vrot.lane.b32.xlu0 %v6152, 24
      %v6186 = vpop.permute.xlu0 %6185
      %6187 = vrot.lane.b32.xlu0 %v6158, 24
      %v6188 = vpop.permute.xlu0 %6187
      %6189 = vrot.lane.b32.xlu0 %v6164, 24
      %v6190 = vpop.permute.xlu0 %6189
      %6191 = vrot.lane.b32.xlu0 %v6170, 24
      %v6192 = vpop.permute.xlu0 %6191
      %6193 = vrot.lane.b32.xlu0 %v6176, 24
      %v6194 = vpop.permute.xlu0 %6193
      %6195 = vrot.lane.b32.xlu0 %v6182, 24
      %v6196 = vpop.permute.xlu0 %6195
      %v6204 = vperm.slane %v5449, 0
      %v6205 = vperm.slane %v5452, 0
      %v6206 = vperm.slane %v5455, 0
      %v6207 = vperm.slane %v5458, 0
      %v6208 = vperm.slane %v5461, 0
      %v6209 = vperm.slane %v5464, 0
      %v6210 = vperm.slane %v5467, 0
      %v6211 = vperm.slane %v5471, 0
      %v6212 = vperm.slane %v5474, 0
      %v6213 = vperm.slane %v5477, 0
      %v6214 = vperm.slane %v5480, 0
      %v6215 = vperm.slane %v5483, 0
      %v6216 = vperm.slane %v5486, 0
      %v6217 = vperm.slane %v5489, 0
      %v6218 = vperm.slane %v5493, 0
      %v6219 = vperm.slane %v5496, 0
      %v6220 = vperm.slane %v5499, 0
      %v6221 = vperm.slane %v5502, 0
      %v6222 = vperm.slane %v5505, 0
      %v6223 = vperm.slane %v5508, 0
      %v6224 = vperm.slane %v5511, 0
      %v6225 = vperm.slane %v5515, 0
      %v6226 = vperm.slane %v5518, 0
      %v6227 = vperm.slane %v5521, 0
      %v6228 = vperm.slane %v5524, 0
      %v6229 = vperm.slane %v5527, 0
      %v6230 = vperm.slane %v5530, 0
      %v6231 = vperm.slane %v5533, 0
      %v6232 = vperm.slane %v5537, 0
      %v6233 = vperm.slane %v5540, 0
      %v6234 = vperm.slane %v5543, 0
      %v6235 = vperm.slane %v5546, 0
      %v6236 = vperm.slane %v5549, 0
      %v6237 = vperm.slane %v5552, 0
      %v6238 = vperm.slane %v5555, 0
      %v6239 = vperm.slane %v5559, 0
      %v6240 = vperm.slane %v5562, 0
      %v6241 = vperm.slane %v5565, 0
      %v6242 = vperm.slane %v5568, 0
      %v6243 = vperm.slane %v5571, 0
      %v6244 = vperm.slane %v5574, 0
      %v6245 = vperm.slane %v5577, 0
      %v6246 = vperm.slane %v5581, 0
      %v6247 = vperm.slane %v5584, 0
      %v6248 = vperm.slane %v5587, 0
      %v6249 = vperm.slane %v5590, 0
      %v6250 = vperm.slane %v5593, 0
      %v6251 = vperm.slane %v5596, 0
      %v6252 = vperm.slane %v5599, 0
      %v6253 = vsel %vm1800, %v6205, %v6204
      %v6254 = vsel %vm457, %v6206, %v6253
      %v6255 = vsel %vm1803, %v6207, %v6254
      %v6256 = vsel %vm459, %v6208, %v6255
      %v6257 = vsel %vm1806, %v6209, %v6256
      %v6258 = vsel %vm461, %v6210, %v6257
      %v6259 = vsel %vm1800, %v6212, %v6211
      %v6260 = vsel %vm457, %v6213, %v6259
      %v6261 = vsel %vm1803, %v6214, %v6260
      %v6262 = vsel %vm459, %v6215, %v6261
      %v6263 = vsel %vm1806, %v6216, %v6262
      %v6264 = vsel %vm461, %v6217, %v6263
      %v6265 = vsel %vm1800, %v6219, %v6218
      %v6266 = vsel %vm457, %v6220, %v6265
      %v6267 = vsel %vm1803, %v6221, %v6266
      %v6268 = vsel %vm459, %v6222, %v6267
      %v6269 = vsel %vm1806, %v6223, %v6268
      %v6270 = vsel %vm461, %v6224, %v6269
      %v6271 = vsel %vm1800, %v6226, %v6225
      %v6272 = vsel %vm457, %v6227, %v6271
      %v6273 = vsel %vm1803, %v6228, %v6272
      %v6274 = vsel %vm459, %v6229, %v6273
      %v6275 = vsel %vm1806, %v6230, %v6274
      %v6276 = vsel %vm461, %v6231, %v6275
      %v6277 = vsel %vm1800, %v6233, %v6232
      %v6278 = vsel %vm457, %v6234, %v6277
      %v6279 = vsel %vm1803, %v6235, %v6278
      %v6280 = vsel %vm459, %v6236, %v6279
      %v6281 = vsel %vm1806, %v6237, %v6280
      %v6282 = vsel %vm461, %v6238, %v6281
      %v6283 = vsel %vm1800, %v6240, %v6239
      %v6284 = vsel %vm457, %v6241, %v6283
      %v6285 = vsel %vm1803, %v6242, %v6284
      %v6286 = vsel %vm459, %v6243, %v6285
      %v6287 = vsel %vm1806, %v6244, %v6286
      %v6288 = vsel %vm461, %v6245, %v6287
      %v6289 = vsel %vm1800, %v6247, %v6246
      %v6290 = vsel %vm457, %v6248, %v6289
      %v6291 = vsel %vm1803, %v6249, %v6290
      %v6292 = vsel %vm459, %v6250, %v6291
      %v6293 = vsel %vm1806, %v6251, %v6292
      %v6294 = vsel %vm461, %v6252, %v6293
      %6295 = vrot.lane.b32.xlu0 %v6258, 32
      %v6296 = vpop.permute.xlu0 %6295
      %6297 = vrot.lane.b32.xlu0 %v6264, 32
      %v6298 = vpop.permute.xlu0 %6297
      %6299 = vrot.lane.b32.xlu0 %v6270, 32
      %v6300 = vpop.permute.xlu0 %6299
      %6301 = vrot.lane.b32.xlu0 %v6276, 32
      %v6302 = vpop.permute.xlu0 %6301
      %6303 = vrot.lane.b32.xlu0 %v6282, 32
      %v6304 = vpop.permute.xlu0 %6303
      %6305 = vrot.lane.b32.xlu0 %v6288, 32
      %v6306 = vpop.permute.xlu0 %6305
      %6307 = vrot.lane.b32.xlu0 %v6294, 32
      %v6308 = vpop.permute.xlu0 %6307
      %v6316 = vperm.slane %v5603, 0
      %v6317 = vperm.slane %v5605, 0
      %v6318 = vperm.slane %v5607, 0
      %v6319 = vperm.slane %v5609, 0
      %v6320 = vperm.slane %v5611, 0
      %v6321 = vperm.slane %v5613, 0
      %v6322 = vperm.slane %v5615, 0
      %v6323 = vperm.slane %v5618, 0
      %v6324 = vperm.slane %v5619, 0
      %v6325 = vperm.slane %v5620, 0
      %v6326 = vperm.slane %v5621, 0
      %v6327 = vperm.slane %v5622, 0
      %v6328 = vperm.slane %v5623, 0
      %v6329 = vperm.slane %v5624, 0
      %v6330 = vperm.slane %v5627, 0
      %v6331 = vperm.slane %v5628, 0
      %v6332 = vperm.slane %v5629, 0
      %v6333 = vperm.slane %v5630, 0
      %v6334 = vperm.slane %v5631, 0
      %v6335 = vperm.slane %v5632, 0
      %v6336 = vperm.slane %v5633, 0
      %v6337 = vperm.slane %v5636, 0
      %v6338 = vperm.slane %v5637, 0
      %v6339 = vperm.slane %v5638, 0
      %v6340 = vperm.slane %v5639, 0
      %v6341 = vperm.slane %v5640, 0
      %v6342 = vperm.slane %v5641, 0
      %v6343 = vperm.slane %v5642, 0
      %v6344 = vperm.slane %v5645, 0
      %v6345 = vperm.slane %v5646, 0
      %v6346 = vperm.slane %v5647, 0
      %v6347 = vperm.slane %v5648, 0
      %v6348 = vperm.slane %v5649, 0
      %v6349 = vperm.slane %v5650, 0
      %v6350 = vperm.slane %v5651, 0
      %v6351 = vperm.slane %v5654, 0
      %v6352 = vperm.slane %v5655, 0
      %v6353 = vperm.slane %v5656, 0
      %v6354 = vperm.slane %v5657, 0
      %v6355 = vperm.slane %v5658, 0
      %v6356 = vperm.slane %v5659, 0
      %v6357 = vperm.slane %v5660, 0
      %v6358 = vperm.slane %v5663, 0
      %v6359 = vperm.slane %v5664, 0
      %v6360 = vperm.slane %v5665, 0
      %v6361 = vperm.slane %v5666, 0
      %v6362 = vperm.slane %v5667, 0
      %v6363 = vperm.slane %v5668, 0
      %v6364 = vperm.slane %v5669, 0
      %v6365 = vsel %vm1800, %v6317, %v6316
      %v6366 = vsel %vm457, %v6318, %v6365
      %v6367 = vsel %vm1803, %v6319, %v6366
      %v6368 = vsel %vm459, %v6320, %v6367
      %v6369 = vsel %vm1806, %v6321, %v6368
      %v6370 = vsel %vm461, %v6322, %v6369
      %v6371 = vsel %vm1800, %v6324, %v6323
      %v6372 = vsel %vm457, %v6325, %v6371
      %v6373 = vsel %vm1803, %v6326, %v6372
      %v6374 = vsel %vm459, %v6327, %v6373
      %v6375 = vsel %vm1806, %v6328, %v6374
      %v6376 = vsel %vm461, %v6329, %v6375
      %v6377 = vsel %vm1800, %v6331, %v6330
      %v6378 = vsel %vm457, %v6332, %v6377
      %v6379 = vsel %vm1803, %v6333, %v6378
      %v6380 = vsel %vm459, %v6334, %v6379
      %v6381 = vsel %vm1806, %v6335, %v6380
      %v6382 = vsel %vm461, %v6336, %v6381
      %v6383 = vsel %vm1800, %v6338, %v6337
      %v6384 = vsel %vm457, %v6339, %v6383
      %v6385 = vsel %vm1803, %v6340, %v6384
      %v6386 = vsel %vm459, %v6341, %v6385
      %v6387 = vsel %vm1806, %v6342, %v6386
      %v6388 = vsel %vm461, %v6343, %v6387
      %v6389 = vsel %vm1800, %v6345, %v6344
      %v6390 = vsel %vm457, %v6346, %v6389
      %v6391 = vsel %vm1803, %v6347, %v6390
      %v6392 = vsel %vm459, %v6348, %v6391
      %v6393 = vsel %vm1806, %v6349, %v6392
      %v6394 = vsel %vm461, %v6350, %v6393
      %v6395 = vsel %vm1800, %v6352, %v6351
      %v6396 = vsel %vm457, %v6353, %v6395
      %v6397 = vsel %vm1803, %v6354, %v6396
      %v6398 = vsel %vm459, %v6355, %v6397
      %v6399 = vsel %vm1806, %v6356, %v6398
      %v6400 = vsel %vm461, %v6357, %v6399
      %v6401 = vsel %vm1800, %v6359, %v6358
      %v6402 = vsel %vm457, %v6360, %v6401
      %v6403 = vsel %vm1803, %v6361, %v6402
      %v6404 = vsel %vm459, %v6362, %v6403
      %v6405 = vsel %vm1806, %v6363, %v6404
      %v6406 = vsel %vm461, %v6364, %v6405
      %6407 = vrot.lane.b32.xlu0 %v6370, 40
      %v6408 = vpop.permute.xlu0 %6407
      %6409 = vrot.lane.b32.xlu0 %v6376, 40
      %v6410 = vpop.permute.xlu0 %6409
      %6411 = vrot.lane.b32.xlu0 %v6382, 40
      %v6412 = vpop.permute.xlu0 %6411
      %6413 = vrot.lane.b32.xlu0 %v6388, 40
      %v6414 = vpop.permute.xlu0 %6413
      %6415 = vrot.lane.b32.xlu0 %v6394, 40
      %v6416 = vpop.permute.xlu0 %6415
      %6417 = vrot.lane.b32.xlu0 %v6400, 40
      %v6418 = vpop.permute.xlu0 %6417
      %6419 = vrot.lane.b32.xlu0 %v6406, 40
      %v6420 = vpop.permute.xlu0 %6419
      %v6428 = vperm.slane %v5108, 0
      %v6429 = vperm.slane %v5672, 0
      %v6430 = vperm.slane %v5673, 0
      %v6431 = vperm.slane %v5674, 0
      %v6432 = vperm.slane %v5109, 0
      %v6433 = vperm.slane %v5675, 0
      %v6434 = vperm.slane %v5676, 0
      %v6435 = vsel %vm1800, %v6429, %v6428
      %v6436 = vsel %vm457, %v6430, %v6435
      %v6437 = vsel %vm1803, %v6431, %v6436
      %v6438 = vsel %vm459, %v6432, %v6437
      %v6439 = vsel %vm1806, %v6433, %v6438
      %v6440 = vsel %vm461, %v6434, %v6439
      %6441 = vrot.lane.b32.xlu0 %v5830, 48
      %v6442 = vpop.permute.xlu0 %6441
      %6443 = vrot.lane.b32.xlu0 %v5836, 48
      %v6444 = vpop.permute.xlu0 %6443
      %6445 = vrot.lane.b32.xlu0 %v5842, 48
      %v6446 = vpop.permute.xlu0 %6445
      %6447 = vrot.lane.b32.xlu0 %v5848, 48
      %v6448 = vpop.permute.xlu0 %6447
      %6449 = vrot.lane.b32.xlu0 %v5854, 48
      %v6450 = vpop.permute.xlu0 %6449
      %6451 = vrot.lane.b32.xlu0 %v5860, 48
      %v6452 = vpop.permute.xlu0 %6451
      %6453 = vrot.lane.b32.xlu0 %v6440, 48
      %v6454 = vpop.permute.xlu0 %6453
      %v6462 = vperm.slane %v5681, 0
      %v6463 = vperm.slane %v5684, 0
      %v6464 = vperm.slane %v5687, 0
      %v6465 = vperm.slane %v5690, 0
      %v6466 = vperm.slane %v5693, 0
      %v6467 = vperm.slane %v5696, 0
      %v6468 = vperm.slane %v5699, 0
      %v6469 = vsel %vm1800, %v6463, %v6462
      %v6470 = vsel %vm457, %v6464, %v6469
      %v6471 = vsel %vm1803, %v6465, %v6470
      %v6472 = vsel %vm459, %v6466, %v6471
      %v6473 = vsel %vm1806, %v6467, %v6472
      %v6474 = vsel %vm461, %v6468, %v6473
      %6475 = vrot.lane.b32.xlu0 %v5928, 56
      %v6476 = vpop.permute.xlu0 %6475
      %6477 = vrot.lane.b32.xlu0 %v5934, 56
      %v6478 = vpop.permute.xlu0 %6477
      %6479 = vrot.lane.b32.xlu0 %v5940, 56
      %v6480 = vpop.permute.xlu0 %6479
      %6481 = vrot.lane.b32.xlu0 %v5946, 56
      %v6482 = vpop.permute.xlu0 %6481
      %6483 = vrot.lane.b32.xlu0 %v5952, 56
      %v6484 = vpop.permute.xlu0 %6483
      %6485 = vrot.lane.b32.xlu0 %v5958, 56
      %v6486 = vpop.permute.xlu0 %6485
      %6487 = vrot.lane.b32.xlu0 %v6474, 56
      %v6488 = vpop.permute.xlu0 %6487
      %v6496 = vperm.slane %v5703, 0
      %v6497 = vperm.slane %v5705, 0
      %v6498 = vperm.slane %v5707, 0
      %v6499 = vperm.slane %v5709, 0
      %v6500 = vperm.slane %v5711, 0
      %v6501 = vperm.slane %v5713, 0
      %v6502 = vperm.slane %v5715, 0
      %v6503 = vperm.slane %v5718, 0
      %v6504 = vperm.slane %v5719, 0
      %v6505 = vperm.slane %v5720, 0
      %v6506 = vperm.slane %v5721, 0
      %v6507 = vperm.slane %v5722, 0
      %v6508 = vperm.slane %v5723, 0
      %v6509 = vperm.slane %v5724, 0
      %v6510 = vperm.slane %v5727, 0
      %v6511 = vperm.slane %v5728, 0
      %v6512 = vperm.slane %v5729, 0
      %v6513 = vperm.slane %v5730, 0
      %v6514 = vperm.slane %v5731, 0
      %v6515 = vperm.slane %v5732, 0
      %v6516 = vperm.slane %v5733, 0
      %v6517 = vperm.slane %v5736, 0
      %v6518 = vperm.slane %v5737, 0
      %v6519 = vperm.slane %v5738, 0
      %v6520 = vperm.slane %v5739, 0
      %v6521 = vperm.slane %v5740, 0
      %v6522 = vperm.slane %v5741, 0
      %v6523 = vperm.slane %v5742, 0
      %v6524 = vperm.slane %v5745, 0
      %v6525 = vperm.slane %v5746, 0
      %v6526 = vperm.slane %v5747, 0
      %v6527 = vperm.slane %v5748, 0
      %v6528 = vperm.slane %v5749, 0
      %v6529 = vperm.slane %v5750, 0
      %v6530 = vperm.slane %v5751, 0
      %v6531 = vperm.slane %v5754, 0
      %v6532 = vperm.slane %v5755, 0
      %v6533 = vperm.slane %v5756, 0
      %v6534 = vperm.slane %v5757, 0
      %v6535 = vperm.slane %v5758, 0
      %v6536 = vperm.slane %v5759, 0
      %v6537 = vperm.slane %v5760, 0
      %v6538 = vperm.slane %v5763, 0
      %v6539 = vperm.slane %v5764, 0
      %v6540 = vperm.slane %v5765, 0
      %v6541 = vperm.slane %v5766, 0
      %v6542 = vperm.slane %v5767, 0
      %v6543 = vperm.slane %v5768, 0
      %v6544 = vperm.slane %v5769, 0
      %v6545 = vsel %vm1800, %v6497, %v6496
      %v6546 = vsel %vm457, %v6498, %v6545
      %v6547 = vsel %vm1803, %v6499, %v6546
      %v6548 = vsel %vm459, %v6500, %v6547
      %v6549 = vsel %vm1806, %v6501, %v6548
      %v6550 = vsel %vm461, %v6502, %v6549
      %v6551 = vsel %vm1800, %v6504, %v6503
      %v6552 = vsel %vm457, %v6505, %v6551
      %v6553 = vsel %vm1803, %v6506, %v6552
      %v6554 = vsel %vm459, %v6507, %v6553
      %v6555 = vsel %vm1806, %v6508, %v6554
      %v6556 = vsel %vm461, %v6509, %v6555
      %v6557 = vsel %vm1800, %v6511, %v6510
      %v6558 = vsel %vm457, %v6512, %v6557
      %v6559 = vsel %vm1803, %v6513, %v6558
      %v6560 = vsel %vm459, %v6514, %v6559
      %v6561 = vsel %vm1806, %v6515, %v6560
      %v6562 = vsel %vm461, %v6516, %v6561
      %v6563 = vsel %vm1800, %v6518, %v6517
      %v6564 = vsel %vm457, %v6519, %v6563
      %v6565 = vsel %vm1803, %v6520, %v6564
      %v6566 = vsel %vm459, %v6521, %v6565
      %v6567 = vsel %vm1806, %v6522, %v6566
      %v6568 = vsel %vm461, %v6523, %v6567
      %v6569 = vsel %vm1800, %v6525, %v6524
      %v6570 = vsel %vm457, %v6526, %v6569
      %v6571 = vsel %vm1803, %v6527, %v6570
      %v6572 = vsel %vm459, %v6528, %v6571
      %v6573 = vsel %vm1806, %v6529, %v6572
      %v6574 = vsel %vm461, %v6530, %v6573
      %v6575 = vsel %vm1800, %v6532, %v6531
      %v6576 = vsel %vm457, %v6533, %v6575
      %v6577 = vsel %vm1803, %v6534, %v6576
      %v6578 = vsel %vm459, %v6535, %v6577
      %v6579 = vsel %vm1806, %v6536, %v6578
      %v6580 = vsel %vm461, %v6537, %v6579
      %v6581 = vsel %vm1800, %v6539, %v6538
      %v6582 = vsel %vm457, %v6540, %v6581
      %v6583 = vsel %vm1803, %v6541, %v6582
      %v6584 = vsel %vm459, %v6542, %v6583
      %v6585 = vsel %vm1806, %v6543, %v6584
      %v6586 = vsel %vm461, %v6544, %v6585
      %6587 = vrot.lane.b32.xlu0 %v6550, 64
      %v6588 = vpop.permute.xlu0 %6587
      %6589 = vrot.lane.b32.xlu0 %v6556, 64
      %v6590 = vpop.permute.xlu0 %6589
      %6591 = vrot.lane.b32.xlu0 %v6562, 64
      %v6592 = vpop.permute.xlu0 %6591
      %6593 = vrot.lane.b32.xlu0 %v6568, 64
      %v6594 = vpop.permute.xlu0 %6593
      %6595 = vrot.lane.b32.xlu0 %v6574, 64
      %v6596 = vpop.permute.xlu0 %6595
      %6597 = vrot.lane.b32.xlu0 %v6580, 64
      %v6598 = vpop.permute.xlu0 %6597
      %6599 = vrot.lane.b32.xlu0 %v6586, 64
      %v6600 = vpop.permute.xlu0 %6599
      %v6608 = vsel %vm2600, %v5824, %v5960
      %v6609 = vsel %vm2600, %v5830, %v5962
      %v6610 = vsel %vm2600, %v5836, %v5964
      %v6611 = vsel %vm2600, %v5842, %v5966
      %v6612 = vsel %vm2600, %v5848, %v5968
      %v6613 = vsel %vm2600, %v5854, %v5970
      %v6614 = vsel %vm2600, %v5860, %v5972
      %v6615 = vsel %vm2616, %v6608, %v6072
      %v6616 = vsel %vm2616, %v6609, %v6074
      %v6617 = vsel %vm2616, %v6610, %v6076
      %v6618 = vsel %vm2616, %v6611, %v6078
      %v6619 = vsel %vm2616, %v6612, %v6080
      %v6620 = vsel %vm2616, %v6613, %v6082
      %v6621 = vsel %vm2616, %v6614, %v6084
      %v6622 = vsel %vm2632, %v6615, %v6184
      %v6623 = vsel %vm2632, %v6616, %v6186
      %v6624 = vsel %vm2632, %v6617, %v6188
      %v6625 = vsel %vm2632, %v6618, %v6190
      %v6626 = vsel %vm2632, %v6619, %v6192
      %v6627 = vsel %vm2632, %v6620, %v6194
      %v6628 = vsel %vm2632, %v6621, %v6196
      %v6629 = vsel %vm2648, %v6622, %v6296
      %v6630 = vsel %vm2648, %v6623, %v6298
      %v6631 = vsel %vm2648, %v6624, %v6300
      %v6632 = vsel %vm2648, %v6625, %v6302
      %v6633 = vsel %vm2648, %v6626, %v6304
      %v6634 = vsel %vm2648, %v6627, %v6306
      %v6635 = vsel %vm2648, %v6628, %v6308
      %v6636 = vsel %vm4667, %v6629, %v6408
      %v6637 = vsel %vm4667, %v6630, %v6410
      %v6638 = vsel %vm4667, %v6631, %v6412
      %v6639 = vsel %vm4667, %v6632, %v6414
      %v6640 = vsel %vm4667, %v6633, %v6416
      %v6641 = vsel %vm4667, %v6634, %v6418
      %v6642 = vsel %vm4667, %v6635, %v6420
      %v6643 = vsel %vm4700, %v6636, %v6442
      %v6644 = vsel %vm4700, %v6637, %v6444
      %v6645 = vsel %vm4700, %v6638, %v6446
      %v6646 = vsel %vm4700, %v6639, %v6448
      %v6647 = vsel %vm4700, %v6640, %v6450
      %v6648 = vsel %vm4700, %v6641, %v6452
      %v6649 = vsel %vm4700, %v6642, %v6454
      %v6650 = vsel %vm4733, %v6643, %v6476
      %v6651 = vsel %vm4733, %v6644, %v6478
      %v6652 = vsel %vm4733, %v6645, %v6480
      %v6653 = vsel %vm4733, %v6646, %v6482
      %v6654 = vsel %vm4733, %v6647, %v6484
      %v6655 = vsel %vm4733, %v6648, %v6486
      %v6656 = vsel %vm4733, %v6649, %v6488
      %v6657 = vsel %vm4766, %v6650, %v6588
      %v6658 = vsel %vm4766, %v6651, %v6590
      %v6659 = vsel %vm4766, %v6652, %v6592
      %v6660 = vsel %vm4766, %v6653, %v6594
      %v6661 = vsel %vm4766, %v6654, %v6596
      %v6662 = vsel %vm4766, %v6655, %v6598
      %v6663 = vsel %vm4766, %v6656, %v6600
      %v6671 = vrot.slane %v6657, 1
      %v6672 = vrot.slane %v6657, 2
      %v6673 = vrot.slane %v6657, 3
      %v6674 = vrot.slane %v6657, 4
      %v6675 = vrot.slane %v6657, 5
      %v6676 = vrot.slane %v6657, 6
      %v6677 = vrot.slane %v6658, 1
      %v6678 = vrot.slane %v6658, 2
      %v6679 = vrot.slane %v6658, 3
      %v6680 = vrot.slane %v6658, 4
      %v6681 = vrot.slane %v6658, 5
      %v6682 = vrot.slane %v6658, 6
      %v6683 = vrot.slane %v6659, 1
      %v6684 = vrot.slane %v6659, 2
      %v6685 = vrot.slane %v6659, 3
      %v6686 = vrot.slane %v6659, 4
      %v6687 = vrot.slane %v6659, 5
      %v6688 = vrot.slane %v6659, 6
      %v6689 = vrot.slane %v6660, 1
      %v6690 = vrot.slane %v6660, 2
      %v6691 = vrot.slane %v6660, 3
      %v6692 = vrot.slane %v6660, 4
      %v6693 = vrot.slane %v6660, 5
      %v6694 = vrot.slane %v6660, 6
      %v6695 = vrot.slane %v6661, 1
      %v6696 = vrot.slane %v6661, 2
      %v6697 = vrot.slane %v6661, 3
      %v6698 = vrot.slane %v6661, 4
      %v6699 = vrot.slane %v6661, 5
      %v6700 = vrot.slane %v6661, 6
      %v6701 = vrot.slane %v6662, 1
      %v6702 = vrot.slane %v6662, 2
      %v6703 = vrot.slane %v6662, 3
      %v6704 = vrot.slane %v6662, 4
      %v6705 = vrot.slane %v6662, 5
      %v6706 = vrot.slane %v6662, 6
      %v6707 = vrot.slane %v6663, 1
      %v6708 = vrot.slane %v6663, 2
      %v6709 = vrot.slane %v6663, 3
      %v6710 = vrot.slane %v6663, 4
      %v6711 = vrot.slane %v6663, 5
      %v6712 = vrot.slane %v6663, 6
      %v6713 = vld [vmem:[%s7] sm:$0xff]
      %v6714 = vld [vmem:[%s7 + $0x8] sm:$0xff]
      %v6715 = vld [vmem:[%s7 + $0x10] sm:$0xff]
      %v6716 = vld [vmem:[%s7 + $0x18] sm:$0xff]
      %v6717 = vld [vmem:[%s7 + $0x20] sm:$0xff]
      %v6718 = vld [vmem:[%s7 + $0x28] sm:$0xff]
      %v6719 = vld [vmem:[%s7 + $0x30] sm:$0xff]
      %v6720 = vld [vmem:[%s7 + $0x38] sm:$0xff]
      %v6721 = vld [vmem:[%s7 + $0x40] sm:$0xff]
      %6722 = vst [vmem:[#allocation1] ss:$9 sm:$0xff] %v6657
      %s6723 = scalar_lea.vmem [#allocation1], 1
      %6724 = vst [vmem:[%s6723] ss:$9 sm:$0xff] %v6671
      %s6725 = scalar_lea.vmem [#allocation1], 2
      %6726 = vst [vmem:[%s6725] ss:$9 sm:$0xff] %v6672
      %s6727 = scalar_lea.vmem [#allocation1], 3
      %6728 = vst [vmem:[%s6727] ss:$9 sm:$0xff] %v6673
      %s6729 = scalar_lea.vmem [#allocation1], 4
      %6730 = vst [vmem:[%s6729] ss:$9 sm:$0xff] %v6674
      %s6731 = scalar_lea.vmem [#allocation1], 5
      %6732 = vst [vmem:[%s6731] ss:$9 sm:$0xff] %v6675
      %s6733 = scalar_lea.vmem [#allocation1], 6
      %6734 = vst [vmem:[%s6733] ss:$9 sm:$0xff] %v6676
      %s6735 = scalar_lea.vmem [#allocation1], 7
      %6736 = vst [vmem:[%s6735] ss:$9 sm:$0xff] %v6658
      %v6737 = vld [vmem:[#allocation1] sm:$0xff]
      %6738 = vst [vmem:[#allocation1] ss:$9 sm:$0xff] %v6677
      %6739 = vst [vmem:[%s6723] ss:$9 sm:$0xff] %v6678
      %6740 = vst [vmem:[%s6725] ss:$9 sm:$0xff] %v6679
      %6741 = vst [vmem:[%s6727] ss:$9 sm:$0xff] %v6680
      %6742 = vst [vmem:[%s6729] ss:$9 sm:$0xff] %v6681
      %6743 = vst [vmem:[%s6731] ss:$9 sm:$0xff] %v6682
      %6744 = vst [vmem:[%s6733] ss:$9 sm:$0xff] %v6659
      %6745 = vst [vmem:[%s6735] ss:$9 sm:$0xff] %v6683
      %v6746 = vld [vmem:[#allocation1] sm:$0xff]
      %6747 = vst [vmem:[#allocation1] ss:$9 sm:$0xff] %v6684
      %6748 = vst [vmem:[%s6723] ss:$9 sm:$0xff] %v6685
      %6749 = vst [vmem:[%s6725] ss:$9 sm:$0xff] %v6686
      %6750 = vst [vmem:[%s6727] ss:$9 sm:$0xff] %v6687
      %6751 = vst [vmem:[%s6729] ss:$9 sm:$0xff] %v6688
      %6752 = vst [vmem:[%s6731] ss:$9 sm:$0xff] %v6660
      %6753 = vst [vmem:[%s6733] ss:$9 sm:$0xff] %v6689
      %6754 = vst [vmem:[%s6735] ss:$9 sm:$0xff] %v6690
      %v6755 = vld [vmem:[#allocation1] sm:$0xff]
      %6756 = vst [vmem:[#allocation1] ss:$9 sm:$0xff] %v6691
      %6757 = vst [vmem:[%s6723] ss:$9 sm:$0xff] %v6692
      %6758 = vst [vmem:[%s6725] ss:$9 sm:$0xff] %v6693
      %6759 = vst [vmem:[%s6727] ss:$9 sm:$0xff] %v6694
      %6760 = vst [vmem:[%s6729] ss:$9 sm:$0xff] %v6661
      %6761 = vst [vmem:[%s6731] ss:$9 sm:$0xff] %v6695
      %6762 = vst [vmem:[%s6733] ss:$9 sm:$0xff] %v6696
      %6763 = vst [vmem:[%s6735] ss:$9 sm:$0xff] %v6697
      %v6764 = vld [vmem:[#allocation1] sm:$0xff]
      %6765 = vst [vmem:[#allocation1] ss:$9 sm:$0xff] %v6698
      %6766 = vst [vmem:[%s6723] ss:$9 sm:$0xff] %v6699
      %6767 = vst [vmem:[%s6725] ss:$9 sm:$0xff] %v6700
      %6768 = vst [vmem:[%s6727] ss:$9 sm:$0xff] %v6662
      %6769 = vst [vmem:[%s6729] ss:$9 sm:$0xff] %v6701
      %6770 = vst [vmem:[%s6731] ss:$9 sm:$0xff] %v6702
      %6771 = vst [vmem:[%s6733] ss:$9 sm:$0xff] %v6703
      %6772 = vst [vmem:[%s6735] ss:$9 sm:$0xff] %v6704
      %v6773 = vld [vmem:[#allocation1] sm:$0xff]
      %6774 = vst [vmem:[#allocation1] ss:$9 sm:$0xff] %v6705
      %6775 = vst [vmem:[%s6723] ss:$9 sm:$0xff] %v6706
      %6776 = vst [vmem:[%s6725] ss:$9 sm:$0xff] %v6663
      %6777 = vst [vmem:[%s6727] ss:$9 sm:$0xff] %v6707
      %6778 = vst [vmem:[%s6729] ss:$9 sm:$0xff] %v6708
      %6779 = vst [vmem:[%s6731] ss:$9 sm:$0xff] %v6709
      %6780 = vst [vmem:[%s6733] ss:$9 sm:$0xff] %v6710
      %6781 = vst [vmem:[%s6735] ss:$9 sm:$0xff] %v6711
      %v6782 = vld [vmem:[#allocation1] sm:$0xff]
      %6783 = vst [vmem:[#allocation1] ss:$9 sm:$0xff] %v6712
      %v6784 = vld [vmem:[#allocation1] sm:$0xff]
      %v6785 = vsel %vm4808, %v6737, 0
      %v6787 = vsel %vm4808, %v6746, 0
      %v6789 = vsel %vm4808, %v6755, 0
      %v6791 = vsel %vm4808, %v6764, 0
      %v6793 = vsel %vm4808, %v6773, 0
      %v6795 = vsel %vm4808, %v6782, 0
      %v6797 = vsel %vm4808, %v6784, 0
      %6799 = vmatpush.msra.mxu0 0.0
      %6800 = vmatpush.msra.mxu0 0.0
      %6801 = vmatpush.msra.mxu0 0.0
      %6802 = vmatpush.msra.mxu0 0.0
      %6803 = vmatpush.msra.mxu0 0.0
      %6804 = vmatpush.msra.mxu0 0.0
      %6805 = vmatpush.msra.mxu0 0.0
      %6806 = vmatpush.msra.mxu0 %v6721
      %6807 = vmatpush.msra.mxu0 %v6720
      %6808 = vmatpush.msra.mxu0 %v6719
      %6809 = vmatpush.msra.mxu0 %v6718
      %6810 = vmatpush.msra.mxu0 %v6717
      %6811 = vmatpush.msra.mxu0 %v6716
      %6812 = vmatpush.msra.mxu0 %v6715
      %6813 = vmatpush.msra.mxu0 %v6714
      %6814 = vmatpush.msra.mxu0 %v6713
      %6815 = vmatmul.f32.gmra.mxu0 %v6785
      %v6816 = vpop.f32.mrf.mxu0
      %v6817 = vadd.f32 0.0, %v6816
      %6818 = vmatmul.f32.gmra.mxu0 %v6787
      %v6819 = vpop.f32.mrf.mxu0
      %v6820 = vadd.f32 0.0, %v6819
      %6821 = vmatmul.f32.gmra.mxu0 %v6789
      %v6822 = vpop.f32.mrf.mxu0
      %v6823 = vadd.f32 0.0, %v6822
      %6824 = vmatmul.f32.gmra.mxu0 %v6791
      %v6825 = vpop.f32.mrf.mxu0
      %v6826 = vadd.f32 0.0, %v6825
      %6827 = vmatmul.f32.gmra.mxu0 %v6793
      %v6828 = vpop.f32.mrf.mxu0
      %v6829 = vadd.f32 0.0, %v6828
      %6830 = vmatmul.f32.gmra.mxu0 %v6795
      %v6831 = vpop.f32.mrf.mxu0
      %v6832 = vadd.f32 0.0, %v6831
      %6833 = vmatmul.f32.gmra.mxu0 %v6797
      %v6834 = vpop.f32.mrf.mxu0
      %v6835 = vadd.f32 0.0, %v6834
      %6836 = vdwg.mxu0
      %v6837 = vld [vmem:[%s8] sm:$0x1]
      %v6838 = vperm.slane %v6837, 0
      %v6839 = vmul.f32 %v6817, %v6838
      %v6840 = vmul.f32 %v6820, %v6838
      %v6841 = vmul.f32 %v6823, %v6838
      %v6842 = vmul.f32 %v6826, %v6838
      %v6843 = vmul.f32 %v6829, %v6838
      %v6844 = vmul.f32 %v6832, %v6838
      %v6845 = vmul.f32 %v6835, %v6838
      %v6846 = vld [vmem:[%s8 + $0x1] sm:$0x1]
      %v6847 = vperm.slane %v6846, 0
      %v6848 = vadd.f32 %v6839, %v6847
      %v6849 = vadd.f32 %v6840, %v6847
      %v6850 = vadd.f32 %v6841, %v6847
      %v6851 = vadd.f32 %v6842, %v6847
      %v6852 = vadd.f32 %v6843, %v6847
      %v6853 = vadd.f32 %v6844, %v6847
      %v6854 = vadd.f32 %v6845, %v6847
      %v6855 = vmax.f32 %v6848, 0.0
      %v6856 = vmax.f32 %v6849, 0.0
      %v6857 = vmax.f32 %v6850, 0.0
      %v6858 = vmax.f32 %v6851, 0.0
      %v6859 = vmax.f32 %v6852, 0.0
      %v6860 = vmax.f32 %v6853, 0.0
      %v6861 = vmax.f32 %v6854, 0.0
      %v6911 = vperm.slane %v1702, 0
      %v6912 = vperm.slane %v1703, 0
      %v6913 = vperm.slane %v1704, 0
      %v6914 = vperm.slane %v1705, 0
      %v6915 = vperm.slane %v1706, 0
      %v6916 = vperm.slane %v1707, 0
      %v6917 = vperm.slane %v1708, 0
      %v6918 = vperm.slane %v1709, 0
      %v6919 = vperm.slane %v1710, 0
      %v6920 = vperm.slane %v1711, 0
      %v6921 = vperm.slane %v1712, 0
      %v6922 = vperm.slane %v1713, 0
      %v6923 = vperm.slane %v1714, 0
      %v6924 = vperm.slane %v1715, 0
      %v6925 = vperm.slane %v1716, 0
      %v6926 = vperm.slane %v1717, 0
      %v6927 = vperm.slane %v1718, 0
      %v6928 = vperm.slane %v1719, 0
      %v6929 = vperm.slane %v1720, 0
      %v6930 = vperm.slane %v1721, 0
      %v6931 = vperm.slane %v1722, 0
      %v6932 = vperm.slane %v1723, 0
      %v6933 = vperm.slane %v1724, 0
      %v6934 = vperm.slane %v1725, 0
      %v6935 = vperm.slane %v1726, 0
      %v6936 = vperm.slane %v1727, 0
      %v6937 = vperm.slane %v1728, 0
      %v6938 = vperm.slane %v1729, 0
      %v6939 = vperm.slane %v1730, 0
      %v6940 = vperm.slane %v1731, 0
      %v6941 = vperm.slane %v1732, 0
      %v6942 = vperm.slane %v1733, 0
      %v6943 = vperm.slane %v1734, 0
      %v6944 = vperm.slane %v1735, 0
      %v6945 = vperm.slane %v1736, 0
      %v6946 = vperm.slane %v1737, 0
      %v6947 = vperm.slane %v1738, 0
      %v6948 = vperm.slane %v1739, 0
      %v6949 = vperm.slane %v1740, 0
      %v6950 = vperm.slane %v1741, 0
      %v6951 = vperm.slane %v1742, 0
      %v6952 = vperm.slane %v1743, 0
      %v6953 = vperm.slane %v1744, 0
      %v6954 = vperm.slane %v1745, 0
      %v6955 = vperm.slane %v1746, 0
      %v6956 = vperm.slane %v1747, 0
      %v6957 = vperm.slane %v1748, 0
      %v6958 = vperm.slane %v1749, 0
      %v6959 = vperm.slane %v1750, 0
      %v6960 = vsel %vm1800, %v6912, %v6911
      %v6961 = vsel %vm457, %v6913, %v6960
      %v6962 = vsel %vm1803, %v6914, %v6961
      %v6963 = vsel %vm459, %v6915, %v6962
      %v6964 = vsel %vm1806, %v6916, %v6963
      %v6965 = vsel %vm461, %v6917, %v6964
      %vm6966 = vcmask 1047559
      %v6967 = vsel %vm6966, %v6918, %v6965
      %v6968 = vsel %vm1800, %v6920, %v6919
      %v6969 = vsel %vm457, %v6921, %v6968
      %v6970 = vsel %vm1803, %v6922, %v6969
      %v6971 = vsel %vm459, %v6923, %v6970
      %v6972 = vsel %vm1806, %v6924, %v6971
      %v6973 = vsel %vm461, %v6925, %v6972
      %v6974 = vsel %vm6966, %v6926, %v6973
      %v6975 = vsel %vm1800, %v6928, %v6927
      %v6976 = vsel %vm457, %v6929, %v6975
      %v6977 = vsel %vm1803, %v6930, %v6976
      %v6978 = vsel %vm459, %v6931, %v6977
      %v6979 = vsel %vm1806, %v6932, %v6978
      %v6980 = vsel %vm461, %v6933, %v6979
      %v6981 = vsel %vm6966, %v6934, %v6980
      %v6982 = vsel %vm1800, %v6936, %v6935
      %v6983 = vsel %vm457, %v6937, %v6982
      %v6984 = vsel %vm1803, %v6938, %v6983
      %v6985 = vsel %vm459, %v6939, %v6984
      %v6986 = vsel %vm1806, %v6940, %v6985
      %v6987 = vsel %vm461, %v6941, %v6986
      %v6988 = vsel %vm6966, %v6942, %v6987
      %v6989 = vsel %vm1800, %v6944, %v6943
      %v6990 = vsel %vm457, %v6945, %v6989
      %v6991 = vsel %vm1803, %v6946, %v6990
      %v6992 = vsel %vm459, %v6947, %v6991
      %v6993 = vsel %vm1806, %v6948, %v6992
      %v6994 = vsel %vm461, %v6949, %v6993
      %v6995 = vsel %vm6966, %v6950, %v6994
      %v6996 = vsel %vm1800, %v6952, %v6951
      %v6997 = vsel %vm457, %v6953, %v6996
      %v6998 = vsel %vm1803, %v6954, %v6997
      %v6999 = vsel %vm459, %v6955, %v6998
      %v7000 = vsel %vm1806, %v6956, %v6999
      %v7001 = vsel %vm461, %v6957, %v7000
      %v7002 = vsel %vm6966, %v6958, %v7001
      %7017 = vrot.lane.b32.xlu0 %v2848, 4
      %v7018 = vpop.permute.xlu0 %7017
      %7019 = vrot.lane.b32.xlu0 %v2849, 4
      %v7020 = vpop.permute.xlu0 %7019
      %7021 = vrot.lane.b32.xlu0 %v2850, 4
      %v7022 = vpop.permute.xlu0 %7021
      %7023 = vrot.lane.b32.xlu0 %v2851, 4
      %v7024 = vpop.permute.xlu0 %7023
      %7025 = vrot.lane.b32.xlu0 %v2852, 4
      %v7026 = vpop.permute.xlu0 %7025
      %7027 = vrot.lane.b32.xlu0 %v2853, 4
      %v7028 = vpop.permute.xlu0 %7027
      %7029 = vrot.lane.b32.xlu0 %v2854, 4
      %v7030 = vpop.permute.xlu0 %7029
      %7045 = vrot.lane.b32.xlu0 %v6855, 12
      %v7046 = vpop.permute.xlu0 %7045
      %7047 = vrot.lane.b32.xlu0 %v6856, 12
      %v7048 = vpop.permute.xlu0 %7047
      %7049 = vrot.lane.b32.xlu0 %v6857, 12
      %v7050 = vpop.permute.xlu0 %7049
      %7051 = vrot.lane.b32.xlu0 %v6858, 12
      %v7052 = vpop.permute.xlu0 %7051
      %7053 = vrot.lane.b32.xlu0 %v6859, 12
      %v7054 = vpop.permute.xlu0 %7053
      %7055 = vrot.lane.b32.xlu0 %v6860, 12
      %v7056 = vpop.permute.xlu0 %7055
      %7057 = vrot.lane.b32.xlu0 %v6861, 12
      %v7058 = vpop.permute.xlu0 %7057
      %v7066 = vsel %vm2592, %v6967, %v7018
      %v7067 = vsel %vm2592, %v6974, %v7020
      %v7068 = vsel %vm2592, %v6981, %v7022
      %v7069 = vsel %vm2592, %v6988, %v7024
      %v7070 = vsel %vm2592, %v6995, %v7026
      %v7071 = vsel %vm2592, %v7002, %v7028
      %v7072 = vsel %vm2592, %v6959, %v7030
      %v7073 = vsel %vm2608, %v7066, %v7046
      %v7074 = vsel %vm2608, %v7067, %v7048
      %v7075 = vsel %vm2608, %v7068, %v7050
      %v7076 = vsel %vm2608, %v7069, %v7052
      %v7077 = vsel %vm2608, %v7070, %v7054
      %v7078 = vsel %vm2608, %v7071, %v7056
      %v7079 = vsel %vm2608, %v7072, %v7058
      %v7080 = vsel %vm2624, %v7073, 0.0
      %v7081 = vsel %vm2624, %v7074, 0.0
      %v7082 = vsel %vm2624, %v7075, 0.0
      %v7083 = vsel %vm2624, %v7076, 0.0
      %v7084 = vsel %vm2624, %v7077, 0.0
      %v7085 = vsel %vm2624, %v7078, 0.0
      %v7086 = vsel %vm2624, %v7079, 0.0
      %v7094 = vrot.slane %v7080, 1
      %v7095 = vrot.slane %v7080, 2
      %v7096 = vrot.slane %v7080, 3
      %v7097 = vrot.slane %v7080, 4
      %v7098 = vrot.slane %v7080, 5
      %v7099 = vrot.slane %v7080, 6
      %v7100 = vrot.slane %v7080, 7
      %v7101 = vrot.slane %v7081, 1
      %v7102 = vrot.slane %v7081, 2
      %v7103 = vrot.slane %v7081, 3
      %v7104 = vrot.slane %v7081, 4
      %v7105 = vrot.slane %v7081, 5
      %v7106 = vrot.slane %v7081, 6
      %v7107 = vrot.slane %v7081, 7
      %v7108 = vrot.slane %v7082, 1
      %v7109 = vrot.slane %v7082, 2
      %v7110 = vrot.slane %v7082, 3
      %v7111 = vrot.slane %v7082, 4
      %v7112 = vrot.slane %v7082, 5
      %v7113 = vrot.slane %v7082, 6
      %v7114 = vrot.slane %v7082, 7
      %v7115 = vrot.slane %v7083, 1
      %v7116 = vrot.slane %v7083, 2
      %v7117 = vrot.slane %v7083, 3
      %v7118 = vrot.slane %v7083, 4
      %v7119 = vrot.slane %v7083, 5
      %v7120 = vrot.slane %v7083, 6
      %v7121 = vrot.slane %v7083, 7
      %v7122 = vrot.slane %v7084, 1
      %v7123 = vrot.slane %v7084, 2
      %v7124 = vrot.slane %v7084, 3
      %v7125 = vrot.slane %v7084, 4
      %v7126 = vrot.slane %v7084, 5
      %v7127 = vrot.slane %v7084, 6
      %v7128 = vrot.slane %v7084, 7
      %v7129 = vrot.slane %v7085, 1
      %v7130 = vrot.slane %v7085, 2
      %v7131 = vrot.slane %v7085, 3
      %v7132 = vrot.slane %v7085, 4
      %v7133 = vrot.slane %v7085, 5
      %v7134 = vrot.slane %v7085, 6
      %v7135 = vrot.slane %v7085, 7
      %7136 = vst [vmem:[#allocation1] ss:$9 sm:$0xff] %v7080
      %s7137 = scalar_lea.vmem [#allocation1], 1
      %7138 = vst [vmem:[%s7137] ss:$9 sm:$0xff] %v7094
      %s7139 = scalar_lea.vmem [#allocation1], 2
      %7140 = vst [vmem:[%s7139] ss:$9 sm:$0xff] %v7095
      %s7141 = scalar_lea.vmem [#allocation1], 3
      %7142 = vst [vmem:[%s7141] ss:$9 sm:$0xff] %v7096
      %s7143 = scalar_lea.vmem [#allocation1], 4
      %7144 = vst [vmem:[%s7143] ss:$9 sm:$0xff] %v7097
      %s7145 = scalar_lea.vmem [#allocation1], 5
      %7146 = vst [vmem:[%s7145] ss:$9 sm:$0xff] %v7098
      %s7147 = scalar_lea.vmem [#allocation1], 6
      %7148 = vst [vmem:[%s7147] ss:$9 sm:$0xff] %v7099
      %v7149 = vld [vmem:[#allocation1] sm:$0xff]
      %7150 = vst [vmem:[#allocation1] ss:$9 sm:$0xff] %v7100
      %7151 = vst [vmem:[%s7137] ss:$9 sm:$0xff] %v7081
      %7152 = vst [vmem:[%s7139] ss:$9 sm:$0xff] %v7101
      %7153 = vst [vmem:[%s7141] ss:$9 sm:$0xff] %v7102
      %7154 = vst [vmem:[%s7143] ss:$9 sm:$0xff] %v7103
      %7155 = vst [vmem:[%s7145] ss:$9 sm:$0xff] %v7104
      %7156 = vst [vmem:[%s7147] ss:$9 sm:$0xff] %v7105
      %v7157 = vld [vmem:[#allocation1] sm:$0xff]
      %7158 = vst [vmem:[#allocation1] ss:$9 sm:$0xff] %v7106
      %7159 = vst [vmem:[%s7137] ss:$9 sm:$0xff] %v7107
      %7160 = vst [vmem:[%s7139] ss:$9 sm:$0xff] %v7082
      %7161 = vst [vmem:[%s7141] ss:$9 sm:$0xff] %v7108
      %7162 = vst [vmem:[%s7143] ss:$9 sm:$0xff] %v7109
      %7163 = vst [vmem:[%s7145] ss:$9 sm:$0xff] %v7110
      %7164 = vst [vmem:[%s7147] ss:$9 sm:$0xff] %v7111
      %v7165 = vld [vmem:[#allocation1] sm:$0xff]
      %7166 = vst [vmem:[#allocation1] ss:$9 sm:$0xff] %v7112
      %7167 = vst [vmem:[%s7137] ss:$9 sm:$0xff] %v7113
      %7168 = vst [vmem:[%s7139] ss:$9 sm:$0xff] %v7114
      %7169 = vst [vmem:[%s7141] ss:$9 sm:$0xff] %v7083
      %7170 = vst [vmem:[%s7143] ss:$9 sm:$0xff] %v7115
      %7171 = vst [vmem:[%s7145] ss:$9 sm:$0xff] %v7116
      %7172 = vst [vmem:[%s7147] ss:$9 sm:$0xff] %v7117
      %v7173 = vld [vmem:[#allocation1] sm:$0xff]
      %7174 = vst [vmem:[#allocation1] ss:$9 sm:$0xff] %v7118
      %7175 = vst [vmem:[%s7137] ss:$9 sm:$0xff] %v7119
      %7176 = vst [vmem:[%s7139] ss:$9 sm:$0xff] %v7120
      %7177 = vst [vmem:[%s7141] ss:$9 sm:$0xff] %v7121
      %7178 = vst [vmem:[%s7143] ss:$9 sm:$0xff] %v7084
      %7179 = vst [vmem:[%s7145] ss:$9 sm:$0xff] %v7122
      %7180 = vst [vmem:[%s7147] ss:$9 sm:$0xff] %v7123
      %v7181 = vld [vmem:[#allocation1] sm:$0xff]
      %7182 = vst [vmem:[#allocation1] ss:$9 sm:$0xff] %v7124
      %7183 = vst [vmem:[%s7137] ss:$9 sm:$0xff] %v7125
      %7184 = vst [vmem:[%s7139] ss:$9 sm:$0xff] %v7126
      %7185 = vst [vmem:[%s7141] ss:$9 sm:$0xff] %v7127
      %7186 = vst [vmem:[%s7143] ss:$9 sm:$0xff] %v7128
      %7187 = vst [vmem:[%s7145] ss:$9 sm:$0xff] %v7085
      %7188 = vst [vmem:[%s7147] ss:$9 sm:$0xff] %v7129
      %v7189 = vld [vmem:[#allocation1] sm:$0xff]
      %7190 = vst [vmem:[#allocation1] ss:$9 sm:$0xff] %v7130
      %7191 = vst [vmem:[%s7137] ss:$9 sm:$0xff] %v7131
      %7192 = vst [vmem:[%s7139] ss:$9 sm:$0xff] %v7132
      %7193 = vst [vmem:[%s7141] ss:$9 sm:$0xff] %v7133
      %7194 = vst [vmem:[%s7143] ss:$9 sm:$0xff] %v7134
      %7195 = vst [vmem:[%s7145] ss:$9 sm:$0xff] %v7135
      %7196 = vst [vmem:[%s7147] ss:$9 sm:$0xff] %v7086
      %v7197 = vld [vmem:[#allocation1] sm:$0xff]
      %7205 = vst [vmem:[%s332] sm:$0x7f] %v7149
      %7206 = vst [vmem:[%s332 + $0x8] sm:$0x7f] %v7157
      %7207 = vst [vmem:[%s332 + $0x10] sm:$0x7f] %v7165
      %7208 = vst [vmem:[%s332 + $0x18] sm:$0x7f] %v7173
      %7209 = vst [vmem:[%s332 + $0x20] sm:$0x7f] %v7181
      %7210 = vst [vmem:[%s332 + $0x28] sm:$0x7f] %v7189
      %7211 = vst [vmem:[%s332 + $0x30] sm:$0x7f] %v7197
      %p7212 = scmp.lt.s32.totalorder %s20, 1
      %s7213 = scalar_select %p7212, %s20, 1
      %s7214 = smul.addr %s7213, 7
      %s7215 = smul.addr %s7214, 8
      %s7216 = scalar_lea.vmem %s9, %s7215
      // Predicated region
      $region57: #{reduction_block_a.1} parent=55 // pred_check
        %p7217 = pneg %p232
      $region58: #{reduction_block_a.1} parent=55 // pred_check_branch
        %7219 = sbr.rel (%p7217) target = $region60
      $region59: #{reduction_block_a.1} parent=55 // pred_region
        _
      $region60: #{reduction_block_a.1} parent=55 // pred_fallthru
        _
    $region56: #{reduction_block_a.1} parent=5 // pred_fallthru
      _
    %p7220 = scmp.le.s32.totalorder 2, %s15
    // Predicated region
    $region61: #{reduction_block_a.1} parent=5 // pred_check
      %p7221 = pneg %p7220
    $region62: #{reduction_block_a.1} parent=5 // pred_check_branch
      %7223 = sbr.rel (%p7221) target = $region64
    $region63: #{reduction_block_a.1} parent=5 // pred_region
      %s7224 = ssub.s32 %s15, 2
      // Predicated region
      $region65: #{reduction_block_a.1} parent=63 // pred_check
        %p7225 = pneg %p238
      $region66: #{reduction_block_a.1} parent=63 // pred_check_branch
        %7227 = sbr.rel (%p7225) target = $region68
      $region67: #{reduction_block_a.1} parent=63 // pred_region
        %p7228 = scmp.lt.s32.totalorder %s21, 1
        %s7229 = scalar_select %p7228, %s21, 1
        %s7230 = smul.addr %s7229, 7
        %s7231 = smul.addr %s7230, 8
        %s7232 = scalar_lea.vmem %s9, %s7231
      $region68: #{reduction_block_a.1} parent=63 // pred_fallthru
        _
    $region64: #{reduction_block_a.1} parent=5 // pred_fallthru
      _
  $region6: #{reduction_block_a.1} parent=0 // loop_footer
    %s19 = sadd.s32 1, %s15
  $region7: #{reduction_block_a.1} parent=0 // loop_footer_branch
    %14 = sbr.rel target = $region3
  $region8: #{reduction_block_a.1} parent=0 // loop_exit
    _

</llo_original>
